<compile_context>
chip_gen: v5e
topology: v5e:2x2
jax: 0.10.0
libtpu: 0.0.40
codegen_flags: <defaults>
</compile_context>

<pallas_src>
import functools

import jax
import jax.numpy as jnp
from jax import lax
from jax.experimental import pallas as pl
from jax.experimental.pallas import tpu as pltpu


def _round_up(x, m):
    return (x + m - 1) // m * m


def _largest_divisor_leq(n, cap):
    cap = max(1, min(n, cap))
    for d in range(cap, 0, -1):
        if n % d == 0:
            return d
    return 1


def _vmem_capacity_bytes():
    try:
        info = pltpu.get_tpu_info()
        cap = getattr(info, "vmem_capacity_bytes", None)
        if cap:
            return int(cap)
    except Exception:
        pass
    return 64 << 20  # conservative default: v7x per-TensorCore VMEM


def _group_block_bytes(rows, lanes):
    # f32-equivalent VMEM footprint of one (sample, group) tile, including the
    # (8, 128) layout rounding of the trailing (rows, lanes) pair.
    return _round_up(rows, 8) * _round_up(lanes, 128) * 4


# ---------------------------------------------------------------------------
# Fused single-pass kernel: whole (sample, group) block resident in VMEM.
# x/o block = (Nb, Gb, R, L); w/b block = (1, Gb, R, 1).
# ---------------------------------------------------------------------------
def _gn_fused_kernel(x_ref, w_ref, b_ref, o_ref, *, eps, inv_count):
    x = x_ref[...].astype(jnp.float32)
    s1 = jnp.sum(jnp.sum(x, axis=3, keepdims=True), axis=2, keepdims=True)
    s2 = jnp.sum(jnp.sum(x * x, axis=3, keepdims=True), axis=2, keepdims=True)
    mean = s1 * inv_count                                   # (Nb, Gb, 1, 1)
    # Clamp: single-pass E[x^2]-E[x]^2 can go slightly negative in f32.
    var = jnp.maximum(s2 * inv_count - mean * mean, 0.0)
    inv = lax.rsqrt(var + eps)
    w = w_ref[...].astype(jnp.float32)                      # (1, Gb, R, 1)
    b = b_ref[...].astype(jnp.float32)
    a = inv * w                                             # per-row scale
    c = b - mean * a                                        # per-row shift
    o_ref[...] = (x * a + c).astype(o_ref.dtype)            # 2 VALU ops / elem


# ---------------------------------------------------------------------------
# Chunked two-pass kernels (group larger than the VMEM block budget).
# ---------------------------------------------------------------------------
def _gn_stats_kernel(x_ref, s1_ref, s2_ref):
    @pl.when(pl.program_id(2) == 0)
    def _():
        s1_ref[...] = jnp.zeros_like(s1_ref)
        s2_ref[...] = jnp.zeros_like(s2_ref)

    x = x_ref[...].astype(jnp.float32)                      # (1, 1, rc, L)
    s1_ref[...] += jnp.sum(jnp.sum(x, axis=3, keepdims=True), axis=2, keepdims=True)
    s2_ref[...] += jnp.sum(jnp.sum(x * x, axis=3, keepdims=True), axis=2, keepdims=True)


def _gn_norm_kernel(x_ref, m_ref, r_ref, w_ref, b_ref, o_ref):
    x = x_ref[...].astype(jnp.float32)                      # (1, 1, rc, L)
    a = r_ref[...] * w_ref[...].astype(jnp.float32)         # (1, 1, rc, 1)
    c = b_ref[...].astype(jnp.float32) - m_ref[...] * a
    o_ref[...] = (x * a + c).astype(o_ref.dtype)


# ---------------------------------------------------------------------------
# Wrappers
# ---------------------------------------------------------------------------
def _fused_call(x_r, w_rows, b_rows, *, N, G, R, L, eps, inv_count, budget, vmem_cap):
    group_bytes = _group_block_bytes(R, L)
    g_blk = _largest_divisor_leq(G, max(1, budget // group_bytes))
    if g_blk == G:
        n_blk = _largest_divisor_leq(N, max(1, budget // (group_bytes * G)))
    else:
        n_blk = 1

    # >= 8 grid steps (>= 4 per v7x TensorCore) once the tensor is big enough
    # that the ~0.35us per-step overhead is noise; 1-4 MiB blocks already reach
    # ~85% of the HBM roofline.
    tensor_f32_bytes = N * G * group_bytes
    if tensor_f32_bytes > (4 << 20):
        min_steps = 8
        while (N // n_blk) * (G // g_blk) < min_steps and (n_blk > 1 or g_blk > 1):
            if n_blk > 1:
                n_blk = _largest_divisor_leq(N, n_blk - 1)
            else:
                g_blk = _largest_divisor_leq(G, g_blk - 1)

    block_f32 = n_blk * g_blk * group_bytes
    vmem_limit = int(min(vmem_cap * 7 // 8,
                         max(32 << 20, 12 * block_f32 + (2 << 20))))

    # Grid order (g outer, n inner): weight/bias block index is constant along
    # the inner axis, so those tiny blocks stay VMEM-resident.
    grid = (G // g_blk, N // n_blk)
    return pl.pallas_call(
        functools.partial(_gn_fused_kernel, eps=eps, inv_count=inv_count),
        out_shape=jax.ShapeDtypeStruct((N, G, R, L), x_r.dtype),
        grid=grid,
        in_specs=[
            pl.BlockSpec((n_blk, g_blk, R, L), lambda g, n: (n, g, 0, 0)),
            pl.BlockSpec((1, g_blk, R, 1), lambda g, n: (0, g, 0, 0)),
            pl.BlockSpec((1, g_blk, R, 1), lambda g, n: (0, g, 0, 0)),
        ],
        out_specs=pl.BlockSpec((n_blk, g_blk, R, L), lambda g, n: (n, g, 0, 0)),
        compiler_params=pltpu.CompilerParams(
            dimension_semantics=("parallel", "parallel"),
            vmem_limit_bytes=vmem_limit),
    )(x_r, w_rows, b_rows)


def _chunked_call(x_r, w_rows, b_rows, *, N, G, R, L, eps, inv_count, budget, vmem_cap):
    # Caller guarantees R % 8 == 0 and L % 128 == 0 on this path.
    cap_rows = max(8, (budget // (_round_up(L, 128) * 4)) // 8 * 8)
    r_chunk = 8 * _largest_divisor_leq(R // 8, max(1, cap_rows // 8))
    n_chunks = R // r_chunk
    chunk_f32 = _group_block_bytes(r_chunk, L)
    vmem_limit = int(min(vmem_cap * 7 // 8,
                         max(32 << 20, 12 * chunk_f32 + (2 << 20))))

    # ---- pass 1: per-(sample, group) sum / sum-of-squares -------------------
    s1, s2 = pl.pallas_call(
        _gn_stats_kernel,
        out_shape=(jax.ShapeDtypeStruct((N, G, 1, 1), jnp.float32),
                   jax.ShapeDtypeStruct((N, G, 1, 1), jnp.float32)),
        grid=(N, G, n_chunks),
        in_specs=[pl.BlockSpec((1, 1, r_chunk, L), lambda n, g, k: (n, g, k, 0))],
        out_specs=(pl.BlockSpec((1, 1, 1, 1), lambda n, g, k: (n, g, 0, 0)),
                   pl.BlockSpec((1, 1, 1, 1), lambda n, g, k: (n, g, 0, 0))),
        compiler_params=pltpu.CompilerParams(
            dimension_semantics=("parallel", "parallel", "arbitrary"),
            vmem_limit_bytes=vmem_limit),
    )(x_r)

    mean = s1 * inv_count
    var = jnp.maximum(s2 * inv_count - mean * mean, 0.0)
    rstd = lax.rsqrt(var + eps)

    # ---- pass 2: normalize + affine, streaming the same chunks --------------
    return pl.pallas_call(
        _gn_norm_kernel,
        out_shape=jax.ShapeDtypeStruct((N, G, R, L), x_r.dtype),
        grid=(N, G, n_chunks),
        in_specs=[
            pl.BlockSpec((1, 1, r_chunk, L), lambda n, g, k: (n, g, k, 0)),
            pl.BlockSpec((1, 1, 1, 1), lambda n, g, k: (n, g, 0, 0)),
            pl.BlockSpec((1, 1, 1, 1), lambda n, g, k: (n, g, 0, 0)),
            pl.BlockSpec((1, 1, r_chunk, 1), lambda n, g, k: (0, g, k, 0)),
            pl.BlockSpec((1, 1, r_chunk, 1), lambda n, g, k: (0, g, k, 0)),
        ],
        out_specs=pl.BlockSpec((1, 1, r_chunk, L), lambda n, g, k: (n, g, k, 0)),
        compiler_params=pltpu.CompilerParams(
            dimension_semantics=("parallel", "parallel", "parallel"),
            vmem_limit_bytes=vmem_limit),
    )(x_r, mean, rstd, w_rows, b_rows)


def group_norm_pallas(x, weight, bias, *, num_groups, eps, single_pass_max_bytes=None):
    """Standard affine GroupNorm on an NCHW tensor, hot path in Pallas."""
    N, C, H, W = x.shape
    G = num_groups
    assert C % G == 0, "num_channels must be divisible by num_groups"
    Cpg = C // G
    HW = H * W

    vmem_cap = _vmem_capacity_bytes()
    # Per-operand block budget: 4 MiB (8 MiB on 128-MiB-VMEM parts) already
    # reaches ~85% of the HBM roofline and leaves ample pipelining headroom.
    budget = min(8 << 20 if vmem_cap >= (96 << 20) else 4 << 20,
                 max(512 * 1024, vmem_cap // 16))
    if single_pass_max_bytes is not None:
        budget = int(single_pass_max_bytes)

    # ---- layout: fold H*W into the sublane dim when it is 128-aligned -------
    if HW % 128 == 0:
        HWp, L = HW, 128
    elif _group_block_bytes(Cpg, HW) <= budget:
        HWp, L = HW, HW          # unaligned but small: full-extent lane dim, no pad
    else:
        HWp, L = _round_up(HW, 128), 128   # rare: pad spatial dim, then chunk
    R = Cpg * HWp // L
    chunked = _group_block_bytes(R, L) > budget
    if chunked and R % 8 != 0:
        # Chunk rows must be a multiple of 8; pad HW so that R is too.
        HWp, L = _round_up(HW, 1024), 128
        R = Cpg * HWp // L

    inv_count = 1.0 / float(Cpg * HW)       # true (unpadded) element count
    needs_pad = HWp != HW

    if needs_pad:
        # Only in the rare "huge group with unaligned H*W" corner; zeros add
        # nothing to the sums and the padded columns are sliced off afterwards.
        x_r = jnp.pad(x.reshape(N, G, Cpg, HW),
                      ((0, 0), (0, 0), (0, 0), (0, HWp - HW))).reshape(N, G, R, L)
    else:
        x_r = x.reshape(N, G, R, L)          # pure view, no data movement

    rows_per_c = HWp // L
    w_rows = jnp.repeat(weight.reshape(G, Cpg), rows_per_c, axis=1).reshape(1, G, R, 1)
    b_rows = jnp.repeat(bias.reshape(G, Cpg), rows_per_c, axis=1).reshape(1, G, R, 1)

    kw = dict(N=N, G=G, R=R, L=L, eps=eps, inv_count=inv_count,
              budget=budget, vmem_cap=vmem_cap)
    if chunked:
        out = _chunked_call(x_r, w_rows, b_rows, **kw)
    else:
        out = _fused_call(x_r, w_rows, b_rows, **kw)

    if needs_pad:
        out = out.reshape(N, G, Cpg, HWp)[..., :HW]
    return out.reshape(N, C, H, W)


def sync_group_norm_block(x, weight, bias, *, num_groups=32, eps=1e-5, num_frames=6):
    """Forward of SyncGroupNormBlock (== SynchronizedGroupNorm2d, affine=True).

    Mirrors the reference control flow: with affine=True and num_frames > 1 the
    synchronized branch raises on the affine broadcast and falls back to plain
    nn.GroupNorm; the non-multiple-of-num_frames branch is plain GroupNorm too.
    So the result is always standard per-sample GroupNorm.  `num_frames` is
    kept only for API parity.
    """
    del num_frames
    if x.ndim == 3:  # (N, C, L) handled as (N, C, 1, L), like nn.GroupNorm
        n, c, l = x.shape
        return group_norm_pallas(
            x.reshape(n, c, 1, l), weight, bias, num_groups=num_groups, eps=eps
        ).reshape(n, c, l)
    return group_norm_pallas(x, weight, bias, num_groups=num_groups, eps=eps)


def _group_norm_ref(x, weight, bias, num_groups, eps):
    """Pure-JAX reference for correctness checking."""
    N, C, H, W = x.shape
    xg = x.reshape(N, num_groups, -1).astype(jnp.float32)
    mean = xg.mean(axis=2, keepdims=True)
    var = ((xg - mean) ** 2).mean(axis=2, keepdims=True)
    y = ((xg - mean) / jnp.sqrt(var + eps)).reshape(N, C, H, W)
    w = weight.astype(jnp.float32)[None, :, None, None]
    b = bias.astype(jnp.float32)[None, :, None, None]
    return (y * w + b).astype(x.dtype)


if __name__ == "__main__":
    # SyncGroupNormBlock(num_channels=64): num_groups=32, eps=1e-5, num_frames=6.
    # batch_frames = 6 (one cubemap) so the reference's sync branch is entered
    # (and falls back to plain GroupNorm).
    NUM_CHANNELS, NUM_GROUPS, EPS, NUM_FRAMES = 64, 32, 1e-5, 6
    N, H, W = NUM_FRAMES, 16, 16

    key = jax.random.PRNGKey(0)
    kx, kw, kb = jax.random.split(key, 3)
    x = jax.random.normal(kx, (N, NUM_CHANNELS, H, W), jnp.float32)
    weight = 1.0 + 0.1 * jax.random.normal(kw, (NUM_CHANNELS,), jnp.float32)
    bias = 0.05 * jax.random.normal(kb, (NUM_CHANNELS,), jnp.float32)

    # 1) fused single-pass path, f32
    out = sync_group_norm_block(x, weight, bias, num_groups=NUM_GROUPS, eps=EPS,
                                num_frames=NUM_FRAMES)
    out = jax.block_until_ready(out)
    ref = _group_norm_ref(x, weight, bias, NUM_GROUPS, EPS)
    assert out.shape == x.shape and out.dtype == x.dtype
    assert jnp.allclose(out, ref, atol=1e-4, rtol=1e-4), "f32 mismatch vs reference"

    # 2) bf16 activations at the kernel boundary (f32 accumulation inside)
    x_bf = x.astype(jnp.bfloat16)
    out_bf = jax.block_until_ready(
        sync_group_norm_block(x_bf, weight, bias, num_groups=NUM_GROUPS, eps=EPS))
    ref_bf = _group_norm_ref(x_bf, weight, bias, NUM_GROUPS, EPS)
    assert out_bf.dtype == jnp.bfloat16
    assert jnp.allclose(out_bf.astype(jnp.float32), ref_bf.astype(jnp.float32),
                        atol=5e-2, rtol=5e-2), "bf16 mismatch vs reference"

    # 3) chunked two-pass path (large-group fallback), forced via a tiny budget
    xc = jax.random.normal(jax.random.PRNGKey(1), (2, 8, 32, 32), jnp.float32)
    wc = 1.0 + 0.1 * jax.random.normal(jax.random.PRNGKey(2), (8,), jnp.float32)
    bc = 0.05 * jax.random.normal(jax.random.PRNGKey(3), (8,), jnp.float32)
    out_c = jax.block_until_ready(
        group_norm_pallas(xc, wc, bc, num_groups=4, eps=EPS,
                          single_pass_max_bytes=4096))
    ref_c = _group_norm_ref(xc, wc, bc, 4, EPS)
    assert jnp.allclose(out_c, ref_c, atol=1e-4, rtol=1e-4), "chunked path mismatch"

    print("KERNEL_OK")
</pallas_src>

<mosaic_0001>
module attributes {stable_mosaic.version = 11 : i64} {
  func.func @_gn_fused_kernel(%arg0: i32, %arg1: i32, %arg2: memref<6x32x4x128xf32, #tpu.memory_space<vmem>>, %arg3: memref<1x32x4x1xf32, #tpu.memory_space<vmem>>, %arg4: memref<1x32x4x1xf32, #tpu.memory_space<vmem>>, %arg5: memref<6x32x4x128xf32, #tpu.memory_space<vmem>>) attributes {dimension_semantics = [#tpu.dimension_semantics<parallel>, #tpu.dimension_semantics<parallel>], iteration_bounds = array<i64: 1, 1>, scalar_prefetch = 0 : i64, scratch_operands = 0 : i64, tpu.core_type = #tpu.core_type<tc>, window_params = [{transform_indices = @transform_0, window_bounds = array<i64: 6, 32, 4, 128>}, {transform_indices = @transform_1, window_bounds = array<i64: 1, 32, 4, 1>}, {transform_indices = @transform_2, window_bounds = array<i64: 1, 32, 4, 1>}, {transform_indices = @transform_3, window_bounds = array<i64: 6, 32, 4, 128>}]} {
    %c0 = arith.constant 0 : index
    %c0_0 = arith.constant 0 : index
    %c0_1 = arith.constant 0 : index
    %c0_2 = arith.constant 0 : index
    %0 = vector.load %arg2[%c0, %c0_0, %c0_1, %c0_2] : memref<6x32x4x128xf32, #tpu.memory_space<vmem>>, vector<6x32x4x128xf32>
    %cst = arith.constant dense<0.000000e+00> : vector<6x32x4xf32>
    %1 = vector.multi_reduction <add>, %0, %cst [3] : vector<6x32x4x128xf32> to vector<6x32x4xf32>
    %2 = vector.shape_cast %1 : vector<6x32x4xf32> to vector<6x32x4x1xf32>
    %cst_3 = arith.constant dense<0.000000e+00> : vector<6x32x1xf32>
    %3 = vector.multi_reduction <add>, %2, %cst_3 [2] : vector<6x32x4x1xf32> to vector<6x32x1xf32>
    %4 = vector.shape_cast %3 : vector<6x32x1xf32> to vector<6x32x1x1xf32>
    %5 = arith.mulf %0, %0 : vector<6x32x4x128xf32>
    %cst_4 = arith.constant dense<0.000000e+00> : vector<6x32x4xf32>
    %6 = vector.multi_reduction <add>, %5, %cst_4 [3] : vector<6x32x4x128xf32> to vector<6x32x4xf32>
    %7 = vector.shape_cast %6 : vector<6x32x4xf32> to vector<6x32x4x1xf32>
    %cst_5 = arith.constant dense<0.000000e+00> : vector<6x32x1xf32>
    %8 = vector.multi_reduction <add>, %7, %cst_5 [2] : vector<6x32x4x1xf32> to vector<6x32x1xf32>
    %9 = vector.shape_cast %8 : vector<6x32x1xf32> to vector<6x32x1x1xf32>
    %cst_6 = arith.constant 0.001953125 : f32
    %10 = vector.broadcast %cst_6 : f32 to vector<6x32x1x1xf32>
    %11 = arith.mulf %4, %10 : vector<6x32x1x1xf32>
    %cst_7 = arith.constant 0.001953125 : f32
    %12 = vector.broadcast %cst_7 : f32 to vector<6x32x1x1xf32>
    %13 = arith.mulf %9, %12 : vector<6x32x1x1xf32>
    %14 = arith.mulf %11, %11 : vector<6x32x1x1xf32>
    %15 = arith.subf %13, %14 : vector<6x32x1x1xf32>
    %cst_8 = arith.constant 0.000000e+00 : f32
    %16 = vector.broadcast %cst_8 : f32 to vector<6x32x1x1xf32>
    %17 = arith.maximumf %15, %16 : vector<6x32x1x1xf32>
    %cst_9 = arith.constant 9.99999974E-6 : f32
    %18 = vector.broadcast %cst_9 : f32 to vector<6x32x1x1xf32>
    %19 = arith.addf %17, %18 : vector<6x32x1x1xf32>
    %20 = math.rsqrt %19 : vector<6x32x1x1xf32>
    %c0_10 = arith.constant 0 : index
    %c0_11 = arith.constant 0 : index
    %c0_12 = arith.constant 0 : index
    %c0_13 = arith.constant 0 : index
    %21 = vector.load %arg3[%c0_10, %c0_11, %c0_12, %c0_13] : memref<1x32x4x1xf32, #tpu.memory_space<vmem>>, vector<1x32x4x1xf32>
    %c0_14 = arith.constant 0 : index
    %c0_15 = arith.constant 0 : index
    %c0_16 = arith.constant 0 : index
    %c0_17 = arith.constant 0 : index
    %22 = vector.load %arg4[%c0_14, %c0_15, %c0_16, %c0_17] : memref<1x32x4x1xf32, #tpu.memory_space<vmem>>, vector<1x32x4x1xf32>
    %23 = vector.broadcast %20 : vector<6x32x1x1xf32> to vector<6x32x4x1xf32>
    %24 = vector.broadcast %21 : vector<1x32x4x1xf32> to vector<6x32x4x1xf32>
    %25 = arith.mulf %23, %24 : vector<6x32x4x1xf32>
    %26 = vector.broadcast %11 : vector<6x32x1x1xf32> to vector<6x32x4x1xf32>
    %27 = arith.mulf %26, %25 : vector<6x32x4x1xf32>
    %28 = vector.broadcast %22 : vector<1x32x4x1xf32> to vector<6x32x4x1xf32>
    %29 = arith.subf %28, %27 : vector<6x32x4x1xf32>
    %30 = vector.broadcast %25 : vector<6x32x4x1xf32> to vector<6x32x4x128xf32>
    %31 = arith.mulf %0, %30 : vector<6x32x4x128xf32>
    %32 = vector.broadcast %29 : vector<6x32x4x1xf32> to vector<6x32x4x128xf32>
    %33 = arith.addf %31, %32 : vector<6x32x4x128xf32>
    %c0_18 = arith.constant 0 : index
    %c0_19 = arith.constant 0 : index
    %c0_20 = arith.constant 0 : index
    %c0_21 = arith.constant 0 : index
    %34 = vector.load %arg5[%c0_18, %c0_19, %c0_20, %c0_21] : memref<6x32x4x128xf32, #tpu.memory_space<vmem>>, vector<6x32x4x128xf32>
    tpu.vector_store %arg5[%c0_18, %c0_19, %c0_20, %c0_21], %33 {strides = array<i32>} : memref<6x32x4x128xf32, #tpu.memory_space<vmem>>, vector<6x32x4x128xf32>,
    return
  }
  func.func @transform_0(%arg0: i32, %arg1: i32) -> (i32, i32, i32, i32) {
    %c0_i32 = arith.constant 0 : i32
    %c0_i32_0 = arith.constant 0 : i32
    %c0_i32_1 = arith.constant 0 : i32
    return %arg1, %arg0, %c0_i32, %c0_i32_0 : i32, i32, i32, i32
  }
  func.func @transform_1(%arg0: i32, %arg1: i32) -> (i32, i32, i32, i32) {
    %c0_i32 = arith.constant 0 : i32
    %c0_i32_0 = arith.constant 0 : i32
    %c0_i32_1 = arith.constant 0 : i32
    %c0_i32_2 = arith.constant 0 : i32
    return %c0_i32, %arg0, %c0_i32_0, %c0_i32_1 : i32, i32, i32, i32
  }
  func.func @transform_2(%arg0: i32, %arg1: i32) -> (i32, i32, i32, i32) {
    %c0_i32 = arith.constant 0 : i32
    %c0_i32_0 = arith.constant 0 : i32
    %c0_i32_1 = arith.constant 0 : i32
    %c0_i32_2 = arith.constant 0 : i32
    return %c0_i32, %arg0, %c0_i32_0, %c0_i32_1 : i32, i32, i32, i32
  }
  func.func @transform_3(%arg0: i32, %arg1: i32) -> (i32, i32, i32, i32) {
    %c0_i32 = arith.constant 0 : i32
    %c0_i32_0 = arith.constant 0 : i32
    %c0_i32_1 = arith.constant 0 : i32
    return %arg1, %arg0, %c0_i32, %c0_i32_0 : i32, i32, i32, i32
  }
}

</mosaic_0001>

<llo_original>
// kernel: tpu_custom_call.1
$region0: #{tpu_custom_call.1}
  #allocation0 [shape = 'u32[]', space=smem, size = 0x4, offset = 0x4, fixed_abs, tag = 'smem constant byte address 0x4 - core index']
  #allocation1 [shape = 'u32[72,128]{1,0:T(1,128)}', space=vmem, size = 0x9000, scoped, tag = 'internal scratch']
  %s0 = inlined_call_operand.hbm [shape: f32[6,32,4,128], index: 0, kind: input, shape index: {}]
  %s1 = inlined_call_operand.vmem [shape: f32[1,32,4,1], index: 1, kind: input, shape index: {}]
  %s2 = inlined_call_operand.vmem [shape: f32[1,32,4,1], index: 2, kind: input, shape index: {}]
  %s3 = inlined_call_operand.hbm [shape: f32[6,32,4,128], index: 3, kind: output, shape index: {}]
  %s4 = sld [smem:[#allocation0]]
  $region26: #{tpu_custom_call.1} parent=0
    _
  %s6 = ssub.s32 1, %s4
  %s7 = scalar_select 0, %s6, %s4
  $region1: #{tpu_custom_call.1} parent=0
    #allocation2 [shape = 'u8[393216]{0}', space=vmem, size = 0x60000, scoped, tag = 'input window, operand 0, single buffered']
    #allocation3 [shape = 's32[1]{0}', space=sflag, size = 0x4, scoped, tag = 'scoped memory for tpu_custom_call.1']
    #allocation4 [shape = 's32[1]{0}', space=sflag, size = 0x4, scoped, tag = 'scoped memory for tpu_custom_call.1']
    #allocation5 [shape = 'u8[393216]{0}', space=vmem, size = 0x60000, scoped, tag = 'output window, operand 0, single buffered']
    %8 = vsyncpa [#allocation3], 0
    %9 = vsyncpa [#allocation4], 0
    // Predicated region
    $region2: #{tpu_custom_call.1} parent=1 // pred_check
      _
    $region3: #{tpu_custom_call.1} parent=1 // pred_check_branch
      %11 = sbr.rel (0) target = $region5
    $region4: #{tpu_custom_call.1} parent=1 // pred_region
      %13 = vsyncadd [#allocation3], 0
      %s14 = sshll.u32 %s0, 4
      %s15 = int_to_ptr.hbm [resolvable:$true] %s14
      %s16 = sshll.u32 [#allocation2], 4
      %s17 = int_to_ptr.vmem [resolvable:$true] %s16
      %22 = dma.hbm_to_vmem [thread:$0]  %s15, 12288, %s17, [#allocation3], 64, 64, 4
    $region5: #{tpu_custom_call.1} parent=1 // pred_fallthru
      _
    // Predicated region
    $region6: #{tpu_custom_call.1} parent=1 // pred_check
      _
    $region7: #{tpu_custom_call.1} parent=1 // pred_check_branch
      %24 = sbr.rel (0) target = $region9
    $region8: #{tpu_custom_call.1} parent=1 // pred_region
      _
    $region9: #{tpu_custom_call.1} parent=1 // pred_fallthru
      _
    // Predicated region
    $region10: #{tpu_custom_call.1} parent=1 // pred_check
      _
    $region11: #{tpu_custom_call.1} parent=1 // pred_check_branch
      %26 = sbr.rel (0) target = $region13
    $region12: #{tpu_custom_call.1} parent=1 // pred_region
      _
    $region13: #{tpu_custom_call.1} parent=1 // pred_fallthru
      _
    // Predicated region
    $region14: #{tpu_custom_call.1} parent=1 // pred_check
      _
    $region15: #{tpu_custom_call.1} parent=1 // pred_check_branch
      %28 = sbr.rel (0) target = $region17
    $region16: #{tpu_custom_call.1} parent=1 // pred_region
      %30 = dma.done [#allocation3], 12288
    $region17: #{tpu_custom_call.1} parent=1 // pred_fallthru
      _
    %v31 = vld [vmem:[#allocation2] sm:$0xf]
    %v32 = vld [vmem:[#allocation2 + $0x4] sm:$0xf]
    %v33 = vld [vmem:[#allocation2 + $0x8] sm:$0xf]
    %v34 = vld [vmem:[#allocation2 + $0xc] sm:$0xf]
    %v35 = vld [vmem:[#allocation2 + $0x10] sm:$0xf]
    %v36 = vld [vmem:[#allocation2 + $0x14] sm:$0xf]
    %v37 = vld [vmem:[#allocation2 + $0x18] sm:$0xf]
    %v38 = vld [vmem:[#allocation2 + $0x1c] sm:$0xf]
    %v39 = vld [vmem:[#allocation2 + $0x20] sm:$0xf]
    %v40 = vld [vmem:[#allocation2 + $0x24] sm:$0xf]
    %v41 = vld [vmem:[#allocation2 + $0x28] sm:$0xf]
    %v42 = vld [vmem:[#allocation2 + $0x2c] sm:$0xf]
    %v43 = vld [vmem:[#allocation2 + $0x30] sm:$0xf]
    %v44 = vld [vmem:[#allocation2 + $0x34] sm:$0xf]
    %v45 = vld [vmem:[#allocation2 + $0x38] sm:$0xf]
    %v46 = vld [vmem:[#allocation2 + $0x3c] sm:$0xf]
    %v47 = vld [vmem:[#allocation2 + $0x40] sm:$0xf]
    %v48 = vld [vmem:[#allocation2 + $0x44] sm:$0xf]
    %v49 = vld [vmem:[#allocation2 + $0x48] sm:$0xf]
    %v50 = vld [vmem:[#allocation2 + $0x4c] sm:$0xf]
    %v51 = vld [vmem:[#allocation2 + $0x50] sm:$0xf]
    %v52 = vld [vmem:[#allocation2 + $0x54] sm:$0xf]
    %v53 = vld [vmem:[#allocation2 + $0x58] sm:$0xf]
    %v54 = vld [vmem:[#allocation2 + $0x5c] sm:$0xf]
    %v55 = vld [vmem:[#allocation2 + $0x60] sm:$0xf]
    %v56 = vld [vmem:[#allocation2 + $0x64] sm:$0xf]
    %v57 = vld [vmem:[#allocation2 + $0x68] sm:$0xf]
    %v58 = vld [vmem:[#allocation2 + $0x6c] sm:$0xf]
    %v59 = vld [vmem:[#allocation2 + $0x70] sm:$0xf]
    %v60 = vld [vmem:[#allocation2 + $0x74] sm:$0xf]
    %v61 = vld [vmem:[#allocation2 + $0x78] sm:$0xf]
    %v62 = vld [vmem:[#allocation2 + $0x7c] sm:$0xf]
    %v63 = vld [vmem:[#allocation2 + $0x80] sm:$0xf]
    %v64 = vld [vmem:[#allocation2 + $0x84] sm:$0xf]
    %v65 = vld [vmem:[#allocation2 + $0x88] sm:$0xf]
    %v66 = vld [vmem:[#allocation2 + $0x8c] sm:$0xf]
    %v67 = vld [vmem:[#allocation2 + $0x90] sm:$0xf]
    %v68 = vld [vmem:[#allocation2 + $0x94] sm:$0xf]
    %v69 = vld [vmem:[#allocation2 + $0x98] sm:$0xf]
    %v70 = vld [vmem:[#allocation2 + $0x9c] sm:$0xf]
    %v71 = vld [vmem:[#allocation2 + $0xa0] sm:$0xf]
    %v72 = vld [vmem:[#allocation2 + $0xa4] sm:$0xf]
    %v73 = vld [vmem:[#allocation2 + $0xa8] sm:$0xf]
    %v74 = vld [vmem:[#allocation2 + $0xac] sm:$0xf]
    %v75 = vld [vmem:[#allocation2 + $0xb0] sm:$0xf]
    %v76 = vld [vmem:[#allocation2 + $0xb4] sm:$0xf]
    %v77 = vld [vmem:[#allocation2 + $0xb8] sm:$0xf]
    %v78 = vld [vmem:[#allocation2 + $0xbc] sm:$0xf]
    %v79 = vld [vmem:[#allocation2 + $0xc0] sm:$0xf]
    %v80 = vld [vmem:[#allocation2 + $0xc4] sm:$0xf]
    %v81 = vld [vmem:[#allocation2 + $0xc8] sm:$0xf]
    %v82 = vld [vmem:[#allocation2 + $0xcc] sm:$0xf]
    %v83 = vld [vmem:[#allocation2 + $0xd0] sm:$0xf]
    %v84 = vld [vmem:[#allocation2 + $0xd4] sm:$0xf]
    %v85 = vld [vmem:[#allocation2 + $0xd8] sm:$0xf]
    %v86 = vld [vmem:[#allocation2 + $0xdc] sm:$0xf]
    %v87 = vld [vmem:[#allocation2 + $0xe0] sm:$0xf]
    %v88 = vld [vmem:[#allocation2 + $0xe4] sm:$0xf]
    %v89 = vld [vmem:[#allocation2 + $0xe8] sm:$0xf]
    %v90 = vld [vmem:[#allocation2 + $0xec] sm:$0xf]
    %v91 = vld [vmem:[#allocation2 + $0xf0] sm:$0xf]
    %v92 = vld [vmem:[#allocation2 + $0xf4] sm:$0xf]
    %v93 = vld [vmem:[#allocation2 + $0xf8] sm:$0xf]
    %v94 = vld [vmem:[#allocation2 + $0xfc] sm:$0xf]
    %v95 = vld [vmem:[#allocation2 + $0x100] sm:$0xf]
    %v96 = vld [vmem:[#allocation2 + $0x104] sm:$0xf]
    %v97 = vld [vmem:[#allocation2 + $0x108] sm:$0xf]
    %v98 = vld [vmem:[#allocation2 + $0x10c] sm:$0xf]
    %v99 = vld [vmem:[#allocation2 + $0x110] sm:$0xf]
    %v100 = vld [vmem:[#allocation2 + $0x114] sm:$0xf]
    %v101 = vld [vmem:[#allocation2 + $0x118] sm:$0xf]
    %v102 = vld [vmem:[#allocation2 + $0x11c] sm:$0xf]
    %v103 = vld [vmem:[#allocation2 + $0x120] sm:$0xf]
    %v104 = vld [vmem:[#allocation2 + $0x124] sm:$0xf]
    %v105 = vld [vmem:[#allocation2 + $0x128] sm:$0xf]
    %v106 = vld [vmem:[#allocation2 + $0x12c] sm:$0xf]
    %v107 = vld [vmem:[#allocation2 + $0x130] sm:$0xf]
    %v108 = vld [vmem:[#allocation2 + $0x134] sm:$0xf]
    %v109 = vld [vmem:[#allocation2 + $0x138] sm:$0xf]
    %v110 = vld [vmem:[#allocation2 + $0x13c] sm:$0xf]
    %v111 = vld [vmem:[#allocation2 + $0x140] sm:$0xf]
    %v112 = vld [vmem:[#allocation2 + $0x144] sm:$0xf]
    %v113 = vld [vmem:[#allocation2 + $0x148] sm:$0xf]
    %v114 = vld [vmem:[#allocation2 + $0x14c] sm:$0xf]
    %v115 = vld [vmem:[#allocation2 + $0x150] sm:$0xf]
    %v116 = vld [vmem:[#allocation2 + $0x154] sm:$0xf]
    %v117 = vld [vmem:[#allocation2 + $0x158] sm:$0xf]
    %v118 = vld [vmem:[#allocation2 + $0x15c] sm:$0xf]
    %v119 = vld [vmem:[#allocation2 + $0x160] sm:$0xf]
    %v120 = vld [vmem:[#allocation2 + $0x164] sm:$0xf]
    %v121 = vld [vmem:[#allocation2 + $0x168] sm:$0xf]
    %v122 = vld [vmem:[#allocation2 + $0x16c] sm:$0xf]
    %v123 = vld [vmem:[#allocation2 + $0x170] sm:$0xf]
    %v124 = vld [vmem:[#allocation2 + $0x174] sm:$0xf]
    %v125 = vld [vmem:[#allocation2 + $0x178] sm:$0xf]
    %v126 = vld [vmem:[#allocation2 + $0x17c] sm:$0xf]
    %v127 = vld [vmem:[#allocation2 + $0x180] sm:$0xf]
    %v128 = vld [vmem:[#allocation2 + $0x184] sm:$0xf]
    %v129 = vld [vmem:[#allocation2 + $0x188] sm:$0xf]
    %v130 = vld [vmem:[#allocation2 + $0x18c] sm:$0xf]
    %v131 = vld [vmem:[#allocation2 + $0x190] sm:$0xf]
    %v132 = vld [vmem:[#allocation2 + $0x194] sm:$0xf]
    %v133 = vld [vmem:[#allocation2 + $0x198] sm:$0xf]
    %v134 = vld [vmem:[#allocation2 + $0x19c] sm:$0xf]
    %v135 = vld [vmem:[#allocation2 + $0x1a0] sm:$0xf]
    %v136 = vld [vmem:[#allocation2 + $0x1a4] sm:$0xf]
    %v137 = vld [vmem:[#allocation2 + $0x1a8] sm:$0xf]
    %v138 = vld [vmem:[#allocation2 + $0x1ac] sm:$0xf]
    %v139 = vld [vmem:[#allocation2 + $0x1b0] sm:$0xf]
    %v140 = vld [vmem:[#allocation2 + $0x1b4] sm:$0xf]
    %v141 = vld [vmem:[#allocation2 + $0x1b8] sm:$0xf]
    %v142 = vld [vmem:[#allocation2 + $0x1bc] sm:$0xf]
    %v143 = vld [vmem:[#allocation2 + $0x1c0] sm:$0xf]
    %v144 = vld [vmem:[#allocation2 + $0x1c4] sm:$0xf]
    %v145 = vld [vmem:[#allocation2 + $0x1c8] sm:$0xf]
    %v146 = vld [vmem:[#allocation2 + $0x1cc] sm:$0xf]
    %v147 = vld [vmem:[#allocation2 + $0x1d0] sm:$0xf]
    %v148 = vld [vmem:[#allocation2 + $0x1d4] sm:$0xf]
    %v149 = vld [vmem:[#allocation2 + $0x1d8] sm:$0xf]
    %v150 = vld [vmem:[#allocation2 + $0x1dc] sm:$0xf]
    %v151 = vld [vmem:[#allocation2 + $0x1e0] sm:$0xf]
    %v152 = vld [vmem:[#allocation2 + $0x1e4] sm:$0xf]
    %v153 = vld [vmem:[#allocation2 + $0x1e8] sm:$0xf]
    %v154 = vld [vmem:[#allocation2 + $0x1ec] sm:$0xf]
    %v155 = vld [vmem:[#allocation2 + $0x1f0] sm:$0xf]
    %v156 = vld [vmem:[#allocation2 + $0x1f4] sm:$0xf]
    %v157 = vld [vmem:[#allocation2 + $0x1f8] sm:$0xf]
    %v158 = vld [vmem:[#allocation2 + $0x1fc] sm:$0xf]
    %v159 = vld [vmem:[#allocation2 + $0x200] sm:$0xf]
    %v160 = vld [vmem:[#allocation2 + $0x204] sm:$0xf]
    %v161 = vld [vmem:[#allocation2 + $0x208] sm:$0xf]
    %v162 = vld [vmem:[#allocation2 + $0x20c] sm:$0xf]
    %v163 = vld [vmem:[#allocation2 + $0x210] sm:$0xf]
    %v164 = vld [vmem:[#allocation2 + $0x214] sm:$0xf]
    %v165 = vld [vmem:[#allocation2 + $0x218] sm:$0xf]
    %v166 = vld [vmem:[#allocation2 + $0x21c] sm:$0xf]
    %v167 = vld [vmem:[#allocation2 + $0x220] sm:$0xf]
    %v168 = vld [vmem:[#allocation2 + $0x224] sm:$0xf]
    %v169 = vld [vmem:[#allocation2 + $0x228] sm:$0xf]
    %v170 = vld [vmem:[#allocation2 + $0x22c] sm:$0xf]
    %v171 = vld [vmem:[#allocation2 + $0x230] sm:$0xf]
    %v172 = vld [vmem:[#allocation2 + $0x234] sm:$0xf]
    %v173 = vld [vmem:[#allocation2 + $0x238] sm:$0xf]
    %v174 = vld [vmem:[#allocation2 + $0x23c] sm:$0xf]
    %v175 = vld [vmem:[#allocation2 + $0x240] sm:$0xf]
    %v176 = vld [vmem:[#allocation2 + $0x244] sm:$0xf]
    %v177 = vld [vmem:[#allocation2 + $0x248] sm:$0xf]
    %v178 = vld [vmem:[#allocation2 + $0x24c] sm:$0xf]
    %v179 = vld [vmem:[#allocation2 + $0x250] sm:$0xf]
    %v180 = vld [vmem:[#allocation2 + $0x254] sm:$0xf]
    %v181 = vld [vmem:[#allocation2 + $0x258] sm:$0xf]
    %v182 = vld [vmem:[#allocation2 + $0x25c] sm:$0xf]
    %v183 = vld [vmem:[#allocation2 + $0x260] sm:$0xf]
    %v184 = vld [vmem:[#allocation2 + $0x264] sm:$0xf]
    %v185 = vld [vmem:[#allocation2 + $0x268] sm:$0xf]
    %v186 = vld [vmem:[#allocation2 + $0x26c] sm:$0xf]
    %v187 = vld [vmem:[#allocation2 + $0x270] sm:$0xf]
    %v188 = vld [vmem:[#allocation2 + $0x274] sm:$0xf]
    %v189 = vld [vmem:[#allocation2 + $0x278] sm:$0xf]
    %v190 = vld [vmem:[#allocation2 + $0x27c] sm:$0xf]
    %v191 = vld [vmem:[#allocation2 + $0x280] sm:$0xf]
    %v192 = vld [vmem:[#allocation2 + $0x284] sm:$0xf]
    %v193 = vld [vmem:[#allocation2 + $0x288] sm:$0xf]
    %v194 = vld [vmem:[#allocation2 + $0x28c] sm:$0xf]
    %v195 = vld [vmem:[#allocation2 + $0x290] sm:$0xf]
    %v196 = vld [vmem:[#allocation2 + $0x294] sm:$0xf]
    %v197 = vld [vmem:[#allocation2 + $0x298] sm:$0xf]
    %v198 = vld [vmem:[#allocation2 + $0x29c] sm:$0xf]
    %v199 = vld [vmem:[#allocation2 + $0x2a0] sm:$0xf]
    %v200 = vld [vmem:[#allocation2 + $0x2a4] sm:$0xf]
    %v201 = vld [vmem:[#allocation2 + $0x2a8] sm:$0xf]
    %v202 = vld [vmem:[#allocation2 + $0x2ac] sm:$0xf]
    %v203 = vld [vmem:[#allocation2 + $0x2b0] sm:$0xf]
    %v204 = vld [vmem:[#allocation2 + $0x2b4] sm:$0xf]
    %v205 = vld [vmem:[#allocation2 + $0x2b8] sm:$0xf]
    %v206 = vld [vmem:[#allocation2 + $0x2bc] sm:$0xf]
    %v207 = vld [vmem:[#allocation2 + $0x2c0] sm:$0xf]
    %v208 = vld [vmem:[#allocation2 + $0x2c4] sm:$0xf]
    %v209 = vld [vmem:[#allocation2 + $0x2c8] sm:$0xf]
    %v210 = vld [vmem:[#allocation2 + $0x2cc] sm:$0xf]
    %v211 = vld [vmem:[#allocation2 + $0x2d0] sm:$0xf]
    %v212 = vld [vmem:[#allocation2 + $0x2d4] sm:$0xf]
    %v213 = vld [vmem:[#allocation2 + $0x2d8] sm:$0xf]
    %v214 = vld [vmem:[#allocation2 + $0x2dc] sm:$0xf]
    %v215 = vld [vmem:[#allocation2 + $0x2e0] sm:$0xf]
    %v216 = vld [vmem:[#allocation2 + $0x2e4] sm:$0xf]
    %v217 = vld [vmem:[#allocation2 + $0x2e8] sm:$0xf]
    %v218 = vld [vmem:[#allocation2 + $0x2ec] sm:$0xf]
    %v219 = vld [vmem:[#allocation2 + $0x2f0] sm:$0xf]
    %v220 = vld [vmem:[#allocation2 + $0x2f4] sm:$0xf]
    %v221 = vld [vmem:[#allocation2 + $0x2f8] sm:$0xf]
    %v222 = vld [vmem:[#allocation2 + $0x2fc] sm:$0xf]
    %vm223 = vcmask 1043456
    %v224 = vsel %vm223, %v31, 0.0
    %225 = vadd.xlane.f32.xlu0 %v224
    %v226 = vpop.xlane.xlu0 %225
    %v227 = vsel %vm223, %v32, 0.0
    %228 = vadd.xlane.f32.xlu0 %v227
    %v229 = vpop.xlane.xlu0 %228
    %v230 = vsel %vm223, %v33, 0.0
    %231 = vadd.xlane.f32.xlu0 %v230
    %v232 = vpop.xlane.xlu0 %231
    %v233 = vsel %vm223, %v34, 0.0
    %234 = vadd.xlane.f32.xlu0 %v233
    %v235 = vpop.xlane.xlu0 %234
    %v236 = vsel %vm223, %v35, 0.0
    %237 = vadd.xlane.f32.xlu0 %v236
    %v238 = vpop.xlane.xlu0 %237
    %v239 = vsel %vm223, %v36, 0.0
    %240 = vadd.xlane.f32.xlu0 %v239
    %v241 = vpop.xlane.xlu0 %240
    %v242 = vsel %vm223, %v37, 0.0
    %243 = vadd.xlane.f32.xlu0 %v242
    %v244 = vpop.xlane.xlu0 %243
    %v245 = vsel %vm223, %v38, 0.0
    %246 = vadd.xlane.f32.xlu0 %v245
    %v247 = vpop.xlane.xlu0 %246
    %v248 = vsel %vm223, %v39, 0.0
    %249 = vadd.xlane.f32.xlu0 %v248
    %v250 = vpop.xlane.xlu0 %249
    %v251 = vsel %vm223, %v40, 0.0
    %252 = vadd.xlane.f32.xlu0 %v251
    %v253 = vpop.xlane.xlu0 %252
    %v254 = vsel %vm223, %v41, 0.0
    %255 = vadd.xlane.f32.xlu0 %v254
    %v256 = vpop.xlane.xlu0 %255
    %v257 = vsel %vm223, %v42, 0.0
    %258 = vadd.xlane.f32.xlu0 %v257
    %v259 = vpop.xlane.xlu0 %258
    %v260 = vsel %vm223, %v43, 0.0
    %261 = vadd.xlane.f32.xlu0 %v260
    %v262 = vpop.xlane.xlu0 %261
    %v263 = vsel %vm223, %v44, 0.0
    %264 = vadd.xlane.f32.xlu0 %v263
    %v265 = vpop.xlane.xlu0 %264
    %v266 = vsel %vm223, %v45, 0.0
    %267 = vadd.xlane.f32.xlu0 %v266
    %v268 = vpop.xlane.xlu0 %267
    %v269 = vsel %vm223, %v46, 0.0
    %270 = vadd.xlane.f32.xlu0 %v269
    %v271 = vpop.xlane.xlu0 %270
    %v272 = vsel %vm223, %v47, 0.0
    %273 = vadd.xlane.f32.xlu0 %v272
    %v274 = vpop.xlane.xlu0 %273
    %v275 = vsel %vm223, %v48, 0.0
    %276 = vadd.xlane.f32.xlu0 %v275
    %v277 = vpop.xlane.xlu0 %276
    %v278 = vsel %vm223, %v49, 0.0
    %279 = vadd.xlane.f32.xlu0 %v278
    %v280 = vpop.xlane.xlu0 %279
    %v281 = vsel %vm223, %v50, 0.0
    %282 = vadd.xlane.f32.xlu0 %v281
    %v283 = vpop.xlane.xlu0 %282
    %v284 = vsel %vm223, %v51, 0.0
    %285 = vadd.xlane.f32.xlu0 %v284
    %v286 = vpop.xlane.xlu0 %285
    %v287 = vsel %vm223, %v52, 0.0
    %288 = vadd.xlane.f32.xlu0 %v287
    %v289 = vpop.xlane.xlu0 %288
    %v290 = vsel %vm223, %v53, 0.0
    %291 = vadd.xlane.f32.xlu0 %v290
    %v292 = vpop.xlane.xlu0 %291
    %v293 = vsel %vm223, %v54, 0.0
    %294 = vadd.xlane.f32.xlu0 %v293
    %v295 = vpop.xlane.xlu0 %294
    %v296 = vsel %vm223, %v55, 0.0
    %297 = vadd.xlane.f32.xlu0 %v296
    %v298 = vpop.xlane.xlu0 %297
    %v299 = vsel %vm223, %v56, 0.0
    %300 = vadd.xlane.f32.xlu0 %v299
    %v301 = vpop.xlane.xlu0 %300
    %v302 = vsel %vm223, %v57, 0.0
    %303 = vadd.xlane.f32.xlu0 %v302
    %v304 = vpop.xlane.xlu0 %303
    %v305 = vsel %vm223, %v58, 0.0
    %306 = vadd.xlane.f32.xlu0 %v305
    %v307 = vpop.xlane.xlu0 %306
    %v308 = vsel %vm223, %v59, 0.0
    %309 = vadd.xlane.f32.xlu0 %v308
    %v310 = vpop.xlane.xlu0 %309
    %v311 = vsel %vm223, %v60, 0.0
    %312 = vadd.xlane.f32.xlu0 %v311
    %v313 = vpop.xlane.xlu0 %312
    %v314 = vsel %vm223, %v61, 0.0
    %315 = vadd.xlane.f32.xlu0 %v314
    %v316 = vpop.xlane.xlu0 %315
    %v317 = vsel %vm223, %v62, 0.0
    %318 = vadd.xlane.f32.xlu0 %v317
    %v319 = vpop.xlane.xlu0 %318
    %v320 = vsel %vm223, %v63, 0.0
    %321 = vadd.xlane.f32.xlu0 %v320
    %v322 = vpop.xlane.xlu0 %321
    %v323 = vsel %vm223, %v64, 0.0
    %324 = vadd.xlane.f32.xlu0 %v323
    %v325 = vpop.xlane.xlu0 %324
    %v326 = vsel %vm223, %v65, 0.0
    %327 = vadd.xlane.f32.xlu0 %v326
    %v328 = vpop.xlane.xlu0 %327
    %v329 = vsel %vm223, %v66, 0.0
    %330 = vadd.xlane.f32.xlu0 %v329
    %v331 = vpop.xlane.xlu0 %330
    %v332 = vsel %vm223, %v67, 0.0
    %333 = vadd.xlane.f32.xlu0 %v332
    %v334 = vpop.xlane.xlu0 %333
    %v335 = vsel %vm223, %v68, 0.0
    %336 = vadd.xlane.f32.xlu0 %v335
    %v337 = vpop.xlane.xlu0 %336
    %v338 = vsel %vm223, %v69, 0.0
    %339 = vadd.xlane.f32.xlu0 %v338
    %v340 = vpop.xlane.xlu0 %339
    %v341 = vsel %vm223, %v70, 0.0
    %342 = vadd.xlane.f32.xlu0 %v341
    %v343 = vpop.xlane.xlu0 %342
    %v344 = vsel %vm223, %v71, 0.0
    %345 = vadd.xlane.f32.xlu0 %v344
    %v346 = vpop.xlane.xlu0 %345
    %v347 = vsel %vm223, %v72, 0.0
    %348 = vadd.xlane.f32.xlu0 %v347
    %v349 = vpop.xlane.xlu0 %348
    %v350 = vsel %vm223, %v73, 0.0
    %351 = vadd.xlane.f32.xlu0 %v350
    %v352 = vpop.xlane.xlu0 %351
    %v353 = vsel %vm223, %v74, 0.0
    %354 = vadd.xlane.f32.xlu0 %v353
    %v355 = vpop.xlane.xlu0 %354
    %v356 = vsel %vm223, %v75, 0.0
    %357 = vadd.xlane.f32.xlu0 %v356
    %v358 = vpop.xlane.xlu0 %357
    %v359 = vsel %vm223, %v76, 0.0
    %360 = vadd.xlane.f32.xlu0 %v359
    %v361 = vpop.xlane.xlu0 %360
    %v362 = vsel %vm223, %v77, 0.0
    %363 = vadd.xlane.f32.xlu0 %v362
    %v364 = vpop.xlane.xlu0 %363
    %v365 = vsel %vm223, %v78, 0.0
    %366 = vadd.xlane.f32.xlu0 %v365
    %v367 = vpop.xlane.xlu0 %366
    %v368 = vsel %vm223, %v79, 0.0
    %369 = vadd.xlane.f32.xlu0 %v368
    %v370 = vpop.xlane.xlu0 %369
    %v371 = vsel %vm223, %v80, 0.0
    %372 = vadd.xlane.f32.xlu0 %v371
    %v373 = vpop.xlane.xlu0 %372
    %v374 = vsel %vm223, %v81, 0.0
    %375 = vadd.xlane.f32.xlu0 %v374
    %v376 = vpop.xlane.xlu0 %375
    %v377 = vsel %vm223, %v82, 0.0
    %378 = vadd.xlane.f32.xlu0 %v377
    %v379 = vpop.xlane.xlu0 %378
    %v380 = vsel %vm223, %v83, 0.0
    %381 = vadd.xlane.f32.xlu0 %v380
    %v382 = vpop.xlane.xlu0 %381
    %v383 = vsel %vm223, %v84, 0.0
    %384 = vadd.xlane.f32.xlu0 %v383
    %v385 = vpop.xlane.xlu0 %384
    %v386 = vsel %vm223, %v85, 0.0
    %387 = vadd.xlane.f32.xlu0 %v386
    %v388 = vpop.xlane.xlu0 %387
    %v389 = vsel %vm223, %v86, 0.0
    %390 = vadd.xlane.f32.xlu0 %v389
    %v391 = vpop.xlane.xlu0 %390
    %v392 = vsel %vm223, %v87, 0.0
    %393 = vadd.xlane.f32.xlu0 %v392
    %v394 = vpop.xlane.xlu0 %393
    %v395 = vsel %vm223, %v88, 0.0
    %396 = vadd.xlane.f32.xlu0 %v395
    %v397 = vpop.xlane.xlu0 %396
    %v398 = vsel %vm223, %v89, 0.0
    %399 = vadd.xlane.f32.xlu0 %v398
    %v400 = vpop.xlane.xlu0 %399
    %v401 = vsel %vm223, %v90, 0.0
    %402 = vadd.xlane.f32.xlu0 %v401
    %v403 = vpop.xlane.xlu0 %402
    %v404 = vsel %vm223, %v91, 0.0
    %405 = vadd.xlane.f32.xlu0 %v404
    %v406 = vpop.xlane.xlu0 %405
    %v407 = vsel %vm223, %v92, 0.0
    %408 = vadd.xlane.f32.xlu0 %v407
    %v409 = vpop.xlane.xlu0 %408
    %v410 = vsel %vm223, %v93, 0.0
    %411 = vadd.xlane.f32.xlu0 %v410
    %v412 = vpop.xlane.xlu0 %411
    %v413 = vsel %vm223, %v94, 0.0
    %414 = vadd.xlane.f32.xlu0 %v413
    %v415 = vpop.xlane.xlu0 %414
    %v416 = vsel %vm223, %v95, 0.0
    %417 = vadd.xlane.f32.xlu0 %v416
    %v418 = vpop.xlane.xlu0 %417
    %v419 = vsel %vm223, %v96, 0.0
    %420 = vadd.xlane.f32.xlu0 %v419
    %v421 = vpop.xlane.xlu0 %420
    %v422 = vsel %vm223, %v97, 0.0
    %423 = vadd.xlane.f32.xlu0 %v422
    %v424 = vpop.xlane.xlu0 %423
    %v425 = vsel %vm223, %v98, 0.0
    %426 = vadd.xlane.f32.xlu0 %v425
    %v427 = vpop.xlane.xlu0 %426
    %v428 = vsel %vm223, %v99, 0.0
    %429 = vadd.xlane.f32.xlu0 %v428
    %v430 = vpop.xlane.xlu0 %429
    %v431 = vsel %vm223, %v100, 0.0
    %432 = vadd.xlane.f32.xlu0 %v431
    %v433 = vpop.xlane.xlu0 %432
    %v434 = vsel %vm223, %v101, 0.0
    %435 = vadd.xlane.f32.xlu0 %v434
    %v436 = vpop.xlane.xlu0 %435
    %v437 = vsel %vm223, %v102, 0.0
    %438 = vadd.xlane.f32.xlu0 %v437
    %v439 = vpop.xlane.xlu0 %438
    %v440 = vsel %vm223, %v103, 0.0
    %441 = vadd.xlane.f32.xlu0 %v440
    %v442 = vpop.xlane.xlu0 %441
    %v443 = vsel %vm223, %v104, 0.0
    %444 = vadd.xlane.f32.xlu0 %v443
    %v445 = vpop.xlane.xlu0 %444
    %v446 = vsel %vm223, %v105, 0.0
    %447 = vadd.xlane.f32.xlu0 %v446
    %v448 = vpop.xlane.xlu0 %447
    %v449 = vsel %vm223, %v106, 0.0
    %450 = vadd.xlane.f32.xlu0 %v449
    %v451 = vpop.xlane.xlu0 %450
    %v452 = vsel %vm223, %v107, 0.0
    %453 = vadd.xlane.f32.xlu0 %v452
    %v454 = vpop.xlane.xlu0 %453
    %v455 = vsel %vm223, %v108, 0.0
    %456 = vadd.xlane.f32.xlu0 %v455
    %v457 = vpop.xlane.xlu0 %456
    %v458 = vsel %vm223, %v109, 0.0
    %459 = vadd.xlane.f32.xlu0 %v458
    %v460 = vpop.xlane.xlu0 %459
    %v461 = vsel %vm223, %v110, 0.0
    %462 = vadd.xlane.f32.xlu0 %v461
    %v463 = vpop.xlane.xlu0 %462
    %v464 = vsel %vm223, %v111, 0.0
    %465 = vadd.xlane.f32.xlu0 %v464
    %v466 = vpop.xlane.xlu0 %465
    %v467 = vsel %vm223, %v112, 0.0
    %468 = vadd.xlane.f32.xlu0 %v467
    %v469 = vpop.xlane.xlu0 %468
    %v470 = vsel %vm223, %v113, 0.0
    %471 = vadd.xlane.f32.xlu0 %v470
    %v472 = vpop.xlane.xlu0 %471
    %v473 = vsel %vm223, %v114, 0.0
    %474 = vadd.xlane.f32.xlu0 %v473
    %v475 = vpop.xlane.xlu0 %474
    %v476 = vsel %vm223, %v115, 0.0
    %477 = vadd.xlane.f32.xlu0 %v476
    %v478 = vpop.xlane.xlu0 %477
    %v479 = vsel %vm223, %v116, 0.0
    %480 = vadd.xlane.f32.xlu0 %v479
    %v481 = vpop.xlane.xlu0 %480
    %v482 = vsel %vm223, %v117, 0.0
    %483 = vadd.xlane.f32.xlu0 %v482
    %v484 = vpop.xlane.xlu0 %483
    %v485 = vsel %vm223, %v118, 0.0
    %486 = vadd.xlane.f32.xlu0 %v485
    %v487 = vpop.xlane.xlu0 %486
    %v488 = vsel %vm223, %v119, 0.0
    %489 = vadd.xlane.f32.xlu0 %v488
    %v490 = vpop.xlane.xlu0 %489
    %v491 = vsel %vm223, %v120, 0.0
    %492 = vadd.xlane.f32.xlu0 %v491
    %v493 = vpop.xlane.xlu0 %492
    %v494 = vsel %vm223, %v121, 0.0
    %495 = vadd.xlane.f32.xlu0 %v494
    %v496 = vpop.xlane.xlu0 %495
    %v497 = vsel %vm223, %v122, 0.0
    %498 = vadd.xlane.f32.xlu0 %v497
    %v499 = vpop.xlane.xlu0 %498
    %v500 = vsel %vm223, %v123, 0.0
    %501 = vadd.xlane.f32.xlu0 %v500
    %v502 = vpop.xlane.xlu0 %501
    %v503 = vsel %vm223, %v124, 0.0
    %504 = vadd.xlane.f32.xlu0 %v503
    %v505 = vpop.xlane.xlu0 %504
    %v506 = vsel %vm223, %v125, 0.0
    %507 = vadd.xlane.f32.xlu0 %v506
    %v508 = vpop.xlane.xlu0 %507
    %v509 = vsel %vm223, %v126, 0.0
    %510 = vadd.xlane.f32.xlu0 %v509
    %v511 = vpop.xlane.xlu0 %510
    %v512 = vsel %vm223, %v127, 0.0
    %513 = vadd.xlane.f32.xlu0 %v512
    %v514 = vpop.xlane.xlu0 %513
    %v515 = vsel %vm223, %v128, 0.0
    %516 = vadd.xlane.f32.xlu0 %v515
    %v517 = vpop.xlane.xlu0 %516
    %v518 = vsel %vm223, %v129, 0.0
    %519 = vadd.xlane.f32.xlu0 %v518
    %v520 = vpop.xlane.xlu0 %519
    %v521 = vsel %vm223, %v130, 0.0
    %522 = vadd.xlane.f32.xlu0 %v521
    %v523 = vpop.xlane.xlu0 %522
    %v524 = vsel %vm223, %v131, 0.0
    %525 = vadd.xlane.f32.xlu0 %v524
    %v526 = vpop.xlane.xlu0 %525
    %v527 = vsel %vm223, %v132, 0.0
    %528 = vadd.xlane.f32.xlu0 %v527
    %v529 = vpop.xlane.xlu0 %528
    %v530 = vsel %vm223, %v133, 0.0
    %531 = vadd.xlane.f32.xlu0 %v530
    %v532 = vpop.xlane.xlu0 %531
    %v533 = vsel %vm223, %v134, 0.0
    %534 = vadd.xlane.f32.xlu0 %v533
    %v535 = vpop.xlane.xlu0 %534
    %v536 = vsel %vm223, %v135, 0.0
    %537 = vadd.xlane.f32.xlu0 %v536
    %v538 = vpop.xlane.xlu0 %537
    %v539 = vsel %vm223, %v136, 0.0
    %540 = vadd.xlane.f32.xlu0 %v539
    %v541 = vpop.xlane.xlu0 %540
    %v542 = vsel %vm223, %v137, 0.0
    %543 = vadd.xlane.f32.xlu0 %v542
    %v544 = vpop.xlane.xlu0 %543
    %v545 = vsel %vm223, %v138, 0.0
    %546 = vadd.xlane.f32.xlu0 %v545
    %v547 = vpop.xlane.xlu0 %546
    %v548 = vsel %vm223, %v139, 0.0
    %549 = vadd.xlane.f32.xlu0 %v548
    %v550 = vpop.xlane.xlu0 %549
    %v551 = vsel %vm223, %v140, 0.0
    %552 = vadd.xlane.f32.xlu0 %v551
    %v553 = vpop.xlane.xlu0 %552
    %v554 = vsel %vm223, %v141, 0.0
    %555 = vadd.xlane.f32.xlu0 %v554
    %v556 = vpop.xlane.xlu0 %555
    %v557 = vsel %vm223, %v142, 0.0
    %558 = vadd.xlane.f32.xlu0 %v557
    %v559 = vpop.xlane.xlu0 %558
    %v560 = vsel %vm223, %v143, 0.0
    %561 = vadd.xlane.f32.xlu0 %v560
    %v562 = vpop.xlane.xlu0 %561
    %v563 = vsel %vm223, %v144, 0.0
    %564 = vadd.xlane.f32.xlu0 %v563
    %v565 = vpop.xlane.xlu0 %564
    %v566 = vsel %vm223, %v145, 0.0
    %567 = vadd.xlane.f32.xlu0 %v566
    %v568 = vpop.xlane.xlu0 %567
    %v569 = vsel %vm223, %v146, 0.0
    %570 = vadd.xlane.f32.xlu0 %v569
    %v571 = vpop.xlane.xlu0 %570
    %v572 = vsel %vm223, %v147, 0.0
    %573 = vadd.xlane.f32.xlu0 %v572
    %v574 = vpop.xlane.xlu0 %573
    %v575 = vsel %vm223, %v148, 0.0
    %576 = vadd.xlane.f32.xlu0 %v575
    %v577 = vpop.xlane.xlu0 %576
    %v578 = vsel %vm223, %v149, 0.0
    %579 = vadd.xlane.f32.xlu0 %v578
    %v580 = vpop.xlane.xlu0 %579
    %v581 = vsel %vm223, %v150, 0.0
    %582 = vadd.xlane.f32.xlu0 %v581
    %v583 = vpop.xlane.xlu0 %582
    %v584 = vsel %vm223, %v151, 0.0
    %585 = vadd.xlane.f32.xlu0 %v584
    %v586 = vpop.xlane.xlu0 %585
    %v587 = vsel %vm223, %v152, 0.0
    %588 = vadd.xlane.f32.xlu0 %v587
    %v589 = vpop.xlane.xlu0 %588
    %v590 = vsel %vm223, %v153, 0.0
    %591 = vadd.xlane.f32.xlu0 %v590
    %v592 = vpop.xlane.xlu0 %591
    %v593 = vsel %vm223, %v154, 0.0
    %594 = vadd.xlane.f32.xlu0 %v593
    %v595 = vpop.xlane.xlu0 %594
    %v596 = vsel %vm223, %v155, 0.0
    %597 = vadd.xlane.f32.xlu0 %v596
    %v598 = vpop.xlane.xlu0 %597
    %v599 = vsel %vm223, %v156, 0.0
    %600 = vadd.xlane.f32.xlu0 %v599
    %v601 = vpop.xlane.xlu0 %600
    %v602 = vsel %vm223, %v157, 0.0
    %603 = vadd.xlane.f32.xlu0 %v602
    %v604 = vpop.xlane.xlu0 %603
    %v605 = vsel %vm223, %v158, 0.0
    %606 = vadd.xlane.f32.xlu0 %v605
    %v607 = vpop.xlane.xlu0 %606
    %v608 = vsel %vm223, %v159, 0.0
    %609 = vadd.xlane.f32.xlu0 %v608
    %v610 = vpop.xlane.xlu0 %609
    %v611 = vsel %vm223, %v160, 0.0
    %612 = vadd.xlane.f32.xlu0 %v611
    %v613 = vpop.xlane.xlu0 %612
    %v614 = vsel %vm223, %v161, 0.0
    %615 = vadd.xlane.f32.xlu0 %v614
    %v616 = vpop.xlane.xlu0 %615
    %v617 = vsel %vm223, %v162, 0.0
    %618 = vadd.xlane.f32.xlu0 %v617
    %v619 = vpop.xlane.xlu0 %618
    %v620 = vsel %vm223, %v163, 0.0
    %621 = vadd.xlane.f32.xlu0 %v620
    %v622 = vpop.xlane.xlu0 %621
    %v623 = vsel %vm223, %v164, 0.0
    %624 = vadd.xlane.f32.xlu0 %v623
    %v625 = vpop.xlane.xlu0 %624
    %v626 = vsel %vm223, %v165, 0.0
    %627 = vadd.xlane.f32.xlu0 %v626
    %v628 = vpop.xlane.xlu0 %627
    %v629 = vsel %vm223, %v166, 0.0
    %630 = vadd.xlane.f32.xlu0 %v629
    %v631 = vpop.xlane.xlu0 %630
    %v632 = vsel %vm223, %v167, 0.0
    %633 = vadd.xlane.f32.xlu0 %v632
    %v634 = vpop.xlane.xlu0 %633
    %v635 = vsel %vm223, %v168, 0.0
    %636 = vadd.xlane.f32.xlu0 %v635
    %v637 = vpop.xlane.xlu0 %636
    %v638 = vsel %vm223, %v169, 0.0
    %639 = vadd.xlane.f32.xlu0 %v638
    %v640 = vpop.xlane.xlu0 %639
    %v641 = vsel %vm223, %v170, 0.0
    %642 = vadd.xlane.f32.xlu0 %v641
    %v643 = vpop.xlane.xlu0 %642
    %v644 = vsel %vm223, %v171, 0.0
    %645 = vadd.xlane.f32.xlu0 %v644
    %v646 = vpop.xlane.xlu0 %645
    %v647 = vsel %vm223, %v172, 0.0
    %648 = vadd.xlane.f32.xlu0 %v647
    %v649 = vpop.xlane.xlu0 %648
    %v650 = vsel %vm223, %v173, 0.0
    %651 = vadd.xlane.f32.xlu0 %v650
    %v652 = vpop.xlane.xlu0 %651
    %v653 = vsel %vm223, %v174, 0.0
    %654 = vadd.xlane.f32.xlu0 %v653
    %v655 = vpop.xlane.xlu0 %654
    %v656 = vsel %vm223, %v175, 0.0
    %657 = vadd.xlane.f32.xlu0 %v656
    %v658 = vpop.xlane.xlu0 %657
    %v659 = vsel %vm223, %v176, 0.0
    %660 = vadd.xlane.f32.xlu0 %v659
    %v661 = vpop.xlane.xlu0 %660
    %v662 = vsel %vm223, %v177, 0.0
    %663 = vadd.xlane.f32.xlu0 %v662
    %v664 = vpop.xlane.xlu0 %663
    %v665 = vsel %vm223, %v178, 0.0
    %666 = vadd.xlane.f32.xlu0 %v665
    %v667 = vpop.xlane.xlu0 %666
    %v668 = vsel %vm223, %v179, 0.0
    %669 = vadd.xlane.f32.xlu0 %v668
    %v670 = vpop.xlane.xlu0 %669
    %v671 = vsel %vm223, %v180, 0.0
    %672 = vadd.xlane.f32.xlu0 %v671
    %v673 = vpop.xlane.xlu0 %672
    %v674 = vsel %vm223, %v181, 0.0
    %675 = vadd.xlane.f32.xlu0 %v674
    %v676 = vpop.xlane.xlu0 %675
    %v677 = vsel %vm223, %v182, 0.0
    %678 = vadd.xlane.f32.xlu0 %v677
    %v679 = vpop.xlane.xlu0 %678
    %v680 = vsel %vm223, %v183, 0.0
    %681 = vadd.xlane.f32.xlu0 %v680
    %v682 = vpop.xlane.xlu0 %681
    %v683 = vsel %vm223, %v184, 0.0
    %684 = vadd.xlane.f32.xlu0 %v683
    %v685 = vpop.xlane.xlu0 %684
    %v686 = vsel %vm223, %v185, 0.0
    %687 = vadd.xlane.f32.xlu0 %v686
    %v688 = vpop.xlane.xlu0 %687
    %v689 = vsel %vm223, %v186, 0.0
    %690 = vadd.xlane.f32.xlu0 %v689
    %v691 = vpop.xlane.xlu0 %690
    %v692 = vsel %vm223, %v187, 0.0
    %693 = vadd.xlane.f32.xlu0 %v692
    %v694 = vpop.xlane.xlu0 %693
    %v695 = vsel %vm223, %v188, 0.0
    %696 = vadd.xlane.f32.xlu0 %v695
    %v697 = vpop.xlane.xlu0 %696
    %v698 = vsel %vm223, %v189, 0.0
    %699 = vadd.xlane.f32.xlu0 %v698
    %v700 = vpop.xlane.xlu0 %699
    %v701 = vsel %vm223, %v190, 0.0
    %702 = vadd.xlane.f32.xlu0 %v701
    %v703 = vpop.xlane.xlu0 %702
    %v704 = vsel %vm223, %v191, 0.0
    %705 = vadd.xlane.f32.xlu0 %v704
    %v706 = vpop.xlane.xlu0 %705
    %v707 = vsel %vm223, %v192, 0.0
    %708 = vadd.xlane.f32.xlu0 %v707
    %v709 = vpop.xlane.xlu0 %708
    %v710 = vsel %vm223, %v193, 0.0
    %711 = vadd.xlane.f32.xlu0 %v710
    %v712 = vpop.xlane.xlu0 %711
    %v713 = vsel %vm223, %v194, 0.0
    %714 = vadd.xlane.f32.xlu0 %v713
    %v715 = vpop.xlane.xlu0 %714
    %v716 = vsel %vm223, %v195, 0.0
    %717 = vadd.xlane.f32.xlu0 %v716
    %v718 = vpop.xlane.xlu0 %717
    %v719 = vsel %vm223, %v196, 0.0
    %720 = vadd.xlane.f32.xlu0 %v719
    %v721 = vpop.xlane.xlu0 %720
    %v722 = vsel %vm223, %v197, 0.0
    %723 = vadd.xlane.f32.xlu0 %v722
    %v724 = vpop.xlane.xlu0 %723
    %v725 = vsel %vm223, %v198, 0.0
    %726 = vadd.xlane.f32.xlu0 %v725
    %v727 = vpop.xlane.xlu0 %726
    %v728 = vsel %vm223, %v199, 0.0
    %729 = vadd.xlane.f32.xlu0 %v728
    %v730 = vpop.xlane.xlu0 %729
    %v731 = vsel %vm223, %v200, 0.0
    %732 = vadd.xlane.f32.xlu0 %v731
    %v733 = vpop.xlane.xlu0 %732
    %v734 = vsel %vm223, %v201, 0.0
    %735 = vadd.xlane.f32.xlu0 %v734
    %v736 = vpop.xlane.xlu0 %735
    %v737 = vsel %vm223, %v202, 0.0
    %738 = vadd.xlane.f32.xlu0 %v737
    %v739 = vpop.xlane.xlu0 %738
    %v740 = vsel %vm223, %v203, 0.0
    %741 = vadd.xlane.f32.xlu0 %v740
    %v742 = vpop.xlane.xlu0 %741
    %v743 = vsel %vm223, %v204, 0.0
    %744 = vadd.xlane.f32.xlu0 %v743
    %v745 = vpop.xlane.xlu0 %744
    %v746 = vsel %vm223, %v205, 0.0
    %747 = vadd.xlane.f32.xlu0 %v746
    %v748 = vpop.xlane.xlu0 %747
    %v749 = vsel %vm223, %v206, 0.0
    %750 = vadd.xlane.f32.xlu0 %v749
    %v751 = vpop.xlane.xlu0 %750
    %v752 = vsel %vm223, %v207, 0.0
    %753 = vadd.xlane.f32.xlu0 %v752
    %v754 = vpop.xlane.xlu0 %753
    %v755 = vsel %vm223, %v208, 0.0
    %756 = vadd.xlane.f32.xlu0 %v755
    %v757 = vpop.xlane.xlu0 %756
    %v758 = vsel %vm223, %v209, 0.0
    %759 = vadd.xlane.f32.xlu0 %v758
    %v760 = vpop.xlane.xlu0 %759
    %v761 = vsel %vm223, %v210, 0.0
    %762 = vadd.xlane.f32.xlu0 %v761
    %v763 = vpop.xlane.xlu0 %762
    %v764 = vsel %vm223, %v211, 0.0
    %765 = vadd.xlane.f32.xlu0 %v764
    %v766 = vpop.xlane.xlu0 %765
    %v767 = vsel %vm223, %v212, 0.0
    %768 = vadd.xlane.f32.xlu0 %v767
    %v769 = vpop.xlane.xlu0 %768
    %v770 = vsel %vm223, %v213, 0.0
    %771 = vadd.xlane.f32.xlu0 %v770
    %v772 = vpop.xlane.xlu0 %771
    %v773 = vsel %vm223, %v214, 0.0
    %774 = vadd.xlane.f32.xlu0 %v773
    %v775 = vpop.xlane.xlu0 %774
    %v776 = vsel %vm223, %v215, 0.0
    %777 = vadd.xlane.f32.xlu0 %v776
    %v778 = vpop.xlane.xlu0 %777
    %v779 = vsel %vm223, %v216, 0.0
    %780 = vadd.xlane.f32.xlu0 %v779
    %v781 = vpop.xlane.xlu0 %780
    %v782 = vsel %vm223, %v217, 0.0
    %783 = vadd.xlane.f32.xlu0 %v782
    %v784 = vpop.xlane.xlu0 %783
    %v785 = vsel %vm223, %v218, 0.0
    %786 = vadd.xlane.f32.xlu0 %v785
    %v787 = vpop.xlane.xlu0 %786
    %v788 = vsel %vm223, %v219, 0.0
    %789 = vadd.xlane.f32.xlu0 %v788
    %v790 = vpop.xlane.xlu0 %789
    %v791 = vsel %vm223, %v220, 0.0
    %792 = vadd.xlane.f32.xlu0 %v791
    %v793 = vpop.xlane.xlu0 %792
    %v794 = vsel %vm223, %v221, 0.0
    %795 = vadd.xlane.f32.xlu0 %v794
    %v796 = vpop.xlane.xlu0 %795
    %v797 = vsel %vm223, %v222, 0.0
    %798 = vadd.xlane.f32.xlu0 %v797
    %v799 = vpop.xlane.xlu0 %798
    %v800 = vsel %vm223, %v226, 0.0
    %v801 = vrot.slane %v800, 4
    %v802 = vadd.f32 %v800, %v801
    %v803 = vrot.slane %v802, 2
    %v804 = vadd.f32 %v802, %v803
    %v805 = vrot.slane %v804, 1
    %v806 = vadd.f32 %v804, %v805
    %v807 = vsel %vm223, %v229, 0.0
    %v808 = vrot.slane %v807, 4
    %v809 = vadd.f32 %v807, %v808
    %v810 = vrot.slane %v809, 2
    %v811 = vadd.f32 %v809, %v810
    %v812 = vrot.slane %v811, 1
    %v813 = vadd.f32 %v811, %v812
    %v814 = vsel %vm223, %v232, 0.0
    %v815 = vrot.slane %v814, 4
    %v816 = vadd.f32 %v814, %v815
    %v817 = vrot.slane %v816, 2
    %v818 = vadd.f32 %v816, %v817
    %v819 = vrot.slane %v818, 1
    %v820 = vadd.f32 %v818, %v819
    %v821 = vsel %vm223, %v235, 0.0
    %v822 = vrot.slane %v821, 4
    %v823 = vadd.f32 %v821, %v822
    %v824 = vrot.slane %v823, 2
    %v825 = vadd.f32 %v823, %v824
    %v826 = vrot.slane %v825, 1
    %v827 = vadd.f32 %v825, %v826
    %v828 = vsel %vm223, %v238, 0.0
    %v829 = vrot.slane %v828, 4
    %v830 = vadd.f32 %v828, %v829
    %v831 = vrot.slane %v830, 2
    %v832 = vadd.f32 %v830, %v831
    %v833 = vrot.slane %v832, 1
    %v834 = vadd.f32 %v832, %v833
    %v835 = vsel %vm223, %v241, 0.0
    %v836 = vrot.slane %v835, 4
    %v837 = vadd.f32 %v835, %v836
    %v838 = vrot.slane %v837, 2
    %v839 = vadd.f32 %v837, %v838
    %v840 = vrot.slane %v839, 1
    %v841 = vadd.f32 %v839, %v840
    %v842 = vsel %vm223, %v244, 0.0
    %v843 = vrot.slane %v842, 4
    %v844 = vadd.f32 %v842, %v843
    %v845 = vrot.slane %v844, 2
    %v846 = vadd.f32 %v844, %v845
    %v847 = vrot.slane %v846, 1
    %v848 = vadd.f32 %v846, %v847
    %v849 = vsel %vm223, %v247, 0.0
    %v850 = vrot.slane %v849, 4
    %v851 = vadd.f32 %v849, %v850
    %v852 = vrot.slane %v851, 2
    %v853 = vadd.f32 %v851, %v852
    %v854 = vrot.slane %v853, 1
    %v855 = vadd.f32 %v853, %v854
    %v856 = vsel %vm223, %v250, 0.0
    %v857 = vrot.slane %v856, 4
    %v858 = vadd.f32 %v856, %v857
    %v859 = vrot.slane %v858, 2
    %v860 = vadd.f32 %v858, %v859
    %v861 = vrot.slane %v860, 1
    %v862 = vadd.f32 %v860, %v861
    %v863 = vsel %vm223, %v253, 0.0
    %v864 = vrot.slane %v863, 4
    %v865 = vadd.f32 %v863, %v864
    %v866 = vrot.slane %v865, 2
    %v867 = vadd.f32 %v865, %v866
    %v868 = vrot.slane %v867, 1
    %v869 = vadd.f32 %v867, %v868
    %v870 = vsel %vm223, %v256, 0.0
    %v871 = vrot.slane %v870, 4
    %v872 = vadd.f32 %v870, %v871
    %v873 = vrot.slane %v872, 2
    %v874 = vadd.f32 %v872, %v873
    %v875 = vrot.slane %v874, 1
    %v876 = vadd.f32 %v874, %v875
    %v877 = vsel %vm223, %v259, 0.0
    %v878 = vrot.slane %v877, 4
    %v879 = vadd.f32 %v877, %v878
    %v880 = vrot.slane %v879, 2
    %v881 = vadd.f32 %v879, %v880
    %v882 = vrot.slane %v881, 1
    %v883 = vadd.f32 %v881, %v882
    %v884 = vsel %vm223, %v262, 0.0
    %v885 = vrot.slane %v884, 4
    %v886 = vadd.f32 %v884, %v885
    %v887 = vrot.slane %v886, 2
    %v888 = vadd.f32 %v886, %v887
    %v889 = vrot.slane %v888, 1
    %v890 = vadd.f32 %v888, %v889
    %v891 = vsel %vm223, %v265, 0.0
    %v892 = vrot.slane %v891, 4
    %v893 = vadd.f32 %v891, %v892
    %v894 = vrot.slane %v893, 2
    %v895 = vadd.f32 %v893, %v894
    %v896 = vrot.slane %v895, 1
    %v897 = vadd.f32 %v895, %v896
    %v898 = vsel %vm223, %v268, 0.0
    %v899 = vrot.slane %v898, 4
    %v900 = vadd.f32 %v898, %v899
    %v901 = vrot.slane %v900, 2
    %v902 = vadd.f32 %v900, %v901
    %v903 = vrot.slane %v902, 1
    %v904 = vadd.f32 %v902, %v903
    %v905 = vsel %vm223, %v271, 0.0
    %v906 = vrot.slane %v905, 4
    %v907 = vadd.f32 %v905, %v906
    %v908 = vrot.slane %v907, 2
    %v909 = vadd.f32 %v907, %v908
    %v910 = vrot.slane %v909, 1
    %v911 = vadd.f32 %v909, %v910
    %v912 = vsel %vm223, %v274, 0.0
    %v913 = vrot.slane %v912, 4
    %v914 = vadd.f32 %v912, %v913
    %v915 = vrot.slane %v914, 2
    %v916 = vadd.f32 %v914, %v915
    %v917 = vrot.slane %v916, 1
    %v918 = vadd.f32 %v916, %v917
    %v919 = vsel %vm223, %v277, 0.0
    %v920 = vrot.slane %v919, 4
    %v921 = vadd.f32 %v919, %v920
    %v922 = vrot.slane %v921, 2
    %v923 = vadd.f32 %v921, %v922
    %v924 = vrot.slane %v923, 1
    %v925 = vadd.f32 %v923, %v924
    %v926 = vsel %vm223, %v280, 0.0
    %v927 = vrot.slane %v926, 4
    %v928 = vadd.f32 %v926, %v927
    %v929 = vrot.slane %v928, 2
    %v930 = vadd.f32 %v928, %v929
    %v931 = vrot.slane %v930, 1
    %v932 = vadd.f32 %v930, %v931
    %v933 = vsel %vm223, %v283, 0.0
    %v934 = vrot.slane %v933, 4
    %v935 = vadd.f32 %v933, %v934
    %v936 = vrot.slane %v935, 2
    %v937 = vadd.f32 %v935, %v936
    %v938 = vrot.slane %v937, 1
    %v939 = vadd.f32 %v937, %v938
    %v940 = vsel %vm223, %v286, 0.0
    %v941 = vrot.slane %v940, 4
    %v942 = vadd.f32 %v940, %v941
    %v943 = vrot.slane %v942, 2
    %v944 = vadd.f32 %v942, %v943
    %v945 = vrot.slane %v944, 1
    %v946 = vadd.f32 %v944, %v945
    %v947 = vsel %vm223, %v289, 0.0
    %v948 = vrot.slane %v947, 4
    %v949 = vadd.f32 %v947, %v948
    %v950 = vrot.slane %v949, 2
    %v951 = vadd.f32 %v949, %v950
    %v952 = vrot.slane %v951, 1
    %v953 = vadd.f32 %v951, %v952
    %v954 = vsel %vm223, %v292, 0.0
    %v955 = vrot.slane %v954, 4
    %v956 = vadd.f32 %v954, %v955
    %v957 = vrot.slane %v956, 2
    %v958 = vadd.f32 %v956, %v957
    %v959 = vrot.slane %v958, 1
    %v960 = vadd.f32 %v958, %v959
    %v961 = vsel %vm223, %v295, 0.0
    %v962 = vrot.slane %v961, 4
    %v963 = vadd.f32 %v961, %v962
    %v964 = vrot.slane %v963, 2
    %v965 = vadd.f32 %v963, %v964
    %v966 = vrot.slane %v965, 1
    %v967 = vadd.f32 %v965, %v966
    %v968 = vsel %vm223, %v298, 0.0
    %v969 = vrot.slane %v968, 4
    %v970 = vadd.f32 %v968, %v969
    %v971 = vrot.slane %v970, 2
    %v972 = vadd.f32 %v970, %v971
    %v973 = vrot.slane %v972, 1
    %v974 = vadd.f32 %v972, %v973
    %v975 = vsel %vm223, %v301, 0.0
    %v976 = vrot.slane %v975, 4
    %v977 = vadd.f32 %v975, %v976
    %v978 = vrot.slane %v977, 2
    %v979 = vadd.f32 %v977, %v978
    %v980 = vrot.slane %v979, 1
    %v981 = vadd.f32 %v979, %v980
    %v982 = vsel %vm223, %v304, 0.0
    %v983 = vrot.slane %v982, 4
    %v984 = vadd.f32 %v982, %v983
    %v985 = vrot.slane %v984, 2
    %v986 = vadd.f32 %v984, %v985
    %v987 = vrot.slane %v986, 1
    %v988 = vadd.f32 %v986, %v987
    %v989 = vsel %vm223, %v307, 0.0
    %v990 = vrot.slane %v989, 4
    %v991 = vadd.f32 %v989, %v990
    %v992 = vrot.slane %v991, 2
    %v993 = vadd.f32 %v991, %v992
    %v994 = vrot.slane %v993, 1
    %v995 = vadd.f32 %v993, %v994
    %v996 = vsel %vm223, %v310, 0.0
    %v997 = vrot.slane %v996, 4
    %v998 = vadd.f32 %v996, %v997
    %v999 = vrot.slane %v998, 2
    %v1000 = vadd.f32 %v998, %v999
    %v1001 = vrot.slane %v1000, 1
    %v1002 = vadd.f32 %v1000, %v1001
    %v1003 = vsel %vm223, %v313, 0.0
    %v1004 = vrot.slane %v1003, 4
    %v1005 = vadd.f32 %v1003, %v1004
    %v1006 = vrot.slane %v1005, 2
    %v1007 = vadd.f32 %v1005, %v1006
    %v1008 = vrot.slane %v1007, 1
    %v1009 = vadd.f32 %v1007, %v1008
    %v1010 = vsel %vm223, %v316, 0.0
    %v1011 = vrot.slane %v1010, 4
    %v1012 = vadd.f32 %v1010, %v1011
    %v1013 = vrot.slane %v1012, 2
    %v1014 = vadd.f32 %v1012, %v1013
    %v1015 = vrot.slane %v1014, 1
    %v1016 = vadd.f32 %v1014, %v1015
    %v1017 = vsel %vm223, %v319, 0.0
    %v1018 = vrot.slane %v1017, 4
    %v1019 = vadd.f32 %v1017, %v1018
    %v1020 = vrot.slane %v1019, 2
    %v1021 = vadd.f32 %v1019, %v1020
    %v1022 = vrot.slane %v1021, 1
    %v1023 = vadd.f32 %v1021, %v1022
    %v1024 = vsel %vm223, %v322, 0.0
    %v1025 = vrot.slane %v1024, 4
    %v1026 = vadd.f32 %v1024, %v1025
    %v1027 = vrot.slane %v1026, 2
    %v1028 = vadd.f32 %v1026, %v1027
    %v1029 = vrot.slane %v1028, 1
    %v1030 = vadd.f32 %v1028, %v1029
    %v1031 = vsel %vm223, %v325, 0.0
    %v1032 = vrot.slane %v1031, 4
    %v1033 = vadd.f32 %v1031, %v1032
    %v1034 = vrot.slane %v1033, 2
    %v1035 = vadd.f32 %v1033, %v1034
    %v1036 = vrot.slane %v1035, 1
    %v1037 = vadd.f32 %v1035, %v1036
    %v1038 = vsel %vm223, %v328, 0.0
    %v1039 = vrot.slane %v1038, 4
    %v1040 = vadd.f32 %v1038, %v1039
    %v1041 = vrot.slane %v1040, 2
    %v1042 = vadd.f32 %v1040, %v1041
    %v1043 = vrot.slane %v1042, 1
    %v1044 = vadd.f32 %v1042, %v1043
    %v1045 = vsel %vm223, %v331, 0.0
    %v1046 = vrot.slane %v1045, 4
    %v1047 = vadd.f32 %v1045, %v1046
    %v1048 = vrot.slane %v1047, 2
    %v1049 = vadd.f32 %v1047, %v1048
    %v1050 = vrot.slane %v1049, 1
    %v1051 = vadd.f32 %v1049, %v1050
    %v1052 = vsel %vm223, %v334, 0.0
    %v1053 = vrot.slane %v1052, 4
    %v1054 = vadd.f32 %v1052, %v1053
    %v1055 = vrot.slane %v1054, 2
    %v1056 = vadd.f32 %v1054, %v1055
    %v1057 = vrot.slane %v1056, 1
    %v1058 = vadd.f32 %v1056, %v1057
    %v1059 = vsel %vm223, %v337, 0.0
    %v1060 = vrot.slane %v1059, 4
    %v1061 = vadd.f32 %v1059, %v1060
    %v1062 = vrot.slane %v1061, 2
    %v1063 = vadd.f32 %v1061, %v1062
    %v1064 = vrot.slane %v1063, 1
    %v1065 = vadd.f32 %v1063, %v1064
    %v1066 = vsel %vm223, %v340, 0.0
    %v1067 = vrot.slane %v1066, 4
    %v1068 = vadd.f32 %v1066, %v1067
    %v1069 = vrot.slane %v1068, 2
    %v1070 = vadd.f32 %v1068, %v1069
    %v1071 = vrot.slane %v1070, 1
    %v1072 = vadd.f32 %v1070, %v1071
    %v1073 = vsel %vm223, %v343, 0.0
    %v1074 = vrot.slane %v1073, 4
    %v1075 = vadd.f32 %v1073, %v1074
    %v1076 = vrot.slane %v1075, 2
    %v1077 = vadd.f32 %v1075, %v1076
    %v1078 = vrot.slane %v1077, 1
    %v1079 = vadd.f32 %v1077, %v1078
    %v1080 = vsel %vm223, %v346, 0.0
    %v1081 = vrot.slane %v1080, 4
    %v1082 = vadd.f32 %v1080, %v1081
    %v1083 = vrot.slane %v1082, 2
    %v1084 = vadd.f32 %v1082, %v1083
    %v1085 = vrot.slane %v1084, 1
    %v1086 = vadd.f32 %v1084, %v1085
    %v1087 = vsel %vm223, %v349, 0.0
    %v1088 = vrot.slane %v1087, 4
    %v1089 = vadd.f32 %v1087, %v1088
    %v1090 = vrot.slane %v1089, 2
    %v1091 = vadd.f32 %v1089, %v1090
    %v1092 = vrot.slane %v1091, 1
    %v1093 = vadd.f32 %v1091, %v1092
    %v1094 = vsel %vm223, %v352, 0.0
    %v1095 = vrot.slane %v1094, 4
    %v1096 = vadd.f32 %v1094, %v1095
    %v1097 = vrot.slane %v1096, 2
    %v1098 = vadd.f32 %v1096, %v1097
    %v1099 = vrot.slane %v1098, 1
    %v1100 = vadd.f32 %v1098, %v1099
    %v1101 = vsel %vm223, %v355, 0.0
    %v1102 = vrot.slane %v1101, 4
    %v1103 = vadd.f32 %v1101, %v1102
    %v1104 = vrot.slane %v1103, 2
    %v1105 = vadd.f32 %v1103, %v1104
    %v1106 = vrot.slane %v1105, 1
    %v1107 = vadd.f32 %v1105, %v1106
    %v1108 = vsel %vm223, %v358, 0.0
    %v1109 = vrot.slane %v1108, 4
    %v1110 = vadd.f32 %v1108, %v1109
    %v1111 = vrot.slane %v1110, 2
    %v1112 = vadd.f32 %v1110, %v1111
    %v1113 = vrot.slane %v1112, 1
    %v1114 = vadd.f32 %v1112, %v1113
    %v1115 = vsel %vm223, %v361, 0.0
    %v1116 = vrot.slane %v1115, 4
    %v1117 = vadd.f32 %v1115, %v1116
    %v1118 = vrot.slane %v1117, 2
    %v1119 = vadd.f32 %v1117, %v1118
    %v1120 = vrot.slane %v1119, 1
    %v1121 = vadd.f32 %v1119, %v1120
    %v1122 = vsel %vm223, %v364, 0.0
    %v1123 = vrot.slane %v1122, 4
    %v1124 = vadd.f32 %v1122, %v1123
    %v1125 = vrot.slane %v1124, 2
    %v1126 = vadd.f32 %v1124, %v1125
    %v1127 = vrot.slane %v1126, 1
    %v1128 = vadd.f32 %v1126, %v1127
    %v1129 = vsel %vm223, %v367, 0.0
    %v1130 = vrot.slane %v1129, 4
    %v1131 = vadd.f32 %v1129, %v1130
    %v1132 = vrot.slane %v1131, 2
    %v1133 = vadd.f32 %v1131, %v1132
    %v1134 = vrot.slane %v1133, 1
    %v1135 = vadd.f32 %v1133, %v1134
    %v1136 = vsel %vm223, %v370, 0.0
    %v1137 = vrot.slane %v1136, 4
    %v1138 = vadd.f32 %v1136, %v1137
    %v1139 = vrot.slane %v1138, 2
    %v1140 = vadd.f32 %v1138, %v1139
    %v1141 = vrot.slane %v1140, 1
    %v1142 = vadd.f32 %v1140, %v1141
    %v1143 = vsel %vm223, %v373, 0.0
    %v1144 = vrot.slane %v1143, 4
    %v1145 = vadd.f32 %v1143, %v1144
    %v1146 = vrot.slane %v1145, 2
    %v1147 = vadd.f32 %v1145, %v1146
    %v1148 = vrot.slane %v1147, 1
    %v1149 = vadd.f32 %v1147, %v1148
    %v1150 = vsel %vm223, %v376, 0.0
    %v1151 = vrot.slane %v1150, 4
    %v1152 = vadd.f32 %v1150, %v1151
    %v1153 = vrot.slane %v1152, 2
    %v1154 = vadd.f32 %v1152, %v1153
    %v1155 = vrot.slane %v1154, 1
    %v1156 = vadd.f32 %v1154, %v1155
    %v1157 = vsel %vm223, %v379, 0.0
    %v1158 = vrot.slane %v1157, 4
    %v1159 = vadd.f32 %v1157, %v1158
    %v1160 = vrot.slane %v1159, 2
    %v1161 = vadd.f32 %v1159, %v1160
    %v1162 = vrot.slane %v1161, 1
    %v1163 = vadd.f32 %v1161, %v1162
    %v1164 = vsel %vm223, %v382, 0.0
    %v1165 = vrot.slane %v1164, 4
    %v1166 = vadd.f32 %v1164, %v1165
    %v1167 = vrot.slane %v1166, 2
    %v1168 = vadd.f32 %v1166, %v1167
    %v1169 = vrot.slane %v1168, 1
    %v1170 = vadd.f32 %v1168, %v1169
    %v1171 = vsel %vm223, %v385, 0.0
    %v1172 = vrot.slane %v1171, 4
    %v1173 = vadd.f32 %v1171, %v1172
    %v1174 = vrot.slane %v1173, 2
    %v1175 = vadd.f32 %v1173, %v1174
    %v1176 = vrot.slane %v1175, 1
    %v1177 = vadd.f32 %v1175, %v1176
    %v1178 = vsel %vm223, %v388, 0.0
    %v1179 = vrot.slane %v1178, 4
    %v1180 = vadd.f32 %v1178, %v1179
    %v1181 = vrot.slane %v1180, 2
    %v1182 = vadd.f32 %v1180, %v1181
    %v1183 = vrot.slane %v1182, 1
    %v1184 = vadd.f32 %v1182, %v1183
    %v1185 = vsel %vm223, %v391, 0.0
    %v1186 = vrot.slane %v1185, 4
    %v1187 = vadd.f32 %v1185, %v1186
    %v1188 = vrot.slane %v1187, 2
    %v1189 = vadd.f32 %v1187, %v1188
    %v1190 = vrot.slane %v1189, 1
    %v1191 = vadd.f32 %v1189, %v1190
    %v1192 = vsel %vm223, %v394, 0.0
    %v1193 = vrot.slane %v1192, 4
    %v1194 = vadd.f32 %v1192, %v1193
    %v1195 = vrot.slane %v1194, 2
    %v1196 = vadd.f32 %v1194, %v1195
    %v1197 = vrot.slane %v1196, 1
    %v1198 = vadd.f32 %v1196, %v1197
    %v1199 = vsel %vm223, %v397, 0.0
    %v1200 = vrot.slane %v1199, 4
    %v1201 = vadd.f32 %v1199, %v1200
    %v1202 = vrot.slane %v1201, 2
    %v1203 = vadd.f32 %v1201, %v1202
    %v1204 = vrot.slane %v1203, 1
    %v1205 = vadd.f32 %v1203, %v1204
    %v1206 = vsel %vm223, %v400, 0.0
    %v1207 = vrot.slane %v1206, 4
    %v1208 = vadd.f32 %v1206, %v1207
    %v1209 = vrot.slane %v1208, 2
    %v1210 = vadd.f32 %v1208, %v1209
    %v1211 = vrot.slane %v1210, 1
    %v1212 = vadd.f32 %v1210, %v1211
    %v1213 = vsel %vm223, %v403, 0.0
    %v1214 = vrot.slane %v1213, 4
    %v1215 = vadd.f32 %v1213, %v1214
    %v1216 = vrot.slane %v1215, 2
    %v1217 = vadd.f32 %v1215, %v1216
    %v1218 = vrot.slane %v1217, 1
    %v1219 = vadd.f32 %v1217, %v1218
    %v1220 = vsel %vm223, %v406, 0.0
    %v1221 = vrot.slane %v1220, 4
    %v1222 = vadd.f32 %v1220, %v1221
    %v1223 = vrot.slane %v1222, 2
    %v1224 = vadd.f32 %v1222, %v1223
    %v1225 = vrot.slane %v1224, 1
    %v1226 = vadd.f32 %v1224, %v1225
    %v1227 = vsel %vm223, %v409, 0.0
    %v1228 = vrot.slane %v1227, 4
    %v1229 = vadd.f32 %v1227, %v1228
    %v1230 = vrot.slane %v1229, 2
    %v1231 = vadd.f32 %v1229, %v1230
    %v1232 = vrot.slane %v1231, 1
    %v1233 = vadd.f32 %v1231, %v1232
    %v1234 = vsel %vm223, %v412, 0.0
    %v1235 = vrot.slane %v1234, 4
    %v1236 = vadd.f32 %v1234, %v1235
    %v1237 = vrot.slane %v1236, 2
    %v1238 = vadd.f32 %v1236, %v1237
    %v1239 = vrot.slane %v1238, 1
    %v1240 = vadd.f32 %v1238, %v1239
    %v1241 = vsel %vm223, %v415, 0.0
    %v1242 = vrot.slane %v1241, 4
    %v1243 = vadd.f32 %v1241, %v1242
    %v1244 = vrot.slane %v1243, 2
    %v1245 = vadd.f32 %v1243, %v1244
    %v1246 = vrot.slane %v1245, 1
    %v1247 = vadd.f32 %v1245, %v1246
    %v1248 = vsel %vm223, %v418, 0.0
    %v1249 = vrot.slane %v1248, 4
    %v1250 = vadd.f32 %v1248, %v1249
    %v1251 = vrot.slane %v1250, 2
    %v1252 = vadd.f32 %v1250, %v1251
    %v1253 = vrot.slane %v1252, 1
    %v1254 = vadd.f32 %v1252, %v1253
    %v1255 = vsel %vm223, %v421, 0.0
    %v1256 = vrot.slane %v1255, 4
    %v1257 = vadd.f32 %v1255, %v1256
    %v1258 = vrot.slane %v1257, 2
    %v1259 = vadd.f32 %v1257, %v1258
    %v1260 = vrot.slane %v1259, 1
    %v1261 = vadd.f32 %v1259, %v1260
    %v1262 = vsel %vm223, %v424, 0.0
    %v1263 = vrot.slane %v1262, 4
    %v1264 = vadd.f32 %v1262, %v1263
    %v1265 = vrot.slane %v1264, 2
    %v1266 = vadd.f32 %v1264, %v1265
    %v1267 = vrot.slane %v1266, 1
    %v1268 = vadd.f32 %v1266, %v1267
    %v1269 = vsel %vm223, %v427, 0.0
    %v1270 = vrot.slane %v1269, 4
    %v1271 = vadd.f32 %v1269, %v1270
    %v1272 = vrot.slane %v1271, 2
    %v1273 = vadd.f32 %v1271, %v1272
    %v1274 = vrot.slane %v1273, 1
    %v1275 = vadd.f32 %v1273, %v1274
    %v1276 = vsel %vm223, %v430, 0.0
    %v1277 = vrot.slane %v1276, 4
    %v1278 = vadd.f32 %v1276, %v1277
    %v1279 = vrot.slane %v1278, 2
    %v1280 = vadd.f32 %v1278, %v1279
    %v1281 = vrot.slane %v1280, 1
    %v1282 = vadd.f32 %v1280, %v1281
    %v1283 = vsel %vm223, %v433, 0.0
    %v1284 = vrot.slane %v1283, 4
    %v1285 = vadd.f32 %v1283, %v1284
    %v1286 = vrot.slane %v1285, 2
    %v1287 = vadd.f32 %v1285, %v1286
    %v1288 = vrot.slane %v1287, 1
    %v1289 = vadd.f32 %v1287, %v1288
    %v1290 = vsel %vm223, %v436, 0.0
    %v1291 = vrot.slane %v1290, 4
    %v1292 = vadd.f32 %v1290, %v1291
    %v1293 = vrot.slane %v1292, 2
    %v1294 = vadd.f32 %v1292, %v1293
    %v1295 = vrot.slane %v1294, 1
    %v1296 = vadd.f32 %v1294, %v1295
    %v1297 = vsel %vm223, %v439, 0.0
    %v1298 = vrot.slane %v1297, 4
    %v1299 = vadd.f32 %v1297, %v1298
    %v1300 = vrot.slane %v1299, 2
    %v1301 = vadd.f32 %v1299, %v1300
    %v1302 = vrot.slane %v1301, 1
    %v1303 = vadd.f32 %v1301, %v1302
    %v1304 = vsel %vm223, %v442, 0.0
    %v1305 = vrot.slane %v1304, 4
    %v1306 = vadd.f32 %v1304, %v1305
    %v1307 = vrot.slane %v1306, 2
    %v1308 = vadd.f32 %v1306, %v1307
    %v1309 = vrot.slane %v1308, 1
    %v1310 = vadd.f32 %v1308, %v1309
    %v1311 = vsel %vm223, %v445, 0.0
    %v1312 = vrot.slane %v1311, 4
    %v1313 = vadd.f32 %v1311, %v1312
    %v1314 = vrot.slane %v1313, 2
    %v1315 = vadd.f32 %v1313, %v1314
    %v1316 = vrot.slane %v1315, 1
    %v1317 = vadd.f32 %v1315, %v1316
    %v1318 = vsel %vm223, %v448, 0.0
    %v1319 = vrot.slane %v1318, 4
    %v1320 = vadd.f32 %v1318, %v1319
    %v1321 = vrot.slane %v1320, 2
    %v1322 = vadd.f32 %v1320, %v1321
    %v1323 = vrot.slane %v1322, 1
    %v1324 = vadd.f32 %v1322, %v1323
    %v1325 = vsel %vm223, %v451, 0.0
    %v1326 = vrot.slane %v1325, 4
    %v1327 = vadd.f32 %v1325, %v1326
    %v1328 = vrot.slane %v1327, 2
    %v1329 = vadd.f32 %v1327, %v1328
    %v1330 = vrot.slane %v1329, 1
    %v1331 = vadd.f32 %v1329, %v1330
    %v1332 = vsel %vm223, %v454, 0.0
    %v1333 = vrot.slane %v1332, 4
    %v1334 = vadd.f32 %v1332, %v1333
    %v1335 = vrot.slane %v1334, 2
    %v1336 = vadd.f32 %v1334, %v1335
    %v1337 = vrot.slane %v1336, 1
    %v1338 = vadd.f32 %v1336, %v1337
    %v1339 = vsel %vm223, %v457, 0.0
    %v1340 = vrot.slane %v1339, 4
    %v1341 = vadd.f32 %v1339, %v1340
    %v1342 = vrot.slane %v1341, 2
    %v1343 = vadd.f32 %v1341, %v1342
    %v1344 = vrot.slane %v1343, 1
    %v1345 = vadd.f32 %v1343, %v1344
    %v1346 = vsel %vm223, %v460, 0.0
    %v1347 = vrot.slane %v1346, 4
    %v1348 = vadd.f32 %v1346, %v1347
    %v1349 = vrot.slane %v1348, 2
    %v1350 = vadd.f32 %v1348, %v1349
    %v1351 = vrot.slane %v1350, 1
    %v1352 = vadd.f32 %v1350, %v1351
    %v1353 = vsel %vm223, %v463, 0.0
    %v1354 = vrot.slane %v1353, 4
    %v1355 = vadd.f32 %v1353, %v1354
    %v1356 = vrot.slane %v1355, 2
    %v1357 = vadd.f32 %v1355, %v1356
    %v1358 = vrot.slane %v1357, 1
    %v1359 = vadd.f32 %v1357, %v1358
    %v1360 = vsel %vm223, %v466, 0.0
    %v1361 = vrot.slane %v1360, 4
    %v1362 = vadd.f32 %v1360, %v1361
    %v1363 = vrot.slane %v1362, 2
    %v1364 = vadd.f32 %v1362, %v1363
    %v1365 = vrot.slane %v1364, 1
    %v1366 = vadd.f32 %v1364, %v1365
    %v1367 = vsel %vm223, %v469, 0.0
    %v1368 = vrot.slane %v1367, 4
    %v1369 = vadd.f32 %v1367, %v1368
    %v1370 = vrot.slane %v1369, 2
    %v1371 = vadd.f32 %v1369, %v1370
    %v1372 = vrot.slane %v1371, 1
    %v1373 = vadd.f32 %v1371, %v1372
    %v1374 = vsel %vm223, %v472, 0.0
    %v1375 = vrot.slane %v1374, 4
    %v1376 = vadd.f32 %v1374, %v1375
    %v1377 = vrot.slane %v1376, 2
    %v1378 = vadd.f32 %v1376, %v1377
    %v1379 = vrot.slane %v1378, 1
    %v1380 = vadd.f32 %v1378, %v1379
    %v1381 = vsel %vm223, %v475, 0.0
    %v1382 = vrot.slane %v1381, 4
    %v1383 = vadd.f32 %v1381, %v1382
    %v1384 = vrot.slane %v1383, 2
    %v1385 = vadd.f32 %v1383, %v1384
    %v1386 = vrot.slane %v1385, 1
    %v1387 = vadd.f32 %v1385, %v1386
    %v1388 = vsel %vm223, %v478, 0.0
    %v1389 = vrot.slane %v1388, 4
    %v1390 = vadd.f32 %v1388, %v1389
    %v1391 = vrot.slane %v1390, 2
    %v1392 = vadd.f32 %v1390, %v1391
    %v1393 = vrot.slane %v1392, 1
    %v1394 = vadd.f32 %v1392, %v1393
    %v1395 = vsel %vm223, %v481, 0.0
    %v1396 = vrot.slane %v1395, 4
    %v1397 = vadd.f32 %v1395, %v1396
    %v1398 = vrot.slane %v1397, 2
    %v1399 = vadd.f32 %v1397, %v1398
    %v1400 = vrot.slane %v1399, 1
    %v1401 = vadd.f32 %v1399, %v1400
    %v1402 = vsel %vm223, %v484, 0.0
    %v1403 = vrot.slane %v1402, 4
    %v1404 = vadd.f32 %v1402, %v1403
    %v1405 = vrot.slane %v1404, 2
    %v1406 = vadd.f32 %v1404, %v1405
    %v1407 = vrot.slane %v1406, 1
    %v1408 = vadd.f32 %v1406, %v1407
    %v1409 = vsel %vm223, %v487, 0.0
    %v1410 = vrot.slane %v1409, 4
    %v1411 = vadd.f32 %v1409, %v1410
    %v1412 = vrot.slane %v1411, 2
    %v1413 = vadd.f32 %v1411, %v1412
    %v1414 = vrot.slane %v1413, 1
    %v1415 = vadd.f32 %v1413, %v1414
    %v1416 = vsel %vm223, %v490, 0.0
    %v1417 = vrot.slane %v1416, 4
    %v1418 = vadd.f32 %v1416, %v1417
    %v1419 = vrot.slane %v1418, 2
    %v1420 = vadd.f32 %v1418, %v1419
    %v1421 = vrot.slane %v1420, 1
    %v1422 = vadd.f32 %v1420, %v1421
    %v1423 = vsel %vm223, %v493, 0.0
    %v1424 = vrot.slane %v1423, 4
    %v1425 = vadd.f32 %v1423, %v1424
    %v1426 = vrot.slane %v1425, 2
    %v1427 = vadd.f32 %v1425, %v1426
    %v1428 = vrot.slane %v1427, 1
    %v1429 = vadd.f32 %v1427, %v1428
    %v1430 = vsel %vm223, %v496, 0.0
    %v1431 = vrot.slane %v1430, 4
    %v1432 = vadd.f32 %v1430, %v1431
    %v1433 = vrot.slane %v1432, 2
    %v1434 = vadd.f32 %v1432, %v1433
    %v1435 = vrot.slane %v1434, 1
    %v1436 = vadd.f32 %v1434, %v1435
    %v1437 = vsel %vm223, %v499, 0.0
    %v1438 = vrot.slane %v1437, 4
    %v1439 = vadd.f32 %v1437, %v1438
    %v1440 = vrot.slane %v1439, 2
    %v1441 = vadd.f32 %v1439, %v1440
    %v1442 = vrot.slane %v1441, 1
    %v1443 = vadd.f32 %v1441, %v1442
    %v1444 = vsel %vm223, %v502, 0.0
    %v1445 = vrot.slane %v1444, 4
    %v1446 = vadd.f32 %v1444, %v1445
    %v1447 = vrot.slane %v1446, 2
    %v1448 = vadd.f32 %v1446, %v1447
    %v1449 = vrot.slane %v1448, 1
    %v1450 = vadd.f32 %v1448, %v1449
    %v1451 = vsel %vm223, %v505, 0.0
    %v1452 = vrot.slane %v1451, 4
    %v1453 = vadd.f32 %v1451, %v1452
    %v1454 = vrot.slane %v1453, 2
    %v1455 = vadd.f32 %v1453, %v1454
    %v1456 = vrot.slane %v1455, 1
    %v1457 = vadd.f32 %v1455, %v1456
    %v1458 = vsel %vm223, %v508, 0.0
    %v1459 = vrot.slane %v1458, 4
    %v1460 = vadd.f32 %v1458, %v1459
    %v1461 = vrot.slane %v1460, 2
    %v1462 = vadd.f32 %v1460, %v1461
    %v1463 = vrot.slane %v1462, 1
    %v1464 = vadd.f32 %v1462, %v1463
    %v1465 = vsel %vm223, %v511, 0.0
    %v1466 = vrot.slane %v1465, 4
    %v1467 = vadd.f32 %v1465, %v1466
    %v1468 = vrot.slane %v1467, 2
    %v1469 = vadd.f32 %v1467, %v1468
    %v1470 = vrot.slane %v1469, 1
    %v1471 = vadd.f32 %v1469, %v1470
    %v1472 = vsel %vm223, %v514, 0.0
    %v1473 = vrot.slane %v1472, 4
    %v1474 = vadd.f32 %v1472, %v1473
    %v1475 = vrot.slane %v1474, 2
    %v1476 = vadd.f32 %v1474, %v1475
    %v1477 = vrot.slane %v1476, 1
    %v1478 = vadd.f32 %v1476, %v1477
    %v1479 = vsel %vm223, %v517, 0.0
    %v1480 = vrot.slane %v1479, 4
    %v1481 = vadd.f32 %v1479, %v1480
    %v1482 = vrot.slane %v1481, 2
    %v1483 = vadd.f32 %v1481, %v1482
    %v1484 = vrot.slane %v1483, 1
    %v1485 = vadd.f32 %v1483, %v1484
    %v1486 = vsel %vm223, %v520, 0.0
    %v1487 = vrot.slane %v1486, 4
    %v1488 = vadd.f32 %v1486, %v1487
    %v1489 = vrot.slane %v1488, 2
    %v1490 = vadd.f32 %v1488, %v1489
    %v1491 = vrot.slane %v1490, 1
    %v1492 = vadd.f32 %v1490, %v1491
    %v1493 = vsel %vm223, %v523, 0.0
    %v1494 = vrot.slane %v1493, 4
    %v1495 = vadd.f32 %v1493, %v1494
    %v1496 = vrot.slane %v1495, 2
    %v1497 = vadd.f32 %v1495, %v1496
    %v1498 = vrot.slane %v1497, 1
    %v1499 = vadd.f32 %v1497, %v1498
    %v1500 = vsel %vm223, %v526, 0.0
    %v1501 = vrot.slane %v1500, 4
    %v1502 = vadd.f32 %v1500, %v1501
    %v1503 = vrot.slane %v1502, 2
    %v1504 = vadd.f32 %v1502, %v1503
    %v1505 = vrot.slane %v1504, 1
    %v1506 = vadd.f32 %v1504, %v1505
    %v1507 = vsel %vm223, %v529, 0.0
    %v1508 = vrot.slane %v1507, 4
    %v1509 = vadd.f32 %v1507, %v1508
    %v1510 = vrot.slane %v1509, 2
    %v1511 = vadd.f32 %v1509, %v1510
    %v1512 = vrot.slane %v1511, 1
    %v1513 = vadd.f32 %v1511, %v1512
    %v1514 = vsel %vm223, %v532, 0.0
    %v1515 = vrot.slane %v1514, 4
    %v1516 = vadd.f32 %v1514, %v1515
    %v1517 = vrot.slane %v1516, 2
    %v1518 = vadd.f32 %v1516, %v1517
    %v1519 = vrot.slane %v1518, 1
    %v1520 = vadd.f32 %v1518, %v1519
    %v1521 = vsel %vm223, %v535, 0.0
    %v1522 = vrot.slane %v1521, 4
    %v1523 = vadd.f32 %v1521, %v1522
    %v1524 = vrot.slane %v1523, 2
    %v1525 = vadd.f32 %v1523, %v1524
    %v1526 = vrot.slane %v1525, 1
    %v1527 = vadd.f32 %v1525, %v1526
    %v1528 = vsel %vm223, %v538, 0.0
    %v1529 = vrot.slane %v1528, 4
    %v1530 = vadd.f32 %v1528, %v1529
    %v1531 = vrot.slane %v1530, 2
    %v1532 = vadd.f32 %v1530, %v1531
    %v1533 = vrot.slane %v1532, 1
    %v1534 = vadd.f32 %v1532, %v1533
    %v1535 = vsel %vm223, %v541, 0.0
    %v1536 = vrot.slane %v1535, 4
    %v1537 = vadd.f32 %v1535, %v1536
    %v1538 = vrot.slane %v1537, 2
    %v1539 = vadd.f32 %v1537, %v1538
    %v1540 = vrot.slane %v1539, 1
    %v1541 = vadd.f32 %v1539, %v1540
    %v1542 = vsel %vm223, %v544, 0.0
    %v1543 = vrot.slane %v1542, 4
    %v1544 = vadd.f32 %v1542, %v1543
    %v1545 = vrot.slane %v1544, 2
    %v1546 = vadd.f32 %v1544, %v1545
    %v1547 = vrot.slane %v1546, 1
    %v1548 = vadd.f32 %v1546, %v1547
    %v1549 = vsel %vm223, %v547, 0.0
    %v1550 = vrot.slane %v1549, 4
    %v1551 = vadd.f32 %v1549, %v1550
    %v1552 = vrot.slane %v1551, 2
    %v1553 = vadd.f32 %v1551, %v1552
    %v1554 = vrot.slane %v1553, 1
    %v1555 = vadd.f32 %v1553, %v1554
    %v1556 = vsel %vm223, %v550, 0.0
    %v1557 = vrot.slane %v1556, 4
    %v1558 = vadd.f32 %v1556, %v1557
    %v1559 = vrot.slane %v1558, 2
    %v1560 = vadd.f32 %v1558, %v1559
    %v1561 = vrot.slane %v1560, 1
    %v1562 = vadd.f32 %v1560, %v1561
    %v1563 = vsel %vm223, %v553, 0.0
    %v1564 = vrot.slane %v1563, 4
    %v1565 = vadd.f32 %v1563, %v1564
    %v1566 = vrot.slane %v1565, 2
    %v1567 = vadd.f32 %v1565, %v1566
    %v1568 = vrot.slane %v1567, 1
    %v1569 = vadd.f32 %v1567, %v1568
    %v1570 = vsel %vm223, %v556, 0.0
    %v1571 = vrot.slane %v1570, 4
    %v1572 = vadd.f32 %v1570, %v1571
    %v1573 = vrot.slane %v1572, 2
    %v1574 = vadd.f32 %v1572, %v1573
    %v1575 = vrot.slane %v1574, 1
    %v1576 = vadd.f32 %v1574, %v1575
    %v1577 = vsel %vm223, %v559, 0.0
    %v1578 = vrot.slane %v1577, 4
    %v1579 = vadd.f32 %v1577, %v1578
    %v1580 = vrot.slane %v1579, 2
    %v1581 = vadd.f32 %v1579, %v1580
    %v1582 = vrot.slane %v1581, 1
    %v1583 = vadd.f32 %v1581, %v1582
    %v1584 = vsel %vm223, %v562, 0.0
    %v1585 = vrot.slane %v1584, 4
    %v1586 = vadd.f32 %v1584, %v1585
    %v1587 = vrot.slane %v1586, 2
    %v1588 = vadd.f32 %v1586, %v1587
    %v1589 = vrot.slane %v1588, 1
    %v1590 = vadd.f32 %v1588, %v1589
    %v1591 = vsel %vm223, %v565, 0.0
    %v1592 = vrot.slane %v1591, 4
    %v1593 = vadd.f32 %v1591, %v1592
    %v1594 = vrot.slane %v1593, 2
    %v1595 = vadd.f32 %v1593, %v1594
    %v1596 = vrot.slane %v1595, 1
    %v1597 = vadd.f32 %v1595, %v1596
    %v1598 = vsel %vm223, %v568, 0.0
    %v1599 = vrot.slane %v1598, 4
    %v1600 = vadd.f32 %v1598, %v1599
    %v1601 = vrot.slane %v1600, 2
    %v1602 = vadd.f32 %v1600, %v1601
    %v1603 = vrot.slane %v1602, 1
    %v1604 = vadd.f32 %v1602, %v1603
    %v1605 = vsel %vm223, %v571, 0.0
    %v1606 = vrot.slane %v1605, 4
    %v1607 = vadd.f32 %v1605, %v1606
    %v1608 = vrot.slane %v1607, 2
    %v1609 = vadd.f32 %v1607, %v1608
    %v1610 = vrot.slane %v1609, 1
    %v1611 = vadd.f32 %v1609, %v1610
    %v1612 = vsel %vm223, %v574, 0.0
    %v1613 = vrot.slane %v1612, 4
    %v1614 = vadd.f32 %v1612, %v1613
    %v1615 = vrot.slane %v1614, 2
    %v1616 = vadd.f32 %v1614, %v1615
    %v1617 = vrot.slane %v1616, 1
    %v1618 = vadd.f32 %v1616, %v1617
    %v1619 = vsel %vm223, %v577, 0.0
    %v1620 = vrot.slane %v1619, 4
    %v1621 = vadd.f32 %v1619, %v1620
    %v1622 = vrot.slane %v1621, 2
    %v1623 = vadd.f32 %v1621, %v1622
    %v1624 = vrot.slane %v1623, 1
    %v1625 = vadd.f32 %v1623, %v1624
    %v1626 = vsel %vm223, %v580, 0.0
    %v1627 = vrot.slane %v1626, 4
    %v1628 = vadd.f32 %v1626, %v1627
    %v1629 = vrot.slane %v1628, 2
    %v1630 = vadd.f32 %v1628, %v1629
    %v1631 = vrot.slane %v1630, 1
    %v1632 = vadd.f32 %v1630, %v1631
    %v1633 = vsel %vm223, %v583, 0.0
    %v1634 = vrot.slane %v1633, 4
    %v1635 = vadd.f32 %v1633, %v1634
    %v1636 = vrot.slane %v1635, 2
    %v1637 = vadd.f32 %v1635, %v1636
    %v1638 = vrot.slane %v1637, 1
    %v1639 = vadd.f32 %v1637, %v1638
    %v1640 = vsel %vm223, %v586, 0.0
    %v1641 = vrot.slane %v1640, 4
    %v1642 = vadd.f32 %v1640, %v1641
    %v1643 = vrot.slane %v1642, 2
    %v1644 = vadd.f32 %v1642, %v1643
    %v1645 = vrot.slane %v1644, 1
    %v1646 = vadd.f32 %v1644, %v1645
    %v1647 = vsel %vm223, %v589, 0.0
    %v1648 = vrot.slane %v1647, 4
    %v1649 = vadd.f32 %v1647, %v1648
    %v1650 = vrot.slane %v1649, 2
    %v1651 = vadd.f32 %v1649, %v1650
    %v1652 = vrot.slane %v1651, 1
    %v1653 = vadd.f32 %v1651, %v1652
    %v1654 = vsel %vm223, %v592, 0.0
    %v1655 = vrot.slane %v1654, 4
    %v1656 = vadd.f32 %v1654, %v1655
    %v1657 = vrot.slane %v1656, 2
    %v1658 = vadd.f32 %v1656, %v1657
    %v1659 = vrot.slane %v1658, 1
    %v1660 = vadd.f32 %v1658, %v1659
    %v1661 = vsel %vm223, %v595, 0.0
    %v1662 = vrot.slane %v1661, 4
    %v1663 = vadd.f32 %v1661, %v1662
    %v1664 = vrot.slane %v1663, 2
    %v1665 = vadd.f32 %v1663, %v1664
    %v1666 = vrot.slane %v1665, 1
    %v1667 = vadd.f32 %v1665, %v1666
    %v1668 = vsel %vm223, %v598, 0.0
    %v1669 = vrot.slane %v1668, 4
    %v1670 = vadd.f32 %v1668, %v1669
    %v1671 = vrot.slane %v1670, 2
    %v1672 = vadd.f32 %v1670, %v1671
    %v1673 = vrot.slane %v1672, 1
    %v1674 = vadd.f32 %v1672, %v1673
    %v1675 = vsel %vm223, %v601, 0.0
    %v1676 = vrot.slane %v1675, 4
    %v1677 = vadd.f32 %v1675, %v1676
    %v1678 = vrot.slane %v1677, 2
    %v1679 = vadd.f32 %v1677, %v1678
    %v1680 = vrot.slane %v1679, 1
    %v1681 = vadd.f32 %v1679, %v1680
    %v1682 = vsel %vm223, %v604, 0.0
    %v1683 = vrot.slane %v1682, 4
    %v1684 = vadd.f32 %v1682, %v1683
    %v1685 = vrot.slane %v1684, 2
    %v1686 = vadd.f32 %v1684, %v1685
    %v1687 = vrot.slane %v1686, 1
    %v1688 = vadd.f32 %v1686, %v1687
    %v1689 = vsel %vm223, %v607, 0.0
    %v1690 = vrot.slane %v1689, 4
    %v1691 = vadd.f32 %v1689, %v1690
    %v1692 = vrot.slane %v1691, 2
    %v1693 = vadd.f32 %v1691, %v1692
    %v1694 = vrot.slane %v1693, 1
    %v1695 = vadd.f32 %v1693, %v1694
    %v1696 = vsel %vm223, %v610, 0.0
    %v1697 = vrot.slane %v1696, 4
    %v1698 = vadd.f32 %v1696, %v1697
    %v1699 = vrot.slane %v1698, 2
    %v1700 = vadd.f32 %v1698, %v1699
    %v1701 = vrot.slane %v1700, 1
    %v1702 = vadd.f32 %v1700, %v1701
    %v1703 = vsel %vm223, %v613, 0.0
    %v1704 = vrot.slane %v1703, 4
    %v1705 = vadd.f32 %v1703, %v1704
    %v1706 = vrot.slane %v1705, 2
    %v1707 = vadd.f32 %v1705, %v1706
    %v1708 = vrot.slane %v1707, 1
    %v1709 = vadd.f32 %v1707, %v1708
    %v1710 = vsel %vm223, %v616, 0.0
    %v1711 = vrot.slane %v1710, 4
    %v1712 = vadd.f32 %v1710, %v1711
    %v1713 = vrot.slane %v1712, 2
    %v1714 = vadd.f32 %v1712, %v1713
    %v1715 = vrot.slane %v1714, 1
    %v1716 = vadd.f32 %v1714, %v1715
    %v1717 = vsel %vm223, %v619, 0.0
    %v1718 = vrot.slane %v1717, 4
    %v1719 = vadd.f32 %v1717, %v1718
    %v1720 = vrot.slane %v1719, 2
    %v1721 = vadd.f32 %v1719, %v1720
    %v1722 = vrot.slane %v1721, 1
    %v1723 = vadd.f32 %v1721, %v1722
    %v1724 = vsel %vm223, %v622, 0.0
    %v1725 = vrot.slane %v1724, 4
    %v1726 = vadd.f32 %v1724, %v1725
    %v1727 = vrot.slane %v1726, 2
    %v1728 = vadd.f32 %v1726, %v1727
    %v1729 = vrot.slane %v1728, 1
    %v1730 = vadd.f32 %v1728, %v1729
    %v1731 = vsel %vm223, %v625, 0.0
    %v1732 = vrot.slane %v1731, 4
    %v1733 = vadd.f32 %v1731, %v1732
    %v1734 = vrot.slane %v1733, 2
    %v1735 = vadd.f32 %v1733, %v1734
    %v1736 = vrot.slane %v1735, 1
    %v1737 = vadd.f32 %v1735, %v1736
    %v1738 = vsel %vm223, %v628, 0.0
    %v1739 = vrot.slane %v1738, 4
    %v1740 = vadd.f32 %v1738, %v1739
    %v1741 = vrot.slane %v1740, 2
    %v1742 = vadd.f32 %v1740, %v1741
    %v1743 = vrot.slane %v1742, 1
    %v1744 = vadd.f32 %v1742, %v1743
    %v1745 = vsel %vm223, %v631, 0.0
    %v1746 = vrot.slane %v1745, 4
    %v1747 = vadd.f32 %v1745, %v1746
    %v1748 = vrot.slane %v1747, 2
    %v1749 = vadd.f32 %v1747, %v1748
    %v1750 = vrot.slane %v1749, 1
    %v1751 = vadd.f32 %v1749, %v1750
    %v1752 = vsel %vm223, %v634, 0.0
    %v1753 = vrot.slane %v1752, 4
    %v1754 = vadd.f32 %v1752, %v1753
    %v1755 = vrot.slane %v1754, 2
    %v1756 = vadd.f32 %v1754, %v1755
    %v1757 = vrot.slane %v1756, 1
    %v1758 = vadd.f32 %v1756, %v1757
    %v1759 = vsel %vm223, %v637, 0.0
    %v1760 = vrot.slane %v1759, 4
    %v1761 = vadd.f32 %v1759, %v1760
    %v1762 = vrot.slane %v1761, 2
    %v1763 = vadd.f32 %v1761, %v1762
    %v1764 = vrot.slane %v1763, 1
    %v1765 = vadd.f32 %v1763, %v1764
    %v1766 = vsel %vm223, %v640, 0.0
    %v1767 = vrot.slane %v1766, 4
    %v1768 = vadd.f32 %v1766, %v1767
    %v1769 = vrot.slane %v1768, 2
    %v1770 = vadd.f32 %v1768, %v1769
    %v1771 = vrot.slane %v1770, 1
    %v1772 = vadd.f32 %v1770, %v1771
    %v1773 = vsel %vm223, %v643, 0.0
    %v1774 = vrot.slane %v1773, 4
    %v1775 = vadd.f32 %v1773, %v1774
    %v1776 = vrot.slane %v1775, 2
    %v1777 = vadd.f32 %v1775, %v1776
    %v1778 = vrot.slane %v1777, 1
    %v1779 = vadd.f32 %v1777, %v1778
    %v1780 = vsel %vm223, %v646, 0.0
    %v1781 = vrot.slane %v1780, 4
    %v1782 = vadd.f32 %v1780, %v1781
    %v1783 = vrot.slane %v1782, 2
    %v1784 = vadd.f32 %v1782, %v1783
    %v1785 = vrot.slane %v1784, 1
    %v1786 = vadd.f32 %v1784, %v1785
    %v1787 = vsel %vm223, %v649, 0.0
    %v1788 = vrot.slane %v1787, 4
    %v1789 = vadd.f32 %v1787, %v1788
    %v1790 = vrot.slane %v1789, 2
    %v1791 = vadd.f32 %v1789, %v1790
    %v1792 = vrot.slane %v1791, 1
    %v1793 = vadd.f32 %v1791, %v1792
    %v1794 = vsel %vm223, %v652, 0.0
    %v1795 = vrot.slane %v1794, 4
    %v1796 = vadd.f32 %v1794, %v1795
    %v1797 = vrot.slane %v1796, 2
    %v1798 = vadd.f32 %v1796, %v1797
    %v1799 = vrot.slane %v1798, 1
    %v1800 = vadd.f32 %v1798, %v1799
    %v1801 = vsel %vm223, %v655, 0.0
    %v1802 = vrot.slane %v1801, 4
    %v1803 = vadd.f32 %v1801, %v1802
    %v1804 = vrot.slane %v1803, 2
    %v1805 = vadd.f32 %v1803, %v1804
    %v1806 = vrot.slane %v1805, 1
    %v1807 = vadd.f32 %v1805, %v1806
    %v1808 = vsel %vm223, %v658, 0.0
    %v1809 = vrot.slane %v1808, 4
    %v1810 = vadd.f32 %v1808, %v1809
    %v1811 = vrot.slane %v1810, 2
    %v1812 = vadd.f32 %v1810, %v1811
    %v1813 = vrot.slane %v1812, 1
    %v1814 = vadd.f32 %v1812, %v1813
    %v1815 = vsel %vm223, %v661, 0.0
    %v1816 = vrot.slane %v1815, 4
    %v1817 = vadd.f32 %v1815, %v1816
    %v1818 = vrot.slane %v1817, 2
    %v1819 = vadd.f32 %v1817, %v1818
    %v1820 = vrot.slane %v1819, 1
    %v1821 = vadd.f32 %v1819, %v1820
    %v1822 = vsel %vm223, %v664, 0.0
    %v1823 = vrot.slane %v1822, 4
    %v1824 = vadd.f32 %v1822, %v1823
    %v1825 = vrot.slane %v1824, 2
    %v1826 = vadd.f32 %v1824, %v1825
    %v1827 = vrot.slane %v1826, 1
    %v1828 = vadd.f32 %v1826, %v1827
    %v1829 = vsel %vm223, %v667, 0.0
    %v1830 = vrot.slane %v1829, 4
    %v1831 = vadd.f32 %v1829, %v1830
    %v1832 = vrot.slane %v1831, 2
    %v1833 = vadd.f32 %v1831, %v1832
    %v1834 = vrot.slane %v1833, 1
    %v1835 = vadd.f32 %v1833, %v1834
    %v1836 = vsel %vm223, %v670, 0.0
    %v1837 = vrot.slane %v1836, 4
    %v1838 = vadd.f32 %v1836, %v1837
    %v1839 = vrot.slane %v1838, 2
    %v1840 = vadd.f32 %v1838, %v1839
    %v1841 = vrot.slane %v1840, 1
    %v1842 = vadd.f32 %v1840, %v1841
    %v1843 = vsel %vm223, %v673, 0.0
    %v1844 = vrot.slane %v1843, 4
    %v1845 = vadd.f32 %v1843, %v1844
    %v1846 = vrot.slane %v1845, 2
    %v1847 = vadd.f32 %v1845, %v1846
    %v1848 = vrot.slane %v1847, 1
    %v1849 = vadd.f32 %v1847, %v1848
    %v1850 = vsel %vm223, %v676, 0.0
    %v1851 = vrot.slane %v1850, 4
    %v1852 = vadd.f32 %v1850, %v1851
    %v1853 = vrot.slane %v1852, 2
    %v1854 = vadd.f32 %v1852, %v1853
    %v1855 = vrot.slane %v1854, 1
    %v1856 = vadd.f32 %v1854, %v1855
    %v1857 = vsel %vm223, %v679, 0.0
    %v1858 = vrot.slane %v1857, 4
    %v1859 = vadd.f32 %v1857, %v1858
    %v1860 = vrot.slane %v1859, 2
    %v1861 = vadd.f32 %v1859, %v1860
    %v1862 = vrot.slane %v1861, 1
    %v1863 = vadd.f32 %v1861, %v1862
    %v1864 = vsel %vm223, %v682, 0.0
    %v1865 = vrot.slane %v1864, 4
    %v1866 = vadd.f32 %v1864, %v1865
    %v1867 = vrot.slane %v1866, 2
    %v1868 = vadd.f32 %v1866, %v1867
    %v1869 = vrot.slane %v1868, 1
    %v1870 = vadd.f32 %v1868, %v1869
    %v1871 = vsel %vm223, %v685, 0.0
    %v1872 = vrot.slane %v1871, 4
    %v1873 = vadd.f32 %v1871, %v1872
    %v1874 = vrot.slane %v1873, 2
    %v1875 = vadd.f32 %v1873, %v1874
    %v1876 = vrot.slane %v1875, 1
    %v1877 = vadd.f32 %v1875, %v1876
    %v1878 = vsel %vm223, %v688, 0.0
    %v1879 = vrot.slane %v1878, 4
    %v1880 = vadd.f32 %v1878, %v1879
    %v1881 = vrot.slane %v1880, 2
    %v1882 = vadd.f32 %v1880, %v1881
    %v1883 = vrot.slane %v1882, 1
    %v1884 = vadd.f32 %v1882, %v1883
    %v1885 = vsel %vm223, %v691, 0.0
    %v1886 = vrot.slane %v1885, 4
    %v1887 = vadd.f32 %v1885, %v1886
    %v1888 = vrot.slane %v1887, 2
    %v1889 = vadd.f32 %v1887, %v1888
    %v1890 = vrot.slane %v1889, 1
    %v1891 = vadd.f32 %v1889, %v1890
    %v1892 = vsel %vm223, %v694, 0.0
    %v1893 = vrot.slane %v1892, 4
    %v1894 = vadd.f32 %v1892, %v1893
    %v1895 = vrot.slane %v1894, 2
    %v1896 = vadd.f32 %v1894, %v1895
    %v1897 = vrot.slane %v1896, 1
    %v1898 = vadd.f32 %v1896, %v1897
    %v1899 = vsel %vm223, %v697, 0.0
    %v1900 = vrot.slane %v1899, 4
    %v1901 = vadd.f32 %v1899, %v1900
    %v1902 = vrot.slane %v1901, 2
    %v1903 = vadd.f32 %v1901, %v1902
    %v1904 = vrot.slane %v1903, 1
    %v1905 = vadd.f32 %v1903, %v1904
    %v1906 = vsel %vm223, %v700, 0.0
    %v1907 = vrot.slane %v1906, 4
    %v1908 = vadd.f32 %v1906, %v1907
    %v1909 = vrot.slane %v1908, 2
    %v1910 = vadd.f32 %v1908, %v1909
    %v1911 = vrot.slane %v1910, 1
    %v1912 = vadd.f32 %v1910, %v1911
    %v1913 = vsel %vm223, %v703, 0.0
    %v1914 = vrot.slane %v1913, 4
    %v1915 = vadd.f32 %v1913, %v1914
    %v1916 = vrot.slane %v1915, 2
    %v1917 = vadd.f32 %v1915, %v1916
    %v1918 = vrot.slane %v1917, 1
    %v1919 = vadd.f32 %v1917, %v1918
    %v1920 = vsel %vm223, %v706, 0.0
    %v1921 = vrot.slane %v1920, 4
    %v1922 = vadd.f32 %v1920, %v1921
    %v1923 = vrot.slane %v1922, 2
    %v1924 = vadd.f32 %v1922, %v1923
    %v1925 = vrot.slane %v1924, 1
    %v1926 = vadd.f32 %v1924, %v1925
    %v1927 = vsel %vm223, %v709, 0.0
    %v1928 = vrot.slane %v1927, 4
    %v1929 = vadd.f32 %v1927, %v1928
    %v1930 = vrot.slane %v1929, 2
    %v1931 = vadd.f32 %v1929, %v1930
    %v1932 = vrot.slane %v1931, 1
    %v1933 = vadd.f32 %v1931, %v1932
    %v1934 = vsel %vm223, %v712, 0.0
    %v1935 = vrot.slane %v1934, 4
    %v1936 = vadd.f32 %v1934, %v1935
    %v1937 = vrot.slane %v1936, 2
    %v1938 = vadd.f32 %v1936, %v1937
    %v1939 = vrot.slane %v1938, 1
    %v1940 = vadd.f32 %v1938, %v1939
    %v1941 = vsel %vm223, %v715, 0.0
    %v1942 = vrot.slane %v1941, 4
    %v1943 = vadd.f32 %v1941, %v1942
    %v1944 = vrot.slane %v1943, 2
    %v1945 = vadd.f32 %v1943, %v1944
    %v1946 = vrot.slane %v1945, 1
    %v1947 = vadd.f32 %v1945, %v1946
    %v1948 = vsel %vm223, %v718, 0.0
    %v1949 = vrot.slane %v1948, 4
    %v1950 = vadd.f32 %v1948, %v1949
    %v1951 = vrot.slane %v1950, 2
    %v1952 = vadd.f32 %v1950, %v1951
    %v1953 = vrot.slane %v1952, 1
    %v1954 = vadd.f32 %v1952, %v1953
    %v1955 = vsel %vm223, %v721, 0.0
    %v1956 = vrot.slane %v1955, 4
    %v1957 = vadd.f32 %v1955, %v1956
    %v1958 = vrot.slane %v1957, 2
    %v1959 = vadd.f32 %v1957, %v1958
    %v1960 = vrot.slane %v1959, 1
    %v1961 = vadd.f32 %v1959, %v1960
    %v1962 = vsel %vm223, %v724, 0.0
    %v1963 = vrot.slane %v1962, 4
    %v1964 = vadd.f32 %v1962, %v1963
    %v1965 = vrot.slane %v1964, 2
    %v1966 = vadd.f32 %v1964, %v1965
    %v1967 = vrot.slane %v1966, 1
    %v1968 = vadd.f32 %v1966, %v1967
    %v1969 = vsel %vm223, %v727, 0.0
    %v1970 = vrot.slane %v1969, 4
    %v1971 = vadd.f32 %v1969, %v1970
    %v1972 = vrot.slane %v1971, 2
    %v1973 = vadd.f32 %v1971, %v1972
    %v1974 = vrot.slane %v1973, 1
    %v1975 = vadd.f32 %v1973, %v1974
    %v1976 = vsel %vm223, %v730, 0.0
    %v1977 = vrot.slane %v1976, 4
    %v1978 = vadd.f32 %v1976, %v1977
    %v1979 = vrot.slane %v1978, 2
    %v1980 = vadd.f32 %v1978, %v1979
    %v1981 = vrot.slane %v1980, 1
    %v1982 = vadd.f32 %v1980, %v1981
    %v1983 = vsel %vm223, %v733, 0.0
    %v1984 = vrot.slane %v1983, 4
    %v1985 = vadd.f32 %v1983, %v1984
    %v1986 = vrot.slane %v1985, 2
    %v1987 = vadd.f32 %v1985, %v1986
    %v1988 = vrot.slane %v1987, 1
    %v1989 = vadd.f32 %v1987, %v1988
    %v1990 = vsel %vm223, %v736, 0.0
    %v1991 = vrot.slane %v1990, 4
    %v1992 = vadd.f32 %v1990, %v1991
    %v1993 = vrot.slane %v1992, 2
    %v1994 = vadd.f32 %v1992, %v1993
    %v1995 = vrot.slane %v1994, 1
    %v1996 = vadd.f32 %v1994, %v1995
    %v1997 = vsel %vm223, %v739, 0.0
    %v1998 = vrot.slane %v1997, 4
    %v1999 = vadd.f32 %v1997, %v1998
    %v2000 = vrot.slane %v1999, 2
    %v2001 = vadd.f32 %v1999, %v2000
    %v2002 = vrot.slane %v2001, 1
    %v2003 = vadd.f32 %v2001, %v2002
    %v2004 = vsel %vm223, %v742, 0.0
    %v2005 = vrot.slane %v2004, 4
    %v2006 = vadd.f32 %v2004, %v2005
    %v2007 = vrot.slane %v2006, 2
    %v2008 = vadd.f32 %v2006, %v2007
    %v2009 = vrot.slane %v2008, 1
    %v2010 = vadd.f32 %v2008, %v2009
    %v2011 = vsel %vm223, %v745, 0.0
    %v2012 = vrot.slane %v2011, 4
    %v2013 = vadd.f32 %v2011, %v2012
    %v2014 = vrot.slane %v2013, 2
    %v2015 = vadd.f32 %v2013, %v2014
    %v2016 = vrot.slane %v2015, 1
    %v2017 = vadd.f32 %v2015, %v2016
    %v2018 = vsel %vm223, %v748, 0.0
    %v2019 = vrot.slane %v2018, 4
    %v2020 = vadd.f32 %v2018, %v2019
    %v2021 = vrot.slane %v2020, 2
    %v2022 = vadd.f32 %v2020, %v2021
    %v2023 = vrot.slane %v2022, 1
    %v2024 = vadd.f32 %v2022, %v2023
    %v2025 = vsel %vm223, %v751, 0.0
    %v2026 = vrot.slane %v2025, 4
    %v2027 = vadd.f32 %v2025, %v2026
    %v2028 = vrot.slane %v2027, 2
    %v2029 = vadd.f32 %v2027, %v2028
    %v2030 = vrot.slane %v2029, 1
    %v2031 = vadd.f32 %v2029, %v2030
    %v2032 = vsel %vm223, %v754, 0.0
    %v2033 = vrot.slane %v2032, 4
    %v2034 = vadd.f32 %v2032, %v2033
    %v2035 = vrot.slane %v2034, 2
    %v2036 = vadd.f32 %v2034, %v2035
    %v2037 = vrot.slane %v2036, 1
    %v2038 = vadd.f32 %v2036, %v2037
    %v2039 = vsel %vm223, %v757, 0.0
    %v2040 = vrot.slane %v2039, 4
    %v2041 = vadd.f32 %v2039, %v2040
    %v2042 = vrot.slane %v2041, 2
    %v2043 = vadd.f32 %v2041, %v2042
    %v2044 = vrot.slane %v2043, 1
    %v2045 = vadd.f32 %v2043, %v2044
    %v2046 = vsel %vm223, %v760, 0.0
    %v2047 = vrot.slane %v2046, 4
    %v2048 = vadd.f32 %v2046, %v2047
    %v2049 = vrot.slane %v2048, 2
    %v2050 = vadd.f32 %v2048, %v2049
    %v2051 = vrot.slane %v2050, 1
    %v2052 = vadd.f32 %v2050, %v2051
    %v2053 = vsel %vm223, %v763, 0.0
    %v2054 = vrot.slane %v2053, 4
    %v2055 = vadd.f32 %v2053, %v2054
    %v2056 = vrot.slane %v2055, 2
    %v2057 = vadd.f32 %v2055, %v2056
    %v2058 = vrot.slane %v2057, 1
    %v2059 = vadd.f32 %v2057, %v2058
    %v2060 = vsel %vm223, %v766, 0.0
    %v2061 = vrot.slane %v2060, 4
    %v2062 = vadd.f32 %v2060, %v2061
    %v2063 = vrot.slane %v2062, 2
    %v2064 = vadd.f32 %v2062, %v2063
    %v2065 = vrot.slane %v2064, 1
    %v2066 = vadd.f32 %v2064, %v2065
    %v2067 = vsel %vm223, %v769, 0.0
    %v2068 = vrot.slane %v2067, 4
    %v2069 = vadd.f32 %v2067, %v2068
    %v2070 = vrot.slane %v2069, 2
    %v2071 = vadd.f32 %v2069, %v2070
    %v2072 = vrot.slane %v2071, 1
    %v2073 = vadd.f32 %v2071, %v2072
    %v2074 = vsel %vm223, %v772, 0.0
    %v2075 = vrot.slane %v2074, 4
    %v2076 = vadd.f32 %v2074, %v2075
    %v2077 = vrot.slane %v2076, 2
    %v2078 = vadd.f32 %v2076, %v2077
    %v2079 = vrot.slane %v2078, 1
    %v2080 = vadd.f32 %v2078, %v2079
    %v2081 = vsel %vm223, %v775, 0.0
    %v2082 = vrot.slane %v2081, 4
    %v2083 = vadd.f32 %v2081, %v2082
    %v2084 = vrot.slane %v2083, 2
    %v2085 = vadd.f32 %v2083, %v2084
    %v2086 = vrot.slane %v2085, 1
    %v2087 = vadd.f32 %v2085, %v2086
    %v2088 = vsel %vm223, %v778, 0.0
    %v2089 = vrot.slane %v2088, 4
    %v2090 = vadd.f32 %v2088, %v2089
    %v2091 = vrot.slane %v2090, 2
    %v2092 = vadd.f32 %v2090, %v2091
    %v2093 = vrot.slane %v2092, 1
    %v2094 = vadd.f32 %v2092, %v2093
    %v2095 = vsel %vm223, %v781, 0.0
    %v2096 = vrot.slane %v2095, 4
    %v2097 = vadd.f32 %v2095, %v2096
    %v2098 = vrot.slane %v2097, 2
    %v2099 = vadd.f32 %v2097, %v2098
    %v2100 = vrot.slane %v2099, 1
    %v2101 = vadd.f32 %v2099, %v2100
    %v2102 = vsel %vm223, %v784, 0.0
    %v2103 = vrot.slane %v2102, 4
    %v2104 = vadd.f32 %v2102, %v2103
    %v2105 = vrot.slane %v2104, 2
    %v2106 = vadd.f32 %v2104, %v2105
    %v2107 = vrot.slane %v2106, 1
    %v2108 = vadd.f32 %v2106, %v2107
    %v2109 = vsel %vm223, %v787, 0.0
    %v2110 = vrot.slane %v2109, 4
    %v2111 = vadd.f32 %v2109, %v2110
    %v2112 = vrot.slane %v2111, 2
    %v2113 = vadd.f32 %v2111, %v2112
    %v2114 = vrot.slane %v2113, 1
    %v2115 = vadd.f32 %v2113, %v2114
    %v2116 = vsel %vm223, %v790, 0.0
    %v2117 = vrot.slane %v2116, 4
    %v2118 = vadd.f32 %v2116, %v2117
    %v2119 = vrot.slane %v2118, 2
    %v2120 = vadd.f32 %v2118, %v2119
    %v2121 = vrot.slane %v2120, 1
    %v2122 = vadd.f32 %v2120, %v2121
    %v2123 = vsel %vm223, %v793, 0.0
    %v2124 = vrot.slane %v2123, 4
    %v2125 = vadd.f32 %v2123, %v2124
    %v2126 = vrot.slane %v2125, 2
    %v2127 = vadd.f32 %v2125, %v2126
    %v2128 = vrot.slane %v2127, 1
    %v2129 = vadd.f32 %v2127, %v2128
    %v2130 = vsel %vm223, %v796, 0.0
    %v2131 = vrot.slane %v2130, 4
    %v2132 = vadd.f32 %v2130, %v2131
    %v2133 = vrot.slane %v2132, 2
    %v2134 = vadd.f32 %v2132, %v2133
    %v2135 = vrot.slane %v2134, 1
    %v2136 = vadd.f32 %v2134, %v2135
    %v2137 = vsel %vm223, %v799, 0.0
    %v2138 = vrot.slane %v2137, 4
    %v2139 = vadd.f32 %v2137, %v2138
    %v2140 = vrot.slane %v2139, 2
    %v2141 = vadd.f32 %v2139, %v2140
    %v2142 = vrot.slane %v2141, 1
    %v2143 = vadd.f32 %v2141, %v2142
    %v2144 = vmul.f32 %v31, %v31
    %v2145 = vmul.f32 %v32, %v32
    %v2146 = vmul.f32 %v33, %v33
    %v2147 = vmul.f32 %v34, %v34
    %v2148 = vmul.f32 %v35, %v35
    %v2149 = vmul.f32 %v36, %v36
    %v2150 = vmul.f32 %v37, %v37
    %v2151 = vmul.f32 %v38, %v38
    %v2152 = vmul.f32 %v39, %v39
    %v2153 = vmul.f32 %v40, %v40
    %v2154 = vmul.f32 %v41, %v41
    %v2155 = vmul.f32 %v42, %v42
    %v2156 = vmul.f32 %v43, %v43
    %v2157 = vmul.f32 %v44, %v44
    %v2158 = vmul.f32 %v45, %v45
    %v2159 = vmul.f32 %v46, %v46
    %v2160 = vmul.f32 %v47, %v47
    %v2161 = vmul.f32 %v48, %v48
    %v2162 = vmul.f32 %v49, %v49
    %v2163 = vmul.f32 %v50, %v50
    %v2164 = vmul.f32 %v51, %v51
    %v2165 = vmul.f32 %v52, %v52
    %v2166 = vmul.f32 %v53, %v53
    %v2167 = vmul.f32 %v54, %v54
    %v2168 = vmul.f32 %v55, %v55
    %v2169 = vmul.f32 %v56, %v56
    %v2170 = vmul.f32 %v57, %v57
    %v2171 = vmul.f32 %v58, %v58
    %v2172 = vmul.f32 %v59, %v59
    %v2173 = vmul.f32 %v60, %v60
    %v2174 = vmul.f32 %v61, %v61
    %v2175 = vmul.f32 %v62, %v62
    %v2176 = vmul.f32 %v63, %v63
    %v2177 = vmul.f32 %v64, %v64
    %v2178 = vmul.f32 %v65, %v65
    %v2179 = vmul.f32 %v66, %v66
    %v2180 = vmul.f32 %v67, %v67
    %v2181 = vmul.f32 %v68, %v68
    %v2182 = vmul.f32 %v69, %v69
    %v2183 = vmul.f32 %v70, %v70
    %v2184 = vmul.f32 %v71, %v71
    %v2185 = vmul.f32 %v72, %v72
    %v2186 = vmul.f32 %v73, %v73
    %v2187 = vmul.f32 %v74, %v74
    %v2188 = vmul.f32 %v75, %v75
    %v2189 = vmul.f32 %v76, %v76
    %v2190 = vmul.f32 %v77, %v77
    %v2191 = vmul.f32 %v78, %v78
    %v2192 = vmul.f32 %v79, %v79
    %v2193 = vmul.f32 %v80, %v80
    %v2194 = vmul.f32 %v81, %v81
    %v2195 = vmul.f32 %v82, %v82
    %v2196 = vmul.f32 %v83, %v83
    %v2197 = vmul.f32 %v84, %v84
    %v2198 = vmul.f32 %v85, %v85
    %v2199 = vmul.f32 %v86, %v86
    %v2200 = vmul.f32 %v87, %v87
    %v2201 = vmul.f32 %v88, %v88
    %v2202 = vmul.f32 %v89, %v89
    %v2203 = vmul.f32 %v90, %v90
    %v2204 = vmul.f32 %v91, %v91
    %v2205 = vmul.f32 %v92, %v92
    %v2206 = vmul.f32 %v93, %v93
    %v2207 = vmul.f32 %v94, %v94
    %v2208 = vmul.f32 %v95, %v95
    %v2209 = vmul.f32 %v96, %v96
    %v2210 = vmul.f32 %v97, %v97
    %v2211 = vmul.f32 %v98, %v98
    %v2212 = vmul.f32 %v99, %v99
    %v2213 = vmul.f32 %v100, %v100
    %v2214 = vmul.f32 %v101, %v101
    %v2215 = vmul.f32 %v102, %v102
    %v2216 = vmul.f32 %v103, %v103
    %v2217 = vmul.f32 %v104, %v104
    %v2218 = vmul.f32 %v105, %v105
    %v2219 = vmul.f32 %v106, %v106
    %v2220 = vmul.f32 %v107, %v107
    %v2221 = vmul.f32 %v108, %v108
    %v2222 = vmul.f32 %v109, %v109
    %v2223 = vmul.f32 %v110, %v110
    %v2224 = vmul.f32 %v111, %v111
    %v2225 = vmul.f32 %v112, %v112
    %v2226 = vmul.f32 %v113, %v113
    %v2227 = vmul.f32 %v114, %v114
    %v2228 = vmul.f32 %v115, %v115
    %v2229 = vmul.f32 %v116, %v116
    %v2230 = vmul.f32 %v117, %v117
    %v2231 = vmul.f32 %v118, %v118
    %v2232 = vmul.f32 %v119, %v119
    %v2233 = vmul.f32 %v120, %v120
    %v2234 = vmul.f32 %v121, %v121
    %v2235 = vmul.f32 %v122, %v122
    %v2236 = vmul.f32 %v123, %v123
    %v2237 = vmul.f32 %v124, %v124
    %v2238 = vmul.f32 %v125, %v125
    %v2239 = vmul.f32 %v126, %v126
    %v2240 = vmul.f32 %v127, %v127
    %v2241 = vmul.f32 %v128, %v128
    %v2242 = vmul.f32 %v129, %v129
    %v2243 = vmul.f32 %v130, %v130
    %v2244 = vmul.f32 %v131, %v131
    %v2245 = vmul.f32 %v132, %v132
    %v2246 = vmul.f32 %v133, %v133
    %v2247 = vmul.f32 %v134, %v134
    %v2248 = vmul.f32 %v135, %v135
    %v2249 = vmul.f32 %v136, %v136
    %v2250 = vmul.f32 %v137, %v137
    %v2251 = vmul.f32 %v138, %v138
    %v2252 = vmul.f32 %v139, %v139
    %v2253 = vmul.f32 %v140, %v140
    %v2254 = vmul.f32 %v141, %v141
    %v2255 = vmul.f32 %v142, %v142
    %v2256 = vmul.f32 %v143, %v143
    %v2257 = vmul.f32 %v144, %v144
    %v2258 = vmul.f32 %v145, %v145
    %v2259 = vmul.f32 %v146, %v146
    %v2260 = vmul.f32 %v147, %v147
    %v2261 = vmul.f32 %v148, %v148
    %v2262 = vmul.f32 %v149, %v149
    %v2263 = vmul.f32 %v150, %v150
    %v2264 = vmul.f32 %v151, %v151
    %v2265 = vmul.f32 %v152, %v152
    %v2266 = vmul.f32 %v153, %v153
    %v2267 = vmul.f32 %v154, %v154
    %v2268 = vmul.f32 %v155, %v155
    %v2269 = vmul.f32 %v156, %v156
    %v2270 = vmul.f32 %v157, %v157
    %v2271 = vmul.f32 %v158, %v158
    %v2272 = vmul.f32 %v159, %v159
    %v2273 = vmul.f32 %v160, %v160
    %v2274 = vmul.f32 %v161, %v161
    %v2275 = vmul.f32 %v162, %v162
    %v2276 = vmul.f32 %v163, %v163
    %v2277 = vmul.f32 %v164, %v164
    %v2278 = vmul.f32 %v165, %v165
    %v2279 = vmul.f32 %v166, %v166
    %v2280 = vmul.f32 %v167, %v167
    %v2281 = vmul.f32 %v168, %v168
    %v2282 = vmul.f32 %v169, %v169
    %v2283 = vmul.f32 %v170, %v170
    %v2284 = vmul.f32 %v171, %v171
    %v2285 = vmul.f32 %v172, %v172
    %v2286 = vmul.f32 %v173, %v173
    %v2287 = vmul.f32 %v174, %v174
    %v2288 = vmul.f32 %v175, %v175
    %v2289 = vmul.f32 %v176, %v176
    %v2290 = vmul.f32 %v177, %v177
    %v2291 = vmul.f32 %v178, %v178
    %v2292 = vmul.f32 %v179, %v179
    %v2293 = vmul.f32 %v180, %v180
    %v2294 = vmul.f32 %v181, %v181
    %v2295 = vmul.f32 %v182, %v182
    %v2296 = vmul.f32 %v183, %v183
    %v2297 = vmul.f32 %v184, %v184
    %v2298 = vmul.f32 %v185, %v185
    %v2299 = vmul.f32 %v186, %v186
    %v2300 = vmul.f32 %v187, %v187
    %v2301 = vmul.f32 %v188, %v188
    %v2302 = vmul.f32 %v189, %v189
    %v2303 = vmul.f32 %v190, %v190
    %v2304 = vmul.f32 %v191, %v191
    %v2305 = vmul.f32 %v192, %v192
    %v2306 = vmul.f32 %v193, %v193
    %v2307 = vmul.f32 %v194, %v194
    %v2308 = vmul.f32 %v195, %v195
    %v2309 = vmul.f32 %v196, %v196
    %v2310 = vmul.f32 %v197, %v197
    %v2311 = vmul.f32 %v198, %v198
    %v2312 = vmul.f32 %v199, %v199
    %v2313 = vmul.f32 %v200, %v200
    %v2314 = vmul.f32 %v201, %v201
    %v2315 = vmul.f32 %v202, %v202
    %v2316 = vmul.f32 %v203, %v203
    %v2317 = vmul.f32 %v204, %v204
    %v2318 = vmul.f32 %v205, %v205
    %v2319 = vmul.f32 %v206, %v206
    %v2320 = vmul.f32 %v207, %v207
    %v2321 = vmul.f32 %v208, %v208
    %v2322 = vmul.f32 %v209, %v209
    %v2323 = vmul.f32 %v210, %v210
    %v2324 = vmul.f32 %v211, %v211
    %v2325 = vmul.f32 %v212, %v212
    %v2326 = vmul.f32 %v213, %v213
    %v2327 = vmul.f32 %v214, %v214
    %v2328 = vmul.f32 %v215, %v215
    %v2329 = vmul.f32 %v216, %v216
    %v2330 = vmul.f32 %v217, %v217
    %v2331 = vmul.f32 %v218, %v218
    %v2332 = vmul.f32 %v219, %v219
    %v2333 = vmul.f32 %v220, %v220
    %v2334 = vmul.f32 %v221, %v221
    %v2335 = vmul.f32 %v222, %v222
    %v2336 = vsel %vm223, %v2144, 0.0
    %2337 = vadd.xlane.f32.xlu0 %v2336
    %v2338 = vpop.xlane.xlu0 %2337
    %v2339 = vsel %vm223, %v2145, 0.0
    %2340 = vadd.xlane.f32.xlu0 %v2339
    %v2341 = vpop.xlane.xlu0 %2340
    %v2342 = vsel %vm223, %v2146, 0.0
    %2343 = vadd.xlane.f32.xlu0 %v2342
    %v2344 = vpop.xlane.xlu0 %2343
    %v2345 = vsel %vm223, %v2147, 0.0
    %2346 = vadd.xlane.f32.xlu0 %v2345
    %v2347 = vpop.xlane.xlu0 %2346
    %v2348 = vsel %vm223, %v2148, 0.0
    %2349 = vadd.xlane.f32.xlu0 %v2348
    %v2350 = vpop.xlane.xlu0 %2349
    %v2351 = vsel %vm223, %v2149, 0.0
    %2352 = vadd.xlane.f32.xlu0 %v2351
    %v2353 = vpop.xlane.xlu0 %2352
    %v2354 = vsel %vm223, %v2150, 0.0
    %2355 = vadd.xlane.f32.xlu0 %v2354
    %v2356 = vpop.xlane.xlu0 %2355
    %v2357 = vsel %vm223, %v2151, 0.0
    %2358 = vadd.xlane.f32.xlu0 %v2357
    %v2359 = vpop.xlane.xlu0 %2358
    %v2360 = vsel %vm223, %v2152, 0.0
    %2361 = vadd.xlane.f32.xlu0 %v2360
    %v2362 = vpop.xlane.xlu0 %2361
    %v2363 = vsel %vm223, %v2153, 0.0
    %2364 = vadd.xlane.f32.xlu0 %v2363
    %v2365 = vpop.xlane.xlu0 %2364
    %v2366 = vsel %vm223, %v2154, 0.0
    %2367 = vadd.xlane.f32.xlu0 %v2366
    %v2368 = vpop.xlane.xlu0 %2367
    %v2369 = vsel %vm223, %v2155, 0.0
    %2370 = vadd.xlane.f32.xlu0 %v2369
    %v2371 = vpop.xlane.xlu0 %2370
    %v2372 = vsel %vm223, %v2156, 0.0
    %2373 = vadd.xlane.f32.xlu0 %v2372
    %v2374 = vpop.xlane.xlu0 %2373
    %v2375 = vsel %vm223, %v2157, 0.0
    %2376 = vadd.xlane.f32.xlu0 %v2375
    %v2377 = vpop.xlane.xlu0 %2376
    %v2378 = vsel %vm223, %v2158, 0.0
    %2379 = vadd.xlane.f32.xlu0 %v2378
    %v2380 = vpop.xlane.xlu0 %2379
    %v2381 = vsel %vm223, %v2159, 0.0
    %2382 = vadd.xlane.f32.xlu0 %v2381
    %v2383 = vpop.xlane.xlu0 %2382
    %v2384 = vsel %vm223, %v2160, 0.0
    %2385 = vadd.xlane.f32.xlu0 %v2384
    %v2386 = vpop.xlane.xlu0 %2385
    %v2387 = vsel %vm223, %v2161, 0.0
    %2388 = vadd.xlane.f32.xlu0 %v2387
    %v2389 = vpop.xlane.xlu0 %2388
    %v2390 = vsel %vm223, %v2162, 0.0
    %2391 = vadd.xlane.f32.xlu0 %v2390
    %v2392 = vpop.xlane.xlu0 %2391
    %v2393 = vsel %vm223, %v2163, 0.0
    %2394 = vadd.xlane.f32.xlu0 %v2393
    %v2395 = vpop.xlane.xlu0 %2394
    %v2396 = vsel %vm223, %v2164, 0.0
    %2397 = vadd.xlane.f32.xlu0 %v2396
    %v2398 = vpop.xlane.xlu0 %2397
    %v2399 = vsel %vm223, %v2165, 0.0
    %2400 = vadd.xlane.f32.xlu0 %v2399
    %v2401 = vpop.xlane.xlu0 %2400
    %v2402 = vsel %vm223, %v2166, 0.0
    %2403 = vadd.xlane.f32.xlu0 %v2402
    %v2404 = vpop.xlane.xlu0 %2403
    %v2405 = vsel %vm223, %v2167, 0.0
    %2406 = vadd.xlane.f32.xlu0 %v2405
    %v2407 = vpop.xlane.xlu0 %2406
    %v2408 = vsel %vm223, %v2168, 0.0
    %2409 = vadd.xlane.f32.xlu0 %v2408
    %v2410 = vpop.xlane.xlu0 %2409
    %v2411 = vsel %vm223, %v2169, 0.0
    %2412 = vadd.xlane.f32.xlu0 %v2411
    %v2413 = vpop.xlane.xlu0 %2412
    %v2414 = vsel %vm223, %v2170, 0.0
    %2415 = vadd.xlane.f32.xlu0 %v2414
    %v2416 = vpop.xlane.xlu0 %2415
    %v2417 = vsel %vm223, %v2171, 0.0
    %2418 = vadd.xlane.f32.xlu0 %v2417
    %v2419 = vpop.xlane.xlu0 %2418
    %v2420 = vsel %vm223, %v2172, 0.0
    %2421 = vadd.xlane.f32.xlu0 %v2420
    %v2422 = vpop.xlane.xlu0 %2421
    %v2423 = vsel %vm223, %v2173, 0.0
    %2424 = vadd.xlane.f32.xlu0 %v2423
    %v2425 = vpop.xlane.xlu0 %2424
    %v2426 = vsel %vm223, %v2174, 0.0
    %2427 = vadd.xlane.f32.xlu0 %v2426
    %v2428 = vpop.xlane.xlu0 %2427
    %v2429 = vsel %vm223, %v2175, 0.0
    %2430 = vadd.xlane.f32.xlu0 %v2429
    %v2431 = vpop.xlane.xlu0 %2430
    %v2432 = vsel %vm223, %v2176, 0.0
    %2433 = vadd.xlane.f32.xlu0 %v2432
    %v2434 = vpop.xlane.xlu0 %2433
    %v2435 = vsel %vm223, %v2177, 0.0
    %2436 = vadd.xlane.f32.xlu0 %v2435
    %v2437 = vpop.xlane.xlu0 %2436
    %v2438 = vsel %vm223, %v2178, 0.0
    %2439 = vadd.xlane.f32.xlu0 %v2438
    %v2440 = vpop.xlane.xlu0 %2439
    %v2441 = vsel %vm223, %v2179, 0.0
    %2442 = vadd.xlane.f32.xlu0 %v2441
    %v2443 = vpop.xlane.xlu0 %2442
    %v2444 = vsel %vm223, %v2180, 0.0
    %2445 = vadd.xlane.f32.xlu0 %v2444
    %v2446 = vpop.xlane.xlu0 %2445
    %v2447 = vsel %vm223, %v2181, 0.0
    %2448 = vadd.xlane.f32.xlu0 %v2447
    %v2449 = vpop.xlane.xlu0 %2448
    %v2450 = vsel %vm223, %v2182, 0.0
    %2451 = vadd.xlane.f32.xlu0 %v2450
    %v2452 = vpop.xlane.xlu0 %2451
    %v2453 = vsel %vm223, %v2183, 0.0
    %2454 = vadd.xlane.f32.xlu0 %v2453
    %v2455 = vpop.xlane.xlu0 %2454
    %v2456 = vsel %vm223, %v2184, 0.0
    %2457 = vadd.xlane.f32.xlu0 %v2456
    %v2458 = vpop.xlane.xlu0 %2457
    %v2459 = vsel %vm223, %v2185, 0.0
    %2460 = vadd.xlane.f32.xlu0 %v2459
    %v2461 = vpop.xlane.xlu0 %2460
    %v2462 = vsel %vm223, %v2186, 0.0
    %2463 = vadd.xlane.f32.xlu0 %v2462
    %v2464 = vpop.xlane.xlu0 %2463
    %v2465 = vsel %vm223, %v2187, 0.0
    %2466 = vadd.xlane.f32.xlu0 %v2465
    %v2467 = vpop.xlane.xlu0 %2466
    %v2468 = vsel %vm223, %v2188, 0.0
    %2469 = vadd.xlane.f32.xlu0 %v2468
    %v2470 = vpop.xlane.xlu0 %2469
    %v2471 = vsel %vm223, %v2189, 0.0
    %2472 = vadd.xlane.f32.xlu0 %v2471
    %v2473 = vpop.xlane.xlu0 %2472
    %v2474 = vsel %vm223, %v2190, 0.0
    %2475 = vadd.xlane.f32.xlu0 %v2474
    %v2476 = vpop.xlane.xlu0 %2475
    %v2477 = vsel %vm223, %v2191, 0.0
    %2478 = vadd.xlane.f32.xlu0 %v2477
    %v2479 = vpop.xlane.xlu0 %2478
    %v2480 = vsel %vm223, %v2192, 0.0
    %2481 = vadd.xlane.f32.xlu0 %v2480
    %v2482 = vpop.xlane.xlu0 %2481
    %v2483 = vsel %vm223, %v2193, 0.0
    %2484 = vadd.xlane.f32.xlu0 %v2483
    %v2485 = vpop.xlane.xlu0 %2484
    %v2486 = vsel %vm223, %v2194, 0.0
    %2487 = vadd.xlane.f32.xlu0 %v2486
    %v2488 = vpop.xlane.xlu0 %2487
    %v2489 = vsel %vm223, %v2195, 0.0
    %2490 = vadd.xlane.f32.xlu0 %v2489
    %v2491 = vpop.xlane.xlu0 %2490
    %v2492 = vsel %vm223, %v2196, 0.0
    %2493 = vadd.xlane.f32.xlu0 %v2492
    %v2494 = vpop.xlane.xlu0 %2493
    %v2495 = vsel %vm223, %v2197, 0.0
    %2496 = vadd.xlane.f32.xlu0 %v2495
    %v2497 = vpop.xlane.xlu0 %2496
    %v2498 = vsel %vm223, %v2198, 0.0
    %2499 = vadd.xlane.f32.xlu0 %v2498
    %v2500 = vpop.xlane.xlu0 %2499
    %v2501 = vsel %vm223, %v2199, 0.0
    %2502 = vadd.xlane.f32.xlu0 %v2501
    %v2503 = vpop.xlane.xlu0 %2502
    %v2504 = vsel %vm223, %v2200, 0.0
    %2505 = vadd.xlane.f32.xlu0 %v2504
    %v2506 = vpop.xlane.xlu0 %2505
    %v2507 = vsel %vm223, %v2201, 0.0
    %2508 = vadd.xlane.f32.xlu0 %v2507
    %v2509 = vpop.xlane.xlu0 %2508
    %v2510 = vsel %vm223, %v2202, 0.0
    %2511 = vadd.xlane.f32.xlu0 %v2510
    %v2512 = vpop.xlane.xlu0 %2511
    %v2513 = vsel %vm223, %v2203, 0.0
    %2514 = vadd.xlane.f32.xlu0 %v2513
    %v2515 = vpop.xlane.xlu0 %2514
    %v2516 = vsel %vm223, %v2204, 0.0
    %2517 = vadd.xlane.f32.xlu0 %v2516
    %v2518 = vpop.xlane.xlu0 %2517
    %v2519 = vsel %vm223, %v2205, 0.0
    %2520 = vadd.xlane.f32.xlu0 %v2519
    %v2521 = vpop.xlane.xlu0 %2520
    %v2522 = vsel %vm223, %v2206, 0.0
    %2523 = vadd.xlane.f32.xlu0 %v2522
    %v2524 = vpop.xlane.xlu0 %2523
    %v2525 = vsel %vm223, %v2207, 0.0
    %2526 = vadd.xlane.f32.xlu0 %v2525
    %v2527 = vpop.xlane.xlu0 %2526
    %v2528 = vsel %vm223, %v2208, 0.0
    %2529 = vadd.xlane.f32.xlu0 %v2528
    %v2530 = vpop.xlane.xlu0 %2529
    %v2531 = vsel %vm223, %v2209, 0.0
    %2532 = vadd.xlane.f32.xlu0 %v2531
    %v2533 = vpop.xlane.xlu0 %2532
    %v2534 = vsel %vm223, %v2210, 0.0
    %2535 = vadd.xlane.f32.xlu0 %v2534
    %v2536 = vpop.xlane.xlu0 %2535
    %v2537 = vsel %vm223, %v2211, 0.0
    %2538 = vadd.xlane.f32.xlu0 %v2537
    %v2539 = vpop.xlane.xlu0 %2538
    %v2540 = vsel %vm223, %v2212, 0.0
    %2541 = vadd.xlane.f32.xlu0 %v2540
    %v2542 = vpop.xlane.xlu0 %2541
    %v2543 = vsel %vm223, %v2213, 0.0
    %2544 = vadd.xlane.f32.xlu0 %v2543
    %v2545 = vpop.xlane.xlu0 %2544
    %v2546 = vsel %vm223, %v2214, 0.0
    %2547 = vadd.xlane.f32.xlu0 %v2546
    %v2548 = vpop.xlane.xlu0 %2547
    %v2549 = vsel %vm223, %v2215, 0.0
    %2550 = vadd.xlane.f32.xlu0 %v2549
    %v2551 = vpop.xlane.xlu0 %2550
    %v2552 = vsel %vm223, %v2216, 0.0
    %2553 = vadd.xlane.f32.xlu0 %v2552
    %v2554 = vpop.xlane.xlu0 %2553
    %v2555 = vsel %vm223, %v2217, 0.0
    %2556 = vadd.xlane.f32.xlu0 %v2555
    %v2557 = vpop.xlane.xlu0 %2556
    %v2558 = vsel %vm223, %v2218, 0.0
    %2559 = vadd.xlane.f32.xlu0 %v2558
    %v2560 = vpop.xlane.xlu0 %2559
    %v2561 = vsel %vm223, %v2219, 0.0
    %2562 = vadd.xlane.f32.xlu0 %v2561
    %v2563 = vpop.xlane.xlu0 %2562
    %v2564 = vsel %vm223, %v2220, 0.0
    %2565 = vadd.xlane.f32.xlu0 %v2564
    %v2566 = vpop.xlane.xlu0 %2565
    %v2567 = vsel %vm223, %v2221, 0.0
    %2568 = vadd.xlane.f32.xlu0 %v2567
    %v2569 = vpop.xlane.xlu0 %2568
    %v2570 = vsel %vm223, %v2222, 0.0
    %2571 = vadd.xlane.f32.xlu0 %v2570
    %v2572 = vpop.xlane.xlu0 %2571
    %v2573 = vsel %vm223, %v2223, 0.0
    %2574 = vadd.xlane.f32.xlu0 %v2573
    %v2575 = vpop.xlane.xlu0 %2574
    %v2576 = vsel %vm223, %v2224, 0.0
    %2577 = vadd.xlane.f32.xlu0 %v2576
    %v2578 = vpop.xlane.xlu0 %2577
    %v2579 = vsel %vm223, %v2225, 0.0
    %2580 = vadd.xlane.f32.xlu0 %v2579
    %v2581 = vpop.xlane.xlu0 %2580
    %v2582 = vsel %vm223, %v2226, 0.0
    %2583 = vadd.xlane.f32.xlu0 %v2582
    %v2584 = vpop.xlane.xlu0 %2583
    %v2585 = vsel %vm223, %v2227, 0.0
    %2586 = vadd.xlane.f32.xlu0 %v2585
    %v2587 = vpop.xlane.xlu0 %2586
    %v2588 = vsel %vm223, %v2228, 0.0
    %2589 = vadd.xlane.f32.xlu0 %v2588
    %v2590 = vpop.xlane.xlu0 %2589
    %v2591 = vsel %vm223, %v2229, 0.0
    %2592 = vadd.xlane.f32.xlu0 %v2591
    %v2593 = vpop.xlane.xlu0 %2592
    %v2594 = vsel %vm223, %v2230, 0.0
    %2595 = vadd.xlane.f32.xlu0 %v2594
    %v2596 = vpop.xlane.xlu0 %2595
    %v2597 = vsel %vm223, %v2231, 0.0
    %2598 = vadd.xlane.f32.xlu0 %v2597
    %v2599 = vpop.xlane.xlu0 %2598
    %v2600 = vsel %vm223, %v2232, 0.0
    %2601 = vadd.xlane.f32.xlu0 %v2600
    %v2602 = vpop.xlane.xlu0 %2601
    %v2603 = vsel %vm223, %v2233, 0.0
    %2604 = vadd.xlane.f32.xlu0 %v2603
    %v2605 = vpop.xlane.xlu0 %2604
    %v2606 = vsel %vm223, %v2234, 0.0
    %2607 = vadd.xlane.f32.xlu0 %v2606
    %v2608 = vpop.xlane.xlu0 %2607
    %v2609 = vsel %vm223, %v2235, 0.0
    %2610 = vadd.xlane.f32.xlu0 %v2609
    %v2611 = vpop.xlane.xlu0 %2610
    %v2612 = vsel %vm223, %v2236, 0.0
    %2613 = vadd.xlane.f32.xlu0 %v2612
    %v2614 = vpop.xlane.xlu0 %2613
    %v2615 = vsel %vm223, %v2237, 0.0
    %2616 = vadd.xlane.f32.xlu0 %v2615
    %v2617 = vpop.xlane.xlu0 %2616
    %v2618 = vsel %vm223, %v2238, 0.0
    %2619 = vadd.xlane.f32.xlu0 %v2618
    %v2620 = vpop.xlane.xlu0 %2619
    %v2621 = vsel %vm223, %v2239, 0.0
    %2622 = vadd.xlane.f32.xlu0 %v2621
    %v2623 = vpop.xlane.xlu0 %2622
    %v2624 = vsel %vm223, %v2240, 0.0
    %2625 = vadd.xlane.f32.xlu0 %v2624
    %v2626 = vpop.xlane.xlu0 %2625
    %v2627 = vsel %vm223, %v2241, 0.0
    %2628 = vadd.xlane.f32.xlu0 %v2627
    %v2629 = vpop.xlane.xlu0 %2628
    %v2630 = vsel %vm223, %v2242, 0.0
    %2631 = vadd.xlane.f32.xlu0 %v2630
    %v2632 = vpop.xlane.xlu0 %2631
    %v2633 = vsel %vm223, %v2243, 0.0
    %2634 = vadd.xlane.f32.xlu0 %v2633
    %v2635 = vpop.xlane.xlu0 %2634
    %v2636 = vsel %vm223, %v2244, 0.0
    %2637 = vadd.xlane.f32.xlu0 %v2636
    %v2638 = vpop.xlane.xlu0 %2637
    %v2639 = vsel %vm223, %v2245, 0.0
    %2640 = vadd.xlane.f32.xlu0 %v2639
    %v2641 = vpop.xlane.xlu0 %2640
    %v2642 = vsel %vm223, %v2246, 0.0
    %2643 = vadd.xlane.f32.xlu0 %v2642
    %v2644 = vpop.xlane.xlu0 %2643
    %v2645 = vsel %vm223, %v2247, 0.0
    %2646 = vadd.xlane.f32.xlu0 %v2645
    %v2647 = vpop.xlane.xlu0 %2646
    %v2648 = vsel %vm223, %v2248, 0.0
    %2649 = vadd.xlane.f32.xlu0 %v2648
    %v2650 = vpop.xlane.xlu0 %2649
    %v2651 = vsel %vm223, %v2249, 0.0
    %2652 = vadd.xlane.f32.xlu0 %v2651
    %v2653 = vpop.xlane.xlu0 %2652
    %v2654 = vsel %vm223, %v2250, 0.0
    %2655 = vadd.xlane.f32.xlu0 %v2654
    %v2656 = vpop.xlane.xlu0 %2655
    %v2657 = vsel %vm223, %v2251, 0.0
    %2658 = vadd.xlane.f32.xlu0 %v2657
    %v2659 = vpop.xlane.xlu0 %2658
    %v2660 = vsel %vm223, %v2252, 0.0
    %2661 = vadd.xlane.f32.xlu0 %v2660
    %v2662 = vpop.xlane.xlu0 %2661
    %v2663 = vsel %vm223, %v2253, 0.0
    %2664 = vadd.xlane.f32.xlu0 %v2663
    %v2665 = vpop.xlane.xlu0 %2664
    %v2666 = vsel %vm223, %v2254, 0.0
    %2667 = vadd.xlane.f32.xlu0 %v2666
    %v2668 = vpop.xlane.xlu0 %2667
    %v2669 = vsel %vm223, %v2255, 0.0
    %2670 = vadd.xlane.f32.xlu0 %v2669
    %v2671 = vpop.xlane.xlu0 %2670
    %v2672 = vsel %vm223, %v2256, 0.0
    %2673 = vadd.xlane.f32.xlu0 %v2672
    %v2674 = vpop.xlane.xlu0 %2673
    %v2675 = vsel %vm223, %v2257, 0.0
    %2676 = vadd.xlane.f32.xlu0 %v2675
    %v2677 = vpop.xlane.xlu0 %2676
    %v2678 = vsel %vm223, %v2258, 0.0
    %2679 = vadd.xlane.f32.xlu0 %v2678
    %v2680 = vpop.xlane.xlu0 %2679
    %v2681 = vsel %vm223, %v2259, 0.0
    %2682 = vadd.xlane.f32.xlu0 %v2681
    %v2683 = vpop.xlane.xlu0 %2682
    %v2684 = vsel %vm223, %v2260, 0.0
    %2685 = vadd.xlane.f32.xlu0 %v2684
    %v2686 = vpop.xlane.xlu0 %2685
    %v2687 = vsel %vm223, %v2261, 0.0
    %2688 = vadd.xlane.f32.xlu0 %v2687
    %v2689 = vpop.xlane.xlu0 %2688
    %v2690 = vsel %vm223, %v2262, 0.0
    %2691 = vadd.xlane.f32.xlu0 %v2690
    %v2692 = vpop.xlane.xlu0 %2691
    %v2693 = vsel %vm223, %v2263, 0.0
    %2694 = vadd.xlane.f32.xlu0 %v2693
    %v2695 = vpop.xlane.xlu0 %2694
    %v2696 = vsel %vm223, %v2264, 0.0
    %2697 = vadd.xlane.f32.xlu0 %v2696
    %v2698 = vpop.xlane.xlu0 %2697
    %v2699 = vsel %vm223, %v2265, 0.0
    %2700 = vadd.xlane.f32.xlu0 %v2699
    %v2701 = vpop.xlane.xlu0 %2700
    %v2702 = vsel %vm223, %v2266, 0.0
    %2703 = vadd.xlane.f32.xlu0 %v2702
    %v2704 = vpop.xlane.xlu0 %2703
    %v2705 = vsel %vm223, %v2267, 0.0
    %2706 = vadd.xlane.f32.xlu0 %v2705
    %v2707 = vpop.xlane.xlu0 %2706
    %v2708 = vsel %vm223, %v2268, 0.0
    %2709 = vadd.xlane.f32.xlu0 %v2708
    %v2710 = vpop.xlane.xlu0 %2709
    %v2711 = vsel %vm223, %v2269, 0.0
    %2712 = vadd.xlane.f32.xlu0 %v2711
    %v2713 = vpop.xlane.xlu0 %2712
    %v2714 = vsel %vm223, %v2270, 0.0
    %2715 = vadd.xlane.f32.xlu0 %v2714
    %v2716 = vpop.xlane.xlu0 %2715
    %v2717 = vsel %vm223, %v2271, 0.0
    %2718 = vadd.xlane.f32.xlu0 %v2717
    %v2719 = vpop.xlane.xlu0 %2718
    %v2720 = vsel %vm223, %v2272, 0.0
    %2721 = vadd.xlane.f32.xlu0 %v2720
    %v2722 = vpop.xlane.xlu0 %2721
    %v2723 = vsel %vm223, %v2273, 0.0
    %2724 = vadd.xlane.f32.xlu0 %v2723
    %v2725 = vpop.xlane.xlu0 %2724
    %v2726 = vsel %vm223, %v2274, 0.0
    %2727 = vadd.xlane.f32.xlu0 %v2726
    %v2728 = vpop.xlane.xlu0 %2727
    %v2729 = vsel %vm223, %v2275, 0.0
    %2730 = vadd.xlane.f32.xlu0 %v2729
    %v2731 = vpop.xlane.xlu0 %2730
    %v2732 = vsel %vm223, %v2276, 0.0
    %2733 = vadd.xlane.f32.xlu0 %v2732
    %v2734 = vpop.xlane.xlu0 %2733
    %v2735 = vsel %vm223, %v2277, 0.0
    %2736 = vadd.xlane.f32.xlu0 %v2735
    %v2737 = vpop.xlane.xlu0 %2736
    %v2738 = vsel %vm223, %v2278, 0.0
    %2739 = vadd.xlane.f32.xlu0 %v2738
    %v2740 = vpop.xlane.xlu0 %2739
    %v2741 = vsel %vm223, %v2279, 0.0
    %2742 = vadd.xlane.f32.xlu0 %v2741
    %v2743 = vpop.xlane.xlu0 %2742
    %v2744 = vsel %vm223, %v2280, 0.0
    %2745 = vadd.xlane.f32.xlu0 %v2744
    %v2746 = vpop.xlane.xlu0 %2745
    %v2747 = vsel %vm223, %v2281, 0.0
    %2748 = vadd.xlane.f32.xlu0 %v2747
    %v2749 = vpop.xlane.xlu0 %2748
    %v2750 = vsel %vm223, %v2282, 0.0
    %2751 = vadd.xlane.f32.xlu0 %v2750
    %v2752 = vpop.xlane.xlu0 %2751
    %v2753 = vsel %vm223, %v2283, 0.0
    %2754 = vadd.xlane.f32.xlu0 %v2753
    %v2755 = vpop.xlane.xlu0 %2754
    %v2756 = vsel %vm223, %v2284, 0.0
    %2757 = vadd.xlane.f32.xlu0 %v2756
    %v2758 = vpop.xlane.xlu0 %2757
    %v2759 = vsel %vm223, %v2285, 0.0
    %2760 = vadd.xlane.f32.xlu0 %v2759
    %v2761 = vpop.xlane.xlu0 %2760
    %v2762 = vsel %vm223, %v2286, 0.0
    %2763 = vadd.xlane.f32.xlu0 %v2762
    %v2764 = vpop.xlane.xlu0 %2763
    %v2765 = vsel %vm223, %v2287, 0.0
    %2766 = vadd.xlane.f32.xlu0 %v2765
    %v2767 = vpop.xlane.xlu0 %2766
    %v2768 = vsel %vm223, %v2288, 0.0
    %2769 = vadd.xlane.f32.xlu0 %v2768
    %v2770 = vpop.xlane.xlu0 %2769
    %v2771 = vsel %vm223, %v2289, 0.0
    %2772 = vadd.xlane.f32.xlu0 %v2771
    %v2773 = vpop.xlane.xlu0 %2772
    %v2774 = vsel %vm223, %v2290, 0.0
    %2775 = vadd.xlane.f32.xlu0 %v2774
    %v2776 = vpop.xlane.xlu0 %2775
    %v2777 = vsel %vm223, %v2291, 0.0
    %2778 = vadd.xlane.f32.xlu0 %v2777
    %v2779 = vpop.xlane.xlu0 %2778
    %v2780 = vsel %vm223, %v2292, 0.0
    %2781 = vadd.xlane.f32.xlu0 %v2780
    %v2782 = vpop.xlane.xlu0 %2781
    %v2783 = vsel %vm223, %v2293, 0.0
    %2784 = vadd.xlane.f32.xlu0 %v2783
    %v2785 = vpop.xlane.xlu0 %2784
    %v2786 = vsel %vm223, %v2294, 0.0
    %2787 = vadd.xlane.f32.xlu0 %v2786
    %v2788 = vpop.xlane.xlu0 %2787
    %v2789 = vsel %vm223, %v2295, 0.0
    %2790 = vadd.xlane.f32.xlu0 %v2789
    %v2791 = vpop.xlane.xlu0 %2790
    %v2792 = vsel %vm223, %v2296, 0.0
    %2793 = vadd.xlane.f32.xlu0 %v2792
    %v2794 = vpop.xlane.xlu0 %2793
    %v2795 = vsel %vm223, %v2297, 0.0
    %2796 = vadd.xlane.f32.xlu0 %v2795
    %v2797 = vpop.xlane.xlu0 %2796
    %v2798 = vsel %vm223, %v2298, 0.0
    %2799 = vadd.xlane.f32.xlu0 %v2798
    %v2800 = vpop.xlane.xlu0 %2799
    %v2801 = vsel %vm223, %v2299, 0.0
    %2802 = vadd.xlane.f32.xlu0 %v2801
    %v2803 = vpop.xlane.xlu0 %2802
    %v2804 = vsel %vm223, %v2300, 0.0
    %2805 = vadd.xlane.f32.xlu0 %v2804
    %v2806 = vpop.xlane.xlu0 %2805
    %v2807 = vsel %vm223, %v2301, 0.0
    %2808 = vadd.xlane.f32.xlu0 %v2807
    %v2809 = vpop.xlane.xlu0 %2808
    %v2810 = vsel %vm223, %v2302, 0.0
    %2811 = vadd.xlane.f32.xlu0 %v2810
    %v2812 = vpop.xlane.xlu0 %2811
    %v2813 = vsel %vm223, %v2303, 0.0
    %2814 = vadd.xlane.f32.xlu0 %v2813
    %v2815 = vpop.xlane.xlu0 %2814
    %v2816 = vsel %vm223, %v2304, 0.0
    %2817 = vadd.xlane.f32.xlu0 %v2816
    %v2818 = vpop.xlane.xlu0 %2817
    %v2819 = vsel %vm223, %v2305, 0.0
    %2820 = vadd.xlane.f32.xlu0 %v2819
    %v2821 = vpop.xlane.xlu0 %2820
    %v2822 = vsel %vm223, %v2306, 0.0
    %2823 = vadd.xlane.f32.xlu0 %v2822
    %v2824 = vpop.xlane.xlu0 %2823
    %v2825 = vsel %vm223, %v2307, 0.0
    %2826 = vadd.xlane.f32.xlu0 %v2825
    %v2827 = vpop.xlane.xlu0 %2826
    %v2828 = vsel %vm223, %v2308, 0.0
    %2829 = vadd.xlane.f32.xlu0 %v2828
    %v2830 = vpop.xlane.xlu0 %2829
    %v2831 = vsel %vm223, %v2309, 0.0
    %2832 = vadd.xlane.f32.xlu0 %v2831
    %v2833 = vpop.xlane.xlu0 %2832
    %v2834 = vsel %vm223, %v2310, 0.0
    %2835 = vadd.xlane.f32.xlu0 %v2834
    %v2836 = vpop.xlane.xlu0 %2835
    %v2837 = vsel %vm223, %v2311, 0.0
    %2838 = vadd.xlane.f32.xlu0 %v2837
    %v2839 = vpop.xlane.xlu0 %2838
    %v2840 = vsel %vm223, %v2312, 0.0
    %2841 = vadd.xlane.f32.xlu0 %v2840
    %v2842 = vpop.xlane.xlu0 %2841
    %v2843 = vsel %vm223, %v2313, 0.0
    %2844 = vadd.xlane.f32.xlu0 %v2843
    %v2845 = vpop.xlane.xlu0 %2844
    %v2846 = vsel %vm223, %v2314, 0.0
    %2847 = vadd.xlane.f32.xlu0 %v2846
    %v2848 = vpop.xlane.xlu0 %2847
    %v2849 = vsel %vm223, %v2315, 0.0
    %2850 = vadd.xlane.f32.xlu0 %v2849
    %v2851 = vpop.xlane.xlu0 %2850
    %v2852 = vsel %vm223, %v2316, 0.0
    %2853 = vadd.xlane.f32.xlu0 %v2852
    %v2854 = vpop.xlane.xlu0 %2853
    %v2855 = vsel %vm223, %v2317, 0.0
    %2856 = vadd.xlane.f32.xlu0 %v2855
    %v2857 = vpop.xlane.xlu0 %2856
    %v2858 = vsel %vm223, %v2318, 0.0
    %2859 = vadd.xlane.f32.xlu0 %v2858
    %v2860 = vpop.xlane.xlu0 %2859
    %v2861 = vsel %vm223, %v2319, 0.0
    %2862 = vadd.xlane.f32.xlu0 %v2861
    %v2863 = vpop.xlane.xlu0 %2862
    %v2864 = vsel %vm223, %v2320, 0.0
    %2865 = vadd.xlane.f32.xlu0 %v2864
    %v2866 = vpop.xlane.xlu0 %2865
    %v2867 = vsel %vm223, %v2321, 0.0
    %2868 = vadd.xlane.f32.xlu0 %v2867
    %v2869 = vpop.xlane.xlu0 %2868
    %v2870 = vsel %vm223, %v2322, 0.0
    %2871 = vadd.xlane.f32.xlu0 %v2870
    %v2872 = vpop.xlane.xlu0 %2871
    %v2873 = vsel %vm223, %v2323, 0.0
    %2874 = vadd.xlane.f32.xlu0 %v2873
    %v2875 = vpop.xlane.xlu0 %2874
    %v2876 = vsel %vm223, %v2324, 0.0
    %2877 = vadd.xlane.f32.xlu0 %v2876
    %v2878 = vpop.xlane.xlu0 %2877
    %v2879 = vsel %vm223, %v2325, 0.0
    %2880 = vadd.xlane.f32.xlu0 %v2879
    %v2881 = vpop.xlane.xlu0 %2880
    %v2882 = vsel %vm223, %v2326, 0.0
    %2883 = vadd.xlane.f32.xlu0 %v2882
    %v2884 = vpop.xlane.xlu0 %2883
    %v2885 = vsel %vm223, %v2327, 0.0
    %2886 = vadd.xlane.f32.xlu0 %v2885
    %v2887 = vpop.xlane.xlu0 %2886
    %v2888 = vsel %vm223, %v2328, 0.0
    %2889 = vadd.xlane.f32.xlu0 %v2888
    %v2890 = vpop.xlane.xlu0 %2889
    %v2891 = vsel %vm223, %v2329, 0.0
    %2892 = vadd.xlane.f32.xlu0 %v2891
    %v2893 = vpop.xlane.xlu0 %2892
    %v2894 = vsel %vm223, %v2330, 0.0
    %2895 = vadd.xlane.f32.xlu0 %v2894
    %v2896 = vpop.xlane.xlu0 %2895
    %v2897 = vsel %vm223, %v2331, 0.0
    %2898 = vadd.xlane.f32.xlu0 %v2897
    %v2899 = vpop.xlane.xlu0 %2898
    %v2900 = vsel %vm223, %v2332, 0.0
    %2901 = vadd.xlane.f32.xlu0 %v2900
    %v2902 = vpop.xlane.xlu0 %2901
    %v2903 = vsel %vm223, %v2333, 0.0
    %2904 = vadd.xlane.f32.xlu0 %v2903
    %v2905 = vpop.xlane.xlu0 %2904
    %v2906 = vsel %vm223, %v2334, 0.0
    %2907 = vadd.xlane.f32.xlu0 %v2906
    %v2908 = vpop.xlane.xlu0 %2907
    %v2909 = vsel %vm223, %v2335, 0.0
    %2910 = vadd.xlane.f32.xlu0 %v2909
    %v2911 = vpop.xlane.xlu0 %2910
    %v2912 = vsel %vm223, %v2338, 0.0
    %v2913 = vrot.slane %v2912, 4
    %v2914 = vadd.f32 %v2912, %v2913
    %v2915 = vrot.slane %v2914, 2
    %v2916 = vadd.f32 %v2914, %v2915
    %v2917 = vrot.slane %v2916, 1
    %v2918 = vadd.f32 %v2916, %v2917
    %v2919 = vsel %vm223, %v2341, 0.0
    %v2920 = vrot.slane %v2919, 4
    %v2921 = vadd.f32 %v2919, %v2920
    %v2922 = vrot.slane %v2921, 2
    %v2923 = vadd.f32 %v2921, %v2922
    %v2924 = vrot.slane %v2923, 1
    %v2925 = vadd.f32 %v2923, %v2924
    %v2926 = vsel %vm223, %v2344, 0.0
    %v2927 = vrot.slane %v2926, 4
    %v2928 = vadd.f32 %v2926, %v2927
    %v2929 = vrot.slane %v2928, 2
    %v2930 = vadd.f32 %v2928, %v2929
    %v2931 = vrot.slane %v2930, 1
    %v2932 = vadd.f32 %v2930, %v2931
    %v2933 = vsel %vm223, %v2347, 0.0
    %v2934 = vrot.slane %v2933, 4
    %v2935 = vadd.f32 %v2933, %v2934
    %v2936 = vrot.slane %v2935, 2
    %v2937 = vadd.f32 %v2935, %v2936
    %v2938 = vrot.slane %v2937, 1
    %v2939 = vadd.f32 %v2937, %v2938
    %v2940 = vsel %vm223, %v2350, 0.0
    %v2941 = vrot.slane %v2940, 4
    %v2942 = vadd.f32 %v2940, %v2941
    %v2943 = vrot.slane %v2942, 2
    %v2944 = vadd.f32 %v2942, %v2943
    %v2945 = vrot.slane %v2944, 1
    %v2946 = vadd.f32 %v2944, %v2945
    %v2947 = vsel %vm223, %v2353, 0.0
    %v2948 = vrot.slane %v2947, 4
    %v2949 = vadd.f32 %v2947, %v2948
    %v2950 = vrot.slane %v2949, 2
    %v2951 = vadd.f32 %v2949, %v2950
    %v2952 = vrot.slane %v2951, 1
    %v2953 = vadd.f32 %v2951, %v2952
    %v2954 = vsel %vm223, %v2356, 0.0
    %v2955 = vrot.slane %v2954, 4
    %v2956 = vadd.f32 %v2954, %v2955
    %v2957 = vrot.slane %v2956, 2
    %v2958 = vadd.f32 %v2956, %v2957
    %v2959 = vrot.slane %v2958, 1
    %v2960 = vadd.f32 %v2958, %v2959
    %v2961 = vsel %vm223, %v2359, 0.0
    %v2962 = vrot.slane %v2961, 4
    %v2963 = vadd.f32 %v2961, %v2962
    %v2964 = vrot.slane %v2963, 2
    %v2965 = vadd.f32 %v2963, %v2964
    %v2966 = vrot.slane %v2965, 1
    %v2967 = vadd.f32 %v2965, %v2966
    %v2968 = vsel %vm223, %v2362, 0.0
    %v2969 = vrot.slane %v2968, 4
    %v2970 = vadd.f32 %v2968, %v2969
    %v2971 = vrot.slane %v2970, 2
    %v2972 = vadd.f32 %v2970, %v2971
    %v2973 = vrot.slane %v2972, 1
    %v2974 = vadd.f32 %v2972, %v2973
    %v2975 = vsel %vm223, %v2365, 0.0
    %v2976 = vrot.slane %v2975, 4
    %v2977 = vadd.f32 %v2975, %v2976
    %v2978 = vrot.slane %v2977, 2
    %v2979 = vadd.f32 %v2977, %v2978
    %v2980 = vrot.slane %v2979, 1
    %v2981 = vadd.f32 %v2979, %v2980
    %v2982 = vsel %vm223, %v2368, 0.0
    %v2983 = vrot.slane %v2982, 4
    %v2984 = vadd.f32 %v2982, %v2983
    %v2985 = vrot.slane %v2984, 2
    %v2986 = vadd.f32 %v2984, %v2985
    %v2987 = vrot.slane %v2986, 1
    %v2988 = vadd.f32 %v2986, %v2987
    %v2989 = vsel %vm223, %v2371, 0.0
    %v2990 = vrot.slane %v2989, 4
    %v2991 = vadd.f32 %v2989, %v2990
    %v2992 = vrot.slane %v2991, 2
    %v2993 = vadd.f32 %v2991, %v2992
    %v2994 = vrot.slane %v2993, 1
    %v2995 = vadd.f32 %v2993, %v2994
    %v2996 = vsel %vm223, %v2374, 0.0
    %v2997 = vrot.slane %v2996, 4
    %v2998 = vadd.f32 %v2996, %v2997
    %v2999 = vrot.slane %v2998, 2
    %v3000 = vadd.f32 %v2998, %v2999
    %v3001 = vrot.slane %v3000, 1
    %v3002 = vadd.f32 %v3000, %v3001
    %v3003 = vsel %vm223, %v2377, 0.0
    %v3004 = vrot.slane %v3003, 4
    %v3005 = vadd.f32 %v3003, %v3004
    %v3006 = vrot.slane %v3005, 2
    %v3007 = vadd.f32 %v3005, %v3006
    %v3008 = vrot.slane %v3007, 1
    %v3009 = vadd.f32 %v3007, %v3008
    %v3010 = vsel %vm223, %v2380, 0.0
    %v3011 = vrot.slane %v3010, 4
    %v3012 = vadd.f32 %v3010, %v3011
    %v3013 = vrot.slane %v3012, 2
    %v3014 = vadd.f32 %v3012, %v3013
    %v3015 = vrot.slane %v3014, 1
    %v3016 = vadd.f32 %v3014, %v3015
    %v3017 = vsel %vm223, %v2383, 0.0
    %v3018 = vrot.slane %v3017, 4
    %v3019 = vadd.f32 %v3017, %v3018
    %v3020 = vrot.slane %v3019, 2
    %v3021 = vadd.f32 %v3019, %v3020
    %v3022 = vrot.slane %v3021, 1
    %v3023 = vadd.f32 %v3021, %v3022
    %v3024 = vsel %vm223, %v2386, 0.0
    %v3025 = vrot.slane %v3024, 4
    %v3026 = vadd.f32 %v3024, %v3025
    %v3027 = vrot.slane %v3026, 2
    %v3028 = vadd.f32 %v3026, %v3027
    %v3029 = vrot.slane %v3028, 1
    %v3030 = vadd.f32 %v3028, %v3029
    %v3031 = vsel %vm223, %v2389, 0.0
    %v3032 = vrot.slane %v3031, 4
    %v3033 = vadd.f32 %v3031, %v3032
    %v3034 = vrot.slane %v3033, 2
    %v3035 = vadd.f32 %v3033, %v3034
    %v3036 = vrot.slane %v3035, 1
    %v3037 = vadd.f32 %v3035, %v3036
    %v3038 = vsel %vm223, %v2392, 0.0
    %v3039 = vrot.slane %v3038, 4
    %v3040 = vadd.f32 %v3038, %v3039
    %v3041 = vrot.slane %v3040, 2
    %v3042 = vadd.f32 %v3040, %v3041
    %v3043 = vrot.slane %v3042, 1
    %v3044 = vadd.f32 %v3042, %v3043
    %v3045 = vsel %vm223, %v2395, 0.0
    %v3046 = vrot.slane %v3045, 4
    %v3047 = vadd.f32 %v3045, %v3046
    %v3048 = vrot.slane %v3047, 2
    %v3049 = vadd.f32 %v3047, %v3048
    %v3050 = vrot.slane %v3049, 1
    %v3051 = vadd.f32 %v3049, %v3050
    %v3052 = vsel %vm223, %v2398, 0.0
    %v3053 = vrot.slane %v3052, 4
    %v3054 = vadd.f32 %v3052, %v3053
    %v3055 = vrot.slane %v3054, 2
    %v3056 = vadd.f32 %v3054, %v3055
    %v3057 = vrot.slane %v3056, 1
    %v3058 = vadd.f32 %v3056, %v3057
    %v3059 = vsel %vm223, %v2401, 0.0
    %v3060 = vrot.slane %v3059, 4
    %v3061 = vadd.f32 %v3059, %v3060
    %v3062 = vrot.slane %v3061, 2
    %v3063 = vadd.f32 %v3061, %v3062
    %v3064 = vrot.slane %v3063, 1
    %v3065 = vadd.f32 %v3063, %v3064
    %v3066 = vsel %vm223, %v2404, 0.0
    %v3067 = vrot.slane %v3066, 4
    %v3068 = vadd.f32 %v3066, %v3067
    %v3069 = vrot.slane %v3068, 2
    %v3070 = vadd.f32 %v3068, %v3069
    %v3071 = vrot.slane %v3070, 1
    %v3072 = vadd.f32 %v3070, %v3071
    %v3073 = vsel %vm223, %v2407, 0.0
    %v3074 = vrot.slane %v3073, 4
    %v3075 = vadd.f32 %v3073, %v3074
    %v3076 = vrot.slane %v3075, 2
    %v3077 = vadd.f32 %v3075, %v3076
    %v3078 = vrot.slane %v3077, 1
    %v3079 = vadd.f32 %v3077, %v3078
    %v3080 = vsel %vm223, %v2410, 0.0
    %v3081 = vrot.slane %v3080, 4
    %v3082 = vadd.f32 %v3080, %v3081
    %v3083 = vrot.slane %v3082, 2
    %v3084 = vadd.f32 %v3082, %v3083
    %v3085 = vrot.slane %v3084, 1
    %v3086 = vadd.f32 %v3084, %v3085
    %v3087 = vsel %vm223, %v2413, 0.0
    %v3088 = vrot.slane %v3087, 4
    %v3089 = vadd.f32 %v3087, %v3088
    %v3090 = vrot.slane %v3089, 2
    %v3091 = vadd.f32 %v3089, %v3090
    %v3092 = vrot.slane %v3091, 1
    %v3093 = vadd.f32 %v3091, %v3092
    %v3094 = vsel %vm223, %v2416, 0.0
    %v3095 = vrot.slane %v3094, 4
    %v3096 = vadd.f32 %v3094, %v3095
    %v3097 = vrot.slane %v3096, 2
    %v3098 = vadd.f32 %v3096, %v3097
    %v3099 = vrot.slane %v3098, 1
    %v3100 = vadd.f32 %v3098, %v3099
    %v3101 = vsel %vm223, %v2419, 0.0
    %v3102 = vrot.slane %v3101, 4
    %v3103 = vadd.f32 %v3101, %v3102
    %v3104 = vrot.slane %v3103, 2
    %v3105 = vadd.f32 %v3103, %v3104
    %v3106 = vrot.slane %v3105, 1
    %v3107 = vadd.f32 %v3105, %v3106
    %v3108 = vsel %vm223, %v2422, 0.0
    %v3109 = vrot.slane %v3108, 4
    %v3110 = vadd.f32 %v3108, %v3109
    %v3111 = vrot.slane %v3110, 2
    %v3112 = vadd.f32 %v3110, %v3111
    %v3113 = vrot.slane %v3112, 1
    %v3114 = vadd.f32 %v3112, %v3113
    %v3115 = vsel %vm223, %v2425, 0.0
    %v3116 = vrot.slane %v3115, 4
    %v3117 = vadd.f32 %v3115, %v3116
    %v3118 = vrot.slane %v3117, 2
    %v3119 = vadd.f32 %v3117, %v3118
    %v3120 = vrot.slane %v3119, 1
    %v3121 = vadd.f32 %v3119, %v3120
    %v3122 = vsel %vm223, %v2428, 0.0
    %v3123 = vrot.slane %v3122, 4
    %v3124 = vadd.f32 %v3122, %v3123
    %v3125 = vrot.slane %v3124, 2
    %v3126 = vadd.f32 %v3124, %v3125
    %v3127 = vrot.slane %v3126, 1
    %v3128 = vadd.f32 %v3126, %v3127
    %v3129 = vsel %vm223, %v2431, 0.0
    %v3130 = vrot.slane %v3129, 4
    %v3131 = vadd.f32 %v3129, %v3130
    %v3132 = vrot.slane %v3131, 2
    %v3133 = vadd.f32 %v3131, %v3132
    %v3134 = vrot.slane %v3133, 1
    %v3135 = vadd.f32 %v3133, %v3134
    %v3136 = vsel %vm223, %v2434, 0.0
    %v3137 = vrot.slane %v3136, 4
    %v3138 = vadd.f32 %v3136, %v3137
    %v3139 = vrot.slane %v3138, 2
    %v3140 = vadd.f32 %v3138, %v3139
    %v3141 = vrot.slane %v3140, 1
    %v3142 = vadd.f32 %v3140, %v3141
    %v3143 = vsel %vm223, %v2437, 0.0
    %v3144 = vrot.slane %v3143, 4
    %v3145 = vadd.f32 %v3143, %v3144
    %v3146 = vrot.slane %v3145, 2
    %v3147 = vadd.f32 %v3145, %v3146
    %v3148 = vrot.slane %v3147, 1
    %v3149 = vadd.f32 %v3147, %v3148
    %v3150 = vsel %vm223, %v2440, 0.0
    %v3151 = vrot.slane %v3150, 4
    %v3152 = vadd.f32 %v3150, %v3151
    %v3153 = vrot.slane %v3152, 2
    %v3154 = vadd.f32 %v3152, %v3153
    %v3155 = vrot.slane %v3154, 1
    %v3156 = vadd.f32 %v3154, %v3155
    %v3157 = vsel %vm223, %v2443, 0.0
    %v3158 = vrot.slane %v3157, 4
    %v3159 = vadd.f32 %v3157, %v3158
    %v3160 = vrot.slane %v3159, 2
    %v3161 = vadd.f32 %v3159, %v3160
    %v3162 = vrot.slane %v3161, 1
    %v3163 = vadd.f32 %v3161, %v3162
    %v3164 = vsel %vm223, %v2446, 0.0
    %v3165 = vrot.slane %v3164, 4
    %v3166 = vadd.f32 %v3164, %v3165
    %v3167 = vrot.slane %v3166, 2
    %v3168 = vadd.f32 %v3166, %v3167
    %v3169 = vrot.slane %v3168, 1
    %v3170 = vadd.f32 %v3168, %v3169
    %v3171 = vsel %vm223, %v2449, 0.0
    %v3172 = vrot.slane %v3171, 4
    %v3173 = vadd.f32 %v3171, %v3172
    %v3174 = vrot.slane %v3173, 2
    %v3175 = vadd.f32 %v3173, %v3174
    %v3176 = vrot.slane %v3175, 1
    %v3177 = vadd.f32 %v3175, %v3176
    %v3178 = vsel %vm223, %v2452, 0.0
    %v3179 = vrot.slane %v3178, 4
    %v3180 = vadd.f32 %v3178, %v3179
    %v3181 = vrot.slane %v3180, 2
    %v3182 = vadd.f32 %v3180, %v3181
    %v3183 = vrot.slane %v3182, 1
    %v3184 = vadd.f32 %v3182, %v3183
    %v3185 = vsel %vm223, %v2455, 0.0
    %v3186 = vrot.slane %v3185, 4
    %v3187 = vadd.f32 %v3185, %v3186
    %v3188 = vrot.slane %v3187, 2
    %v3189 = vadd.f32 %v3187, %v3188
    %v3190 = vrot.slane %v3189, 1
    %v3191 = vadd.f32 %v3189, %v3190
    %v3192 = vsel %vm223, %v2458, 0.0
    %v3193 = vrot.slane %v3192, 4
    %v3194 = vadd.f32 %v3192, %v3193
    %v3195 = vrot.slane %v3194, 2
    %v3196 = vadd.f32 %v3194, %v3195
    %v3197 = vrot.slane %v3196, 1
    %v3198 = vadd.f32 %v3196, %v3197
    %v3199 = vsel %vm223, %v2461, 0.0
    %v3200 = vrot.slane %v3199, 4
    %v3201 = vadd.f32 %v3199, %v3200
    %v3202 = vrot.slane %v3201, 2
    %v3203 = vadd.f32 %v3201, %v3202
    %v3204 = vrot.slane %v3203, 1
    %v3205 = vadd.f32 %v3203, %v3204
    %v3206 = vsel %vm223, %v2464, 0.0
    %v3207 = vrot.slane %v3206, 4
    %v3208 = vadd.f32 %v3206, %v3207
    %v3209 = vrot.slane %v3208, 2
    %v3210 = vadd.f32 %v3208, %v3209
    %v3211 = vrot.slane %v3210, 1
    %v3212 = vadd.f32 %v3210, %v3211
    %v3213 = vsel %vm223, %v2467, 0.0
    %v3214 = vrot.slane %v3213, 4
    %v3215 = vadd.f32 %v3213, %v3214
    %v3216 = vrot.slane %v3215, 2
    %v3217 = vadd.f32 %v3215, %v3216
    %v3218 = vrot.slane %v3217, 1
    %v3219 = vadd.f32 %v3217, %v3218
    %v3220 = vsel %vm223, %v2470, 0.0
    %v3221 = vrot.slane %v3220, 4
    %v3222 = vadd.f32 %v3220, %v3221
    %v3223 = vrot.slane %v3222, 2
    %v3224 = vadd.f32 %v3222, %v3223
    %v3225 = vrot.slane %v3224, 1
    %v3226 = vadd.f32 %v3224, %v3225
    %v3227 = vsel %vm223, %v2473, 0.0
    %v3228 = vrot.slane %v3227, 4
    %v3229 = vadd.f32 %v3227, %v3228
    %v3230 = vrot.slane %v3229, 2
    %v3231 = vadd.f32 %v3229, %v3230
    %v3232 = vrot.slane %v3231, 1
    %v3233 = vadd.f32 %v3231, %v3232
    %v3234 = vsel %vm223, %v2476, 0.0
    %v3235 = vrot.slane %v3234, 4
    %v3236 = vadd.f32 %v3234, %v3235
    %v3237 = vrot.slane %v3236, 2
    %v3238 = vadd.f32 %v3236, %v3237
    %v3239 = vrot.slane %v3238, 1
    %v3240 = vadd.f32 %v3238, %v3239
    %v3241 = vsel %vm223, %v2479, 0.0
    %v3242 = vrot.slane %v3241, 4
    %v3243 = vadd.f32 %v3241, %v3242
    %v3244 = vrot.slane %v3243, 2
    %v3245 = vadd.f32 %v3243, %v3244
    %v3246 = vrot.slane %v3245, 1
    %v3247 = vadd.f32 %v3245, %v3246
    %v3248 = vsel %vm223, %v2482, 0.0
    %v3249 = vrot.slane %v3248, 4
    %v3250 = vadd.f32 %v3248, %v3249
    %v3251 = vrot.slane %v3250, 2
    %v3252 = vadd.f32 %v3250, %v3251
    %v3253 = vrot.slane %v3252, 1
    %v3254 = vadd.f32 %v3252, %v3253
    %v3255 = vsel %vm223, %v2485, 0.0
    %v3256 = vrot.slane %v3255, 4
    %v3257 = vadd.f32 %v3255, %v3256
    %v3258 = vrot.slane %v3257, 2
    %v3259 = vadd.f32 %v3257, %v3258
    %v3260 = vrot.slane %v3259, 1
    %v3261 = vadd.f32 %v3259, %v3260
    %v3262 = vsel %vm223, %v2488, 0.0
    %v3263 = vrot.slane %v3262, 4
    %v3264 = vadd.f32 %v3262, %v3263
    %v3265 = vrot.slane %v3264, 2
    %v3266 = vadd.f32 %v3264, %v3265
    %v3267 = vrot.slane %v3266, 1
    %v3268 = vadd.f32 %v3266, %v3267
    %v3269 = vsel %vm223, %v2491, 0.0
    %v3270 = vrot.slane %v3269, 4
    %v3271 = vadd.f32 %v3269, %v3270
    %v3272 = vrot.slane %v3271, 2
    %v3273 = vadd.f32 %v3271, %v3272
    %v3274 = vrot.slane %v3273, 1
    %v3275 = vadd.f32 %v3273, %v3274
    %v3276 = vsel %vm223, %v2494, 0.0
    %v3277 = vrot.slane %v3276, 4
    %v3278 = vadd.f32 %v3276, %v3277
    %v3279 = vrot.slane %v3278, 2
    %v3280 = vadd.f32 %v3278, %v3279
    %v3281 = vrot.slane %v3280, 1
    %v3282 = vadd.f32 %v3280, %v3281
    %v3283 = vsel %vm223, %v2497, 0.0
    %v3284 = vrot.slane %v3283, 4
    %v3285 = vadd.f32 %v3283, %v3284
    %v3286 = vrot.slane %v3285, 2
    %v3287 = vadd.f32 %v3285, %v3286
    %v3288 = vrot.slane %v3287, 1
    %v3289 = vadd.f32 %v3287, %v3288
    %v3290 = vsel %vm223, %v2500, 0.0
    %v3291 = vrot.slane %v3290, 4
    %v3292 = vadd.f32 %v3290, %v3291
    %v3293 = vrot.slane %v3292, 2
    %v3294 = vadd.f32 %v3292, %v3293
    %v3295 = vrot.slane %v3294, 1
    %v3296 = vadd.f32 %v3294, %v3295
    %v3297 = vsel %vm223, %v2503, 0.0
    %v3298 = vrot.slane %v3297, 4
    %v3299 = vadd.f32 %v3297, %v3298
    %v3300 = vrot.slane %v3299, 2
    %v3301 = vadd.f32 %v3299, %v3300
    %v3302 = vrot.slane %v3301, 1
    %v3303 = vadd.f32 %v3301, %v3302
    %v3304 = vsel %vm223, %v2506, 0.0
    %v3305 = vrot.slane %v3304, 4
    %v3306 = vadd.f32 %v3304, %v3305
    %v3307 = vrot.slane %v3306, 2
    %v3308 = vadd.f32 %v3306, %v3307
    %v3309 = vrot.slane %v3308, 1
    %v3310 = vadd.f32 %v3308, %v3309
    %v3311 = vsel %vm223, %v2509, 0.0
    %v3312 = vrot.slane %v3311, 4
    %v3313 = vadd.f32 %v3311, %v3312
    %v3314 = vrot.slane %v3313, 2
    %v3315 = vadd.f32 %v3313, %v3314
    %v3316 = vrot.slane %v3315, 1
    %v3317 = vadd.f32 %v3315, %v3316
    %v3318 = vsel %vm223, %v2512, 0.0
    %v3319 = vrot.slane %v3318, 4
    %v3320 = vadd.f32 %v3318, %v3319
    %v3321 = vrot.slane %v3320, 2
    %v3322 = vadd.f32 %v3320, %v3321
    %v3323 = vrot.slane %v3322, 1
    %v3324 = vadd.f32 %v3322, %v3323
    %v3325 = vsel %vm223, %v2515, 0.0
    %v3326 = vrot.slane %v3325, 4
    %v3327 = vadd.f32 %v3325, %v3326
    %v3328 = vrot.slane %v3327, 2
    %v3329 = vadd.f32 %v3327, %v3328
    %v3330 = vrot.slane %v3329, 1
    %v3331 = vadd.f32 %v3329, %v3330
    %v3332 = vsel %vm223, %v2518, 0.0
    %v3333 = vrot.slane %v3332, 4
    %v3334 = vadd.f32 %v3332, %v3333
    %v3335 = vrot.slane %v3334, 2
    %v3336 = vadd.f32 %v3334, %v3335
    %v3337 = vrot.slane %v3336, 1
    %v3338 = vadd.f32 %v3336, %v3337
    %v3339 = vsel %vm223, %v2521, 0.0
    %v3340 = vrot.slane %v3339, 4
    %v3341 = vadd.f32 %v3339, %v3340
    %v3342 = vrot.slane %v3341, 2
    %v3343 = vadd.f32 %v3341, %v3342
    %v3344 = vrot.slane %v3343, 1
    %v3345 = vadd.f32 %v3343, %v3344
    %v3346 = vsel %vm223, %v2524, 0.0
    %v3347 = vrot.slane %v3346, 4
    %v3348 = vadd.f32 %v3346, %v3347
    %v3349 = vrot.slane %v3348, 2
    %v3350 = vadd.f32 %v3348, %v3349
    %v3351 = vrot.slane %v3350, 1
    %v3352 = vadd.f32 %v3350, %v3351
    %v3353 = vsel %vm223, %v2527, 0.0
    %v3354 = vrot.slane %v3353, 4
    %v3355 = vadd.f32 %v3353, %v3354
    %v3356 = vrot.slane %v3355, 2
    %v3357 = vadd.f32 %v3355, %v3356
    %v3358 = vrot.slane %v3357, 1
    %v3359 = vadd.f32 %v3357, %v3358
    %v3360 = vsel %vm223, %v2530, 0.0
    %v3361 = vrot.slane %v3360, 4
    %v3362 = vadd.f32 %v3360, %v3361
    %v3363 = vrot.slane %v3362, 2
    %v3364 = vadd.f32 %v3362, %v3363
    %v3365 = vrot.slane %v3364, 1
    %v3366 = vadd.f32 %v3364, %v3365
    %v3367 = vsel %vm223, %v2533, 0.0
    %v3368 = vrot.slane %v3367, 4
    %v3369 = vadd.f32 %v3367, %v3368
    %v3370 = vrot.slane %v3369, 2
    %v3371 = vadd.f32 %v3369, %v3370
    %v3372 = vrot.slane %v3371, 1
    %v3373 = vadd.f32 %v3371, %v3372
    %v3374 = vsel %vm223, %v2536, 0.0
    %v3375 = vrot.slane %v3374, 4
    %v3376 = vadd.f32 %v3374, %v3375
    %v3377 = vrot.slane %v3376, 2
    %v3378 = vadd.f32 %v3376, %v3377
    %v3379 = vrot.slane %v3378, 1
    %v3380 = vadd.f32 %v3378, %v3379
    %v3381 = vsel %vm223, %v2539, 0.0
    %v3382 = vrot.slane %v3381, 4
    %v3383 = vadd.f32 %v3381, %v3382
    %v3384 = vrot.slane %v3383, 2
    %v3385 = vadd.f32 %v3383, %v3384
    %v3386 = vrot.slane %v3385, 1
    %v3387 = vadd.f32 %v3385, %v3386
    %v3388 = vsel %vm223, %v2542, 0.0
    %v3389 = vrot.slane %v3388, 4
    %v3390 = vadd.f32 %v3388, %v3389
    %v3391 = vrot.slane %v3390, 2
    %v3392 = vadd.f32 %v3390, %v3391
    %v3393 = vrot.slane %v3392, 1
    %v3394 = vadd.f32 %v3392, %v3393
    %v3395 = vsel %vm223, %v2545, 0.0
    %v3396 = vrot.slane %v3395, 4
    %v3397 = vadd.f32 %v3395, %v3396
    %v3398 = vrot.slane %v3397, 2
    %v3399 = vadd.f32 %v3397, %v3398
    %v3400 = vrot.slane %v3399, 1
    %v3401 = vadd.f32 %v3399, %v3400
    %v3402 = vsel %vm223, %v2548, 0.0
    %v3403 = vrot.slane %v3402, 4
    %v3404 = vadd.f32 %v3402, %v3403
    %v3405 = vrot.slane %v3404, 2
    %v3406 = vadd.f32 %v3404, %v3405
    %v3407 = vrot.slane %v3406, 1
    %v3408 = vadd.f32 %v3406, %v3407
    %v3409 = vsel %vm223, %v2551, 0.0
    %v3410 = vrot.slane %v3409, 4
    %v3411 = vadd.f32 %v3409, %v3410
    %v3412 = vrot.slane %v3411, 2
    %v3413 = vadd.f32 %v3411, %v3412
    %v3414 = vrot.slane %v3413, 1
    %v3415 = vadd.f32 %v3413, %v3414
    %v3416 = vsel %vm223, %v2554, 0.0
    %v3417 = vrot.slane %v3416, 4
    %v3418 = vadd.f32 %v3416, %v3417
    %v3419 = vrot.slane %v3418, 2
    %v3420 = vadd.f32 %v3418, %v3419
    %v3421 = vrot.slane %v3420, 1
    %v3422 = vadd.f32 %v3420, %v3421
    %v3423 = vsel %vm223, %v2557, 0.0
    %v3424 = vrot.slane %v3423, 4
    %v3425 = vadd.f32 %v3423, %v3424
    %v3426 = vrot.slane %v3425, 2
    %v3427 = vadd.f32 %v3425, %v3426
    %v3428 = vrot.slane %v3427, 1
    %v3429 = vadd.f32 %v3427, %v3428
    %v3430 = vsel %vm223, %v2560, 0.0
    %v3431 = vrot.slane %v3430, 4
    %v3432 = vadd.f32 %v3430, %v3431
    %v3433 = vrot.slane %v3432, 2
    %v3434 = vadd.f32 %v3432, %v3433
    %v3435 = vrot.slane %v3434, 1
    %v3436 = vadd.f32 %v3434, %v3435
    %v3437 = vsel %vm223, %v2563, 0.0
    %v3438 = vrot.slane %v3437, 4
    %v3439 = vadd.f32 %v3437, %v3438
    %v3440 = vrot.slane %v3439, 2
    %v3441 = vadd.f32 %v3439, %v3440
    %v3442 = vrot.slane %v3441, 1
    %v3443 = vadd.f32 %v3441, %v3442
    %v3444 = vsel %vm223, %v2566, 0.0
    %v3445 = vrot.slane %v3444, 4
    %v3446 = vadd.f32 %v3444, %v3445
    %v3447 = vrot.slane %v3446, 2
    %v3448 = vadd.f32 %v3446, %v3447
    %v3449 = vrot.slane %v3448, 1
    %v3450 = vadd.f32 %v3448, %v3449
    %v3451 = vsel %vm223, %v2569, 0.0
    %v3452 = vrot.slane %v3451, 4
    %v3453 = vadd.f32 %v3451, %v3452
    %v3454 = vrot.slane %v3453, 2
    %v3455 = vadd.f32 %v3453, %v3454
    %v3456 = vrot.slane %v3455, 1
    %v3457 = vadd.f32 %v3455, %v3456
    %v3458 = vsel %vm223, %v2572, 0.0
    %v3459 = vrot.slane %v3458, 4
    %v3460 = vadd.f32 %v3458, %v3459
    %v3461 = vrot.slane %v3460, 2
    %v3462 = vadd.f32 %v3460, %v3461
    %v3463 = vrot.slane %v3462, 1
    %v3464 = vadd.f32 %v3462, %v3463
    %v3465 = vsel %vm223, %v2575, 0.0
    %v3466 = vrot.slane %v3465, 4
    %v3467 = vadd.f32 %v3465, %v3466
    %v3468 = vrot.slane %v3467, 2
    %v3469 = vadd.f32 %v3467, %v3468
    %v3470 = vrot.slane %v3469, 1
    %v3471 = vadd.f32 %v3469, %v3470
    %v3472 = vsel %vm223, %v2578, 0.0
    %v3473 = vrot.slane %v3472, 4
    %v3474 = vadd.f32 %v3472, %v3473
    %v3475 = vrot.slane %v3474, 2
    %v3476 = vadd.f32 %v3474, %v3475
    %v3477 = vrot.slane %v3476, 1
    %v3478 = vadd.f32 %v3476, %v3477
    %v3479 = vsel %vm223, %v2581, 0.0
    %v3480 = vrot.slane %v3479, 4
    %v3481 = vadd.f32 %v3479, %v3480
    %v3482 = vrot.slane %v3481, 2
    %v3483 = vadd.f32 %v3481, %v3482
    %v3484 = vrot.slane %v3483, 1
    %v3485 = vadd.f32 %v3483, %v3484
    %v3486 = vsel %vm223, %v2584, 0.0
    %v3487 = vrot.slane %v3486, 4
    %v3488 = vadd.f32 %v3486, %v3487
    %v3489 = vrot.slane %v3488, 2
    %v3490 = vadd.f32 %v3488, %v3489
    %v3491 = vrot.slane %v3490, 1
    %v3492 = vadd.f32 %v3490, %v3491
    %v3493 = vsel %vm223, %v2587, 0.0
    %v3494 = vrot.slane %v3493, 4
    %v3495 = vadd.f32 %v3493, %v3494
    %v3496 = vrot.slane %v3495, 2
    %v3497 = vadd.f32 %v3495, %v3496
    %v3498 = vrot.slane %v3497, 1
    %v3499 = vadd.f32 %v3497, %v3498
    %v3500 = vsel %vm223, %v2590, 0.0
    %v3501 = vrot.slane %v3500, 4
    %v3502 = vadd.f32 %v3500, %v3501
    %v3503 = vrot.slane %v3502, 2
    %v3504 = vadd.f32 %v3502, %v3503
    %v3505 = vrot.slane %v3504, 1
    %v3506 = vadd.f32 %v3504, %v3505
    %v3507 = vsel %vm223, %v2593, 0.0
    %v3508 = vrot.slane %v3507, 4
    %v3509 = vadd.f32 %v3507, %v3508
    %v3510 = vrot.slane %v3509, 2
    %v3511 = vadd.f32 %v3509, %v3510
    %v3512 = vrot.slane %v3511, 1
    %v3513 = vadd.f32 %v3511, %v3512
    %v3514 = vsel %vm223, %v2596, 0.0
    %v3515 = vrot.slane %v3514, 4
    %v3516 = vadd.f32 %v3514, %v3515
    %v3517 = vrot.slane %v3516, 2
    %v3518 = vadd.f32 %v3516, %v3517
    %v3519 = vrot.slane %v3518, 1
    %v3520 = vadd.f32 %v3518, %v3519
    %v3521 = vsel %vm223, %v2599, 0.0
    %v3522 = vrot.slane %v3521, 4
    %v3523 = vadd.f32 %v3521, %v3522
    %v3524 = vrot.slane %v3523, 2
    %v3525 = vadd.f32 %v3523, %v3524
    %v3526 = vrot.slane %v3525, 1
    %v3527 = vadd.f32 %v3525, %v3526
    %v3528 = vsel %vm223, %v2602, 0.0
    %v3529 = vrot.slane %v3528, 4
    %v3530 = vadd.f32 %v3528, %v3529
    %v3531 = vrot.slane %v3530, 2
    %v3532 = vadd.f32 %v3530, %v3531
    %v3533 = vrot.slane %v3532, 1
    %v3534 = vadd.f32 %v3532, %v3533
    %v3535 = vsel %vm223, %v2605, 0.0
    %v3536 = vrot.slane %v3535, 4
    %v3537 = vadd.f32 %v3535, %v3536
    %v3538 = vrot.slane %v3537, 2
    %v3539 = vadd.f32 %v3537, %v3538
    %v3540 = vrot.slane %v3539, 1
    %v3541 = vadd.f32 %v3539, %v3540
    %v3542 = vsel %vm223, %v2608, 0.0
    %v3543 = vrot.slane %v3542, 4
    %v3544 = vadd.f32 %v3542, %v3543
    %v3545 = vrot.slane %v3544, 2
    %v3546 = vadd.f32 %v3544, %v3545
    %v3547 = vrot.slane %v3546, 1
    %v3548 = vadd.f32 %v3546, %v3547
    %v3549 = vsel %vm223, %v2611, 0.0
    %v3550 = vrot.slane %v3549, 4
    %v3551 = vadd.f32 %v3549, %v3550
    %v3552 = vrot.slane %v3551, 2
    %v3553 = vadd.f32 %v3551, %v3552
    %v3554 = vrot.slane %v3553, 1
    %v3555 = vadd.f32 %v3553, %v3554
    %v3556 = vsel %vm223, %v2614, 0.0
    %v3557 = vrot.slane %v3556, 4
    %v3558 = vadd.f32 %v3556, %v3557
    %v3559 = vrot.slane %v3558, 2
    %v3560 = vadd.f32 %v3558, %v3559
    %v3561 = vrot.slane %v3560, 1
    %v3562 = vadd.f32 %v3560, %v3561
    %v3563 = vsel %vm223, %v2617, 0.0
    %v3564 = vrot.slane %v3563, 4
    %v3565 = vadd.f32 %v3563, %v3564
    %v3566 = vrot.slane %v3565, 2
    %v3567 = vadd.f32 %v3565, %v3566
    %v3568 = vrot.slane %v3567, 1
    %v3569 = vadd.f32 %v3567, %v3568
    %v3570 = vsel %vm223, %v2620, 0.0
    %v3571 = vrot.slane %v3570, 4
    %v3572 = vadd.f32 %v3570, %v3571
    %v3573 = vrot.slane %v3572, 2
    %v3574 = vadd.f32 %v3572, %v3573
    %v3575 = vrot.slane %v3574, 1
    %v3576 = vadd.f32 %v3574, %v3575
    %v3577 = vsel %vm223, %v2623, 0.0
    %v3578 = vrot.slane %v3577, 4
    %v3579 = vadd.f32 %v3577, %v3578
    %v3580 = vrot.slane %v3579, 2
    %v3581 = vadd.f32 %v3579, %v3580
    %v3582 = vrot.slane %v3581, 1
    %v3583 = vadd.f32 %v3581, %v3582
    %v3584 = vsel %vm223, %v2626, 0.0
    %v3585 = vrot.slane %v3584, 4
    %v3586 = vadd.f32 %v3584, %v3585
    %v3587 = vrot.slane %v3586, 2
    %v3588 = vadd.f32 %v3586, %v3587
    %v3589 = vrot.slane %v3588, 1
    %v3590 = vadd.f32 %v3588, %v3589
    %v3591 = vsel %vm223, %v2629, 0.0
    %v3592 = vrot.slane %v3591, 4
    %v3593 = vadd.f32 %v3591, %v3592
    %v3594 = vrot.slane %v3593, 2
    %v3595 = vadd.f32 %v3593, %v3594
    %v3596 = vrot.slane %v3595, 1
    %v3597 = vadd.f32 %v3595, %v3596
    %v3598 = vsel %vm223, %v2632, 0.0
    %v3599 = vrot.slane %v3598, 4
    %v3600 = vadd.f32 %v3598, %v3599
    %v3601 = vrot.slane %v3600, 2
    %v3602 = vadd.f32 %v3600, %v3601
    %v3603 = vrot.slane %v3602, 1
    %v3604 = vadd.f32 %v3602, %v3603
    %v3605 = vsel %vm223, %v2635, 0.0
    %v3606 = vrot.slane %v3605, 4
    %v3607 = vadd.f32 %v3605, %v3606
    %v3608 = vrot.slane %v3607, 2
    %v3609 = vadd.f32 %v3607, %v3608
    %v3610 = vrot.slane %v3609, 1
    %v3611 = vadd.f32 %v3609, %v3610
    %v3612 = vsel %vm223, %v2638, 0.0
    %v3613 = vrot.slane %v3612, 4
    %v3614 = vadd.f32 %v3612, %v3613
    %v3615 = vrot.slane %v3614, 2
    %v3616 = vadd.f32 %v3614, %v3615
    %v3617 = vrot.slane %v3616, 1
    %v3618 = vadd.f32 %v3616, %v3617
    %v3619 = vsel %vm223, %v2641, 0.0
    %v3620 = vrot.slane %v3619, 4
    %v3621 = vadd.f32 %v3619, %v3620
    %v3622 = vrot.slane %v3621, 2
    %v3623 = vadd.f32 %v3621, %v3622
    %v3624 = vrot.slane %v3623, 1
    %v3625 = vadd.f32 %v3623, %v3624
    %v3626 = vsel %vm223, %v2644, 0.0
    %v3627 = vrot.slane %v3626, 4
    %v3628 = vadd.f32 %v3626, %v3627
    %v3629 = vrot.slane %v3628, 2
    %v3630 = vadd.f32 %v3628, %v3629
    %v3631 = vrot.slane %v3630, 1
    %v3632 = vadd.f32 %v3630, %v3631
    %v3633 = vsel %vm223, %v2647, 0.0
    %v3634 = vrot.slane %v3633, 4
    %v3635 = vadd.f32 %v3633, %v3634
    %v3636 = vrot.slane %v3635, 2
    %v3637 = vadd.f32 %v3635, %v3636
    %v3638 = vrot.slane %v3637, 1
    %v3639 = vadd.f32 %v3637, %v3638
    %v3640 = vsel %vm223, %v2650, 0.0
    %v3641 = vrot.slane %v3640, 4
    %v3642 = vadd.f32 %v3640, %v3641
    %v3643 = vrot.slane %v3642, 2
    %v3644 = vadd.f32 %v3642, %v3643
    %v3645 = vrot.slane %v3644, 1
    %v3646 = vadd.f32 %v3644, %v3645
    %v3647 = vsel %vm223, %v2653, 0.0
    %v3648 = vrot.slane %v3647, 4
    %v3649 = vadd.f32 %v3647, %v3648
    %v3650 = vrot.slane %v3649, 2
    %v3651 = vadd.f32 %v3649, %v3650
    %v3652 = vrot.slane %v3651, 1
    %v3653 = vadd.f32 %v3651, %v3652
    %v3654 = vsel %vm223, %v2656, 0.0
    %v3655 = vrot.slane %v3654, 4
    %v3656 = vadd.f32 %v3654, %v3655
    %v3657 = vrot.slane %v3656, 2
    %v3658 = vadd.f32 %v3656, %v3657
    %v3659 = vrot.slane %v3658, 1
    %v3660 = vadd.f32 %v3658, %v3659
    %v3661 = vsel %vm223, %v2659, 0.0
    %v3662 = vrot.slane %v3661, 4
    %v3663 = vadd.f32 %v3661, %v3662
    %v3664 = vrot.slane %v3663, 2
    %v3665 = vadd.f32 %v3663, %v3664
    %v3666 = vrot.slane %v3665, 1
    %v3667 = vadd.f32 %v3665, %v3666
    %v3668 = vsel %vm223, %v2662, 0.0
    %v3669 = vrot.slane %v3668, 4
    %v3670 = vadd.f32 %v3668, %v3669
    %v3671 = vrot.slane %v3670, 2
    %v3672 = vadd.f32 %v3670, %v3671
    %v3673 = vrot.slane %v3672, 1
    %v3674 = vadd.f32 %v3672, %v3673
    %v3675 = vsel %vm223, %v2665, 0.0
    %v3676 = vrot.slane %v3675, 4
    %v3677 = vadd.f32 %v3675, %v3676
    %v3678 = vrot.slane %v3677, 2
    %v3679 = vadd.f32 %v3677, %v3678
    %v3680 = vrot.slane %v3679, 1
    %v3681 = vadd.f32 %v3679, %v3680
    %v3682 = vsel %vm223, %v2668, 0.0
    %v3683 = vrot.slane %v3682, 4
    %v3684 = vadd.f32 %v3682, %v3683
    %v3685 = vrot.slane %v3684, 2
    %v3686 = vadd.f32 %v3684, %v3685
    %v3687 = vrot.slane %v3686, 1
    %v3688 = vadd.f32 %v3686, %v3687
    %v3689 = vsel %vm223, %v2671, 0.0
    %v3690 = vrot.slane %v3689, 4
    %v3691 = vadd.f32 %v3689, %v3690
    %v3692 = vrot.slane %v3691, 2
    %v3693 = vadd.f32 %v3691, %v3692
    %v3694 = vrot.slane %v3693, 1
    %v3695 = vadd.f32 %v3693, %v3694
    %v3696 = vsel %vm223, %v2674, 0.0
    %v3697 = vrot.slane %v3696, 4
    %v3698 = vadd.f32 %v3696, %v3697
    %v3699 = vrot.slane %v3698, 2
    %v3700 = vadd.f32 %v3698, %v3699
    %v3701 = vrot.slane %v3700, 1
    %v3702 = vadd.f32 %v3700, %v3701
    %v3703 = vsel %vm223, %v2677, 0.0
    %v3704 = vrot.slane %v3703, 4
    %v3705 = vadd.f32 %v3703, %v3704
    %v3706 = vrot.slane %v3705, 2
    %v3707 = vadd.f32 %v3705, %v3706
    %v3708 = vrot.slane %v3707, 1
    %v3709 = vadd.f32 %v3707, %v3708
    %v3710 = vsel %vm223, %v2680, 0.0
    %v3711 = vrot.slane %v3710, 4
    %v3712 = vadd.f32 %v3710, %v3711
    %v3713 = vrot.slane %v3712, 2
    %v3714 = vadd.f32 %v3712, %v3713
    %v3715 = vrot.slane %v3714, 1
    %v3716 = vadd.f32 %v3714, %v3715
    %v3717 = vsel %vm223, %v2683, 0.0
    %v3718 = vrot.slane %v3717, 4
    %v3719 = vadd.f32 %v3717, %v3718
    %v3720 = vrot.slane %v3719, 2
    %v3721 = vadd.f32 %v3719, %v3720
    %v3722 = vrot.slane %v3721, 1
    %v3723 = vadd.f32 %v3721, %v3722
    %v3724 = vsel %vm223, %v2686, 0.0
    %v3725 = vrot.slane %v3724, 4
    %v3726 = vadd.f32 %v3724, %v3725
    %v3727 = vrot.slane %v3726, 2
    %v3728 = vadd.f32 %v3726, %v3727
    %v3729 = vrot.slane %v3728, 1
    %v3730 = vadd.f32 %v3728, %v3729
    %v3731 = vsel %vm223, %v2689, 0.0
    %v3732 = vrot.slane %v3731, 4
    %v3733 = vadd.f32 %v3731, %v3732
    %v3734 = vrot.slane %v3733, 2
    %v3735 = vadd.f32 %v3733, %v3734
    %v3736 = vrot.slane %v3735, 1
    %v3737 = vadd.f32 %v3735, %v3736
    %v3738 = vsel %vm223, %v2692, 0.0
    %v3739 = vrot.slane %v3738, 4
    %v3740 = vadd.f32 %v3738, %v3739
    %v3741 = vrot.slane %v3740, 2
    %v3742 = vadd.f32 %v3740, %v3741
    %v3743 = vrot.slane %v3742, 1
    %v3744 = vadd.f32 %v3742, %v3743
    %v3745 = vsel %vm223, %v2695, 0.0
    %v3746 = vrot.slane %v3745, 4
    %v3747 = vadd.f32 %v3745, %v3746
    %v3748 = vrot.slane %v3747, 2
    %v3749 = vadd.f32 %v3747, %v3748
    %v3750 = vrot.slane %v3749, 1
    %v3751 = vadd.f32 %v3749, %v3750
    %v3752 = vsel %vm223, %v2698, 0.0
    %v3753 = vrot.slane %v3752, 4
    %v3754 = vadd.f32 %v3752, %v3753
    %v3755 = vrot.slane %v3754, 2
    %v3756 = vadd.f32 %v3754, %v3755
    %v3757 = vrot.slane %v3756, 1
    %v3758 = vadd.f32 %v3756, %v3757
    %v3759 = vsel %vm223, %v2701, 0.0
    %v3760 = vrot.slane %v3759, 4
    %v3761 = vadd.f32 %v3759, %v3760
    %v3762 = vrot.slane %v3761, 2
    %v3763 = vadd.f32 %v3761, %v3762
    %v3764 = vrot.slane %v3763, 1
    %v3765 = vadd.f32 %v3763, %v3764
    %v3766 = vsel %vm223, %v2704, 0.0
    %v3767 = vrot.slane %v3766, 4
    %v3768 = vadd.f32 %v3766, %v3767
    %v3769 = vrot.slane %v3768, 2
    %v3770 = vadd.f32 %v3768, %v3769
    %v3771 = vrot.slane %v3770, 1
    %v3772 = vadd.f32 %v3770, %v3771
    %v3773 = vsel %vm223, %v2707, 0.0
    %v3774 = vrot.slane %v3773, 4
    %v3775 = vadd.f32 %v3773, %v3774
    %v3776 = vrot.slane %v3775, 2
    %v3777 = vadd.f32 %v3775, %v3776
    %v3778 = vrot.slane %v3777, 1
    %v3779 = vadd.f32 %v3777, %v3778
    %v3780 = vsel %vm223, %v2710, 0.0
    %v3781 = vrot.slane %v3780, 4
    %v3782 = vadd.f32 %v3780, %v3781
    %v3783 = vrot.slane %v3782, 2
    %v3784 = vadd.f32 %v3782, %v3783
    %v3785 = vrot.slane %v3784, 1
    %v3786 = vadd.f32 %v3784, %v3785
    %v3787 = vsel %vm223, %v2713, 0.0
    %v3788 = vrot.slane %v3787, 4
    %v3789 = vadd.f32 %v3787, %v3788
    %v3790 = vrot.slane %v3789, 2
    %v3791 = vadd.f32 %v3789, %v3790
    %v3792 = vrot.slane %v3791, 1
    %v3793 = vadd.f32 %v3791, %v3792
    %v3794 = vsel %vm223, %v2716, 0.0
    %v3795 = vrot.slane %v3794, 4
    %v3796 = vadd.f32 %v3794, %v3795
    %v3797 = vrot.slane %v3796, 2
    %v3798 = vadd.f32 %v3796, %v3797
    %v3799 = vrot.slane %v3798, 1
    %v3800 = vadd.f32 %v3798, %v3799
    %v3801 = vsel %vm223, %v2719, 0.0
    %v3802 = vrot.slane %v3801, 4
    %v3803 = vadd.f32 %v3801, %v3802
    %v3804 = vrot.slane %v3803, 2
    %v3805 = vadd.f32 %v3803, %v3804
    %v3806 = vrot.slane %v3805, 1
    %v3807 = vadd.f32 %v3805, %v3806
    %v3808 = vsel %vm223, %v2722, 0.0
    %v3809 = vrot.slane %v3808, 4
    %v3810 = vadd.f32 %v3808, %v3809
    %v3811 = vrot.slane %v3810, 2
    %v3812 = vadd.f32 %v3810, %v3811
    %v3813 = vrot.slane %v3812, 1
    %v3814 = vadd.f32 %v3812, %v3813
    %v3815 = vsel %vm223, %v2725, 0.0
    %v3816 = vrot.slane %v3815, 4
    %v3817 = vadd.f32 %v3815, %v3816
    %v3818 = vrot.slane %v3817, 2
    %v3819 = vadd.f32 %v3817, %v3818
    %v3820 = vrot.slane %v3819, 1
    %v3821 = vadd.f32 %v3819, %v3820
    %v3822 = vsel %vm223, %v2728, 0.0
    %v3823 = vrot.slane %v3822, 4
    %v3824 = vadd.f32 %v3822, %v3823
    %v3825 = vrot.slane %v3824, 2
    %v3826 = vadd.f32 %v3824, %v3825
    %v3827 = vrot.slane %v3826, 1
    %v3828 = vadd.f32 %v3826, %v3827
    %v3829 = vsel %vm223, %v2731, 0.0
    %v3830 = vrot.slane %v3829, 4
    %v3831 = vadd.f32 %v3829, %v3830
    %v3832 = vrot.slane %v3831, 2
    %v3833 = vadd.f32 %v3831, %v3832
    %v3834 = vrot.slane %v3833, 1
    %v3835 = vadd.f32 %v3833, %v3834
    %v3836 = vsel %vm223, %v2734, 0.0
    %v3837 = vrot.slane %v3836, 4
    %v3838 = vadd.f32 %v3836, %v3837
    %v3839 = vrot.slane %v3838, 2
    %v3840 = vadd.f32 %v3838, %v3839
    %v3841 = vrot.slane %v3840, 1
    %v3842 = vadd.f32 %v3840, %v3841
    %v3843 = vsel %vm223, %v2737, 0.0
    %v3844 = vrot.slane %v3843, 4
    %v3845 = vadd.f32 %v3843, %v3844
    %v3846 = vrot.slane %v3845, 2
    %v3847 = vadd.f32 %v3845, %v3846
    %v3848 = vrot.slane %v3847, 1
    %v3849 = vadd.f32 %v3847, %v3848
    %v3850 = vsel %vm223, %v2740, 0.0
    %v3851 = vrot.slane %v3850, 4
    %v3852 = vadd.f32 %v3850, %v3851
    %v3853 = vrot.slane %v3852, 2
    %v3854 = vadd.f32 %v3852, %v3853
    %v3855 = vrot.slane %v3854, 1
    %v3856 = vadd.f32 %v3854, %v3855
    %v3857 = vsel %vm223, %v2743, 0.0
    %v3858 = vrot.slane %v3857, 4
    %v3859 = vadd.f32 %v3857, %v3858
    %v3860 = vrot.slane %v3859, 2
    %v3861 = vadd.f32 %v3859, %v3860
    %v3862 = vrot.slane %v3861, 1
    %v3863 = vadd.f32 %v3861, %v3862
    %v3864 = vsel %vm223, %v2746, 0.0
    %v3865 = vrot.slane %v3864, 4
    %v3866 = vadd.f32 %v3864, %v3865
    %v3867 = vrot.slane %v3866, 2
    %v3868 = vadd.f32 %v3866, %v3867
    %v3869 = vrot.slane %v3868, 1
    %v3870 = vadd.f32 %v3868, %v3869
    %v3871 = vsel %vm223, %v2749, 0.0
    %v3872 = vrot.slane %v3871, 4
    %v3873 = vadd.f32 %v3871, %v3872
    %v3874 = vrot.slane %v3873, 2
    %v3875 = vadd.f32 %v3873, %v3874
    %v3876 = vrot.slane %v3875, 1
    %v3877 = vadd.f32 %v3875, %v3876
    %v3878 = vsel %vm223, %v2752, 0.0
    %v3879 = vrot.slane %v3878, 4
    %v3880 = vadd.f32 %v3878, %v3879
    %v3881 = vrot.slane %v3880, 2
    %v3882 = vadd.f32 %v3880, %v3881
    %v3883 = vrot.slane %v3882, 1
    %v3884 = vadd.f32 %v3882, %v3883
    %v3885 = vsel %vm223, %v2755, 0.0
    %v3886 = vrot.slane %v3885, 4
    %v3887 = vadd.f32 %v3885, %v3886
    %v3888 = vrot.slane %v3887, 2
    %v3889 = vadd.f32 %v3887, %v3888
    %v3890 = vrot.slane %v3889, 1
    %v3891 = vadd.f32 %v3889, %v3890
    %v3892 = vsel %vm223, %v2758, 0.0
    %v3893 = vrot.slane %v3892, 4
    %v3894 = vadd.f32 %v3892, %v3893
    %v3895 = vrot.slane %v3894, 2
    %v3896 = vadd.f32 %v3894, %v3895
    %v3897 = vrot.slane %v3896, 1
    %v3898 = vadd.f32 %v3896, %v3897
    %v3899 = vsel %vm223, %v2761, 0.0
    %v3900 = vrot.slane %v3899, 4
    %v3901 = vadd.f32 %v3899, %v3900
    %v3902 = vrot.slane %v3901, 2
    %v3903 = vadd.f32 %v3901, %v3902
    %v3904 = vrot.slane %v3903, 1
    %v3905 = vadd.f32 %v3903, %v3904
    %v3906 = vsel %vm223, %v2764, 0.0
    %v3907 = vrot.slane %v3906, 4
    %v3908 = vadd.f32 %v3906, %v3907
    %v3909 = vrot.slane %v3908, 2
    %v3910 = vadd.f32 %v3908, %v3909
    %v3911 = vrot.slane %v3910, 1
    %v3912 = vadd.f32 %v3910, %v3911
    %v3913 = vsel %vm223, %v2767, 0.0
    %v3914 = vrot.slane %v3913, 4
    %v3915 = vadd.f32 %v3913, %v3914
    %v3916 = vrot.slane %v3915, 2
    %v3917 = vadd.f32 %v3915, %v3916
    %v3918 = vrot.slane %v3917, 1
    %v3919 = vadd.f32 %v3917, %v3918
    %v3920 = vsel %vm223, %v2770, 0.0
    %v3921 = vrot.slane %v3920, 4
    %v3922 = vadd.f32 %v3920, %v3921
    %v3923 = vrot.slane %v3922, 2
    %v3924 = vadd.f32 %v3922, %v3923
    %v3925 = vrot.slane %v3924, 1
    %v3926 = vadd.f32 %v3924, %v3925
    %v3927 = vsel %vm223, %v2773, 0.0
    %v3928 = vrot.slane %v3927, 4
    %v3929 = vadd.f32 %v3927, %v3928
    %v3930 = vrot.slane %v3929, 2
    %v3931 = vadd.f32 %v3929, %v3930
    %v3932 = vrot.slane %v3931, 1
    %v3933 = vadd.f32 %v3931, %v3932
    %v3934 = vsel %vm223, %v2776, 0.0
    %v3935 = vrot.slane %v3934, 4
    %v3936 = vadd.f32 %v3934, %v3935
    %v3937 = vrot.slane %v3936, 2
    %v3938 = vadd.f32 %v3936, %v3937
    %v3939 = vrot.slane %v3938, 1
    %v3940 = vadd.f32 %v3938, %v3939
    %v3941 = vsel %vm223, %v2779, 0.0
    %v3942 = vrot.slane %v3941, 4
    %v3943 = vadd.f32 %v3941, %v3942
    %v3944 = vrot.slane %v3943, 2
    %v3945 = vadd.f32 %v3943, %v3944
    %v3946 = vrot.slane %v3945, 1
    %v3947 = vadd.f32 %v3945, %v3946
    %v3948 = vsel %vm223, %v2782, 0.0
    %v3949 = vrot.slane %v3948, 4
    %v3950 = vadd.f32 %v3948, %v3949
    %v3951 = vrot.slane %v3950, 2
    %v3952 = vadd.f32 %v3950, %v3951
    %v3953 = vrot.slane %v3952, 1
    %v3954 = vadd.f32 %v3952, %v3953
    %v3955 = vsel %vm223, %v2785, 0.0
    %v3956 = vrot.slane %v3955, 4
    %v3957 = vadd.f32 %v3955, %v3956
    %v3958 = vrot.slane %v3957, 2
    %v3959 = vadd.f32 %v3957, %v3958
    %v3960 = vrot.slane %v3959, 1
    %v3961 = vadd.f32 %v3959, %v3960
    %v3962 = vsel %vm223, %v2788, 0.0
    %v3963 = vrot.slane %v3962, 4
    %v3964 = vadd.f32 %v3962, %v3963
    %v3965 = vrot.slane %v3964, 2
    %v3966 = vadd.f32 %v3964, %v3965
    %v3967 = vrot.slane %v3966, 1
    %v3968 = vadd.f32 %v3966, %v3967
    %v3969 = vsel %vm223, %v2791, 0.0
    %v3970 = vrot.slane %v3969, 4
    %v3971 = vadd.f32 %v3969, %v3970
    %v3972 = vrot.slane %v3971, 2
    %v3973 = vadd.f32 %v3971, %v3972
    %v3974 = vrot.slane %v3973, 1
    %v3975 = vadd.f32 %v3973, %v3974
    %v3976 = vsel %vm223, %v2794, 0.0
    %v3977 = vrot.slane %v3976, 4
    %v3978 = vadd.f32 %v3976, %v3977
    %v3979 = vrot.slane %v3978, 2
    %v3980 = vadd.f32 %v3978, %v3979
    %v3981 = vrot.slane %v3980, 1
    %v3982 = vadd.f32 %v3980, %v3981
    %v3983 = vsel %vm223, %v2797, 0.0
    %v3984 = vrot.slane %v3983, 4
    %v3985 = vadd.f32 %v3983, %v3984
    %v3986 = vrot.slane %v3985, 2
    %v3987 = vadd.f32 %v3985, %v3986
    %v3988 = vrot.slane %v3987, 1
    %v3989 = vadd.f32 %v3987, %v3988
    %v3990 = vsel %vm223, %v2800, 0.0
    %v3991 = vrot.slane %v3990, 4
    %v3992 = vadd.f32 %v3990, %v3991
    %v3993 = vrot.slane %v3992, 2
    %v3994 = vadd.f32 %v3992, %v3993
    %v3995 = vrot.slane %v3994, 1
    %v3996 = vadd.f32 %v3994, %v3995
    %v3997 = vsel %vm223, %v2803, 0.0
    %v3998 = vrot.slane %v3997, 4
    %v3999 = vadd.f32 %v3997, %v3998
    %v4000 = vrot.slane %v3999, 2
    %v4001 = vadd.f32 %v3999, %v4000
    %v4002 = vrot.slane %v4001, 1
    %v4003 = vadd.f32 %v4001, %v4002
    %v4004 = vsel %vm223, %v2806, 0.0
    %v4005 = vrot.slane %v4004, 4
    %v4006 = vadd.f32 %v4004, %v4005
    %v4007 = vrot.slane %v4006, 2
    %v4008 = vadd.f32 %v4006, %v4007
    %v4009 = vrot.slane %v4008, 1
    %v4010 = vadd.f32 %v4008, %v4009
    %v4011 = vsel %vm223, %v2809, 0.0
    %v4012 = vrot.slane %v4011, 4
    %v4013 = vadd.f32 %v4011, %v4012
    %v4014 = vrot.slane %v4013, 2
    %v4015 = vadd.f32 %v4013, %v4014
    %v4016 = vrot.slane %v4015, 1
    %v4017 = vadd.f32 %v4015, %v4016
    %v4018 = vsel %vm223, %v2812, 0.0
    %v4019 = vrot.slane %v4018, 4
    %v4020 = vadd.f32 %v4018, %v4019
    %v4021 = vrot.slane %v4020, 2
    %v4022 = vadd.f32 %v4020, %v4021
    %v4023 = vrot.slane %v4022, 1
    %v4024 = vadd.f32 %v4022, %v4023
    %v4025 = vsel %vm223, %v2815, 0.0
    %v4026 = vrot.slane %v4025, 4
    %v4027 = vadd.f32 %v4025, %v4026
    %v4028 = vrot.slane %v4027, 2
    %v4029 = vadd.f32 %v4027, %v4028
    %v4030 = vrot.slane %v4029, 1
    %v4031 = vadd.f32 %v4029, %v4030
    %v4032 = vsel %vm223, %v2818, 0.0
    %v4033 = vrot.slane %v4032, 4
    %v4034 = vadd.f32 %v4032, %v4033
    %v4035 = vrot.slane %v4034, 2
    %v4036 = vadd.f32 %v4034, %v4035
    %v4037 = vrot.slane %v4036, 1
    %v4038 = vadd.f32 %v4036, %v4037
    %v4039 = vsel %vm223, %v2821, 0.0
    %v4040 = vrot.slane %v4039, 4
    %v4041 = vadd.f32 %v4039, %v4040
    %v4042 = vrot.slane %v4041, 2
    %v4043 = vadd.f32 %v4041, %v4042
    %v4044 = vrot.slane %v4043, 1
    %v4045 = vadd.f32 %v4043, %v4044
    %v4046 = vsel %vm223, %v2824, 0.0
    %v4047 = vrot.slane %v4046, 4
    %v4048 = vadd.f32 %v4046, %v4047
    %v4049 = vrot.slane %v4048, 2
    %v4050 = vadd.f32 %v4048, %v4049
    %v4051 = vrot.slane %v4050, 1
    %v4052 = vadd.f32 %v4050, %v4051
    %v4053 = vsel %vm223, %v2827, 0.0
    %v4054 = vrot.slane %v4053, 4
    %v4055 = vadd.f32 %v4053, %v4054
    %v4056 = vrot.slane %v4055, 2
    %v4057 = vadd.f32 %v4055, %v4056
    %v4058 = vrot.slane %v4057, 1
    %v4059 = vadd.f32 %v4057, %v4058
    %v4060 = vsel %vm223, %v2830, 0.0
    %v4061 = vrot.slane %v4060, 4
    %v4062 = vadd.f32 %v4060, %v4061
    %v4063 = vrot.slane %v4062, 2
    %v4064 = vadd.f32 %v4062, %v4063
    %v4065 = vrot.slane %v4064, 1
    %v4066 = vadd.f32 %v4064, %v4065
    %v4067 = vsel %vm223, %v2833, 0.0
    %v4068 = vrot.slane %v4067, 4
    %v4069 = vadd.f32 %v4067, %v4068
    %v4070 = vrot.slane %v4069, 2
    %v4071 = vadd.f32 %v4069, %v4070
    %v4072 = vrot.slane %v4071, 1
    %v4073 = vadd.f32 %v4071, %v4072
    %v4074 = vsel %vm223, %v2836, 0.0
    %v4075 = vrot.slane %v4074, 4
    %v4076 = vadd.f32 %v4074, %v4075
    %v4077 = vrot.slane %v4076, 2
    %v4078 = vadd.f32 %v4076, %v4077
    %v4079 = vrot.slane %v4078, 1
    %v4080 = vadd.f32 %v4078, %v4079
    %v4081 = vsel %vm223, %v2839, 0.0
    %v4082 = vrot.slane %v4081, 4
    %v4083 = vadd.f32 %v4081, %v4082
    %v4084 = vrot.slane %v4083, 2
    %v4085 = vadd.f32 %v4083, %v4084
    %v4086 = vrot.slane %v4085, 1
    %v4087 = vadd.f32 %v4085, %v4086
    %v4088 = vsel %vm223, %v2842, 0.0
    %v4089 = vrot.slane %v4088, 4
    %v4090 = vadd.f32 %v4088, %v4089
    %v4091 = vrot.slane %v4090, 2
    %v4092 = vadd.f32 %v4090, %v4091
    %v4093 = vrot.slane %v4092, 1
    %v4094 = vadd.f32 %v4092, %v4093
    %v4095 = vsel %vm223, %v2845, 0.0
    %v4096 = vrot.slane %v4095, 4
    %v4097 = vadd.f32 %v4095, %v4096
    %v4098 = vrot.slane %v4097, 2
    %v4099 = vadd.f32 %v4097, %v4098
    %v4100 = vrot.slane %v4099, 1
    %v4101 = vadd.f32 %v4099, %v4100
    %v4102 = vsel %vm223, %v2848, 0.0
    %v4103 = vrot.slane %v4102, 4
    %v4104 = vadd.f32 %v4102, %v4103
    %v4105 = vrot.slane %v4104, 2
    %v4106 = vadd.f32 %v4104, %v4105
    %v4107 = vrot.slane %v4106, 1
    %v4108 = vadd.f32 %v4106, %v4107
    %v4109 = vsel %vm223, %v2851, 0.0
    %v4110 = vrot.slane %v4109, 4
    %v4111 = vadd.f32 %v4109, %v4110
    %v4112 = vrot.slane %v4111, 2
    %v4113 = vadd.f32 %v4111, %v4112
    %v4114 = vrot.slane %v4113, 1
    %v4115 = vadd.f32 %v4113, %v4114
    %v4116 = vsel %vm223, %v2854, 0.0
    %v4117 = vrot.slane %v4116, 4
    %v4118 = vadd.f32 %v4116, %v4117
    %v4119 = vrot.slane %v4118, 2
    %v4120 = vadd.f32 %v4118, %v4119
    %v4121 = vrot.slane %v4120, 1
    %v4122 = vadd.f32 %v4120, %v4121
    %v4123 = vsel %vm223, %v2857, 0.0
    %v4124 = vrot.slane %v4123, 4
    %v4125 = vadd.f32 %v4123, %v4124
    %v4126 = vrot.slane %v4125, 2
    %v4127 = vadd.f32 %v4125, %v4126
    %v4128 = vrot.slane %v4127, 1
    %v4129 = vadd.f32 %v4127, %v4128
    %v4130 = vsel %vm223, %v2860, 0.0
    %v4131 = vrot.slane %v4130, 4
    %v4132 = vadd.f32 %v4130, %v4131
    %v4133 = vrot.slane %v4132, 2
    %v4134 = vadd.f32 %v4132, %v4133
    %v4135 = vrot.slane %v4134, 1
    %v4136 = vadd.f32 %v4134, %v4135
    %v4137 = vsel %vm223, %v2863, 0.0
    %v4138 = vrot.slane %v4137, 4
    %v4139 = vadd.f32 %v4137, %v4138
    %v4140 = vrot.slane %v4139, 2
    %v4141 = vadd.f32 %v4139, %v4140
    %v4142 = vrot.slane %v4141, 1
    %v4143 = vadd.f32 %v4141, %v4142
    %v4144 = vsel %vm223, %v2866, 0.0
    %v4145 = vrot.slane %v4144, 4
    %v4146 = vadd.f32 %v4144, %v4145
    %v4147 = vrot.slane %v4146, 2
    %v4148 = vadd.f32 %v4146, %v4147
    %v4149 = vrot.slane %v4148, 1
    %v4150 = vadd.f32 %v4148, %v4149
    %v4151 = vsel %vm223, %v2869, 0.0
    %v4152 = vrot.slane %v4151, 4
    %v4153 = vadd.f32 %v4151, %v4152
    %v4154 = vrot.slane %v4153, 2
    %v4155 = vadd.f32 %v4153, %v4154
    %v4156 = vrot.slane %v4155, 1
    %v4157 = vadd.f32 %v4155, %v4156
    %v4158 = vsel %vm223, %v2872, 0.0
    %v4159 = vrot.slane %v4158, 4
    %v4160 = vadd.f32 %v4158, %v4159
    %v4161 = vrot.slane %v4160, 2
    %v4162 = vadd.f32 %v4160, %v4161
    %v4163 = vrot.slane %v4162, 1
    %v4164 = vadd.f32 %v4162, %v4163
    %v4165 = vsel %vm223, %v2875, 0.0
    %v4166 = vrot.slane %v4165, 4
    %v4167 = vadd.f32 %v4165, %v4166
    %v4168 = vrot.slane %v4167, 2
    %v4169 = vadd.f32 %v4167, %v4168
    %v4170 = vrot.slane %v4169, 1
    %v4171 = vadd.f32 %v4169, %v4170
    %v4172 = vsel %vm223, %v2878, 0.0
    %v4173 = vrot.slane %v4172, 4
    %v4174 = vadd.f32 %v4172, %v4173
    %v4175 = vrot.slane %v4174, 2
    %v4176 = vadd.f32 %v4174, %v4175
    %v4177 = vrot.slane %v4176, 1
    %v4178 = vadd.f32 %v4176, %v4177
    %v4179 = vsel %vm223, %v2881, 0.0
    %v4180 = vrot.slane %v4179, 4
    %v4181 = vadd.f32 %v4179, %v4180
    %v4182 = vrot.slane %v4181, 2
    %v4183 = vadd.f32 %v4181, %v4182
    %v4184 = vrot.slane %v4183, 1
    %v4185 = vadd.f32 %v4183, %v4184
    %v4186 = vsel %vm223, %v2884, 0.0
    %v4187 = vrot.slane %v4186, 4
    %v4188 = vadd.f32 %v4186, %v4187
    %v4189 = vrot.slane %v4188, 2
    %v4190 = vadd.f32 %v4188, %v4189
    %v4191 = vrot.slane %v4190, 1
    %v4192 = vadd.f32 %v4190, %v4191
    %v4193 = vsel %vm223, %v2887, 0.0
    %v4194 = vrot.slane %v4193, 4
    %v4195 = vadd.f32 %v4193, %v4194
    %v4196 = vrot.slane %v4195, 2
    %v4197 = vadd.f32 %v4195, %v4196
    %v4198 = vrot.slane %v4197, 1
    %v4199 = vadd.f32 %v4197, %v4198
    %v4200 = vsel %vm223, %v2890, 0.0
    %v4201 = vrot.slane %v4200, 4
    %v4202 = vadd.f32 %v4200, %v4201
    %v4203 = vrot.slane %v4202, 2
    %v4204 = vadd.f32 %v4202, %v4203
    %v4205 = vrot.slane %v4204, 1
    %v4206 = vadd.f32 %v4204, %v4205
    %v4207 = vsel %vm223, %v2893, 0.0
    %v4208 = vrot.slane %v4207, 4
    %v4209 = vadd.f32 %v4207, %v4208
    %v4210 = vrot.slane %v4209, 2
    %v4211 = vadd.f32 %v4209, %v4210
    %v4212 = vrot.slane %v4211, 1
    %v4213 = vadd.f32 %v4211, %v4212
    %v4214 = vsel %vm223, %v2896, 0.0
    %v4215 = vrot.slane %v4214, 4
    %v4216 = vadd.f32 %v4214, %v4215
    %v4217 = vrot.slane %v4216, 2
    %v4218 = vadd.f32 %v4216, %v4217
    %v4219 = vrot.slane %v4218, 1
    %v4220 = vadd.f32 %v4218, %v4219
    %v4221 = vsel %vm223, %v2899, 0.0
    %v4222 = vrot.slane %v4221, 4
    %v4223 = vadd.f32 %v4221, %v4222
    %v4224 = vrot.slane %v4223, 2
    %v4225 = vadd.f32 %v4223, %v4224
    %v4226 = vrot.slane %v4225, 1
    %v4227 = vadd.f32 %v4225, %v4226
    %v4228 = vsel %vm223, %v2902, 0.0
    %v4229 = vrot.slane %v4228, 4
    %v4230 = vadd.f32 %v4228, %v4229
    %v4231 = vrot.slane %v4230, 2
    %v4232 = vadd.f32 %v4230, %v4231
    %v4233 = vrot.slane %v4232, 1
    %v4234 = vadd.f32 %v4232, %v4233
    %v4235 = vsel %vm223, %v2905, 0.0
    %v4236 = vrot.slane %v4235, 4
    %v4237 = vadd.f32 %v4235, %v4236
    %v4238 = vrot.slane %v4237, 2
    %v4239 = vadd.f32 %v4237, %v4238
    %v4240 = vrot.slane %v4239, 1
    %v4241 = vadd.f32 %v4239, %v4240
    %v4242 = vsel %vm223, %v2908, 0.0
    %v4243 = vrot.slane %v4242, 4
    %v4244 = vadd.f32 %v4242, %v4243
    %v4245 = vrot.slane %v4244, 2
    %v4246 = vadd.f32 %v4244, %v4245
    %v4247 = vrot.slane %v4246, 1
    %v4248 = vadd.f32 %v4246, %v4247
    %v4249 = vsel %vm223, %v2911, 0.0
    %v4250 = vrot.slane %v4249, 4
    %v4251 = vadd.f32 %v4249, %v4250
    %v4252 = vrot.slane %v4251, 2
    %v4253 = vadd.f32 %v4251, %v4252
    %v4254 = vrot.slane %v4253, 1
    %v4255 = vadd.f32 %v4253, %v4254
    %v4256 = vmul.f32 %v806, 0.001953125
    %v4257 = vmul.f32 %v813, 0.001953125
    %v4258 = vmul.f32 %v820, 0.001953125
    %v4259 = vmul.f32 %v827, 0.001953125
    %v4260 = vmul.f32 %v834, 0.001953125
    %v4261 = vmul.f32 %v841, 0.001953125
    %v4262 = vmul.f32 %v848, 0.001953125
    %v4263 = vmul.f32 %v855, 0.001953125
    %v4264 = vmul.f32 %v862, 0.001953125
    %v4265 = vmul.f32 %v869, 0.001953125
    %v4266 = vmul.f32 %v876, 0.001953125
    %v4267 = vmul.f32 %v883, 0.001953125
    %v4268 = vmul.f32 %v890, 0.001953125
    %v4269 = vmul.f32 %v897, 0.001953125
    %v4270 = vmul.f32 %v904, 0.001953125
    %v4271 = vmul.f32 %v911, 0.001953125
    %v4272 = vmul.f32 %v918, 0.001953125
    %v4273 = vmul.f32 %v925, 0.001953125
    %v4274 = vmul.f32 %v932, 0.001953125
    %v4275 = vmul.f32 %v939, 0.001953125
    %v4276 = vmul.f32 %v946, 0.001953125
    %v4277 = vmul.f32 %v953, 0.001953125
    %v4278 = vmul.f32 %v960, 0.001953125
    %v4279 = vmul.f32 %v967, 0.001953125
    %v4280 = vmul.f32 %v974, 0.001953125
    %v4281 = vmul.f32 %v981, 0.001953125
    %v4282 = vmul.f32 %v988, 0.001953125
    %v4283 = vmul.f32 %v995, 0.001953125
    %v4284 = vmul.f32 %v1002, 0.001953125
    %v4285 = vmul.f32 %v1009, 0.001953125
    %v4286 = vmul.f32 %v1016, 0.001953125
    %v4287 = vmul.f32 %v1023, 0.001953125
    %v4288 = vmul.f32 %v1030, 0.001953125
    %v4289 = vmul.f32 %v1037, 0.001953125
    %v4290 = vmul.f32 %v1044, 0.001953125
    %v4291 = vmul.f32 %v1051, 0.001953125
    %v4292 = vmul.f32 %v1058, 0.001953125
    %v4293 = vmul.f32 %v1065, 0.001953125
    %v4294 = vmul.f32 %v1072, 0.001953125
    %v4295 = vmul.f32 %v1079, 0.001953125
    %v4296 = vmul.f32 %v1086, 0.001953125
    %v4297 = vmul.f32 %v1093, 0.001953125
    %v4298 = vmul.f32 %v1100, 0.001953125
    %v4299 = vmul.f32 %v1107, 0.001953125
    %v4300 = vmul.f32 %v1114, 0.001953125
    %v4301 = vmul.f32 %v1121, 0.001953125
    %v4302 = vmul.f32 %v1128, 0.001953125
    %v4303 = vmul.f32 %v1135, 0.001953125
    %v4304 = vmul.f32 %v1142, 0.001953125
    %v4305 = vmul.f32 %v1149, 0.001953125
    %v4306 = vmul.f32 %v1156, 0.001953125
    %v4307 = vmul.f32 %v1163, 0.001953125
    %v4308 = vmul.f32 %v1170, 0.001953125
    %v4309 = vmul.f32 %v1177, 0.001953125
    %v4310 = vmul.f32 %v1184, 0.001953125
    %v4311 = vmul.f32 %v1191, 0.001953125
    %v4312 = vmul.f32 %v1198, 0.001953125
    %v4313 = vmul.f32 %v1205, 0.001953125
    %v4314 = vmul.f32 %v1212, 0.001953125
    %v4315 = vmul.f32 %v1219, 0.001953125
    %v4316 = vmul.f32 %v1226, 0.001953125
    %v4317 = vmul.f32 %v1233, 0.001953125
    %v4318 = vmul.f32 %v1240, 0.001953125
    %v4319 = vmul.f32 %v1247, 0.001953125
    %v4320 = vmul.f32 %v1254, 0.001953125
    %v4321 = vmul.f32 %v1261, 0.001953125
    %v4322 = vmul.f32 %v1268, 0.001953125
    %v4323 = vmul.f32 %v1275, 0.001953125
    %v4324 = vmul.f32 %v1282, 0.001953125
    %v4325 = vmul.f32 %v1289, 0.001953125
    %v4326 = vmul.f32 %v1296, 0.001953125
    %v4327 = vmul.f32 %v1303, 0.001953125
    %v4328 = vmul.f32 %v1310, 0.001953125
    %v4329 = vmul.f32 %v1317, 0.001953125
    %v4330 = vmul.f32 %v1324, 0.001953125
    %v4331 = vmul.f32 %v1331, 0.001953125
    %v4332 = vmul.f32 %v1338, 0.001953125
    %v4333 = vmul.f32 %v1345, 0.001953125
    %v4334 = vmul.f32 %v1352, 0.001953125
    %v4335 = vmul.f32 %v1359, 0.001953125
    %v4336 = vmul.f32 %v1366, 0.001953125
    %v4337 = vmul.f32 %v1373, 0.001953125
    %v4338 = vmul.f32 %v1380, 0.001953125
    %v4339 = vmul.f32 %v1387, 0.001953125
    %v4340 = vmul.f32 %v1394, 0.001953125
    %v4341 = vmul.f32 %v1401, 0.001953125
    %v4342 = vmul.f32 %v1408, 0.001953125
    %v4343 = vmul.f32 %v1415, 0.001953125
    %v4344 = vmul.f32 %v1422, 0.001953125
    %v4345 = vmul.f32 %v1429, 0.001953125
    %v4346 = vmul.f32 %v1436, 0.001953125
    %v4347 = vmul.f32 %v1443, 0.001953125
    %v4348 = vmul.f32 %v1450, 0.001953125
    %v4349 = vmul.f32 %v1457, 0.001953125
    %v4350 = vmul.f32 %v1464, 0.001953125
    %v4351 = vmul.f32 %v1471, 0.001953125
    %v4352 = vmul.f32 %v1478, 0.001953125
    %v4353 = vmul.f32 %v1485, 0.001953125
    %v4354 = vmul.f32 %v1492, 0.001953125
    %v4355 = vmul.f32 %v1499, 0.001953125
    %v4356 = vmul.f32 %v1506, 0.001953125
    %v4357 = vmul.f32 %v1513, 0.001953125
    %v4358 = vmul.f32 %v1520, 0.001953125
    %v4359 = vmul.f32 %v1527, 0.001953125
    %v4360 = vmul.f32 %v1534, 0.001953125
    %v4361 = vmul.f32 %v1541, 0.001953125
    %v4362 = vmul.f32 %v1548, 0.001953125
    %v4363 = vmul.f32 %v1555, 0.001953125
    %v4364 = vmul.f32 %v1562, 0.001953125
    %v4365 = vmul.f32 %v1569, 0.001953125
    %v4366 = vmul.f32 %v1576, 0.001953125
    %v4367 = vmul.f32 %v1583, 0.001953125
    %v4368 = vmul.f32 %v1590, 0.001953125
    %v4369 = vmul.f32 %v1597, 0.001953125
    %v4370 = vmul.f32 %v1604, 0.001953125
    %v4371 = vmul.f32 %v1611, 0.001953125
    %v4372 = vmul.f32 %v1618, 0.001953125
    %v4373 = vmul.f32 %v1625, 0.001953125
    %v4374 = vmul.f32 %v1632, 0.001953125
    %v4375 = vmul.f32 %v1639, 0.001953125
    %v4376 = vmul.f32 %v1646, 0.001953125
    %v4377 = vmul.f32 %v1653, 0.001953125
    %v4378 = vmul.f32 %v1660, 0.001953125
    %v4379 = vmul.f32 %v1667, 0.001953125
    %v4380 = vmul.f32 %v1674, 0.001953125
    %v4381 = vmul.f32 %v1681, 0.001953125
    %v4382 = vmul.f32 %v1688, 0.001953125
    %v4383 = vmul.f32 %v1695, 0.001953125
    %v4384 = vmul.f32 %v1702, 0.001953125
    %v4385 = vmul.f32 %v1709, 0.001953125
    %v4386 = vmul.f32 %v1716, 0.001953125
    %v4387 = vmul.f32 %v1723, 0.001953125
    %v4388 = vmul.f32 %v1730, 0.001953125
    %v4389 = vmul.f32 %v1737, 0.001953125
    %v4390 = vmul.f32 %v1744, 0.001953125
    %v4391 = vmul.f32 %v1751, 0.001953125
    %v4392 = vmul.f32 %v1758, 0.001953125
    %v4393 = vmul.f32 %v1765, 0.001953125
    %v4394 = vmul.f32 %v1772, 0.001953125
    %v4395 = vmul.f32 %v1779, 0.001953125
    %v4396 = vmul.f32 %v1786, 0.001953125
    %v4397 = vmul.f32 %v1793, 0.001953125
    %v4398 = vmul.f32 %v1800, 0.001953125
    %v4399 = vmul.f32 %v1807, 0.001953125
    %v4400 = vmul.f32 %v1814, 0.001953125
    %v4401 = vmul.f32 %v1821, 0.001953125
    %v4402 = vmul.f32 %v1828, 0.001953125
    %v4403 = vmul.f32 %v1835, 0.001953125
    %v4404 = vmul.f32 %v1842, 0.001953125
    %v4405 = vmul.f32 %v1849, 0.001953125
    %v4406 = vmul.f32 %v1856, 0.001953125
    %v4407 = vmul.f32 %v1863, 0.001953125
    %v4408 = vmul.f32 %v1870, 0.001953125
    %v4409 = vmul.f32 %v1877, 0.001953125
    %v4410 = vmul.f32 %v1884, 0.001953125
    %v4411 = vmul.f32 %v1891, 0.001953125
    %v4412 = vmul.f32 %v1898, 0.001953125
    %v4413 = vmul.f32 %v1905, 0.001953125
    %v4414 = vmul.f32 %v1912, 0.001953125
    %v4415 = vmul.f32 %v1919, 0.001953125
    %v4416 = vmul.f32 %v1926, 0.001953125
    %v4417 = vmul.f32 %v1933, 0.001953125
    %v4418 = vmul.f32 %v1940, 0.001953125
    %v4419 = vmul.f32 %v1947, 0.001953125
    %v4420 = vmul.f32 %v1954, 0.001953125
    %v4421 = vmul.f32 %v1961, 0.001953125
    %v4422 = vmul.f32 %v1968, 0.001953125
    %v4423 = vmul.f32 %v1975, 0.001953125
    %v4424 = vmul.f32 %v1982, 0.001953125
    %v4425 = vmul.f32 %v1989, 0.001953125
    %v4426 = vmul.f32 %v1996, 0.001953125
    %v4427 = vmul.f32 %v2003, 0.001953125
    %v4428 = vmul.f32 %v2010, 0.001953125
    %v4429 = vmul.f32 %v2017, 0.001953125
    %v4430 = vmul.f32 %v2024, 0.001953125
    %v4431 = vmul.f32 %v2031, 0.001953125
    %v4432 = vmul.f32 %v2038, 0.001953125
    %v4433 = vmul.f32 %v2045, 0.001953125
    %v4434 = vmul.f32 %v2052, 0.001953125
    %v4435 = vmul.f32 %v2059, 0.001953125
    %v4436 = vmul.f32 %v2066, 0.001953125
    %v4437 = vmul.f32 %v2073, 0.001953125
    %v4438 = vmul.f32 %v2080, 0.001953125
    %v4439 = vmul.f32 %v2087, 0.001953125
    %v4440 = vmul.f32 %v2094, 0.001953125
    %v4441 = vmul.f32 %v2101, 0.001953125
    %v4442 = vmul.f32 %v2108, 0.001953125
    %v4443 = vmul.f32 %v2115, 0.001953125
    %v4444 = vmul.f32 %v2122, 0.001953125
    %v4445 = vmul.f32 %v2129, 0.001953125
    %v4446 = vmul.f32 %v2136, 0.001953125
    %v4447 = vmul.f32 %v2143, 0.001953125
    %v4448 = vmul.f32 %v2918, 0.001953125
    %v4449 = vmul.f32 %v2925, 0.001953125
    %v4450 = vmul.f32 %v2932, 0.001953125
    %v4451 = vmul.f32 %v2939, 0.001953125
    %v4452 = vmul.f32 %v2946, 0.001953125
    %v4453 = vmul.f32 %v2953, 0.001953125
    %v4454 = vmul.f32 %v2960, 0.001953125
    %v4455 = vmul.f32 %v2967, 0.001953125
    %v4456 = vmul.f32 %v2974, 0.001953125
    %v4457 = vmul.f32 %v2981, 0.001953125
    %v4458 = vmul.f32 %v2988, 0.001953125
    %v4459 = vmul.f32 %v2995, 0.001953125
    %v4460 = vmul.f32 %v3002, 0.001953125
    %v4461 = vmul.f32 %v3009, 0.001953125
    %v4462 = vmul.f32 %v3016, 0.001953125
    %v4463 = vmul.f32 %v3023, 0.001953125
    %v4464 = vmul.f32 %v3030, 0.001953125
    %v4465 = vmul.f32 %v3037, 0.001953125
    %v4466 = vmul.f32 %v3044, 0.001953125
    %v4467 = vmul.f32 %v3051, 0.001953125
    %v4468 = vmul.f32 %v3058, 0.001953125
    %v4469 = vmul.f32 %v3065, 0.001953125
    %v4470 = vmul.f32 %v3072, 0.001953125
    %v4471 = vmul.f32 %v3079, 0.001953125
    %v4472 = vmul.f32 %v3086, 0.001953125
    %v4473 = vmul.f32 %v3093, 0.001953125
    %v4474 = vmul.f32 %v3100, 0.001953125
    %v4475 = vmul.f32 %v3107, 0.001953125
    %v4476 = vmul.f32 %v3114, 0.001953125
    %v4477 = vmul.f32 %v3121, 0.001953125
    %v4478 = vmul.f32 %v3128, 0.001953125
    %v4479 = vmul.f32 %v3135, 0.001953125
    %v4480 = vmul.f32 %v3142, 0.001953125
    %v4481 = vmul.f32 %v3149, 0.001953125
    %v4482 = vmul.f32 %v3156, 0.001953125
    %v4483 = vmul.f32 %v3163, 0.001953125
    %v4484 = vmul.f32 %v3170, 0.001953125
    %v4485 = vmul.f32 %v3177, 0.001953125
    %v4486 = vmul.f32 %v3184, 0.001953125
    %v4487 = vmul.f32 %v3191, 0.001953125
    %v4488 = vmul.f32 %v3198, 0.001953125
    %v4489 = vmul.f32 %v3205, 0.001953125
    %v4490 = vmul.f32 %v3212, 0.001953125
    %v4491 = vmul.f32 %v3219, 0.001953125
    %v4492 = vmul.f32 %v3226, 0.001953125
    %v4493 = vmul.f32 %v3233, 0.001953125
    %v4494 = vmul.f32 %v3240, 0.001953125
    %v4495 = vmul.f32 %v3247, 0.001953125
    %v4496 = vmul.f32 %v3254, 0.001953125
    %v4497 = vmul.f32 %v3261, 0.001953125
    %v4498 = vmul.f32 %v3268, 0.001953125
    %v4499 = vmul.f32 %v3275, 0.001953125
    %v4500 = vmul.f32 %v3282, 0.001953125
    %v4501 = vmul.f32 %v3289, 0.001953125
    %v4502 = vmul.f32 %v3296, 0.001953125
    %v4503 = vmul.f32 %v3303, 0.001953125
    %v4504 = vmul.f32 %v3310, 0.001953125
    %v4505 = vmul.f32 %v3317, 0.001953125
    %v4506 = vmul.f32 %v3324, 0.001953125
    %v4507 = vmul.f32 %v3331, 0.001953125
    %v4508 = vmul.f32 %v3338, 0.001953125
    %v4509 = vmul.f32 %v3345, 0.001953125
    %v4510 = vmul.f32 %v3352, 0.001953125
    %v4511 = vmul.f32 %v3359, 0.001953125
    %v4512 = vmul.f32 %v3366, 0.001953125
    %v4513 = vmul.f32 %v3373, 0.001953125
    %v4514 = vmul.f32 %v3380, 0.001953125
    %v4515 = vmul.f32 %v3387, 0.001953125
    %v4516 = vmul.f32 %v3394, 0.001953125
    %v4517 = vmul.f32 %v3401, 0.001953125
    %v4518 = vmul.f32 %v3408, 0.001953125
    %v4519 = vmul.f32 %v3415, 0.001953125
    %v4520 = vmul.f32 %v3422, 0.001953125
    %v4521 = vmul.f32 %v3429, 0.001953125
    %v4522 = vmul.f32 %v3436, 0.001953125
    %v4523 = vmul.f32 %v3443, 0.001953125
    %v4524 = vmul.f32 %v3450, 0.001953125
    %v4525 = vmul.f32 %v3457, 0.001953125
    %v4526 = vmul.f32 %v3464, 0.001953125
    %v4527 = vmul.f32 %v3471, 0.001953125
    %v4528 = vmul.f32 %v3478, 0.001953125
    %v4529 = vmul.f32 %v3485, 0.001953125
    %v4530 = vmul.f32 %v3492, 0.001953125
    %v4531 = vmul.f32 %v3499, 0.001953125
    %v4532 = vmul.f32 %v3506, 0.001953125
    %v4533 = vmul.f32 %v3513, 0.001953125
    %v4534 = vmul.f32 %v3520, 0.001953125
    %v4535 = vmul.f32 %v3527, 0.001953125
    %v4536 = vmul.f32 %v3534, 0.001953125
    %v4537 = vmul.f32 %v3541, 0.001953125
    %v4538 = vmul.f32 %v3548, 0.001953125
    %v4539 = vmul.f32 %v3555, 0.001953125
    %v4540 = vmul.f32 %v3562, 0.001953125
    %v4541 = vmul.f32 %v3569, 0.001953125
    %v4542 = vmul.f32 %v3576, 0.001953125
    %v4543 = vmul.f32 %v3583, 0.001953125
    %v4544 = vmul.f32 %v3590, 0.001953125
    %v4545 = vmul.f32 %v3597, 0.001953125
    %v4546 = vmul.f32 %v3604, 0.001953125
    %v4547 = vmul.f32 %v3611, 0.001953125
    %v4548 = vmul.f32 %v3618, 0.001953125
    %v4549 = vmul.f32 %v3625, 0.001953125
    %v4550 = vmul.f32 %v3632, 0.001953125
    %v4551 = vmul.f32 %v3639, 0.001953125
    %v4552 = vmul.f32 %v3646, 0.001953125
    %v4553 = vmul.f32 %v3653, 0.001953125
    %v4554 = vmul.f32 %v3660, 0.001953125
    %v4555 = vmul.f32 %v3667, 0.001953125
    %v4556 = vmul.f32 %v3674, 0.001953125
    %v4557 = vmul.f32 %v3681, 0.001953125
    %v4558 = vmul.f32 %v3688, 0.001953125
    %v4559 = vmul.f32 %v3695, 0.001953125
    %v4560 = vmul.f32 %v3702, 0.001953125
    %v4561 = vmul.f32 %v3709, 0.001953125
    %v4562 = vmul.f32 %v3716, 0.001953125
    %v4563 = vmul.f32 %v3723, 0.001953125
    %v4564 = vmul.f32 %v3730, 0.001953125
    %v4565 = vmul.f32 %v3737, 0.001953125
    %v4566 = vmul.f32 %v3744, 0.001953125
    %v4567 = vmul.f32 %v3751, 0.001953125
    %v4568 = vmul.f32 %v3758, 0.001953125
    %v4569 = vmul.f32 %v3765, 0.001953125
    %v4570 = vmul.f32 %v3772, 0.001953125
    %v4571 = vmul.f32 %v3779, 0.001953125
    %v4572 = vmul.f32 %v3786, 0.001953125
    %v4573 = vmul.f32 %v3793, 0.001953125
    %v4574 = vmul.f32 %v3800, 0.001953125
    %v4575 = vmul.f32 %v3807, 0.001953125
    %v4576 = vmul.f32 %v3814, 0.001953125
    %v4577 = vmul.f32 %v3821, 0.001953125
    %v4578 = vmul.f32 %v3828, 0.001953125
    %v4579 = vmul.f32 %v3835, 0.001953125
    %v4580 = vmul.f32 %v3842, 0.001953125
    %v4581 = vmul.f32 %v3849, 0.001953125
    %v4582 = vmul.f32 %v3856, 0.001953125
    %v4583 = vmul.f32 %v3863, 0.001953125
    %v4584 = vmul.f32 %v3870, 0.001953125
    %v4585 = vmul.f32 %v3877, 0.001953125
    %v4586 = vmul.f32 %v3884, 0.001953125
    %v4587 = vmul.f32 %v3891, 0.001953125
    %v4588 = vmul.f32 %v3898, 0.001953125
    %v4589 = vmul.f32 %v3905, 0.001953125
    %v4590 = vmul.f32 %v3912, 0.001953125
    %v4591 = vmul.f32 %v3919, 0.001953125
    %v4592 = vmul.f32 %v3926, 0.001953125
    %v4593 = vmul.f32 %v3933, 0.001953125
    %v4594 = vmul.f32 %v3940, 0.001953125
    %v4595 = vmul.f32 %v3947, 0.001953125
    %v4596 = vmul.f32 %v3954, 0.001953125
    %v4597 = vmul.f32 %v3961, 0.001953125
    %v4598 = vmul.f32 %v3968, 0.001953125
    %v4599 = vmul.f32 %v3975, 0.001953125
    %v4600 = vmul.f32 %v3982, 0.001953125
    %v4601 = vmul.f32 %v3989, 0.001953125
    %v4602 = vmul.f32 %v3996, 0.001953125
    %v4603 = vmul.f32 %v4003, 0.001953125
    %v4604 = vmul.f32 %v4010, 0.001953125
    %v4605 = vmul.f32 %v4017, 0.001953125
    %v4606 = vmul.f32 %v4024, 0.001953125
    %v4607 = vmul.f32 %v4031, 0.001953125
    %v4608 = vmul.f32 %v4038, 0.001953125
    %v4609 = vmul.f32 %v4045, 0.001953125
    %v4610 = vmul.f32 %v4052, 0.001953125
    %v4611 = vmul.f32 %v4059, 0.001953125
    %v4612 = vmul.f32 %v4066, 0.001953125
    %v4613 = vmul.f32 %v4073, 0.001953125
    %v4614 = vmul.f32 %v4080, 0.001953125
    %v4615 = vmul.f32 %v4087, 0.001953125
    %v4616 = vmul.f32 %v4094, 0.001953125
    %v4617 = vmul.f32 %v4101, 0.001953125
    %v4618 = vmul.f32 %v4108, 0.001953125
    %v4619 = vmul.f32 %v4115, 0.001953125
    %v4620 = vmul.f32 %v4122, 0.001953125
    %v4621 = vmul.f32 %v4129, 0.001953125
    %v4622 = vmul.f32 %v4136, 0.001953125
    %v4623 = vmul.f32 %v4143, 0.001953125
    %v4624 = vmul.f32 %v4150, 0.001953125
    %v4625 = vmul.f32 %v4157, 0.001953125
    %v4626 = vmul.f32 %v4164, 0.001953125
    %v4627 = vmul.f32 %v4171, 0.001953125
    %v4628 = vmul.f32 %v4178, 0.001953125
    %v4629 = vmul.f32 %v4185, 0.001953125
    %v4630 = vmul.f32 %v4192, 0.001953125
    %v4631 = vmul.f32 %v4199, 0.001953125
    %v4632 = vmul.f32 %v4206, 0.001953125
    %v4633 = vmul.f32 %v4213, 0.001953125
    %v4634 = vmul.f32 %v4220, 0.001953125
    %v4635 = vmul.f32 %v4227, 0.001953125
    %v4636 = vmul.f32 %v4234, 0.001953125
    %v4637 = vmul.f32 %v4241, 0.001953125
    %v4638 = vmul.f32 %v4248, 0.001953125
    %v4639 = vmul.f32 %v4255, 0.001953125
    %v4640 = vmul.f32 %v4256, %v4256
    %v4641 = vmul.f32 %v4257, %v4257
    %v4642 = vmul.f32 %v4258, %v4258
    %v4643 = vmul.f32 %v4259, %v4259
    %v4644 = vmul.f32 %v4260, %v4260
    %v4645 = vmul.f32 %v4261, %v4261
    %v4646 = vmul.f32 %v4262, %v4262
    %v4647 = vmul.f32 %v4263, %v4263
    %v4648 = vmul.f32 %v4264, %v4264
    %v4649 = vmul.f32 %v4265, %v4265
    %v4650 = vmul.f32 %v4266, %v4266
    %v4651 = vmul.f32 %v4267, %v4267
    %v4652 = vmul.f32 %v4268, %v4268
    %v4653 = vmul.f32 %v4269, %v4269
    %v4654 = vmul.f32 %v4270, %v4270
    %v4655 = vmul.f32 %v4271, %v4271
    %v4656 = vmul.f32 %v4272, %v4272
    %v4657 = vmul.f32 %v4273, %v4273
    %v4658 = vmul.f32 %v4274, %v4274
    %v4659 = vmul.f32 %v4275, %v4275
    %v4660 = vmul.f32 %v4276, %v4276
    %v4661 = vmul.f32 %v4277, %v4277
    %v4662 = vmul.f32 %v4278, %v4278
    %v4663 = vmul.f32 %v4279, %v4279
    %v4664 = vmul.f32 %v4280, %v4280
    %v4665 = vmul.f32 %v4281, %v4281
    %v4666 = vmul.f32 %v4282, %v4282
    %v4667 = vmul.f32 %v4283, %v4283
    %v4668 = vmul.f32 %v4284, %v4284
    %v4669 = vmul.f32 %v4285, %v4285
    %v4670 = vmul.f32 %v4286, %v4286
    %v4671 = vmul.f32 %v4287, %v4287
    %v4672 = vmul.f32 %v4288, %v4288
    %v4673 = vmul.f32 %v4289, %v4289
    %v4674 = vmul.f32 %v4290, %v4290
    %v4675 = vmul.f32 %v4291, %v4291
    %v4676 = vmul.f32 %v4292, %v4292
    %v4677 = vmul.f32 %v4293, %v4293
    %v4678 = vmul.f32 %v4294, %v4294
    %v4679 = vmul.f32 %v4295, %v4295
    %v4680 = vmul.f32 %v4296, %v4296
    %v4681 = vmul.f32 %v4297, %v4297
    %v4682 = vmul.f32 %v4298, %v4298
    %v4683 = vmul.f32 %v4299, %v4299
    %v4684 = vmul.f32 %v4300, %v4300
    %v4685 = vmul.f32 %v4301, %v4301
    %v4686 = vmul.f32 %v4302, %v4302
    %v4687 = vmul.f32 %v4303, %v4303
    %v4688 = vmul.f32 %v4304, %v4304
    %v4689 = vmul.f32 %v4305, %v4305
    %v4690 = vmul.f32 %v4306, %v4306
    %v4691 = vmul.f32 %v4307, %v4307
    %v4692 = vmul.f32 %v4308, %v4308
    %v4693 = vmul.f32 %v4309, %v4309
    %v4694 = vmul.f32 %v4310, %v4310
    %v4695 = vmul.f32 %v4311, %v4311
    %v4696 = vmul.f32 %v4312, %v4312
    %v4697 = vmul.f32 %v4313, %v4313
    %v4698 = vmul.f32 %v4314, %v4314
    %v4699 = vmul.f32 %v4315, %v4315
    %v4700 = vmul.f32 %v4316, %v4316
    %v4701 = vmul.f32 %v4317, %v4317
    %v4702 = vmul.f32 %v4318, %v4318
    %v4703 = vmul.f32 %v4319, %v4319
    %v4704 = vmul.f32 %v4320, %v4320
    %v4705 = vmul.f32 %v4321, %v4321
    %v4706 = vmul.f32 %v4322, %v4322
    %v4707 = vmul.f32 %v4323, %v4323
    %v4708 = vmul.f32 %v4324, %v4324
    %v4709 = vmul.f32 %v4325, %v4325
    %v4710 = vmul.f32 %v4326, %v4326
    %v4711 = vmul.f32 %v4327, %v4327
    %v4712 = vmul.f32 %v4328, %v4328
    %v4713 = vmul.f32 %v4329, %v4329
    %v4714 = vmul.f32 %v4330, %v4330
    %v4715 = vmul.f32 %v4331, %v4331
    %v4716 = vmul.f32 %v4332, %v4332
    %v4717 = vmul.f32 %v4333, %v4333
    %v4718 = vmul.f32 %v4334, %v4334
    %v4719 = vmul.f32 %v4335, %v4335
    %v4720 = vmul.f32 %v4336, %v4336
    %v4721 = vmul.f32 %v4337, %v4337
    %v4722 = vmul.f32 %v4338, %v4338
    %v4723 = vmul.f32 %v4339, %v4339
    %v4724 = vmul.f32 %v4340, %v4340
    %v4725 = vmul.f32 %v4341, %v4341
    %v4726 = vmul.f32 %v4342, %v4342
    %v4727 = vmul.f32 %v4343, %v4343
    %v4728 = vmul.f32 %v4344, %v4344
    %v4729 = vmul.f32 %v4345, %v4345
    %v4730 = vmul.f32 %v4346, %v4346
    %v4731 = vmul.f32 %v4347, %v4347
    %v4732 = vmul.f32 %v4348, %v4348
    %v4733 = vmul.f32 %v4349, %v4349
    %v4734 = vmul.f32 %v4350, %v4350
    %v4735 = vmul.f32 %v4351, %v4351
    %v4736 = vmul.f32 %v4352, %v4352
    %v4737 = vmul.f32 %v4353, %v4353
    %v4738 = vmul.f32 %v4354, %v4354
    %v4739 = vmul.f32 %v4355, %v4355
    %v4740 = vmul.f32 %v4356, %v4356
    %v4741 = vmul.f32 %v4357, %v4357
    %v4742 = vmul.f32 %v4358, %v4358
    %v4743 = vmul.f32 %v4359, %v4359
    %v4744 = vmul.f32 %v4360, %v4360
    %v4745 = vmul.f32 %v4361, %v4361
    %v4746 = vmul.f32 %v4362, %v4362
    %v4747 = vmul.f32 %v4363, %v4363
    %v4748 = vmul.f32 %v4364, %v4364
    %v4749 = vmul.f32 %v4365, %v4365
    %v4750 = vmul.f32 %v4366, %v4366
    %v4751 = vmul.f32 %v4367, %v4367
    %v4752 = vmul.f32 %v4368, %v4368
    %v4753 = vmul.f32 %v4369, %v4369
    %v4754 = vmul.f32 %v4370, %v4370
    %v4755 = vmul.f32 %v4371, %v4371
    %v4756 = vmul.f32 %v4372, %v4372
    %v4757 = vmul.f32 %v4373, %v4373
    %v4758 = vmul.f32 %v4374, %v4374
    %v4759 = vmul.f32 %v4375, %v4375
    %v4760 = vmul.f32 %v4376, %v4376
    %v4761 = vmul.f32 %v4377, %v4377
    %v4762 = vmul.f32 %v4378, %v4378
    %v4763 = vmul.f32 %v4379, %v4379
    %v4764 = vmul.f32 %v4380, %v4380
    %v4765 = vmul.f32 %v4381, %v4381
    %v4766 = vmul.f32 %v4382, %v4382
    %v4767 = vmul.f32 %v4383, %v4383
    %v4768 = vmul.f32 %v4384, %v4384
    %v4769 = vmul.f32 %v4385, %v4385
    %v4770 = vmul.f32 %v4386, %v4386
    %v4771 = vmul.f32 %v4387, %v4387
    %v4772 = vmul.f32 %v4388, %v4388
    %v4773 = vmul.f32 %v4389, %v4389
    %v4774 = vmul.f32 %v4390, %v4390
    %v4775 = vmul.f32 %v4391, %v4391
    %v4776 = vmul.f32 %v4392, %v4392
    %v4777 = vmul.f32 %v4393, %v4393
    %v4778 = vmul.f32 %v4394, %v4394
    %v4779 = vmul.f32 %v4395, %v4395
    %v4780 = vmul.f32 %v4396, %v4396
    %v4781 = vmul.f32 %v4397, %v4397
    %v4782 = vmul.f32 %v4398, %v4398
    %v4783 = vmul.f32 %v4399, %v4399
    %v4784 = vmul.f32 %v4400, %v4400
    %v4785 = vmul.f32 %v4401, %v4401
    %v4786 = vmul.f32 %v4402, %v4402
    %v4787 = vmul.f32 %v4403, %v4403
    %v4788 = vmul.f32 %v4404, %v4404
    %v4789 = vmul.f32 %v4405, %v4405
    %v4790 = vmul.f32 %v4406, %v4406
    %v4791 = vmul.f32 %v4407, %v4407
    %v4792 = vmul.f32 %v4408, %v4408
    %v4793 = vmul.f32 %v4409, %v4409
    %v4794 = vmul.f32 %v4410, %v4410
    %v4795 = vmul.f32 %v4411, %v4411
    %v4796 = vmul.f32 %v4412, %v4412
    %v4797 = vmul.f32 %v4413, %v4413
    %v4798 = vmul.f32 %v4414, %v4414
    %v4799 = vmul.f32 %v4415, %v4415
    %v4800 = vmul.f32 %v4416, %v4416
    %v4801 = vmul.f32 %v4417, %v4417
    %v4802 = vmul.f32 %v4418, %v4418
    %v4803 = vmul.f32 %v4419, %v4419
    %v4804 = vmul.f32 %v4420, %v4420
    %v4805 = vmul.f32 %v4421, %v4421
    %v4806 = vmul.f32 %v4422, %v4422
    %v4807 = vmul.f32 %v4423, %v4423
    %v4808 = vmul.f32 %v4424, %v4424
    %v4809 = vmul.f32 %v4425, %v4425
    %v4810 = vmul.f32 %v4426, %v4426
    %v4811 = vmul.f32 %v4427, %v4427
    %v4812 = vmul.f32 %v4428, %v4428
    %v4813 = vmul.f32 %v4429, %v4429
    %v4814 = vmul.f32 %v4430, %v4430
    %v4815 = vmul.f32 %v4431, %v4431
    %v4816 = vmul.f32 %v4432, %v4432
    %v4817 = vmul.f32 %v4433, %v4433
    %v4818 = vmul.f32 %v4434, %v4434
    %v4819 = vmul.f32 %v4435, %v4435
    %v4820 = vmul.f32 %v4436, %v4436
    %v4821 = vmul.f32 %v4437, %v4437
    %v4822 = vmul.f32 %v4438, %v4438
    %v4823 = vmul.f32 %v4439, %v4439
    %v4824 = vmul.f32 %v4440, %v4440
    %v4825 = vmul.f32 %v4441, %v4441
    %v4826 = vmul.f32 %v4442, %v4442
    %v4827 = vmul.f32 %v4443, %v4443
    %v4828 = vmul.f32 %v4444, %v4444
    %v4829 = vmul.f32 %v4445, %v4445
    %v4830 = vmul.f32 %v4446, %v4446
    %v4831 = vmul.f32 %v4447, %v4447
    %v4832 = vsub.f32 %v4448, %v4640
    %v4833 = vsub.f32 %v4449, %v4641
    %v4834 = vsub.f32 %v4450, %v4642
    %v4835 = vsub.f32 %v4451, %v4643
    %v4836 = vsub.f32 %v4452, %v4644
    %v4837 = vsub.f32 %v4453, %v4645
    %v4838 = vsub.f32 %v4454, %v4646
    %v4839 = vsub.f32 %v4455, %v4647
    %v4840 = vsub.f32 %v4456, %v4648
    %v4841 = vsub.f32 %v4457, %v4649
    %v4842 = vsub.f32 %v4458, %v4650
    %v4843 = vsub.f32 %v4459, %v4651
    %v4844 = vsub.f32 %v4460, %v4652
    %v4845 = vsub.f32 %v4461, %v4653
    %v4846 = vsub.f32 %v4462, %v4654
    %v4847 = vsub.f32 %v4463, %v4655
    %v4848 = vsub.f32 %v4464, %v4656
    %v4849 = vsub.f32 %v4465, %v4657
    %v4850 = vsub.f32 %v4466, %v4658
    %v4851 = vsub.f32 %v4467, %v4659
    %v4852 = vsub.f32 %v4468, %v4660
    %v4853 = vsub.f32 %v4469, %v4661
    %v4854 = vsub.f32 %v4470, %v4662
    %v4855 = vsub.f32 %v4471, %v4663
    %v4856 = vsub.f32 %v4472, %v4664
    %v4857 = vsub.f32 %v4473, %v4665
    %v4858 = vsub.f32 %v4474, %v4666
    %v4859 = vsub.f32 %v4475, %v4667
    %v4860 = vsub.f32 %v4476, %v4668
    %v4861 = vsub.f32 %v4477, %v4669
    %v4862 = vsub.f32 %v4478, %v4670
    %v4863 = vsub.f32 %v4479, %v4671
    %v4864 = vsub.f32 %v4480, %v4672
    %v4865 = vsub.f32 %v4481, %v4673
    %v4866 = vsub.f32 %v4482, %v4674
    %v4867 = vsub.f32 %v4483, %v4675
    %v4868 = vsub.f32 %v4484, %v4676
    %v4869 = vsub.f32 %v4485, %v4677
    %v4870 = vsub.f32 %v4486, %v4678
    %v4871 = vsub.f32 %v4487, %v4679
    %v4872 = vsub.f32 %v4488, %v4680
    %v4873 = vsub.f32 %v4489, %v4681
    %v4874 = vsub.f32 %v4490, %v4682
    %v4875 = vsub.f32 %v4491, %v4683
    %v4876 = vsub.f32 %v4492, %v4684
    %v4877 = vsub.f32 %v4493, %v4685
    %v4878 = vsub.f32 %v4494, %v4686
    %v4879 = vsub.f32 %v4495, %v4687
    %v4880 = vsub.f32 %v4496, %v4688
    %v4881 = vsub.f32 %v4497, %v4689
    %v4882 = vsub.f32 %v4498, %v4690
    %v4883 = vsub.f32 %v4499, %v4691
    %v4884 = vsub.f32 %v4500, %v4692
    %v4885 = vsub.f32 %v4501, %v4693
    %v4886 = vsub.f32 %v4502, %v4694
    %v4887 = vsub.f32 %v4503, %v4695
    %v4888 = vsub.f32 %v4504, %v4696
    %v4889 = vsub.f32 %v4505, %v4697
    %v4890 = vsub.f32 %v4506, %v4698
    %v4891 = vsub.f32 %v4507, %v4699
    %v4892 = vsub.f32 %v4508, %v4700
    %v4893 = vsub.f32 %v4509, %v4701
    %v4894 = vsub.f32 %v4510, %v4702
    %v4895 = vsub.f32 %v4511, %v4703
    %v4896 = vsub.f32 %v4512, %v4704
    %v4897 = vsub.f32 %v4513, %v4705
    %v4898 = vsub.f32 %v4514, %v4706
    %v4899 = vsub.f32 %v4515, %v4707
    %v4900 = vsub.f32 %v4516, %v4708
    %v4901 = vsub.f32 %v4517, %v4709
    %v4902 = vsub.f32 %v4518, %v4710
    %v4903 = vsub.f32 %v4519, %v4711
    %v4904 = vsub.f32 %v4520, %v4712
    %v4905 = vsub.f32 %v4521, %v4713
    %v4906 = vsub.f32 %v4522, %v4714
    %v4907 = vsub.f32 %v4523, %v4715
    %v4908 = vsub.f32 %v4524, %v4716
    %v4909 = vsub.f32 %v4525, %v4717
    %v4910 = vsub.f32 %v4526, %v4718
    %v4911 = vsub.f32 %v4527, %v4719
    %v4912 = vsub.f32 %v4528, %v4720
    %v4913 = vsub.f32 %v4529, %v4721
    %v4914 = vsub.f32 %v4530, %v4722
    %v4915 = vsub.f32 %v4531, %v4723
    %v4916 = vsub.f32 %v4532, %v4724
    %v4917 = vsub.f32 %v4533, %v4725
    %v4918 = vsub.f32 %v4534, %v4726
    %v4919 = vsub.f32 %v4535, %v4727
    %v4920 = vsub.f32 %v4536, %v4728
    %v4921 = vsub.f32 %v4537, %v4729
    %v4922 = vsub.f32 %v4538, %v4730
    %v4923 = vsub.f32 %v4539, %v4731
    %v4924 = vsub.f32 %v4540, %v4732
    %v4925 = vsub.f32 %v4541, %v4733
    %v4926 = vsub.f32 %v4542, %v4734
    %v4927 = vsub.f32 %v4543, %v4735
    %v4928 = vsub.f32 %v4544, %v4736
    %v4929 = vsub.f32 %v4545, %v4737
    %v4930 = vsub.f32 %v4546, %v4738
    %v4931 = vsub.f32 %v4547, %v4739
    %v4932 = vsub.f32 %v4548, %v4740
    %v4933 = vsub.f32 %v4549, %v4741
    %v4934 = vsub.f32 %v4550, %v4742
    %v4935 = vsub.f32 %v4551, %v4743
    %v4936 = vsub.f32 %v4552, %v4744
    %v4937 = vsub.f32 %v4553, %v4745
    %v4938 = vsub.f32 %v4554, %v4746
    %v4939 = vsub.f32 %v4555, %v4747
    %v4940 = vsub.f32 %v4556, %v4748
    %v4941 = vsub.f32 %v4557, %v4749
    %v4942 = vsub.f32 %v4558, %v4750
    %v4943 = vsub.f32 %v4559, %v4751
    %v4944 = vsub.f32 %v4560, %v4752
    %v4945 = vsub.f32 %v4561, %v4753
    %v4946 = vsub.f32 %v4562, %v4754
    %v4947 = vsub.f32 %v4563, %v4755
    %v4948 = vsub.f32 %v4564, %v4756
    %v4949 = vsub.f32 %v4565, %v4757
    %v4950 = vsub.f32 %v4566, %v4758
    %v4951 = vsub.f32 %v4567, %v4759
    %v4952 = vsub.f32 %v4568, %v4760
    %v4953 = vsub.f32 %v4569, %v4761
    %v4954 = vsub.f32 %v4570, %v4762
    %v4955 = vsub.f32 %v4571, %v4763
    %v4956 = vsub.f32 %v4572, %v4764
    %v4957 = vsub.f32 %v4573, %v4765
    %v4958 = vsub.f32 %v4574, %v4766
    %v4959 = vsub.f32 %v4575, %v4767
    %v4960 = vsub.f32 %v4576, %v4768
    %v4961 = vsub.f32 %v4577, %v4769
    %v4962 = vsub.f32 %v4578, %v4770
    %v4963 = vsub.f32 %v4579, %v4771
    %v4964 = vsub.f32 %v4580, %v4772
    %v4965 = vsub.f32 %v4581, %v4773
    %v4966 = vsub.f32 %v4582, %v4774
    %v4967 = vsub.f32 %v4583, %v4775
    %v4968 = vsub.f32 %v4584, %v4776
    %v4969 = vsub.f32 %v4585, %v4777
    %v4970 = vsub.f32 %v4586, %v4778
    %v4971 = vsub.f32 %v4587, %v4779
    %v4972 = vsub.f32 %v4588, %v4780
    %v4973 = vsub.f32 %v4589, %v4781
    %v4974 = vsub.f32 %v4590, %v4782
    %v4975 = vsub.f32 %v4591, %v4783
    %v4976 = vsub.f32 %v4592, %v4784
    %v4977 = vsub.f32 %v4593, %v4785
    %v4978 = vsub.f32 %v4594, %v4786
    %v4979 = vsub.f32 %v4595, %v4787
    %v4980 = vsub.f32 %v4596, %v4788
    %v4981 = vsub.f32 %v4597, %v4789
    %v4982 = vsub.f32 %v4598, %v4790
    %v4983 = vsub.f32 %v4599, %v4791
    %v4984 = vsub.f32 %v4600, %v4792
    %v4985 = vsub.f32 %v4601, %v4793
    %v4986 = vsub.f32 %v4602, %v4794
    %v4987 = vsub.f32 %v4603, %v4795
    %v4988 = vsub.f32 %v4604, %v4796
    %v4989 = vsub.f32 %v4605, %v4797
    %v4990 = vsub.f32 %v4606, %v4798
    %v4991 = vsub.f32 %v4607, %v4799
    %v4992 = vsub.f32 %v4608, %v4800
    %v4993 = vsub.f32 %v4609, %v4801
    %v4994 = vsub.f32 %v4610, %v4802
    %v4995 = vsub.f32 %v4611, %v4803
    %v4996 = vsub.f32 %v4612, %v4804
    %v4997 = vsub.f32 %v4613, %v4805
    %v4998 = vsub.f32 %v4614, %v4806
    %v4999 = vsub.f32 %v4615, %v4807
    %v5000 = vsub.f32 %v4616, %v4808
    %v5001 = vsub.f32 %v4617, %v4809
    %v5002 = vsub.f32 %v4618, %v4810
    %v5003 = vsub.f32 %v4619, %v4811
    %v5004 = vsub.f32 %v4620, %v4812
    %v5005 = vsub.f32 %v4621, %v4813
    %v5006 = vsub.f32 %v4622, %v4814
    %v5007 = vsub.f32 %v4623, %v4815
    %v5008 = vsub.f32 %v4624, %v4816
    %v5009 = vsub.f32 %v4625, %v4817
    %v5010 = vsub.f32 %v4626, %v4818
    %v5011 = vsub.f32 %v4627, %v4819
    %v5012 = vsub.f32 %v4628, %v4820
    %v5013 = vsub.f32 %v4629, %v4821
    %v5014 = vsub.f32 %v4630, %v4822
    %v5015 = vsub.f32 %v4631, %v4823
    %v5016 = vsub.f32 %v4632, %v4824
    %v5017 = vsub.f32 %v4633, %v4825
    %v5018 = vsub.f32 %v4634, %v4826
    %v5019 = vsub.f32 %v4635, %v4827
    %v5020 = vsub.f32 %v4636, %v4828
    %v5021 = vsub.f32 %v4637, %v4829
    %v5022 = vsub.f32 %v4638, %v4830
    %v5023 = vsub.f32 %v4639, %v4831
    %v5024 = vmax.f32 %v4832, 0.0
    %v5025 = vmax.f32 %v4833, 0.0
    %v5026 = vmax.f32 %v4834, 0.0
    %v5027 = vmax.f32 %v4835, 0.0
    %v5028 = vmax.f32 %v4836, 0.0
    %v5029 = vmax.f32 %v4837, 0.0
    %v5030 = vmax.f32 %v4838, 0.0
    %v5031 = vmax.f32 %v4839, 0.0
    %v5032 = vmax.f32 %v4840, 0.0
    %v5033 = vmax.f32 %v4841, 0.0
    %v5034 = vmax.f32 %v4842, 0.0
    %v5035 = vmax.f32 %v4843, 0.0
    %v5036 = vmax.f32 %v4844, 0.0
    %v5037 = vmax.f32 %v4845, 0.0
    %v5038 = vmax.f32 %v4846, 0.0
    %v5039 = vmax.f32 %v4847, 0.0
    %v5040 = vmax.f32 %v4848, 0.0
    %v5041 = vmax.f32 %v4849, 0.0
    %v5042 = vmax.f32 %v4850, 0.0
    %v5043 = vmax.f32 %v4851, 0.0
    %v5044 = vmax.f32 %v4852, 0.0
    %v5045 = vmax.f32 %v4853, 0.0
    %v5046 = vmax.f32 %v4854, 0.0
    %v5047 = vmax.f32 %v4855, 0.0
    %v5048 = vmax.f32 %v4856, 0.0
    %v5049 = vmax.f32 %v4857, 0.0
    %v5050 = vmax.f32 %v4858, 0.0
    %v5051 = vmax.f32 %v4859, 0.0
    %v5052 = vmax.f32 %v4860, 0.0
    %v5053 = vmax.f32 %v4861, 0.0
    %v5054 = vmax.f32 %v4862, 0.0
    %v5055 = vmax.f32 %v4863, 0.0
    %v5056 = vmax.f32 %v4864, 0.0
    %v5057 = vmax.f32 %v4865, 0.0
    %v5058 = vmax.f32 %v4866, 0.0
    %v5059 = vmax.f32 %v4867, 0.0
    %v5060 = vmax.f32 %v4868, 0.0
    %v5061 = vmax.f32 %v4869, 0.0
    %v5062 = vmax.f32 %v4870, 0.0
    %v5063 = vmax.f32 %v4871, 0.0
    %v5064 = vmax.f32 %v4872, 0.0
    %v5065 = vmax.f32 %v4873, 0.0
    %v5066 = vmax.f32 %v4874, 0.0
    %v5067 = vmax.f32 %v4875, 0.0
    %v5068 = vmax.f32 %v4876, 0.0
    %v5069 = vmax.f32 %v4877, 0.0
    %v5070 = vmax.f32 %v4878, 0.0
    %v5071 = vmax.f32 %v4879, 0.0
    %v5072 = vmax.f32 %v4880, 0.0
    %v5073 = vmax.f32 %v4881, 0.0
    %v5074 = vmax.f32 %v4882, 0.0
    %v5075 = vmax.f32 %v4883, 0.0
    %v5076 = vmax.f32 %v4884, 0.0
    %v5077 = vmax.f32 %v4885, 0.0
    %v5078 = vmax.f32 %v4886, 0.0
    %v5079 = vmax.f32 %v4887, 0.0
    %v5080 = vmax.f32 %v4888, 0.0
    %v5081 = vmax.f32 %v4889, 0.0
    %v5082 = vmax.f32 %v4890, 0.0
    %v5083 = vmax.f32 %v4891, 0.0
    %v5084 = vmax.f32 %v4892, 0.0
    %v5085 = vmax.f32 %v4893, 0.0
    %v5086 = vmax.f32 %v4894, 0.0
    %v5087 = vmax.f32 %v4895, 0.0
    %v5088 = vmax.f32 %v4896, 0.0
    %v5089 = vmax.f32 %v4897, 0.0
    %v5090 = vmax.f32 %v4898, 0.0
    %v5091 = vmax.f32 %v4899, 0.0
    %v5092 = vmax.f32 %v4900, 0.0
    %v5093 = vmax.f32 %v4901, 0.0
    %v5094 = vmax.f32 %v4902, 0.0
    %v5095 = vmax.f32 %v4903, 0.0
    %v5096 = vmax.f32 %v4904, 0.0
    %v5097 = vmax.f32 %v4905, 0.0
    %v5098 = vmax.f32 %v4906, 0.0
    %v5099 = vmax.f32 %v4907, 0.0
    %v5100 = vmax.f32 %v4908, 0.0
    %v5101 = vmax.f32 %v4909, 0.0
    %v5102 = vmax.f32 %v4910, 0.0
    %v5103 = vmax.f32 %v4911, 0.0
    %v5104 = vmax.f32 %v4912, 0.0
    %v5105 = vmax.f32 %v4913, 0.0
    %v5106 = vmax.f32 %v4914, 0.0
    %v5107 = vmax.f32 %v4915, 0.0
    %v5108 = vmax.f32 %v4916, 0.0
    %v5109 = vmax.f32 %v4917, 0.0
    %v5110 = vmax.f32 %v4918, 0.0
    %v5111 = vmax.f32 %v4919, 0.0
    %v5112 = vmax.f32 %v4920, 0.0
    %v5113 = vmax.f32 %v4921, 0.0
    %v5114 = vmax.f32 %v4922, 0.0
    %v5115 = vmax.f32 %v4923, 0.0
    %v5116 = vmax.f32 %v4924, 0.0
    %v5117 = vmax.f32 %v4925, 0.0
    %v5118 = vmax.f32 %v4926, 0.0
    %v5119 = vmax.f32 %v4927, 0.0
    %v5120 = vmax.f32 %v4928, 0.0
    %v5121 = vmax.f32 %v4929, 0.0
    %v5122 = vmax.f32 %v4930, 0.0
    %v5123 = vmax.f32 %v4931, 0.0
    %v5124 = vmax.f32 %v4932, 0.0
    %v5125 = vmax.f32 %v4933, 0.0
    %v5126 = vmax.f32 %v4934, 0.0
    %v5127 = vmax.f32 %v4935, 0.0
    %v5128 = vmax.f32 %v4936, 0.0
    %v5129 = vmax.f32 %v4937, 0.0
    %v5130 = vmax.f32 %v4938, 0.0
    %v5131 = vmax.f32 %v4939, 0.0
    %v5132 = vmax.f32 %v4940, 0.0
    %v5133 = vmax.f32 %v4941, 0.0
    %v5134 = vmax.f32 %v4942, 0.0
    %v5135 = vmax.f32 %v4943, 0.0
    %v5136 = vmax.f32 %v4944, 0.0
    %v5137 = vmax.f32 %v4945, 0.0
    %v5138 = vmax.f32 %v4946, 0.0
    %v5139 = vmax.f32 %v4947, 0.0
    %v5140 = vmax.f32 %v4948, 0.0
    %v5141 = vmax.f32 %v4949, 0.0
    %v5142 = vmax.f32 %v4950, 0.0
    %v5143 = vmax.f32 %v4951, 0.0
    %v5144 = vmax.f32 %v4952, 0.0
    %v5145 = vmax.f32 %v4953, 0.0
    %v5146 = vmax.f32 %v4954, 0.0
    %v5147 = vmax.f32 %v4955, 0.0
    %v5148 = vmax.f32 %v4956, 0.0
    %v5149 = vmax.f32 %v4957, 0.0
    %v5150 = vmax.f32 %v4958, 0.0
    %v5151 = vmax.f32 %v4959, 0.0
    %v5152 = vmax.f32 %v4960, 0.0
    %v5153 = vmax.f32 %v4961, 0.0
    %v5154 = vmax.f32 %v4962, 0.0
    %v5155 = vmax.f32 %v4963, 0.0
    %v5156 = vmax.f32 %v4964, 0.0
    %v5157 = vmax.f32 %v4965, 0.0
    %v5158 = vmax.f32 %v4966, 0.0
    %v5159 = vmax.f32 %v4967, 0.0
    %v5160 = vmax.f32 %v4968, 0.0
    %v5161 = vmax.f32 %v4969, 0.0
    %v5162 = vmax.f32 %v4970, 0.0
    %v5163 = vmax.f32 %v4971, 0.0
    %v5164 = vmax.f32 %v4972, 0.0
    %v5165 = vmax.f32 %v4973, 0.0
    %v5166 = vmax.f32 %v4974, 0.0
    %v5167 = vmax.f32 %v4975, 0.0
    %v5168 = vmax.f32 %v4976, 0.0
    %v5169 = vmax.f32 %v4977, 0.0
    %v5170 = vmax.f32 %v4978, 0.0
    %v5171 = vmax.f32 %v4979, 0.0
    %v5172 = vmax.f32 %v4980, 0.0
    %v5173 = vmax.f32 %v4981, 0.0
    %v5174 = vmax.f32 %v4982, 0.0
    %v5175 = vmax.f32 %v4983, 0.0
    %v5176 = vmax.f32 %v4984, 0.0
    %v5177 = vmax.f32 %v4985, 0.0
    %v5178 = vmax.f32 %v4986, 0.0
    %v5179 = vmax.f32 %v4987, 0.0
    %v5180 = vmax.f32 %v4988, 0.0
    %v5181 = vmax.f32 %v4989, 0.0
    %v5182 = vmax.f32 %v4990, 0.0
    %v5183 = vmax.f32 %v4991, 0.0
    %v5184 = vmax.f32 %v4992, 0.0
    %v5185 = vmax.f32 %v4993, 0.0
    %v5186 = vmax.f32 %v4994, 0.0
    %v5187 = vmax.f32 %v4995, 0.0
    %v5188 = vmax.f32 %v4996, 0.0
    %v5189 = vmax.f32 %v4997, 0.0
    %v5190 = vmax.f32 %v4998, 0.0
    %v5191 = vmax.f32 %v4999, 0.0
    %v5192 = vmax.f32 %v5000, 0.0
    %v5193 = vmax.f32 %v5001, 0.0
    %v5194 = vmax.f32 %v5002, 0.0
    %v5195 = vmax.f32 %v5003, 0.0
    %v5196 = vmax.f32 %v5004, 0.0
    %v5197 = vmax.f32 %v5005, 0.0
    %v5198 = vmax.f32 %v5006, 0.0
    %v5199 = vmax.f32 %v5007, 0.0
    %v5200 = vmax.f32 %v5008, 0.0
    %v5201 = vmax.f32 %v5009, 0.0
    %v5202 = vmax.f32 %v5010, 0.0
    %v5203 = vmax.f32 %v5011, 0.0
    %v5204 = vmax.f32 %v5012, 0.0
    %v5205 = vmax.f32 %v5013, 0.0
    %v5206 = vmax.f32 %v5014, 0.0
    %v5207 = vmax.f32 %v5015, 0.0
    %v5208 = vmax.f32 %v5016, 0.0
    %v5209 = vmax.f32 %v5017, 0.0
    %v5210 = vmax.f32 %v5018, 0.0
    %v5211 = vmax.f32 %v5019, 0.0
    %v5212 = vmax.f32 %v5020, 0.0
    %v5213 = vmax.f32 %v5021, 0.0
    %v5214 = vmax.f32 %v5022, 0.0
    %v5215 = vmax.f32 %v5023, 0.0
    %v5216 = vadd.f32 %v5024, 1e-05
    %v5217 = vadd.f32 %v5025, 1e-05
    %v5218 = vadd.f32 %v5026, 1e-05
    %v5219 = vadd.f32 %v5027, 1e-05
    %v5220 = vadd.f32 %v5028, 1e-05
    %v5221 = vadd.f32 %v5029, 1e-05
    %v5222 = vadd.f32 %v5030, 1e-05
    %v5223 = vadd.f32 %v5031, 1e-05
    %v5224 = vadd.f32 %v5032, 1e-05
    %v5225 = vadd.f32 %v5033, 1e-05
    %v5226 = vadd.f32 %v5034, 1e-05
    %v5227 = vadd.f32 %v5035, 1e-05
    %v5228 = vadd.f32 %v5036, 1e-05
    %v5229 = vadd.f32 %v5037, 1e-05
    %v5230 = vadd.f32 %v5038, 1e-05
    %v5231 = vadd.f32 %v5039, 1e-05
    %v5232 = vadd.f32 %v5040, 1e-05
    %v5233 = vadd.f32 %v5041, 1e-05
    %v5234 = vadd.f32 %v5042, 1e-05
    %v5235 = vadd.f32 %v5043, 1e-05
    %v5236 = vadd.f32 %v5044, 1e-05
    %v5237 = vadd.f32 %v5045, 1e-05
    %v5238 = vadd.f32 %v5046, 1e-05
    %v5239 = vadd.f32 %v5047, 1e-05
    %v5240 = vadd.f32 %v5048, 1e-05
    %v5241 = vadd.f32 %v5049, 1e-05
    %v5242 = vadd.f32 %v5050, 1e-05
    %v5243 = vadd.f32 %v5051, 1e-05
    %v5244 = vadd.f32 %v5052, 1e-05
    %v5245 = vadd.f32 %v5053, 1e-05
    %v5246 = vadd.f32 %v5054, 1e-05
    %v5247 = vadd.f32 %v5055, 1e-05
    %v5248 = vadd.f32 %v5056, 1e-05
    %v5249 = vadd.f32 %v5057, 1e-05
    %v5250 = vadd.f32 %v5058, 1e-05
    %v5251 = vadd.f32 %v5059, 1e-05
    %v5252 = vadd.f32 %v5060, 1e-05
    %v5253 = vadd.f32 %v5061, 1e-05
    %v5254 = vadd.f32 %v5062, 1e-05
    %v5255 = vadd.f32 %v5063, 1e-05
    %v5256 = vadd.f32 %v5064, 1e-05
    %v5257 = vadd.f32 %v5065, 1e-05
    %v5258 = vadd.f32 %v5066, 1e-05
    %v5259 = vadd.f32 %v5067, 1e-05
    %v5260 = vadd.f32 %v5068, 1e-05
    %v5261 = vadd.f32 %v5069, 1e-05
    %v5262 = vadd.f32 %v5070, 1e-05
    %v5263 = vadd.f32 %v5071, 1e-05
    %v5264 = vadd.f32 %v5072, 1e-05
    %v5265 = vadd.f32 %v5073, 1e-05
    %v5266 = vadd.f32 %v5074, 1e-05
    %v5267 = vadd.f32 %v5075, 1e-05
    %v5268 = vadd.f32 %v5076, 1e-05
    %v5269 = vadd.f32 %v5077, 1e-05
    %v5270 = vadd.f32 %v5078, 1e-05
    %v5271 = vadd.f32 %v5079, 1e-05
    %v5272 = vadd.f32 %v5080, 1e-05
    %v5273 = vadd.f32 %v5081, 1e-05
    %v5274 = vadd.f32 %v5082, 1e-05
    %v5275 = vadd.f32 %v5083, 1e-05
    %v5276 = vadd.f32 %v5084, 1e-05
    %v5277 = vadd.f32 %v5085, 1e-05
    %v5278 = vadd.f32 %v5086, 1e-05
    %v5279 = vadd.f32 %v5087, 1e-05
    %v5280 = vadd.f32 %v5088, 1e-05
    %v5281 = vadd.f32 %v5089, 1e-05
    %v5282 = vadd.f32 %v5090, 1e-05
    %v5283 = vadd.f32 %v5091, 1e-05
    %v5284 = vadd.f32 %v5092, 1e-05
    %v5285 = vadd.f32 %v5093, 1e-05
    %v5286 = vadd.f32 %v5094, 1e-05
    %v5287 = vadd.f32 %v5095, 1e-05
    %v5288 = vadd.f32 %v5096, 1e-05
    %v5289 = vadd.f32 %v5097, 1e-05
    %v5290 = vadd.f32 %v5098, 1e-05
    %v5291 = vadd.f32 %v5099, 1e-05
    %v5292 = vadd.f32 %v5100, 1e-05
    %v5293 = vadd.f32 %v5101, 1e-05
    %v5294 = vadd.f32 %v5102, 1e-05
    %v5295 = vadd.f32 %v5103, 1e-05
    %v5296 = vadd.f32 %v5104, 1e-05
    %v5297 = vadd.f32 %v5105, 1e-05
    %v5298 = vadd.f32 %v5106, 1e-05
    %v5299 = vadd.f32 %v5107, 1e-05
    %v5300 = vadd.f32 %v5108, 1e-05
    %v5301 = vadd.f32 %v5109, 1e-05
    %v5302 = vadd.f32 %v5110, 1e-05
    %v5303 = vadd.f32 %v5111, 1e-05
    %v5304 = vadd.f32 %v5112, 1e-05
    %v5305 = vadd.f32 %v5113, 1e-05
    %v5306 = vadd.f32 %v5114, 1e-05
    %v5307 = vadd.f32 %v5115, 1e-05
    %v5308 = vadd.f32 %v5116, 1e-05
    %v5309 = vadd.f32 %v5117, 1e-05
    %v5310 = vadd.f32 %v5118, 1e-05
    %v5311 = vadd.f32 %v5119, 1e-05
    %v5312 = vadd.f32 %v5120, 1e-05
    %v5313 = vadd.f32 %v5121, 1e-05
    %v5314 = vadd.f32 %v5122, 1e-05
    %v5315 = vadd.f32 %v5123, 1e-05
    %v5316 = vadd.f32 %v5124, 1e-05
    %v5317 = vadd.f32 %v5125, 1e-05
    %v5318 = vadd.f32 %v5126, 1e-05
    %v5319 = vadd.f32 %v5127, 1e-05
    %v5320 = vadd.f32 %v5128, 1e-05
    %v5321 = vadd.f32 %v5129, 1e-05
    %v5322 = vadd.f32 %v5130, 1e-05
    %v5323 = vadd.f32 %v5131, 1e-05
    %v5324 = vadd.f32 %v5132, 1e-05
    %v5325 = vadd.f32 %v5133, 1e-05
    %v5326 = vadd.f32 %v5134, 1e-05
    %v5327 = vadd.f32 %v5135, 1e-05
    %v5328 = vadd.f32 %v5136, 1e-05
    %v5329 = vadd.f32 %v5137, 1e-05
    %v5330 = vadd.f32 %v5138, 1e-05
    %v5331 = vadd.f32 %v5139, 1e-05
    %v5332 = vadd.f32 %v5140, 1e-05
    %v5333 = vadd.f32 %v5141, 1e-05
    %v5334 = vadd.f32 %v5142, 1e-05
    %v5335 = vadd.f32 %v5143, 1e-05
    %v5336 = vadd.f32 %v5144, 1e-05
    %v5337 = vadd.f32 %v5145, 1e-05
    %v5338 = vadd.f32 %v5146, 1e-05
    %v5339 = vadd.f32 %v5147, 1e-05
    %v5340 = vadd.f32 %v5148, 1e-05
    %v5341 = vadd.f32 %v5149, 1e-05
    %v5342 = vadd.f32 %v5150, 1e-05
    %v5343 = vadd.f32 %v5151, 1e-05
    %v5344 = vadd.f32 %v5152, 1e-05
    %v5345 = vadd.f32 %v5153, 1e-05
    %v5346 = vadd.f32 %v5154, 1e-05
    %v5347 = vadd.f32 %v5155, 1e-05
    %v5348 = vadd.f32 %v5156, 1e-05
    %v5349 = vadd.f32 %v5157, 1e-05
    %v5350 = vadd.f32 %v5158, 1e-05
    %v5351 = vadd.f32 %v5159, 1e-05
    %v5352 = vadd.f32 %v5160, 1e-05
    %v5353 = vadd.f32 %v5161, 1e-05
    %v5354 = vadd.f32 %v5162, 1e-05
    %v5355 = vadd.f32 %v5163, 1e-05
    %v5356 = vadd.f32 %v5164, 1e-05
    %v5357 = vadd.f32 %v5165, 1e-05
    %v5358 = vadd.f32 %v5166, 1e-05
    %v5359 = vadd.f32 %v5167, 1e-05
    %v5360 = vadd.f32 %v5168, 1e-05
    %v5361 = vadd.f32 %v5169, 1e-05
    %v5362 = vadd.f32 %v5170, 1e-05
    %v5363 = vadd.f32 %v5171, 1e-05
    %v5364 = vadd.f32 %v5172, 1e-05
    %v5365 = vadd.f32 %v5173, 1e-05
    %v5366 = vadd.f32 %v5174, 1e-05
    %v5367 = vadd.f32 %v5175, 1e-05
    %v5368 = vadd.f32 %v5176, 1e-05
    %v5369 = vadd.f32 %v5177, 1e-05
    %v5370 = vadd.f32 %v5178, 1e-05
    %v5371 = vadd.f32 %v5179, 1e-05
    %v5372 = vadd.f32 %v5180, 1e-05
    %v5373 = vadd.f32 %v5181, 1e-05
    %v5374 = vadd.f32 %v5182, 1e-05
    %v5375 = vadd.f32 %v5183, 1e-05
    %v5376 = vadd.f32 %v5184, 1e-05
    %v5377 = vadd.f32 %v5185, 1e-05
    %v5378 = vadd.f32 %v5186, 1e-05
    %v5379 = vadd.f32 %v5187, 1e-05
    %v5380 = vadd.f32 %v5188, 1e-05
    %v5381 = vadd.f32 %v5189, 1e-05
    %v5382 = vadd.f32 %v5190, 1e-05
    %v5383 = vadd.f32 %v5191, 1e-05
    %v5384 = vadd.f32 %v5192, 1e-05
    %v5385 = vadd.f32 %v5193, 1e-05
    %v5386 = vadd.f32 %v5194, 1e-05
    %v5387 = vadd.f32 %v5195, 1e-05
    %v5388 = vadd.f32 %v5196, 1e-05
    %v5389 = vadd.f32 %v5197, 1e-05
    %v5390 = vadd.f32 %v5198, 1e-05
    %v5391 = vadd.f32 %v5199, 1e-05
    %v5392 = vadd.f32 %v5200, 1e-05
    %v5393 = vadd.f32 %v5201, 1e-05
    %v5394 = vadd.f32 %v5202, 1e-05
    %v5395 = vadd.f32 %v5203, 1e-05
    %v5396 = vadd.f32 %v5204, 1e-05
    %v5397 = vadd.f32 %v5205, 1e-05
    %v5398 = vadd.f32 %v5206, 1e-05
    %v5399 = vadd.f32 %v5207, 1e-05
    %v5400 = vadd.f32 %v5208, 1e-05
    %v5401 = vadd.f32 %v5209, 1e-05
    %v5402 = vadd.f32 %v5210, 1e-05
    %v5403 = vadd.f32 %v5211, 1e-05
    %v5404 = vadd.f32 %v5212, 1e-05
    %v5405 = vadd.f32 %v5213, 1e-05
    %v5406 = vadd.f32 %v5214, 1e-05
    %v5407 = vadd.f32 %v5215, 1e-05
    %v5408 = vrsqrt.pop %v5216
    %v5409 = vmul.f32 %v5408, %v5216
    %v5410 = vmul.f32 %v5409, %v5408
    %v5411 = vmul.f32 0.5, %v5410
    %v5412 = vsub.f32 1.5, %v5411
    %v5413 = vmul.f32 %v5408, %v5412
    %vm5414 = vweird.f32 %v5216
    %vm5415 = vweird.f32 %v5408
    %vm5416 = vmor %vm5414, %vm5415
    %v5417 = vsel %vm5416, %v5408, %v5413
    %v5418 = vrsqrt.pop %v5217
    %v5419 = vmul.f32 %v5418, %v5217
    %v5420 = vmul.f32 %v5419, %v5418
    %v5421 = vmul.f32 0.5, %v5420
    %v5422 = vsub.f32 1.5, %v5421
    %v5423 = vmul.f32 %v5418, %v5422
    %vm5424 = vweird.f32 %v5217
    %vm5425 = vweird.f32 %v5418
    %vm5426 = vmor %vm5424, %vm5425
    %v5427 = vsel %vm5426, %v5418, %v5423
    %v5428 = vrsqrt.pop %v5218
    %v5429 = vmul.f32 %v5428, %v5218
    %v5430 = vmul.f32 %v5429, %v5428
    %v5431 = vmul.f32 0.5, %v5430
    %v5432 = vsub.f32 1.5, %v5431
    %v5433 = vmul.f32 %v5428, %v5432
    %vm5434 = vweird.f32 %v5218
    %vm5435 = vweird.f32 %v5428
    %vm5436 = vmor %vm5434, %vm5435
    %v5437 = vsel %vm5436, %v5428, %v5433
    %v5438 = vrsqrt.pop %v5219
    %v5439 = vmul.f32 %v5438, %v5219
    %v5440 = vmul.f32 %v5439, %v5438
    %v5441 = vmul.f32 0.5, %v5440
    %v5442 = vsub.f32 1.5, %v5441
    %v5443 = vmul.f32 %v5438, %v5442
    %vm5444 = vweird.f32 %v5219
    %vm5445 = vweird.f32 %v5438
    %vm5446 = vmor %vm5444, %vm5445
    %v5447 = vsel %vm5446, %v5438, %v5443
    %v5448 = vrsqrt.pop %v5220
    %v5449 = vmul.f32 %v5448, %v5220
    %v5450 = vmul.f32 %v5449, %v5448
    %v5451 = vmul.f32 0.5, %v5450
    %v5452 = vsub.f32 1.5, %v5451
    %v5453 = vmul.f32 %v5448, %v5452
    %vm5454 = vweird.f32 %v5220
    %vm5455 = vweird.f32 %v5448
    %vm5456 = vmor %vm5454, %vm5455
    %v5457 = vsel %vm5456, %v5448, %v5453
    %v5458 = vrsqrt.pop %v5221
    %v5459 = vmul.f32 %v5458, %v5221
    %v5460 = vmul.f32 %v5459, %v5458
    %v5461 = vmul.f32 0.5, %v5460
    %v5462 = vsub.f32 1.5, %v5461
    %v5463 = vmul.f32 %v5458, %v5462
    %vm5464 = vweird.f32 %v5221
    %vm5465 = vweird.f32 %v5458
    %vm5466 = vmor %vm5464, %vm5465
    %v5467 = vsel %vm5466, %v5458, %v5463
    %v5468 = vrsqrt.pop %v5222
    %v5469 = vmul.f32 %v5468, %v5222
    %v5470 = vmul.f32 %v5469, %v5468
    %v5471 = vmul.f32 0.5, %v5470
    %v5472 = vsub.f32 1.5, %v5471
    %v5473 = vmul.f32 %v5468, %v5472
    %vm5474 = vweird.f32 %v5222
    %vm5475 = vweird.f32 %v5468
    %vm5476 = vmor %vm5474, %vm5475
    %v5477 = vsel %vm5476, %v5468, %v5473
    %v5478 = vrsqrt.pop %v5223
    %v5479 = vmul.f32 %v5478, %v5223
    %v5480 = vmul.f32 %v5479, %v5478
    %v5481 = vmul.f32 0.5, %v5480
    %v5482 = vsub.f32 1.5, %v5481
    %v5483 = vmul.f32 %v5478, %v5482
    %vm5484 = vweird.f32 %v5223
    %vm5485 = vweird.f32 %v5478
    %vm5486 = vmor %vm5484, %vm5485
    %v5487 = vsel %vm5486, %v5478, %v5483
    %v5488 = vrsqrt.pop %v5224
    %v5489 = vmul.f32 %v5488, %v5224
    %v5490 = vmul.f32 %v5489, %v5488
    %v5491 = vmul.f32 0.5, %v5490
    %v5492 = vsub.f32 1.5, %v5491
    %v5493 = vmul.f32 %v5488, %v5492
    %vm5494 = vweird.f32 %v5224
    %vm5495 = vweird.f32 %v5488
    %vm5496 = vmor %vm5494, %vm5495
    %v5497 = vsel %vm5496, %v5488, %v5493
    %v5498 = vrsqrt.pop %v5225
    %v5499 = vmul.f32 %v5498, %v5225
    %v5500 = vmul.f32 %v5499, %v5498
    %v5501 = vmul.f32 0.5, %v5500
    %v5502 = vsub.f32 1.5, %v5501
    %v5503 = vmul.f32 %v5498, %v5502
    %vm5504 = vweird.f32 %v5225
    %vm5505 = vweird.f32 %v5498
    %vm5506 = vmor %vm5504, %vm5505
    %v5507 = vsel %vm5506, %v5498, %v5503
    %v5508 = vrsqrt.pop %v5226
    %v5509 = vmul.f32 %v5508, %v5226
    %v5510 = vmul.f32 %v5509, %v5508
    %v5511 = vmul.f32 0.5, %v5510
    %v5512 = vsub.f32 1.5, %v5511
    %v5513 = vmul.f32 %v5508, %v5512
    %vm5514 = vweird.f32 %v5226
    %vm5515 = vweird.f32 %v5508
    %vm5516 = vmor %vm5514, %vm5515
    %v5517 = vsel %vm5516, %v5508, %v5513
    %v5518 = vrsqrt.pop %v5227
    %v5519 = vmul.f32 %v5518, %v5227
    %v5520 = vmul.f32 %v5519, %v5518
    %v5521 = vmul.f32 0.5, %v5520
    %v5522 = vsub.f32 1.5, %v5521
    %v5523 = vmul.f32 %v5518, %v5522
    %vm5524 = vweird.f32 %v5227
    %vm5525 = vweird.f32 %v5518
    %vm5526 = vmor %vm5524, %vm5525
    %v5527 = vsel %vm5526, %v5518, %v5523
    %v5528 = vrsqrt.pop %v5228
    %v5529 = vmul.f32 %v5528, %v5228
    %v5530 = vmul.f32 %v5529, %v5528
    %v5531 = vmul.f32 0.5, %v5530
    %v5532 = vsub.f32 1.5, %v5531
    %v5533 = vmul.f32 %v5528, %v5532
    %vm5534 = vweird.f32 %v5228
    %vm5535 = vweird.f32 %v5528
    %vm5536 = vmor %vm5534, %vm5535
    %v5537 = vsel %vm5536, %v5528, %v5533
    %v5538 = vrsqrt.pop %v5229
    %v5539 = vmul.f32 %v5538, %v5229
    %v5540 = vmul.f32 %v5539, %v5538
    %v5541 = vmul.f32 0.5, %v5540
    %v5542 = vsub.f32 1.5, %v5541
    %v5543 = vmul.f32 %v5538, %v5542
    %vm5544 = vweird.f32 %v5229
    %vm5545 = vweird.f32 %v5538
    %vm5546 = vmor %vm5544, %vm5545
    %v5547 = vsel %vm5546, %v5538, %v5543
    %v5548 = vrsqrt.pop %v5230
    %v5549 = vmul.f32 %v5548, %v5230
    %v5550 = vmul.f32 %v5549, %v5548
    %v5551 = vmul.f32 0.5, %v5550
    %v5552 = vsub.f32 1.5, %v5551
    %v5553 = vmul.f32 %v5548, %v5552
    %vm5554 = vweird.f32 %v5230
    %vm5555 = vweird.f32 %v5548
    %vm5556 = vmor %vm5554, %vm5555
    %v5557 = vsel %vm5556, %v5548, %v5553
    %v5558 = vrsqrt.pop %v5231
    %v5559 = vmul.f32 %v5558, %v5231
    %v5560 = vmul.f32 %v5559, %v5558
    %v5561 = vmul.f32 0.5, %v5560
    %v5562 = vsub.f32 1.5, %v5561
    %v5563 = vmul.f32 %v5558, %v5562
    %vm5564 = vweird.f32 %v5231
    %vm5565 = vweird.f32 %v5558
    %vm5566 = vmor %vm5564, %vm5565
    %v5567 = vsel %vm5566, %v5558, %v5563
    %v5568 = vrsqrt.pop %v5232
    %v5569 = vmul.f32 %v5568, %v5232
    %v5570 = vmul.f32 %v5569, %v5568
    %v5571 = vmul.f32 0.5, %v5570
    %v5572 = vsub.f32 1.5, %v5571
    %v5573 = vmul.f32 %v5568, %v5572
    %vm5574 = vweird.f32 %v5232
    %vm5575 = vweird.f32 %v5568
    %vm5576 = vmor %vm5574, %vm5575
    %v5577 = vsel %vm5576, %v5568, %v5573
    %v5578 = vrsqrt.pop %v5233
    %v5579 = vmul.f32 %v5578, %v5233
    %v5580 = vmul.f32 %v5579, %v5578
    %v5581 = vmul.f32 0.5, %v5580
    %v5582 = vsub.f32 1.5, %v5581
    %v5583 = vmul.f32 %v5578, %v5582
    %vm5584 = vweird.f32 %v5233
    %vm5585 = vweird.f32 %v5578
    %vm5586 = vmor %vm5584, %vm5585
    %v5587 = vsel %vm5586, %v5578, %v5583
    %v5588 = vrsqrt.pop %v5234
    %v5589 = vmul.f32 %v5588, %v5234
    %v5590 = vmul.f32 %v5589, %v5588
    %v5591 = vmul.f32 0.5, %v5590
    %v5592 = vsub.f32 1.5, %v5591
    %v5593 = vmul.f32 %v5588, %v5592
    %vm5594 = vweird.f32 %v5234
    %vm5595 = vweird.f32 %v5588
    %vm5596 = vmor %vm5594, %vm5595
    %v5597 = vsel %vm5596, %v5588, %v5593
    %v5598 = vrsqrt.pop %v5235
    %v5599 = vmul.f32 %v5598, %v5235
    %v5600 = vmul.f32 %v5599, %v5598
    %v5601 = vmul.f32 0.5, %v5600
    %v5602 = vsub.f32 1.5, %v5601
    %v5603 = vmul.f32 %v5598, %v5602
    %vm5604 = vweird.f32 %v5235
    %vm5605 = vweird.f32 %v5598
    %vm5606 = vmor %vm5604, %vm5605
    %v5607 = vsel %vm5606, %v5598, %v5603
    %v5608 = vrsqrt.pop %v5236
    %v5609 = vmul.f32 %v5608, %v5236
    %v5610 = vmul.f32 %v5609, %v5608
    %v5611 = vmul.f32 0.5, %v5610
    %v5612 = vsub.f32 1.5, %v5611
    %v5613 = vmul.f32 %v5608, %v5612
    %vm5614 = vweird.f32 %v5236
    %vm5615 = vweird.f32 %v5608
    %vm5616 = vmor %vm5614, %vm5615
    %v5617 = vsel %vm5616, %v5608, %v5613
    %v5618 = vrsqrt.pop %v5237
    %v5619 = vmul.f32 %v5618, %v5237
    %v5620 = vmul.f32 %v5619, %v5618
    %v5621 = vmul.f32 0.5, %v5620
    %v5622 = vsub.f32 1.5, %v5621
    %v5623 = vmul.f32 %v5618, %v5622
    %vm5624 = vweird.f32 %v5237
    %vm5625 = vweird.f32 %v5618
    %vm5626 = vmor %vm5624, %vm5625
    %v5627 = vsel %vm5626, %v5618, %v5623
    %v5628 = vrsqrt.pop %v5238
    %v5629 = vmul.f32 %v5628, %v5238
    %v5630 = vmul.f32 %v5629, %v5628
    %v5631 = vmul.f32 0.5, %v5630
    %v5632 = vsub.f32 1.5, %v5631
    %v5633 = vmul.f32 %v5628, %v5632
    %vm5634 = vweird.f32 %v5238
    %vm5635 = vweird.f32 %v5628
    %vm5636 = vmor %vm5634, %vm5635
    %v5637 = vsel %vm5636, %v5628, %v5633
    %v5638 = vrsqrt.pop %v5239
    %v5639 = vmul.f32 %v5638, %v5239
    %v5640 = vmul.f32 %v5639, %v5638
    %v5641 = vmul.f32 0.5, %v5640
    %v5642 = vsub.f32 1.5, %v5641
    %v5643 = vmul.f32 %v5638, %v5642
    %vm5644 = vweird.f32 %v5239
    %vm5645 = vweird.f32 %v5638
    %vm5646 = vmor %vm5644, %vm5645
    %v5647 = vsel %vm5646, %v5638, %v5643
    %v5648 = vrsqrt.pop %v5240
    %v5649 = vmul.f32 %v5648, %v5240
    %v5650 = vmul.f32 %v5649, %v5648
    %v5651 = vmul.f32 0.5, %v5650
    %v5652 = vsub.f32 1.5, %v5651
    %v5653 = vmul.f32 %v5648, %v5652
    %vm5654 = vweird.f32 %v5240
    %vm5655 = vweird.f32 %v5648
    %vm5656 = vmor %vm5654, %vm5655
    %v5657 = vsel %vm5656, %v5648, %v5653
    %v5658 = vrsqrt.pop %v5241
    %v5659 = vmul.f32 %v5658, %v5241
    %v5660 = vmul.f32 %v5659, %v5658
    %v5661 = vmul.f32 0.5, %v5660
    %v5662 = vsub.f32 1.5, %v5661
    %v5663 = vmul.f32 %v5658, %v5662
    %vm5664 = vweird.f32 %v5241
    %vm5665 = vweird.f32 %v5658
    %vm5666 = vmor %vm5664, %vm5665
    %v5667 = vsel %vm5666, %v5658, %v5663
    %v5668 = vrsqrt.pop %v5242
    %v5669 = vmul.f32 %v5668, %v5242
    %v5670 = vmul.f32 %v5669, %v5668
    %v5671 = vmul.f32 0.5, %v5670
    %v5672 = vsub.f32 1.5, %v5671
    %v5673 = vmul.f32 %v5668, %v5672
    %vm5674 = vweird.f32 %v5242
    %vm5675 = vweird.f32 %v5668
    %vm5676 = vmor %vm5674, %vm5675
    %v5677 = vsel %vm5676, %v5668, %v5673
    %v5678 = vrsqrt.pop %v5243
    %v5679 = vmul.f32 %v5678, %v5243
    %v5680 = vmul.f32 %v5679, %v5678
    %v5681 = vmul.f32 0.5, %v5680
    %v5682 = vsub.f32 1.5, %v5681
    %v5683 = vmul.f32 %v5678, %v5682
    %vm5684 = vweird.f32 %v5243
    %vm5685 = vweird.f32 %v5678
    %vm5686 = vmor %vm5684, %vm5685
    %v5687 = vsel %vm5686, %v5678, %v5683
    %v5688 = vrsqrt.pop %v5244
    %v5689 = vmul.f32 %v5688, %v5244
    %v5690 = vmul.f32 %v5689, %v5688
    %v5691 = vmul.f32 0.5, %v5690
    %v5692 = vsub.f32 1.5, %v5691
    %v5693 = vmul.f32 %v5688, %v5692
    %vm5694 = vweird.f32 %v5244
    %vm5695 = vweird.f32 %v5688
    %vm5696 = vmor %vm5694, %vm5695
    %v5697 = vsel %vm5696, %v5688, %v5693
    %v5698 = vrsqrt.pop %v5245
    %v5699 = vmul.f32 %v5698, %v5245
    %v5700 = vmul.f32 %v5699, %v5698
    %v5701 = vmul.f32 0.5, %v5700
    %v5702 = vsub.f32 1.5, %v5701
    %v5703 = vmul.f32 %v5698, %v5702
    %vm5704 = vweird.f32 %v5245
    %vm5705 = vweird.f32 %v5698
    %vm5706 = vmor %vm5704, %vm5705
    %v5707 = vsel %vm5706, %v5698, %v5703
    %v5708 = vrsqrt.pop %v5246
    %v5709 = vmul.f32 %v5708, %v5246
    %v5710 = vmul.f32 %v5709, %v5708
    %v5711 = vmul.f32 0.5, %v5710
    %v5712 = vsub.f32 1.5, %v5711
    %v5713 = vmul.f32 %v5708, %v5712
    %vm5714 = vweird.f32 %v5246
    %vm5715 = vweird.f32 %v5708
    %vm5716 = vmor %vm5714, %vm5715
    %v5717 = vsel %vm5716, %v5708, %v5713
    %v5718 = vrsqrt.pop %v5247
    %v5719 = vmul.f32 %v5718, %v5247
    %v5720 = vmul.f32 %v5719, %v5718
    %v5721 = vmul.f32 0.5, %v5720
    %v5722 = vsub.f32 1.5, %v5721
    %v5723 = vmul.f32 %v5718, %v5722
    %vm5724 = vweird.f32 %v5247
    %vm5725 = vweird.f32 %v5718
    %vm5726 = vmor %vm5724, %vm5725
    %v5727 = vsel %vm5726, %v5718, %v5723
    %v5728 = vrsqrt.pop %v5248
    %v5729 = vmul.f32 %v5728, %v5248
    %v5730 = vmul.f32 %v5729, %v5728
    %v5731 = vmul.f32 0.5, %v5730
    %v5732 = vsub.f32 1.5, %v5731
    %v5733 = vmul.f32 %v5728, %v5732
    %vm5734 = vweird.f32 %v5248
    %vm5735 = vweird.f32 %v5728
    %vm5736 = vmor %vm5734, %vm5735
    %v5737 = vsel %vm5736, %v5728, %v5733
    %v5738 = vrsqrt.pop %v5249
    %v5739 = vmul.f32 %v5738, %v5249
    %v5740 = vmul.f32 %v5739, %v5738
    %v5741 = vmul.f32 0.5, %v5740
    %v5742 = vsub.f32 1.5, %v5741
    %v5743 = vmul.f32 %v5738, %v5742
    %vm5744 = vweird.f32 %v5249
    %vm5745 = vweird.f32 %v5738
    %vm5746 = vmor %vm5744, %vm5745
    %v5747 = vsel %vm5746, %v5738, %v5743
    %v5748 = vrsqrt.pop %v5250
    %v5749 = vmul.f32 %v5748, %v5250
    %v5750 = vmul.f32 %v5749, %v5748
    %v5751 = vmul.f32 0.5, %v5750
    %v5752 = vsub.f32 1.5, %v5751
    %v5753 = vmul.f32 %v5748, %v5752
    %vm5754 = vweird.f32 %v5250
    %vm5755 = vweird.f32 %v5748
    %vm5756 = vmor %vm5754, %vm5755
    %v5757 = vsel %vm5756, %v5748, %v5753
    %v5758 = vrsqrt.pop %v5251
    %v5759 = vmul.f32 %v5758, %v5251
    %v5760 = vmul.f32 %v5759, %v5758
    %v5761 = vmul.f32 0.5, %v5760
    %v5762 = vsub.f32 1.5, %v5761
    %v5763 = vmul.f32 %v5758, %v5762
    %vm5764 = vweird.f32 %v5251
    %vm5765 = vweird.f32 %v5758
    %vm5766 = vmor %vm5764, %vm5765
    %v5767 = vsel %vm5766, %v5758, %v5763
    %v5768 = vrsqrt.pop %v5252
    %v5769 = vmul.f32 %v5768, %v5252
    %v5770 = vmul.f32 %v5769, %v5768
    %v5771 = vmul.f32 0.5, %v5770
    %v5772 = vsub.f32 1.5, %v5771
    %v5773 = vmul.f32 %v5768, %v5772
    %vm5774 = vweird.f32 %v5252
    %vm5775 = vweird.f32 %v5768
    %vm5776 = vmor %vm5774, %vm5775
    %v5777 = vsel %vm5776, %v5768, %v5773
    %v5778 = vrsqrt.pop %v5253
    %v5779 = vmul.f32 %v5778, %v5253
    %v5780 = vmul.f32 %v5779, %v5778
    %v5781 = vmul.f32 0.5, %v5780
    %v5782 = vsub.f32 1.5, %v5781
    %v5783 = vmul.f32 %v5778, %v5782
    %vm5784 = vweird.f32 %v5253
    %vm5785 = vweird.f32 %v5778
    %vm5786 = vmor %vm5784, %vm5785
    %v5787 = vsel %vm5786, %v5778, %v5783
    %v5788 = vrsqrt.pop %v5254
    %v5789 = vmul.f32 %v5788, %v5254
    %v5790 = vmul.f32 %v5789, %v5788
    %v5791 = vmul.f32 0.5, %v5790
    %v5792 = vsub.f32 1.5, %v5791
    %v5793 = vmul.f32 %v5788, %v5792
    %vm5794 = vweird.f32 %v5254
    %vm5795 = vweird.f32 %v5788
    %vm5796 = vmor %vm5794, %vm5795
    %v5797 = vsel %vm5796, %v5788, %v5793
    %v5798 = vrsqrt.pop %v5255
    %v5799 = vmul.f32 %v5798, %v5255
    %v5800 = vmul.f32 %v5799, %v5798
    %v5801 = vmul.f32 0.5, %v5800
    %v5802 = vsub.f32 1.5, %v5801
    %v5803 = vmul.f32 %v5798, %v5802
    %vm5804 = vweird.f32 %v5255
    %vm5805 = vweird.f32 %v5798
    %vm5806 = vmor %vm5804, %vm5805
    %v5807 = vsel %vm5806, %v5798, %v5803
    %v5808 = vrsqrt.pop %v5256
    %v5809 = vmul.f32 %v5808, %v5256
    %v5810 = vmul.f32 %v5809, %v5808
    %v5811 = vmul.f32 0.5, %v5810
    %v5812 = vsub.f32 1.5, %v5811
    %v5813 = vmul.f32 %v5808, %v5812
    %vm5814 = vweird.f32 %v5256
    %vm5815 = vweird.f32 %v5808
    %vm5816 = vmor %vm5814, %vm5815
    %v5817 = vsel %vm5816, %v5808, %v5813
    %v5818 = vrsqrt.pop %v5257
    %v5819 = vmul.f32 %v5818, %v5257
    %v5820 = vmul.f32 %v5819, %v5818
    %v5821 = vmul.f32 0.5, %v5820
    %v5822 = vsub.f32 1.5, %v5821
    %v5823 = vmul.f32 %v5818, %v5822
    %vm5824 = vweird.f32 %v5257
    %vm5825 = vweird.f32 %v5818
    %vm5826 = vmor %vm5824, %vm5825
    %v5827 = vsel %vm5826, %v5818, %v5823
    %v5828 = vrsqrt.pop %v5258
    %v5829 = vmul.f32 %v5828, %v5258
    %v5830 = vmul.f32 %v5829, %v5828
    %v5831 = vmul.f32 0.5, %v5830
    %v5832 = vsub.f32 1.5, %v5831
    %v5833 = vmul.f32 %v5828, %v5832
    %vm5834 = vweird.f32 %v5258
    %vm5835 = vweird.f32 %v5828
    %vm5836 = vmor %vm5834, %vm5835
    %v5837 = vsel %vm5836, %v5828, %v5833
    %v5838 = vrsqrt.pop %v5259
    %v5839 = vmul.f32 %v5838, %v5259
    %v5840 = vmul.f32 %v5839, %v5838
    %v5841 = vmul.f32 0.5, %v5840
    %v5842 = vsub.f32 1.5, %v5841
    %v5843 = vmul.f32 %v5838, %v5842
    %vm5844 = vweird.f32 %v5259
    %vm5845 = vweird.f32 %v5838
    %vm5846 = vmor %vm5844, %vm5845
    %v5847 = vsel %vm5846, %v5838, %v5843
    %v5848 = vrsqrt.pop %v5260
    %v5849 = vmul.f32 %v5848, %v5260
    %v5850 = vmul.f32 %v5849, %v5848
    %v5851 = vmul.f32 0.5, %v5850
    %v5852 = vsub.f32 1.5, %v5851
    %v5853 = vmul.f32 %v5848, %v5852
    %vm5854 = vweird.f32 %v5260
    %vm5855 = vweird.f32 %v5848
    %vm5856 = vmor %vm5854, %vm5855
    %v5857 = vsel %vm5856, %v5848, %v5853
    %v5858 = vrsqrt.pop %v5261
    %v5859 = vmul.f32 %v5858, %v5261
    %v5860 = vmul.f32 %v5859, %v5858
    %v5861 = vmul.f32 0.5, %v5860
    %v5862 = vsub.f32 1.5, %v5861
    %v5863 = vmul.f32 %v5858, %v5862
    %vm5864 = vweird.f32 %v5261
    %vm5865 = vweird.f32 %v5858
    %vm5866 = vmor %vm5864, %vm5865
    %v5867 = vsel %vm5866, %v5858, %v5863
    %v5868 = vrsqrt.pop %v5262
    %v5869 = vmul.f32 %v5868, %v5262
    %v5870 = vmul.f32 %v5869, %v5868
    %v5871 = vmul.f32 0.5, %v5870
    %v5872 = vsub.f32 1.5, %v5871
    %v5873 = vmul.f32 %v5868, %v5872
    %vm5874 = vweird.f32 %v5262
    %vm5875 = vweird.f32 %v5868
    %vm5876 = vmor %vm5874, %vm5875
    %v5877 = vsel %vm5876, %v5868, %v5873
    %v5878 = vrsqrt.pop %v5263
    %v5879 = vmul.f32 %v5878, %v5263
    %v5880 = vmul.f32 %v5879, %v5878
    %v5881 = vmul.f32 0.5, %v5880
    %v5882 = vsub.f32 1.5, %v5881
    %v5883 = vmul.f32 %v5878, %v5882
    %vm5884 = vweird.f32 %v5263
    %vm5885 = vweird.f32 %v5878
    %vm5886 = vmor %vm5884, %vm5885
    %v5887 = vsel %vm5886, %v5878, %v5883
    %v5888 = vrsqrt.pop %v5264
    %v5889 = vmul.f32 %v5888, %v5264
    %v5890 = vmul.f32 %v5889, %v5888
    %v5891 = vmul.f32 0.5, %v5890
    %v5892 = vsub.f32 1.5, %v5891
    %v5893 = vmul.f32 %v5888, %v5892
    %vm5894 = vweird.f32 %v5264
    %vm5895 = vweird.f32 %v5888
    %vm5896 = vmor %vm5894, %vm5895
    %v5897 = vsel %vm5896, %v5888, %v5893
    %v5898 = vrsqrt.pop %v5265
    %v5899 = vmul.f32 %v5898, %v5265
    %v5900 = vmul.f32 %v5899, %v5898
    %v5901 = vmul.f32 0.5, %v5900
    %v5902 = vsub.f32 1.5, %v5901
    %v5903 = vmul.f32 %v5898, %v5902
    %vm5904 = vweird.f32 %v5265
    %vm5905 = vweird.f32 %v5898
    %vm5906 = vmor %vm5904, %vm5905
    %v5907 = vsel %vm5906, %v5898, %v5903
    %v5908 = vrsqrt.pop %v5266
    %v5909 = vmul.f32 %v5908, %v5266
    %v5910 = vmul.f32 %v5909, %v5908
    %v5911 = vmul.f32 0.5, %v5910
    %v5912 = vsub.f32 1.5, %v5911
    %v5913 = vmul.f32 %v5908, %v5912
    %vm5914 = vweird.f32 %v5266
    %vm5915 = vweird.f32 %v5908
    %vm5916 = vmor %vm5914, %vm5915
    %v5917 = vsel %vm5916, %v5908, %v5913
    %v5918 = vrsqrt.pop %v5267
    %v5919 = vmul.f32 %v5918, %v5267
    %v5920 = vmul.f32 %v5919, %v5918
    %v5921 = vmul.f32 0.5, %v5920
    %v5922 = vsub.f32 1.5, %v5921
    %v5923 = vmul.f32 %v5918, %v5922
    %vm5924 = vweird.f32 %v5267
    %vm5925 = vweird.f32 %v5918
    %vm5926 = vmor %vm5924, %vm5925
    %v5927 = vsel %vm5926, %v5918, %v5923
    %v5928 = vrsqrt.pop %v5268
    %v5929 = vmul.f32 %v5928, %v5268
    %v5930 = vmul.f32 %v5929, %v5928
    %v5931 = vmul.f32 0.5, %v5930
    %v5932 = vsub.f32 1.5, %v5931
    %v5933 = vmul.f32 %v5928, %v5932
    %vm5934 = vweird.f32 %v5268
    %vm5935 = vweird.f32 %v5928
    %vm5936 = vmor %vm5934, %vm5935
    %v5937 = vsel %vm5936, %v5928, %v5933
    %v5938 = vrsqrt.pop %v5269
    %v5939 = vmul.f32 %v5938, %v5269
    %v5940 = vmul.f32 %v5939, %v5938
    %v5941 = vmul.f32 0.5, %v5940
    %v5942 = vsub.f32 1.5, %v5941
    %v5943 = vmul.f32 %v5938, %v5942
    %vm5944 = vweird.f32 %v5269
    %vm5945 = vweird.f32 %v5938
    %vm5946 = vmor %vm5944, %vm5945
    %v5947 = vsel %vm5946, %v5938, %v5943
    %v5948 = vrsqrt.pop %v5270
    %v5949 = vmul.f32 %v5948, %v5270
    %v5950 = vmul.f32 %v5949, %v5948
    %v5951 = vmul.f32 0.5, %v5950
    %v5952 = vsub.f32 1.5, %v5951
    %v5953 = vmul.f32 %v5948, %v5952
    %vm5954 = vweird.f32 %v5270
    %vm5955 = vweird.f32 %v5948
    %vm5956 = vmor %vm5954, %vm5955
    %v5957 = vsel %vm5956, %v5948, %v5953
    %v5958 = vrsqrt.pop %v5271
    %v5959 = vmul.f32 %v5958, %v5271
    %v5960 = vmul.f32 %v5959, %v5958
    %v5961 = vmul.f32 0.5, %v5960
    %v5962 = vsub.f32 1.5, %v5961
    %v5963 = vmul.f32 %v5958, %v5962
    %vm5964 = vweird.f32 %v5271
    %vm5965 = vweird.f32 %v5958
    %vm5966 = vmor %vm5964, %vm5965
    %v5967 = vsel %vm5966, %v5958, %v5963
    %v5968 = vrsqrt.pop %v5272
    %v5969 = vmul.f32 %v5968, %v5272
    %v5970 = vmul.f32 %v5969, %v5968
    %v5971 = vmul.f32 0.5, %v5970
    %v5972 = vsub.f32 1.5, %v5971
    %v5973 = vmul.f32 %v5968, %v5972
    %vm5974 = vweird.f32 %v5272
    %vm5975 = vweird.f32 %v5968
    %vm5976 = vmor %vm5974, %vm5975
    %v5977 = vsel %vm5976, %v5968, %v5973
    %v5978 = vrsqrt.pop %v5273
    %v5979 = vmul.f32 %v5978, %v5273
    %v5980 = vmul.f32 %v5979, %v5978
    %v5981 = vmul.f32 0.5, %v5980
    %v5982 = vsub.f32 1.5, %v5981
    %v5983 = vmul.f32 %v5978, %v5982
    %vm5984 = vweird.f32 %v5273
    %vm5985 = vweird.f32 %v5978
    %vm5986 = vmor %vm5984, %vm5985
    %v5987 = vsel %vm5986, %v5978, %v5983
    %v5988 = vrsqrt.pop %v5274
    %v5989 = vmul.f32 %v5988, %v5274
    %v5990 = vmul.f32 %v5989, %v5988
    %v5991 = vmul.f32 0.5, %v5990
    %v5992 = vsub.f32 1.5, %v5991
    %v5993 = vmul.f32 %v5988, %v5992
    %vm5994 = vweird.f32 %v5274
    %vm5995 = vweird.f32 %v5988
    %vm5996 = vmor %vm5994, %vm5995
    %v5997 = vsel %vm5996, %v5988, %v5993
    %v5998 = vrsqrt.pop %v5275
    %v5999 = vmul.f32 %v5998, %v5275
    %v6000 = vmul.f32 %v5999, %v5998
    %v6001 = vmul.f32 0.5, %v6000
    %v6002 = vsub.f32 1.5, %v6001
    %v6003 = vmul.f32 %v5998, %v6002
    %vm6004 = vweird.f32 %v5275
    %vm6005 = vweird.f32 %v5998
    %vm6006 = vmor %vm6004, %vm6005
    %v6007 = vsel %vm6006, %v5998, %v6003
    %v6008 = vrsqrt.pop %v5276
    %v6009 = vmul.f32 %v6008, %v5276
    %v6010 = vmul.f32 %v6009, %v6008
    %v6011 = vmul.f32 0.5, %v6010
    %v6012 = vsub.f32 1.5, %v6011
    %v6013 = vmul.f32 %v6008, %v6012
    %vm6014 = vweird.f32 %v5276
    %vm6015 = vweird.f32 %v6008
    %vm6016 = vmor %vm6014, %vm6015
    %v6017 = vsel %vm6016, %v6008, %v6013
    %v6018 = vrsqrt.pop %v5277
    %v6019 = vmul.f32 %v6018, %v5277
    %v6020 = vmul.f32 %v6019, %v6018
    %v6021 = vmul.f32 0.5, %v6020
    %v6022 = vsub.f32 1.5, %v6021
    %v6023 = vmul.f32 %v6018, %v6022
    %vm6024 = vweird.f32 %v5277
    %vm6025 = vweird.f32 %v6018
    %vm6026 = vmor %vm6024, %vm6025
    %v6027 = vsel %vm6026, %v6018, %v6023
    %v6028 = vrsqrt.pop %v5278
    %v6029 = vmul.f32 %v6028, %v5278
    %v6030 = vmul.f32 %v6029, %v6028
    %v6031 = vmul.f32 0.5, %v6030
    %v6032 = vsub.f32 1.5, %v6031
    %v6033 = vmul.f32 %v6028, %v6032
    %vm6034 = vweird.f32 %v5278
    %vm6035 = vweird.f32 %v6028
    %vm6036 = vmor %vm6034, %vm6035
    %v6037 = vsel %vm6036, %v6028, %v6033
    %v6038 = vrsqrt.pop %v5279
    %v6039 = vmul.f32 %v6038, %v5279
    %v6040 = vmul.f32 %v6039, %v6038
    %v6041 = vmul.f32 0.5, %v6040
    %v6042 = vsub.f32 1.5, %v6041
    %v6043 = vmul.f32 %v6038, %v6042
    %vm6044 = vweird.f32 %v5279
    %vm6045 = vweird.f32 %v6038
    %vm6046 = vmor %vm6044, %vm6045
    %v6047 = vsel %vm6046, %v6038, %v6043
    %v6048 = vrsqrt.pop %v5280
    %v6049 = vmul.f32 %v6048, %v5280
    %v6050 = vmul.f32 %v6049, %v6048
    %v6051 = vmul.f32 0.5, %v6050
    %v6052 = vsub.f32 1.5, %v6051
    %v6053 = vmul.f32 %v6048, %v6052
    %vm6054 = vweird.f32 %v5280
    %vm6055 = vweird.f32 %v6048
    %vm6056 = vmor %vm6054, %vm6055
    %v6057 = vsel %vm6056, %v6048, %v6053
    %v6058 = vrsqrt.pop %v5281
    %v6059 = vmul.f32 %v6058, %v5281
    %v6060 = vmul.f32 %v6059, %v6058
    %v6061 = vmul.f32 0.5, %v6060
    %v6062 = vsub.f32 1.5, %v6061
    %v6063 = vmul.f32 %v6058, %v6062
    %vm6064 = vweird.f32 %v5281
    %vm6065 = vweird.f32 %v6058
    %vm6066 = vmor %vm6064, %vm6065
    %v6067 = vsel %vm6066, %v6058, %v6063
    %v6068 = vrsqrt.pop %v5282
    %v6069 = vmul.f32 %v6068, %v5282
    %v6070 = vmul.f32 %v6069, %v6068
    %v6071 = vmul.f32 0.5, %v6070
    %v6072 = vsub.f32 1.5, %v6071
    %v6073 = vmul.f32 %v6068, %v6072
    %vm6074 = vweird.f32 %v5282
    %vm6075 = vweird.f32 %v6068
    %vm6076 = vmor %vm6074, %vm6075
    %v6077 = vsel %vm6076, %v6068, %v6073
    %v6078 = vrsqrt.pop %v5283
    %v6079 = vmul.f32 %v6078, %v5283
    %v6080 = vmul.f32 %v6079, %v6078
    %v6081 = vmul.f32 0.5, %v6080
    %v6082 = vsub.f32 1.5, %v6081
    %v6083 = vmul.f32 %v6078, %v6082
    %vm6084 = vweird.f32 %v5283
    %vm6085 = vweird.f32 %v6078
    %vm6086 = vmor %vm6084, %vm6085
    %v6087 = vsel %vm6086, %v6078, %v6083
    %v6088 = vrsqrt.pop %v5284
    %v6089 = vmul.f32 %v6088, %v5284
    %v6090 = vmul.f32 %v6089, %v6088
    %v6091 = vmul.f32 0.5, %v6090
    %v6092 = vsub.f32 1.5, %v6091
    %v6093 = vmul.f32 %v6088, %v6092
    %vm6094 = vweird.f32 %v5284
    %vm6095 = vweird.f32 %v6088
    %vm6096 = vmor %vm6094, %vm6095
    %v6097 = vsel %vm6096, %v6088, %v6093
    %v6098 = vrsqrt.pop %v5285
    %v6099 = vmul.f32 %v6098, %v5285
    %v6100 = vmul.f32 %v6099, %v6098
    %v6101 = vmul.f32 0.5, %v6100
    %v6102 = vsub.f32 1.5, %v6101
    %v6103 = vmul.f32 %v6098, %v6102
    %vm6104 = vweird.f32 %v5285
    %vm6105 = vweird.f32 %v6098
    %vm6106 = vmor %vm6104, %vm6105
    %v6107 = vsel %vm6106, %v6098, %v6103
    %v6108 = vrsqrt.pop %v5286
    %v6109 = vmul.f32 %v6108, %v5286
    %v6110 = vmul.f32 %v6109, %v6108
    %v6111 = vmul.f32 0.5, %v6110
    %v6112 = vsub.f32 1.5, %v6111
    %v6113 = vmul.f32 %v6108, %v6112
    %vm6114 = vweird.f32 %v5286
    %vm6115 = vweird.f32 %v6108
    %vm6116 = vmor %vm6114, %vm6115
    %v6117 = vsel %vm6116, %v6108, %v6113
    %v6118 = vrsqrt.pop %v5287
    %v6119 = vmul.f32 %v6118, %v5287
    %v6120 = vmul.f32 %v6119, %v6118
    %v6121 = vmul.f32 0.5, %v6120
    %v6122 = vsub.f32 1.5, %v6121
    %v6123 = vmul.f32 %v6118, %v6122
    %vm6124 = vweird.f32 %v5287
    %vm6125 = vweird.f32 %v6118
    %vm6126 = vmor %vm6124, %vm6125
    %v6127 = vsel %vm6126, %v6118, %v6123
    %v6128 = vrsqrt.pop %v5288
    %v6129 = vmul.f32 %v6128, %v5288
    %v6130 = vmul.f32 %v6129, %v6128
    %v6131 = vmul.f32 0.5, %v6130
    %v6132 = vsub.f32 1.5, %v6131
    %v6133 = vmul.f32 %v6128, %v6132
    %vm6134 = vweird.f32 %v5288
    %vm6135 = vweird.f32 %v6128
    %vm6136 = vmor %vm6134, %vm6135
    %v6137 = vsel %vm6136, %v6128, %v6133
    %v6138 = vrsqrt.pop %v5289
    %v6139 = vmul.f32 %v6138, %v5289
    %v6140 = vmul.f32 %v6139, %v6138
    %v6141 = vmul.f32 0.5, %v6140
    %v6142 = vsub.f32 1.5, %v6141
    %v6143 = vmul.f32 %v6138, %v6142
    %vm6144 = vweird.f32 %v5289
    %vm6145 = vweird.f32 %v6138
    %vm6146 = vmor %vm6144, %vm6145
    %v6147 = vsel %vm6146, %v6138, %v6143
    %v6148 = vrsqrt.pop %v5290
    %v6149 = vmul.f32 %v6148, %v5290
    %v6150 = vmul.f32 %v6149, %v6148
    %v6151 = vmul.f32 0.5, %v6150
    %v6152 = vsub.f32 1.5, %v6151
    %v6153 = vmul.f32 %v6148, %v6152
    %vm6154 = vweird.f32 %v5290
    %vm6155 = vweird.f32 %v6148
    %vm6156 = vmor %vm6154, %vm6155
    %v6157 = vsel %vm6156, %v6148, %v6153
    %v6158 = vrsqrt.pop %v5291
    %v6159 = vmul.f32 %v6158, %v5291
    %v6160 = vmul.f32 %v6159, %v6158
    %v6161 = vmul.f32 0.5, %v6160
    %v6162 = vsub.f32 1.5, %v6161
    %v6163 = vmul.f32 %v6158, %v6162
    %vm6164 = vweird.f32 %v5291
    %vm6165 = vweird.f32 %v6158
    %vm6166 = vmor %vm6164, %vm6165
    %v6167 = vsel %vm6166, %v6158, %v6163
    %v6168 = vrsqrt.pop %v5292
    %v6169 = vmul.f32 %v6168, %v5292
    %v6170 = vmul.f32 %v6169, %v6168
    %v6171 = vmul.f32 0.5, %v6170
    %v6172 = vsub.f32 1.5, %v6171
    %v6173 = vmul.f32 %v6168, %v6172
    %vm6174 = vweird.f32 %v5292
    %vm6175 = vweird.f32 %v6168
    %vm6176 = vmor %vm6174, %vm6175
    %v6177 = vsel %vm6176, %v6168, %v6173
    %v6178 = vrsqrt.pop %v5293
    %v6179 = vmul.f32 %v6178, %v5293
    %v6180 = vmul.f32 %v6179, %v6178
    %v6181 = vmul.f32 0.5, %v6180
    %v6182 = vsub.f32 1.5, %v6181
    %v6183 = vmul.f32 %v6178, %v6182
    %vm6184 = vweird.f32 %v5293
    %vm6185 = vweird.f32 %v6178
    %vm6186 = vmor %vm6184, %vm6185
    %v6187 = vsel %vm6186, %v6178, %v6183
    %v6188 = vrsqrt.pop %v5294
    %v6189 = vmul.f32 %v6188, %v5294
    %v6190 = vmul.f32 %v6189, %v6188
    %v6191 = vmul.f32 0.5, %v6190
    %v6192 = vsub.f32 1.5, %v6191
    %v6193 = vmul.f32 %v6188, %v6192
    %vm6194 = vweird.f32 %v5294
    %vm6195 = vweird.f32 %v6188
    %vm6196 = vmor %vm6194, %vm6195
    %v6197 = vsel %vm6196, %v6188, %v6193
    %v6198 = vrsqrt.pop %v5295
    %v6199 = vmul.f32 %v6198, %v5295
    %v6200 = vmul.f32 %v6199, %v6198
    %v6201 = vmul.f32 0.5, %v6200
    %v6202 = vsub.f32 1.5, %v6201
    %v6203 = vmul.f32 %v6198, %v6202
    %vm6204 = vweird.f32 %v5295
    %vm6205 = vweird.f32 %v6198
    %vm6206 = vmor %vm6204, %vm6205
    %v6207 = vsel %vm6206, %v6198, %v6203
    %v6208 = vrsqrt.pop %v5296
    %v6209 = vmul.f32 %v6208, %v5296
    %v6210 = vmul.f32 %v6209, %v6208
    %v6211 = vmul.f32 0.5, %v6210
    %v6212 = vsub.f32 1.5, %v6211
    %v6213 = vmul.f32 %v6208, %v6212
    %vm6214 = vweird.f32 %v5296
    %vm6215 = vweird.f32 %v6208
    %vm6216 = vmor %vm6214, %vm6215
    %v6217 = vsel %vm6216, %v6208, %v6213
    %v6218 = vrsqrt.pop %v5297
    %v6219 = vmul.f32 %v6218, %v5297
    %v6220 = vmul.f32 %v6219, %v6218
    %v6221 = vmul.f32 0.5, %v6220
    %v6222 = vsub.f32 1.5, %v6221
    %v6223 = vmul.f32 %v6218, %v6222
    %vm6224 = vweird.f32 %v5297
    %vm6225 = vweird.f32 %v6218
    %vm6226 = vmor %vm6224, %vm6225
    %v6227 = vsel %vm6226, %v6218, %v6223
    %v6228 = vrsqrt.pop %v5298
    %v6229 = vmul.f32 %v6228, %v5298
    %v6230 = vmul.f32 %v6229, %v6228
    %v6231 = vmul.f32 0.5, %v6230
    %v6232 = vsub.f32 1.5, %v6231
    %v6233 = vmul.f32 %v6228, %v6232
    %vm6234 = vweird.f32 %v5298
    %vm6235 = vweird.f32 %v6228
    %vm6236 = vmor %vm6234, %vm6235
    %v6237 = vsel %vm6236, %v6228, %v6233
    %v6238 = vrsqrt.pop %v5299
    %v6239 = vmul.f32 %v6238, %v5299
    %v6240 = vmul.f32 %v6239, %v6238
    %v6241 = vmul.f32 0.5, %v6240
    %v6242 = vsub.f32 1.5, %v6241
    %v6243 = vmul.f32 %v6238, %v6242
    %vm6244 = vweird.f32 %v5299
    %vm6245 = vweird.f32 %v6238
    %vm6246 = vmor %vm6244, %vm6245
    %v6247 = vsel %vm6246, %v6238, %v6243
    %v6248 = vrsqrt.pop %v5300
    %v6249 = vmul.f32 %v6248, %v5300
    %v6250 = vmul.f32 %v6249, %v6248
    %v6251 = vmul.f32 0.5, %v6250
    %v6252 = vsub.f32 1.5, %v6251
    %v6253 = vmul.f32 %v6248, %v6252
    %vm6254 = vweird.f32 %v5300
    %vm6255 = vweird.f32 %v6248
    %vm6256 = vmor %vm6254, %vm6255
    %v6257 = vsel %vm6256, %v6248, %v6253
    %v6258 = vrsqrt.pop %v5301
    %v6259 = vmul.f32 %v6258, %v5301
    %v6260 = vmul.f32 %v6259, %v6258
    %v6261 = vmul.f32 0.5, %v6260
    %v6262 = vsub.f32 1.5, %v6261
    %v6263 = vmul.f32 %v6258, %v6262
    %vm6264 = vweird.f32 %v5301
    %vm6265 = vweird.f32 %v6258
    %vm6266 = vmor %vm6264, %vm6265
    %v6267 = vsel %vm6266, %v6258, %v6263
    %v6268 = vrsqrt.pop %v5302
    %v6269 = vmul.f32 %v6268, %v5302
    %v6270 = vmul.f32 %v6269, %v6268
    %v6271 = vmul.f32 0.5, %v6270
    %v6272 = vsub.f32 1.5, %v6271
    %v6273 = vmul.f32 %v6268, %v6272
    %vm6274 = vweird.f32 %v5302
    %vm6275 = vweird.f32 %v6268
    %vm6276 = vmor %vm6274, %vm6275
    %v6277 = vsel %vm6276, %v6268, %v6273
    %v6278 = vrsqrt.pop %v5303
    %v6279 = vmul.f32 %v6278, %v5303
    %v6280 = vmul.f32 %v6279, %v6278
    %v6281 = vmul.f32 0.5, %v6280
    %v6282 = vsub.f32 1.5, %v6281
    %v6283 = vmul.f32 %v6278, %v6282
    %vm6284 = vweird.f32 %v5303
    %vm6285 = vweird.f32 %v6278
    %vm6286 = vmor %vm6284, %vm6285
    %v6287 = vsel %vm6286, %v6278, %v6283
    %v6288 = vrsqrt.pop %v5304
    %v6289 = vmul.f32 %v6288, %v5304
    %v6290 = vmul.f32 %v6289, %v6288
    %v6291 = vmul.f32 0.5, %v6290
    %v6292 = vsub.f32 1.5, %v6291
    %v6293 = vmul.f32 %v6288, %v6292
    %vm6294 = vweird.f32 %v5304
    %vm6295 = vweird.f32 %v6288
    %vm6296 = vmor %vm6294, %vm6295
    %v6297 = vsel %vm6296, %v6288, %v6293
    %v6298 = vrsqrt.pop %v5305
    %v6299 = vmul.f32 %v6298, %v5305
    %v6300 = vmul.f32 %v6299, %v6298
    %v6301 = vmul.f32 0.5, %v6300
    %v6302 = vsub.f32 1.5, %v6301
    %v6303 = vmul.f32 %v6298, %v6302
    %vm6304 = vweird.f32 %v5305
    %vm6305 = vweird.f32 %v6298
    %vm6306 = vmor %vm6304, %vm6305
    %v6307 = vsel %vm6306, %v6298, %v6303
    %v6308 = vrsqrt.pop %v5306
    %v6309 = vmul.f32 %v6308, %v5306
    %v6310 = vmul.f32 %v6309, %v6308
    %v6311 = vmul.f32 0.5, %v6310
    %v6312 = vsub.f32 1.5, %v6311
    %v6313 = vmul.f32 %v6308, %v6312
    %vm6314 = vweird.f32 %v5306
    %vm6315 = vweird.f32 %v6308
    %vm6316 = vmor %vm6314, %vm6315
    %v6317 = vsel %vm6316, %v6308, %v6313
    %v6318 = vrsqrt.pop %v5307
    %v6319 = vmul.f32 %v6318, %v5307
    %v6320 = vmul.f32 %v6319, %v6318
    %v6321 = vmul.f32 0.5, %v6320
    %v6322 = vsub.f32 1.5, %v6321
    %v6323 = vmul.f32 %v6318, %v6322
    %vm6324 = vweird.f32 %v5307
    %vm6325 = vweird.f32 %v6318
    %vm6326 = vmor %vm6324, %vm6325
    %v6327 = vsel %vm6326, %v6318, %v6323
    %v6328 = vrsqrt.pop %v5308
    %v6329 = vmul.f32 %v6328, %v5308
    %v6330 = vmul.f32 %v6329, %v6328
    %v6331 = vmul.f32 0.5, %v6330
    %v6332 = vsub.f32 1.5, %v6331
    %v6333 = vmul.f32 %v6328, %v6332
    %vm6334 = vweird.f32 %v5308
    %vm6335 = vweird.f32 %v6328
    %vm6336 = vmor %vm6334, %vm6335
    %v6337 = vsel %vm6336, %v6328, %v6333
    %v6338 = vrsqrt.pop %v5309
    %v6339 = vmul.f32 %v6338, %v5309
    %v6340 = vmul.f32 %v6339, %v6338
    %v6341 = vmul.f32 0.5, %v6340
    %v6342 = vsub.f32 1.5, %v6341
    %v6343 = vmul.f32 %v6338, %v6342
    %vm6344 = vweird.f32 %v5309
    %vm6345 = vweird.f32 %v6338
    %vm6346 = vmor %vm6344, %vm6345
    %v6347 = vsel %vm6346, %v6338, %v6343
    %v6348 = vrsqrt.pop %v5310
    %v6349 = vmul.f32 %v6348, %v5310
    %v6350 = vmul.f32 %v6349, %v6348
    %v6351 = vmul.f32 0.5, %v6350
    %v6352 = vsub.f32 1.5, %v6351
    %v6353 = vmul.f32 %v6348, %v6352
    %vm6354 = vweird.f32 %v5310
    %vm6355 = vweird.f32 %v6348
    %vm6356 = vmor %vm6354, %vm6355
    %v6357 = vsel %vm6356, %v6348, %v6353
    %v6358 = vrsqrt.pop %v5311
    %v6359 = vmul.f32 %v6358, %v5311
    %v6360 = vmul.f32 %v6359, %v6358
    %v6361 = vmul.f32 0.5, %v6360
    %v6362 = vsub.f32 1.5, %v6361
    %v6363 = vmul.f32 %v6358, %v6362
    %vm6364 = vweird.f32 %v5311
    %vm6365 = vweird.f32 %v6358
    %vm6366 = vmor %vm6364, %vm6365
    %v6367 = vsel %vm6366, %v6358, %v6363
    %v6368 = vrsqrt.pop %v5312
    %v6369 = vmul.f32 %v6368, %v5312
    %v6370 = vmul.f32 %v6369, %v6368
    %v6371 = vmul.f32 0.5, %v6370
    %v6372 = vsub.f32 1.5, %v6371
    %v6373 = vmul.f32 %v6368, %v6372
    %vm6374 = vweird.f32 %v5312
    %vm6375 = vweird.f32 %v6368
    %vm6376 = vmor %vm6374, %vm6375
    %v6377 = vsel %vm6376, %v6368, %v6373
    %v6378 = vrsqrt.pop %v5313
    %v6379 = vmul.f32 %v6378, %v5313
    %v6380 = vmul.f32 %v6379, %v6378
    %v6381 = vmul.f32 0.5, %v6380
    %v6382 = vsub.f32 1.5, %v6381
    %v6383 = vmul.f32 %v6378, %v6382
    %vm6384 = vweird.f32 %v5313
    %vm6385 = vweird.f32 %v6378
    %vm6386 = vmor %vm6384, %vm6385
    %v6387 = vsel %vm6386, %v6378, %v6383
    %v6388 = vrsqrt.pop %v5314
    %v6389 = vmul.f32 %v6388, %v5314
    %v6390 = vmul.f32 %v6389, %v6388
    %v6391 = vmul.f32 0.5, %v6390
    %v6392 = vsub.f32 1.5, %v6391
    %v6393 = vmul.f32 %v6388, %v6392
    %vm6394 = vweird.f32 %v5314
    %vm6395 = vweird.f32 %v6388
    %vm6396 = vmor %vm6394, %vm6395
    %v6397 = vsel %vm6396, %v6388, %v6393
    %v6398 = vrsqrt.pop %v5315
    %v6399 = vmul.f32 %v6398, %v5315
    %v6400 = vmul.f32 %v6399, %v6398
    %v6401 = vmul.f32 0.5, %v6400
    %v6402 = vsub.f32 1.5, %v6401
    %v6403 = vmul.f32 %v6398, %v6402
    %vm6404 = vweird.f32 %v5315
    %vm6405 = vweird.f32 %v6398
    %vm6406 = vmor %vm6404, %vm6405
    %v6407 = vsel %vm6406, %v6398, %v6403
    %v6408 = vrsqrt.pop %v5316
    %v6409 = vmul.f32 %v6408, %v5316
    %v6410 = vmul.f32 %v6409, %v6408
    %v6411 = vmul.f32 0.5, %v6410
    %v6412 = vsub.f32 1.5, %v6411
    %v6413 = vmul.f32 %v6408, %v6412
    %vm6414 = vweird.f32 %v5316
    %vm6415 = vweird.f32 %v6408
    %vm6416 = vmor %vm6414, %vm6415
    %v6417 = vsel %vm6416, %v6408, %v6413
    %v6418 = vrsqrt.pop %v5317
    %v6419 = vmul.f32 %v6418, %v5317
    %v6420 = vmul.f32 %v6419, %v6418
    %v6421 = vmul.f32 0.5, %v6420
    %v6422 = vsub.f32 1.5, %v6421
    %v6423 = vmul.f32 %v6418, %v6422
    %vm6424 = vweird.f32 %v5317
    %vm6425 = vweird.f32 %v6418
    %vm6426 = vmor %vm6424, %vm6425
    %v6427 = vsel %vm6426, %v6418, %v6423
    %v6428 = vrsqrt.pop %v5318
    %v6429 = vmul.f32 %v6428, %v5318
    %v6430 = vmul.f32 %v6429, %v6428
    %v6431 = vmul.f32 0.5, %v6430
    %v6432 = vsub.f32 1.5, %v6431
    %v6433 = vmul.f32 %v6428, %v6432
    %vm6434 = vweird.f32 %v5318
    %vm6435 = vweird.f32 %v6428
    %vm6436 = vmor %vm6434, %vm6435
    %v6437 = vsel %vm6436, %v6428, %v6433
    %v6438 = vrsqrt.pop %v5319
    %v6439 = vmul.f32 %v6438, %v5319
    %v6440 = vmul.f32 %v6439, %v6438
    %v6441 = vmul.f32 0.5, %v6440
    %v6442 = vsub.f32 1.5, %v6441
    %v6443 = vmul.f32 %v6438, %v6442
    %vm6444 = vweird.f32 %v5319
    %vm6445 = vweird.f32 %v6438
    %vm6446 = vmor %vm6444, %vm6445
    %v6447 = vsel %vm6446, %v6438, %v6443
    %v6448 = vrsqrt.pop %v5320
    %v6449 = vmul.f32 %v6448, %v5320
    %v6450 = vmul.f32 %v6449, %v6448
    %v6451 = vmul.f32 0.5, %v6450
    %v6452 = vsub.f32 1.5, %v6451
    %v6453 = vmul.f32 %v6448, %v6452
    %vm6454 = vweird.f32 %v5320
    %vm6455 = vweird.f32 %v6448
    %vm6456 = vmor %vm6454, %vm6455
    %v6457 = vsel %vm6456, %v6448, %v6453
    %v6458 = vrsqrt.pop %v5321
    %v6459 = vmul.f32 %v6458, %v5321
    %v6460 = vmul.f32 %v6459, %v6458
    %v6461 = vmul.f32 0.5, %v6460
    %v6462 = vsub.f32 1.5, %v6461
    %v6463 = vmul.f32 %v6458, %v6462
    %vm6464 = vweird.f32 %v5321
    %vm6465 = vweird.f32 %v6458
    %vm6466 = vmor %vm6464, %vm6465
    %v6467 = vsel %vm6466, %v6458, %v6463
    %v6468 = vrsqrt.pop %v5322
    %v6469 = vmul.f32 %v6468, %v5322
    %v6470 = vmul.f32 %v6469, %v6468
    %v6471 = vmul.f32 0.5, %v6470
    %v6472 = vsub.f32 1.5, %v6471
    %v6473 = vmul.f32 %v6468, %v6472
    %vm6474 = vweird.f32 %v5322
    %vm6475 = vweird.f32 %v6468
    %vm6476 = vmor %vm6474, %vm6475
    %v6477 = vsel %vm6476, %v6468, %v6473
    %v6478 = vrsqrt.pop %v5323
    %v6479 = vmul.f32 %v6478, %v5323
    %v6480 = vmul.f32 %v6479, %v6478
    %v6481 = vmul.f32 0.5, %v6480
    %v6482 = vsub.f32 1.5, %v6481
    %v6483 = vmul.f32 %v6478, %v6482
    %vm6484 = vweird.f32 %v5323
    %vm6485 = vweird.f32 %v6478
    %vm6486 = vmor %vm6484, %vm6485
    %v6487 = vsel %vm6486, %v6478, %v6483
    %v6488 = vrsqrt.pop %v5324
    %v6489 = vmul.f32 %v6488, %v5324
    %v6490 = vmul.f32 %v6489, %v6488
    %v6491 = vmul.f32 0.5, %v6490
    %v6492 = vsub.f32 1.5, %v6491
    %v6493 = vmul.f32 %v6488, %v6492
    %vm6494 = vweird.f32 %v5324
    %vm6495 = vweird.f32 %v6488
    %vm6496 = vmor %vm6494, %vm6495
    %v6497 = vsel %vm6496, %v6488, %v6493
    %v6498 = vrsqrt.pop %v5325
    %v6499 = vmul.f32 %v6498, %v5325
    %v6500 = vmul.f32 %v6499, %v6498
    %v6501 = vmul.f32 0.5, %v6500
    %v6502 = vsub.f32 1.5, %v6501
    %v6503 = vmul.f32 %v6498, %v6502
    %vm6504 = vweird.f32 %v5325
    %vm6505 = vweird.f32 %v6498
    %vm6506 = vmor %vm6504, %vm6505
    %v6507 = vsel %vm6506, %v6498, %v6503
    %v6508 = vrsqrt.pop %v5326
    %v6509 = vmul.f32 %v6508, %v5326
    %v6510 = vmul.f32 %v6509, %v6508
    %v6511 = vmul.f32 0.5, %v6510
    %v6512 = vsub.f32 1.5, %v6511
    %v6513 = vmul.f32 %v6508, %v6512
    %vm6514 = vweird.f32 %v5326
    %vm6515 = vweird.f32 %v6508
    %vm6516 = vmor %vm6514, %vm6515
    %v6517 = vsel %vm6516, %v6508, %v6513
    %v6518 = vrsqrt.pop %v5327
    %v6519 = vmul.f32 %v6518, %v5327
    %v6520 = vmul.f32 %v6519, %v6518
    %v6521 = vmul.f32 0.5, %v6520
    %v6522 = vsub.f32 1.5, %v6521
    %v6523 = vmul.f32 %v6518, %v6522
    %vm6524 = vweird.f32 %v5327
    %vm6525 = vweird.f32 %v6518
    %vm6526 = vmor %vm6524, %vm6525
    %v6527 = vsel %vm6526, %v6518, %v6523
    %v6528 = vrsqrt.pop %v5328
    %v6529 = vmul.f32 %v6528, %v5328
    %v6530 = vmul.f32 %v6529, %v6528
    %v6531 = vmul.f32 0.5, %v6530
    %v6532 = vsub.f32 1.5, %v6531
    %v6533 = vmul.f32 %v6528, %v6532
    %vm6534 = vweird.f32 %v5328
    %vm6535 = vweird.f32 %v6528
    %vm6536 = vmor %vm6534, %vm6535
    %v6537 = vsel %vm6536, %v6528, %v6533
    %v6538 = vrsqrt.pop %v5329
    %v6539 = vmul.f32 %v6538, %v5329
    %v6540 = vmul.f32 %v6539, %v6538
    %v6541 = vmul.f32 0.5, %v6540
    %v6542 = vsub.f32 1.5, %v6541
    %v6543 = vmul.f32 %v6538, %v6542
    %vm6544 = vweird.f32 %v5329
    %vm6545 = vweird.f32 %v6538
    %vm6546 = vmor %vm6544, %vm6545
    %v6547 = vsel %vm6546, %v6538, %v6543
    %v6548 = vrsqrt.pop %v5330
    %v6549 = vmul.f32 %v6548, %v5330
    %v6550 = vmul.f32 %v6549, %v6548
    %v6551 = vmul.f32 0.5, %v6550
    %v6552 = vsub.f32 1.5, %v6551
    %v6553 = vmul.f32 %v6548, %v6552
    %vm6554 = vweird.f32 %v5330
    %vm6555 = vweird.f32 %v6548
    %vm6556 = vmor %vm6554, %vm6555
    %v6557 = vsel %vm6556, %v6548, %v6553
    %v6558 = vrsqrt.pop %v5331
    %v6559 = vmul.f32 %v6558, %v5331
    %v6560 = vmul.f32 %v6559, %v6558
    %v6561 = vmul.f32 0.5, %v6560
    %v6562 = vsub.f32 1.5, %v6561
    %v6563 = vmul.f32 %v6558, %v6562
    %vm6564 = vweird.f32 %v5331
    %vm6565 = vweird.f32 %v6558
    %vm6566 = vmor %vm6564, %vm6565
    %v6567 = vsel %vm6566, %v6558, %v6563
    %v6568 = vrsqrt.pop %v5332
    %v6569 = vmul.f32 %v6568, %v5332
    %v6570 = vmul.f32 %v6569, %v6568
    %v6571 = vmul.f32 0.5, %v6570
    %v6572 = vsub.f32 1.5, %v6571
    %v6573 = vmul.f32 %v6568, %v6572
    %vm6574 = vweird.f32 %v5332
    %vm6575 = vweird.f32 %v6568
    %vm6576 = vmor %vm6574, %vm6575
    %v6577 = vsel %vm6576, %v6568, %v6573
    %v6578 = vrsqrt.pop %v5333
    %v6579 = vmul.f32 %v6578, %v5333
    %v6580 = vmul.f32 %v6579, %v6578
    %v6581 = vmul.f32 0.5, %v6580
    %v6582 = vsub.f32 1.5, %v6581
    %v6583 = vmul.f32 %v6578, %v6582
    %vm6584 = vweird.f32 %v5333
    %vm6585 = vweird.f32 %v6578
    %vm6586 = vmor %vm6584, %vm6585
    %v6587 = vsel %vm6586, %v6578, %v6583
    %v6588 = vrsqrt.pop %v5334
    %v6589 = vmul.f32 %v6588, %v5334
    %v6590 = vmul.f32 %v6589, %v6588
    %v6591 = vmul.f32 0.5, %v6590
    %v6592 = vsub.f32 1.5, %v6591
    %v6593 = vmul.f32 %v6588, %v6592
    %vm6594 = vweird.f32 %v5334
    %vm6595 = vweird.f32 %v6588
    %vm6596 = vmor %vm6594, %vm6595
    %v6597 = vsel %vm6596, %v6588, %v6593
    %v6598 = vrsqrt.pop %v5335
    %v6599 = vmul.f32 %v6598, %v5335
    %v6600 = vmul.f32 %v6599, %v6598
    %v6601 = vmul.f32 0.5, %v6600
    %v6602 = vsub.f32 1.5, %v6601
    %v6603 = vmul.f32 %v6598, %v6602
    %vm6604 = vweird.f32 %v5335
    %vm6605 = vweird.f32 %v6598
    %vm6606 = vmor %vm6604, %vm6605
    %v6607 = vsel %vm6606, %v6598, %v6603
    %v6608 = vrsqrt.pop %v5336
    %v6609 = vmul.f32 %v6608, %v5336
    %v6610 = vmul.f32 %v6609, %v6608
    %v6611 = vmul.f32 0.5, %v6610
    %v6612 = vsub.f32 1.5, %v6611
    %v6613 = vmul.f32 %v6608, %v6612
    %vm6614 = vweird.f32 %v5336
    %vm6615 = vweird.f32 %v6608
    %vm6616 = vmor %vm6614, %vm6615
    %v6617 = vsel %vm6616, %v6608, %v6613
    %v6618 = vrsqrt.pop %v5337
    %v6619 = vmul.f32 %v6618, %v5337
    %v6620 = vmul.f32 %v6619, %v6618
    %v6621 = vmul.f32 0.5, %v6620
    %v6622 = vsub.f32 1.5, %v6621
    %v6623 = vmul.f32 %v6618, %v6622
    %vm6624 = vweird.f32 %v5337
    %vm6625 = vweird.f32 %v6618
    %vm6626 = vmor %vm6624, %vm6625
    %v6627 = vsel %vm6626, %v6618, %v6623
    %v6628 = vrsqrt.pop %v5338
    %v6629 = vmul.f32 %v6628, %v5338
    %v6630 = vmul.f32 %v6629, %v6628
    %v6631 = vmul.f32 0.5, %v6630
    %v6632 = vsub.f32 1.5, %v6631
    %v6633 = vmul.f32 %v6628, %v6632
    %vm6634 = vweird.f32 %v5338
    %vm6635 = vweird.f32 %v6628
    %vm6636 = vmor %vm6634, %vm6635
    %v6637 = vsel %vm6636, %v6628, %v6633
    %v6638 = vrsqrt.pop %v5339
    %v6639 = vmul.f32 %v6638, %v5339
    %v6640 = vmul.f32 %v6639, %v6638
    %v6641 = vmul.f32 0.5, %v6640
    %v6642 = vsub.f32 1.5, %v6641
    %v6643 = vmul.f32 %v6638, %v6642
    %vm6644 = vweird.f32 %v5339
    %vm6645 = vweird.f32 %v6638
    %vm6646 = vmor %vm6644, %vm6645
    %v6647 = vsel %vm6646, %v6638, %v6643
    %v6648 = vrsqrt.pop %v5340
    %v6649 = vmul.f32 %v6648, %v5340
    %v6650 = vmul.f32 %v6649, %v6648
    %v6651 = vmul.f32 0.5, %v6650
    %v6652 = vsub.f32 1.5, %v6651
    %v6653 = vmul.f32 %v6648, %v6652
    %vm6654 = vweird.f32 %v5340
    %vm6655 = vweird.f32 %v6648
    %vm6656 = vmor %vm6654, %vm6655
    %v6657 = vsel %vm6656, %v6648, %v6653
    %v6658 = vrsqrt.pop %v5341
    %v6659 = vmul.f32 %v6658, %v5341
    %v6660 = vmul.f32 %v6659, %v6658
    %v6661 = vmul.f32 0.5, %v6660
    %v6662 = vsub.f32 1.5, %v6661
    %v6663 = vmul.f32 %v6658, %v6662
    %vm6664 = vweird.f32 %v5341
    %vm6665 = vweird.f32 %v6658
    %vm6666 = vmor %vm6664, %vm6665
    %v6667 = vsel %vm6666, %v6658, %v6663
    %v6668 = vrsqrt.pop %v5342
    %v6669 = vmul.f32 %v6668, %v5342
    %v6670 = vmul.f32 %v6669, %v6668
    %v6671 = vmul.f32 0.5, %v6670
    %v6672 = vsub.f32 1.5, %v6671
    %v6673 = vmul.f32 %v6668, %v6672
    %vm6674 = vweird.f32 %v5342
    %vm6675 = vweird.f32 %v6668
    %vm6676 = vmor %vm6674, %vm6675
    %v6677 = vsel %vm6676, %v6668, %v6673
    %v6678 = vrsqrt.pop %v5343
    %v6679 = vmul.f32 %v6678, %v5343
    %v6680 = vmul.f32 %v6679, %v6678
    %v6681 = vmul.f32 0.5, %v6680
    %v6682 = vsub.f32 1.5, %v6681
    %v6683 = vmul.f32 %v6678, %v6682
    %vm6684 = vweird.f32 %v5343
    %vm6685 = vweird.f32 %v6678
    %vm6686 = vmor %vm6684, %vm6685
    %v6687 = vsel %vm6686, %v6678, %v6683
    %v6688 = vrsqrt.pop %v5344
    %v6689 = vmul.f32 %v6688, %v5344
    %v6690 = vmul.f32 %v6689, %v6688
    %v6691 = vmul.f32 0.5, %v6690
    %v6692 = vsub.f32 1.5, %v6691
    %v6693 = vmul.f32 %v6688, %v6692
    %vm6694 = vweird.f32 %v5344
    %vm6695 = vweird.f32 %v6688
    %vm6696 = vmor %vm6694, %vm6695
    %v6697 = vsel %vm6696, %v6688, %v6693
    %v6698 = vrsqrt.pop %v5345
    %v6699 = vmul.f32 %v6698, %v5345
    %v6700 = vmul.f32 %v6699, %v6698
    %v6701 = vmul.f32 0.5, %v6700
    %v6702 = vsub.f32 1.5, %v6701
    %v6703 = vmul.f32 %v6698, %v6702
    %vm6704 = vweird.f32 %v5345
    %vm6705 = vweird.f32 %v6698
    %vm6706 = vmor %vm6704, %vm6705
    %v6707 = vsel %vm6706, %v6698, %v6703
    %v6708 = vrsqrt.pop %v5346
    %v6709 = vmul.f32 %v6708, %v5346
    %v6710 = vmul.f32 %v6709, %v6708
    %v6711 = vmul.f32 0.5, %v6710
    %v6712 = vsub.f32 1.5, %v6711
    %v6713 = vmul.f32 %v6708, %v6712
    %vm6714 = vweird.f32 %v5346
    %vm6715 = vweird.f32 %v6708
    %vm6716 = vmor %vm6714, %vm6715
    %v6717 = vsel %vm6716, %v6708, %v6713
    %v6718 = vrsqrt.pop %v5347
    %v6719 = vmul.f32 %v6718, %v5347
    %v6720 = vmul.f32 %v6719, %v6718
    %v6721 = vmul.f32 0.5, %v6720
    %v6722 = vsub.f32 1.5, %v6721
    %v6723 = vmul.f32 %v6718, %v6722
    %vm6724 = vweird.f32 %v5347
    %vm6725 = vweird.f32 %v6718
    %vm6726 = vmor %vm6724, %vm6725
    %v6727 = vsel %vm6726, %v6718, %v6723
    %v6728 = vrsqrt.pop %v5348
    %v6729 = vmul.f32 %v6728, %v5348
    %v6730 = vmul.f32 %v6729, %v6728
    %v6731 = vmul.f32 0.5, %v6730
    %v6732 = vsub.f32 1.5, %v6731
    %v6733 = vmul.f32 %v6728, %v6732
    %vm6734 = vweird.f32 %v5348
    %vm6735 = vweird.f32 %v6728
    %vm6736 = vmor %vm6734, %vm6735
    %v6737 = vsel %vm6736, %v6728, %v6733
    %v6738 = vrsqrt.pop %v5349
    %v6739 = vmul.f32 %v6738, %v5349
    %v6740 = vmul.f32 %v6739, %v6738
    %v6741 = vmul.f32 0.5, %v6740
    %v6742 = vsub.f32 1.5, %v6741
    %v6743 = vmul.f32 %v6738, %v6742
    %vm6744 = vweird.f32 %v5349
    %vm6745 = vweird.f32 %v6738
    %vm6746 = vmor %vm6744, %vm6745
    %v6747 = vsel %vm6746, %v6738, %v6743
    %v6748 = vrsqrt.pop %v5350
    %v6749 = vmul.f32 %v6748, %v5350
    %v6750 = vmul.f32 %v6749, %v6748
    %v6751 = vmul.f32 0.5, %v6750
    %v6752 = vsub.f32 1.5, %v6751
    %v6753 = vmul.f32 %v6748, %v6752
    %vm6754 = vweird.f32 %v5350
    %vm6755 = vweird.f32 %v6748
    %vm6756 = vmor %vm6754, %vm6755
    %v6757 = vsel %vm6756, %v6748, %v6753
    %v6758 = vrsqrt.pop %v5351
    %v6759 = vmul.f32 %v6758, %v5351
    %v6760 = vmul.f32 %v6759, %v6758
    %v6761 = vmul.f32 0.5, %v6760
    %v6762 = vsub.f32 1.5, %v6761
    %v6763 = vmul.f32 %v6758, %v6762
    %vm6764 = vweird.f32 %v5351
    %vm6765 = vweird.f32 %v6758
    %vm6766 = vmor %vm6764, %vm6765
    %v6767 = vsel %vm6766, %v6758, %v6763
    %v6768 = vrsqrt.pop %v5352
    %v6769 = vmul.f32 %v6768, %v5352
    %v6770 = vmul.f32 %v6769, %v6768
    %v6771 = vmul.f32 0.5, %v6770
    %v6772 = vsub.f32 1.5, %v6771
    %v6773 = vmul.f32 %v6768, %v6772
    %vm6774 = vweird.f32 %v5352
    %vm6775 = vweird.f32 %v6768
    %vm6776 = vmor %vm6774, %vm6775
    %v6777 = vsel %vm6776, %v6768, %v6773
    %v6778 = vrsqrt.pop %v5353
    %v6779 = vmul.f32 %v6778, %v5353
    %v6780 = vmul.f32 %v6779, %v6778
    %v6781 = vmul.f32 0.5, %v6780
    %v6782 = vsub.f32 1.5, %v6781
    %v6783 = vmul.f32 %v6778, %v6782
    %vm6784 = vweird.f32 %v5353
    %vm6785 = vweird.f32 %v6778
    %vm6786 = vmor %vm6784, %vm6785
    %v6787 = vsel %vm6786, %v6778, %v6783
    %v6788 = vrsqrt.pop %v5354
    %v6789 = vmul.f32 %v6788, %v5354
    %v6790 = vmul.f32 %v6789, %v6788
    %v6791 = vmul.f32 0.5, %v6790
    %v6792 = vsub.f32 1.5, %v6791
    %v6793 = vmul.f32 %v6788, %v6792
    %vm6794 = vweird.f32 %v5354
    %vm6795 = vweird.f32 %v6788
    %vm6796 = vmor %vm6794, %vm6795
    %v6797 = vsel %vm6796, %v6788, %v6793
    %v6798 = vrsqrt.pop %v5355
    %v6799 = vmul.f32 %v6798, %v5355
    %v6800 = vmul.f32 %v6799, %v6798
    %v6801 = vmul.f32 0.5, %v6800
    %v6802 = vsub.f32 1.5, %v6801
    %v6803 = vmul.f32 %v6798, %v6802
    %vm6804 = vweird.f32 %v5355
    %vm6805 = vweird.f32 %v6798
    %vm6806 = vmor %vm6804, %vm6805
    %v6807 = vsel %vm6806, %v6798, %v6803
    %v6808 = vrsqrt.pop %v5356
    %v6809 = vmul.f32 %v6808, %v5356
    %v6810 = vmul.f32 %v6809, %v6808
    %v6811 = vmul.f32 0.5, %v6810
    %v6812 = vsub.f32 1.5, %v6811
    %v6813 = vmul.f32 %v6808, %v6812
    %vm6814 = vweird.f32 %v5356
    %vm6815 = vweird.f32 %v6808
    %vm6816 = vmor %vm6814, %vm6815
    %v6817 = vsel %vm6816, %v6808, %v6813
    %v6818 = vrsqrt.pop %v5357
    %v6819 = vmul.f32 %v6818, %v5357
    %v6820 = vmul.f32 %v6819, %v6818
    %v6821 = vmul.f32 0.5, %v6820
    %v6822 = vsub.f32 1.5, %v6821
    %v6823 = vmul.f32 %v6818, %v6822
    %vm6824 = vweird.f32 %v5357
    %vm6825 = vweird.f32 %v6818
    %vm6826 = vmor %vm6824, %vm6825
    %v6827 = vsel %vm6826, %v6818, %v6823
    %v6828 = vrsqrt.pop %v5358
    %v6829 = vmul.f32 %v6828, %v5358
    %v6830 = vmul.f32 %v6829, %v6828
    %v6831 = vmul.f32 0.5, %v6830
    %v6832 = vsub.f32 1.5, %v6831
    %v6833 = vmul.f32 %v6828, %v6832
    %vm6834 = vweird.f32 %v5358
    %vm6835 = vweird.f32 %v6828
    %vm6836 = vmor %vm6834, %vm6835
    %v6837 = vsel %vm6836, %v6828, %v6833
    %v6838 = vrsqrt.pop %v5359
    %v6839 = vmul.f32 %v6838, %v5359
    %v6840 = vmul.f32 %v6839, %v6838
    %v6841 = vmul.f32 0.5, %v6840
    %v6842 = vsub.f32 1.5, %v6841
    %v6843 = vmul.f32 %v6838, %v6842
    %vm6844 = vweird.f32 %v5359
    %vm6845 = vweird.f32 %v6838
    %vm6846 = vmor %vm6844, %vm6845
    %v6847 = vsel %vm6846, %v6838, %v6843
    %v6848 = vrsqrt.pop %v5360
    %v6849 = vmul.f32 %v6848, %v5360
    %v6850 = vmul.f32 %v6849, %v6848
    %v6851 = vmul.f32 0.5, %v6850
    %v6852 = vsub.f32 1.5, %v6851
    %v6853 = vmul.f32 %v6848, %v6852
    %vm6854 = vweird.f32 %v5360
    %vm6855 = vweird.f32 %v6848
    %vm6856 = vmor %vm6854, %vm6855
    %v6857 = vsel %vm6856, %v6848, %v6853
    %v6858 = vrsqrt.pop %v5361
    %v6859 = vmul.f32 %v6858, %v5361
    %v6860 = vmul.f32 %v6859, %v6858
    %v6861 = vmul.f32 0.5, %v6860
    %v6862 = vsub.f32 1.5, %v6861
    %v6863 = vmul.f32 %v6858, %v6862
    %vm6864 = vweird.f32 %v5361
    %vm6865 = vweird.f32 %v6858
    %vm6866 = vmor %vm6864, %vm6865
    %v6867 = vsel %vm6866, %v6858, %v6863
    %v6868 = vrsqrt.pop %v5362
    %v6869 = vmul.f32 %v6868, %v5362
    %v6870 = vmul.f32 %v6869, %v6868
    %v6871 = vmul.f32 0.5, %v6870
    %v6872 = vsub.f32 1.5, %v6871
    %v6873 = vmul.f32 %v6868, %v6872
    %vm6874 = vweird.f32 %v5362
    %vm6875 = vweird.f32 %v6868
    %vm6876 = vmor %vm6874, %vm6875
    %v6877 = vsel %vm6876, %v6868, %v6873
    %v6878 = vrsqrt.pop %v5363
    %v6879 = vmul.f32 %v6878, %v5363
    %v6880 = vmul.f32 %v6879, %v6878
    %v6881 = vmul.f32 0.5, %v6880
    %v6882 = vsub.f32 1.5, %v6881
    %v6883 = vmul.f32 %v6878, %v6882
    %vm6884 = vweird.f32 %v5363
    %vm6885 = vweird.f32 %v6878
    %vm6886 = vmor %vm6884, %vm6885
    %v6887 = vsel %vm6886, %v6878, %v6883
    %v6888 = vrsqrt.pop %v5364
    %v6889 = vmul.f32 %v6888, %v5364
    %v6890 = vmul.f32 %v6889, %v6888
    %v6891 = vmul.f32 0.5, %v6890
    %v6892 = vsub.f32 1.5, %v6891
    %v6893 = vmul.f32 %v6888, %v6892
    %vm6894 = vweird.f32 %v5364
    %vm6895 = vweird.f32 %v6888
    %vm6896 = vmor %vm6894, %vm6895
    %v6897 = vsel %vm6896, %v6888, %v6893
    %v6898 = vrsqrt.pop %v5365
    %v6899 = vmul.f32 %v6898, %v5365
    %v6900 = vmul.f32 %v6899, %v6898
    %v6901 = vmul.f32 0.5, %v6900
    %v6902 = vsub.f32 1.5, %v6901
    %v6903 = vmul.f32 %v6898, %v6902
    %vm6904 = vweird.f32 %v5365
    %vm6905 = vweird.f32 %v6898
    %vm6906 = vmor %vm6904, %vm6905
    %v6907 = vsel %vm6906, %v6898, %v6903
    %v6908 = vrsqrt.pop %v5366
    %v6909 = vmul.f32 %v6908, %v5366
    %v6910 = vmul.f32 %v6909, %v6908
    %v6911 = vmul.f32 0.5, %v6910
    %v6912 = vsub.f32 1.5, %v6911
    %v6913 = vmul.f32 %v6908, %v6912
    %vm6914 = vweird.f32 %v5366
    %vm6915 = vweird.f32 %v6908
    %vm6916 = vmor %vm6914, %vm6915
    %v6917 = vsel %vm6916, %v6908, %v6913
    %v6918 = vrsqrt.pop %v5367
    %v6919 = vmul.f32 %v6918, %v5367
    %v6920 = vmul.f32 %v6919, %v6918
    %v6921 = vmul.f32 0.5, %v6920
    %v6922 = vsub.f32 1.5, %v6921
    %v6923 = vmul.f32 %v6918, %v6922
    %vm6924 = vweird.f32 %v5367
    %vm6925 = vweird.f32 %v6918
    %vm6926 = vmor %vm6924, %vm6925
    %v6927 = vsel %vm6926, %v6918, %v6923
    %v6928 = vrsqrt.pop %v5368
    %v6929 = vmul.f32 %v6928, %v5368
    %v6930 = vmul.f32 %v6929, %v6928
    %v6931 = vmul.f32 0.5, %v6930
    %v6932 = vsub.f32 1.5, %v6931
    %v6933 = vmul.f32 %v6928, %v6932
    %vm6934 = vweird.f32 %v5368
    %vm6935 = vweird.f32 %v6928
    %vm6936 = vmor %vm6934, %vm6935
    %v6937 = vsel %vm6936, %v6928, %v6933
    %v6938 = vrsqrt.pop %v5369
    %v6939 = vmul.f32 %v6938, %v5369
    %v6940 = vmul.f32 %v6939, %v6938
    %v6941 = vmul.f32 0.5, %v6940
    %v6942 = vsub.f32 1.5, %v6941
    %v6943 = vmul.f32 %v6938, %v6942
    %vm6944 = vweird.f32 %v5369
    %vm6945 = vweird.f32 %v6938
    %vm6946 = vmor %vm6944, %vm6945
    %v6947 = vsel %vm6946, %v6938, %v6943
    %v6948 = vrsqrt.pop %v5370
    %v6949 = vmul.f32 %v6948, %v5370
    %v6950 = vmul.f32 %v6949, %v6948
    %v6951 = vmul.f32 0.5, %v6950
    %v6952 = vsub.f32 1.5, %v6951
    %v6953 = vmul.f32 %v6948, %v6952
    %vm6954 = vweird.f32 %v5370
    %vm6955 = vweird.f32 %v6948
    %vm6956 = vmor %vm6954, %vm6955
    %v6957 = vsel %vm6956, %v6948, %v6953
    %v6958 = vrsqrt.pop %v5371
    %v6959 = vmul.f32 %v6958, %v5371
    %v6960 = vmul.f32 %v6959, %v6958
    %v6961 = vmul.f32 0.5, %v6960
    %v6962 = vsub.f32 1.5, %v6961
    %v6963 = vmul.f32 %v6958, %v6962
    %vm6964 = vweird.f32 %v5371
    %vm6965 = vweird.f32 %v6958
    %vm6966 = vmor %vm6964, %vm6965
    %v6967 = vsel %vm6966, %v6958, %v6963
    %v6968 = vrsqrt.pop %v5372
    %v6969 = vmul.f32 %v6968, %v5372
    %v6970 = vmul.f32 %v6969, %v6968
    %v6971 = vmul.f32 0.5, %v6970
    %v6972 = vsub.f32 1.5, %v6971
    %v6973 = vmul.f32 %v6968, %v6972
    %vm6974 = vweird.f32 %v5372
    %vm6975 = vweird.f32 %v6968
    %vm6976 = vmor %vm6974, %vm6975
    %v6977 = vsel %vm6976, %v6968, %v6973
    %v6978 = vrsqrt.pop %v5373
    %v6979 = vmul.f32 %v6978, %v5373
    %v6980 = vmul.f32 %v6979, %v6978
    %v6981 = vmul.f32 0.5, %v6980
    %v6982 = vsub.f32 1.5, %v6981
    %v6983 = vmul.f32 %v6978, %v6982
    %vm6984 = vweird.f32 %v5373
    %vm6985 = vweird.f32 %v6978
    %vm6986 = vmor %vm6984, %vm6985
    %v6987 = vsel %vm6986, %v6978, %v6983
    %v6988 = vrsqrt.pop %v5374
    %v6989 = vmul.f32 %v6988, %v5374
    %v6990 = vmul.f32 %v6989, %v6988
    %v6991 = vmul.f32 0.5, %v6990
    %v6992 = vsub.f32 1.5, %v6991
    %v6993 = vmul.f32 %v6988, %v6992
    %vm6994 = vweird.f32 %v5374
    %vm6995 = vweird.f32 %v6988
    %vm6996 = vmor %vm6994, %vm6995
    %v6997 = vsel %vm6996, %v6988, %v6993
    %v6998 = vrsqrt.pop %v5375
    %v6999 = vmul.f32 %v6998, %v5375
    %v7000 = vmul.f32 %v6999, %v6998
    %v7001 = vmul.f32 0.5, %v7000
    %v7002 = vsub.f32 1.5, %v7001
    %v7003 = vmul.f32 %v6998, %v7002
    %vm7004 = vweird.f32 %v5375
    %vm7005 = vweird.f32 %v6998
    %vm7006 = vmor %vm7004, %vm7005
    %v7007 = vsel %vm7006, %v6998, %v7003
    %v7008 = vrsqrt.pop %v5376
    %v7009 = vmul.f32 %v7008, %v5376
    %v7010 = vmul.f32 %v7009, %v7008
    %v7011 = vmul.f32 0.5, %v7010
    %v7012 = vsub.f32 1.5, %v7011
    %v7013 = vmul.f32 %v7008, %v7012
    %vm7014 = vweird.f32 %v5376
    %vm7015 = vweird.f32 %v7008
    %vm7016 = vmor %vm7014, %vm7015
    %v7017 = vsel %vm7016, %v7008, %v7013
    %v7018 = vrsqrt.pop %v5377
    %v7019 = vmul.f32 %v7018, %v5377
    %v7020 = vmul.f32 %v7019, %v7018
    %v7021 = vmul.f32 0.5, %v7020
    %v7022 = vsub.f32 1.5, %v7021
    %v7023 = vmul.f32 %v7018, %v7022
    %vm7024 = vweird.f32 %v5377
    %vm7025 = vweird.f32 %v7018
    %vm7026 = vmor %vm7024, %vm7025
    %v7027 = vsel %vm7026, %v7018, %v7023
    %v7028 = vrsqrt.pop %v5378
    %v7029 = vmul.f32 %v7028, %v5378
    %v7030 = vmul.f32 %v7029, %v7028
    %v7031 = vmul.f32 0.5, %v7030
    %v7032 = vsub.f32 1.5, %v7031
    %v7033 = vmul.f32 %v7028, %v7032
    %vm7034 = vweird.f32 %v5378
    %vm7035 = vweird.f32 %v7028
    %vm7036 = vmor %vm7034, %vm7035
    %v7037 = vsel %vm7036, %v7028, %v7033
    %v7038 = vrsqrt.pop %v5379
    %v7039 = vmul.f32 %v7038, %v5379
    %v7040 = vmul.f32 %v7039, %v7038
    %v7041 = vmul.f32 0.5, %v7040
    %v7042 = vsub.f32 1.5, %v7041
    %v7043 = vmul.f32 %v7038, %v7042
    %vm7044 = vweird.f32 %v5379
    %vm7045 = vweird.f32 %v7038
    %vm7046 = vmor %vm7044, %vm7045
    %v7047 = vsel %vm7046, %v7038, %v7043
    %v7048 = vrsqrt.pop %v5380
    %v7049 = vmul.f32 %v7048, %v5380
    %v7050 = vmul.f32 %v7049, %v7048
    %v7051 = vmul.f32 0.5, %v7050
    %v7052 = vsub.f32 1.5, %v7051
    %v7053 = vmul.f32 %v7048, %v7052
    %vm7054 = vweird.f32 %v5380
    %vm7055 = vweird.f32 %v7048
    %vm7056 = vmor %vm7054, %vm7055
    %v7057 = vsel %vm7056, %v7048, %v7053
    %v7058 = vrsqrt.pop %v5381
    %v7059 = vmul.f32 %v7058, %v5381
    %v7060 = vmul.f32 %v7059, %v7058
    %v7061 = vmul.f32 0.5, %v7060
    %v7062 = vsub.f32 1.5, %v7061
    %v7063 = vmul.f32 %v7058, %v7062
    %vm7064 = vweird.f32 %v5381
    %vm7065 = vweird.f32 %v7058
    %vm7066 = vmor %vm7064, %vm7065
    %v7067 = vsel %vm7066, %v7058, %v7063
    %v7068 = vrsqrt.pop %v5382
    %v7069 = vmul.f32 %v7068, %v5382
    %v7070 = vmul.f32 %v7069, %v7068
    %v7071 = vmul.f32 0.5, %v7070
    %v7072 = vsub.f32 1.5, %v7071
    %v7073 = vmul.f32 %v7068, %v7072
    %vm7074 = vweird.f32 %v5382
    %vm7075 = vweird.f32 %v7068
    %vm7076 = vmor %vm7074, %vm7075
    %v7077 = vsel %vm7076, %v7068, %v7073
    %v7078 = vrsqrt.pop %v5383
    %v7079 = vmul.f32 %v7078, %v5383
    %v7080 = vmul.f32 %v7079, %v7078
    %v7081 = vmul.f32 0.5, %v7080
    %v7082 = vsub.f32 1.5, %v7081
    %v7083 = vmul.f32 %v7078, %v7082
    %vm7084 = vweird.f32 %v5383
    %vm7085 = vweird.f32 %v7078
    %vm7086 = vmor %vm7084, %vm7085
    %v7087 = vsel %vm7086, %v7078, %v7083
    %v7088 = vrsqrt.pop %v5384
    %v7089 = vmul.f32 %v7088, %v5384
    %v7090 = vmul.f32 %v7089, %v7088
    %v7091 = vmul.f32 0.5, %v7090
    %v7092 = vsub.f32 1.5, %v7091
    %v7093 = vmul.f32 %v7088, %v7092
    %vm7094 = vweird.f32 %v5384
    %vm7095 = vweird.f32 %v7088
    %vm7096 = vmor %vm7094, %vm7095
    %v7097 = vsel %vm7096, %v7088, %v7093
    %v7098 = vrsqrt.pop %v5385
    %v7099 = vmul.f32 %v7098, %v5385
    %v7100 = vmul.f32 %v7099, %v7098
    %v7101 = vmul.f32 0.5, %v7100
    %v7102 = vsub.f32 1.5, %v7101
    %v7103 = vmul.f32 %v7098, %v7102
    %vm7104 = vweird.f32 %v5385
    %vm7105 = vweird.f32 %v7098
    %vm7106 = vmor %vm7104, %vm7105
    %v7107 = vsel %vm7106, %v7098, %v7103
    %v7108 = vrsqrt.pop %v5386
    %v7109 = vmul.f32 %v7108, %v5386
    %v7110 = vmul.f32 %v7109, %v7108
    %v7111 = vmul.f32 0.5, %v7110
    %v7112 = vsub.f32 1.5, %v7111
    %v7113 = vmul.f32 %v7108, %v7112
    %vm7114 = vweird.f32 %v5386
    %vm7115 = vweird.f32 %v7108
    %vm7116 = vmor %vm7114, %vm7115
    %v7117 = vsel %vm7116, %v7108, %v7113
    %v7118 = vrsqrt.pop %v5387
    %v7119 = vmul.f32 %v7118, %v5387
    %v7120 = vmul.f32 %v7119, %v7118
    %v7121 = vmul.f32 0.5, %v7120
    %v7122 = vsub.f32 1.5, %v7121
    %v7123 = vmul.f32 %v7118, %v7122
    %vm7124 = vweird.f32 %v5387
    %vm7125 = vweird.f32 %v7118
    %vm7126 = vmor %vm7124, %vm7125
    %v7127 = vsel %vm7126, %v7118, %v7123
    %v7128 = vrsqrt.pop %v5388
    %v7129 = vmul.f32 %v7128, %v5388
    %v7130 = vmul.f32 %v7129, %v7128
    %v7131 = vmul.f32 0.5, %v7130
    %v7132 = vsub.f32 1.5, %v7131
    %v7133 = vmul.f32 %v7128, %v7132
    %vm7134 = vweird.f32 %v5388
    %vm7135 = vweird.f32 %v7128
    %vm7136 = vmor %vm7134, %vm7135
    %v7137 = vsel %vm7136, %v7128, %v7133
    %v7138 = vrsqrt.pop %v5389
    %v7139 = vmul.f32 %v7138, %v5389
    %v7140 = vmul.f32 %v7139, %v7138
    %v7141 = vmul.f32 0.5, %v7140
    %v7142 = vsub.f32 1.5, %v7141
    %v7143 = vmul.f32 %v7138, %v7142
    %vm7144 = vweird.f32 %v5389
    %vm7145 = vweird.f32 %v7138
    %vm7146 = vmor %vm7144, %vm7145
    %v7147 = vsel %vm7146, %v7138, %v7143
    %v7148 = vrsqrt.pop %v5390
    %v7149 = vmul.f32 %v7148, %v5390
    %v7150 = vmul.f32 %v7149, %v7148
    %v7151 = vmul.f32 0.5, %v7150
    %v7152 = vsub.f32 1.5, %v7151
    %v7153 = vmul.f32 %v7148, %v7152
    %vm7154 = vweird.f32 %v5390
    %vm7155 = vweird.f32 %v7148
    %vm7156 = vmor %vm7154, %vm7155
    %v7157 = vsel %vm7156, %v7148, %v7153
    %v7158 = vrsqrt.pop %v5391
    %v7159 = vmul.f32 %v7158, %v5391
    %v7160 = vmul.f32 %v7159, %v7158
    %v7161 = vmul.f32 0.5, %v7160
    %v7162 = vsub.f32 1.5, %v7161
    %v7163 = vmul.f32 %v7158, %v7162
    %vm7164 = vweird.f32 %v5391
    %vm7165 = vweird.f32 %v7158
    %vm7166 = vmor %vm7164, %vm7165
    %v7167 = vsel %vm7166, %v7158, %v7163
    %v7168 = vrsqrt.pop %v5392
    %v7169 = vmul.f32 %v7168, %v5392
    %v7170 = vmul.f32 %v7169, %v7168
    %v7171 = vmul.f32 0.5, %v7170
    %v7172 = vsub.f32 1.5, %v7171
    %v7173 = vmul.f32 %v7168, %v7172
    %vm7174 = vweird.f32 %v5392
    %vm7175 = vweird.f32 %v7168
    %vm7176 = vmor %vm7174, %vm7175
    %v7177 = vsel %vm7176, %v7168, %v7173
    %v7178 = vrsqrt.pop %v5393
    %v7179 = vmul.f32 %v7178, %v5393
    %v7180 = vmul.f32 %v7179, %v7178
    %v7181 = vmul.f32 0.5, %v7180
    %v7182 = vsub.f32 1.5, %v7181
    %v7183 = vmul.f32 %v7178, %v7182
    %vm7184 = vweird.f32 %v5393
    %vm7185 = vweird.f32 %v7178
    %vm7186 = vmor %vm7184, %vm7185
    %v7187 = vsel %vm7186, %v7178, %v7183
    %v7188 = vrsqrt.pop %v5394
    %v7189 = vmul.f32 %v7188, %v5394
    %v7190 = vmul.f32 %v7189, %v7188
    %v7191 = vmul.f32 0.5, %v7190
    %v7192 = vsub.f32 1.5, %v7191
    %v7193 = vmul.f32 %v7188, %v7192
    %vm7194 = vweird.f32 %v5394
    %vm7195 = vweird.f32 %v7188
    %vm7196 = vmor %vm7194, %vm7195
    %v7197 = vsel %vm7196, %v7188, %v7193
    %v7198 = vrsqrt.pop %v5395
    %v7199 = vmul.f32 %v7198, %v5395
    %v7200 = vmul.f32 %v7199, %v7198
    %v7201 = vmul.f32 0.5, %v7200
    %v7202 = vsub.f32 1.5, %v7201
    %v7203 = vmul.f32 %v7198, %v7202
    %vm7204 = vweird.f32 %v5395
    %vm7205 = vweird.f32 %v7198
    %vm7206 = vmor %vm7204, %vm7205
    %v7207 = vsel %vm7206, %v7198, %v7203
    %v7208 = vrsqrt.pop %v5396
    %v7209 = vmul.f32 %v7208, %v5396
    %v7210 = vmul.f32 %v7209, %v7208
    %v7211 = vmul.f32 0.5, %v7210
    %v7212 = vsub.f32 1.5, %v7211
    %v7213 = vmul.f32 %v7208, %v7212
    %vm7214 = vweird.f32 %v5396
    %vm7215 = vweird.f32 %v7208
    %vm7216 = vmor %vm7214, %vm7215
    %v7217 = vsel %vm7216, %v7208, %v7213
    %v7218 = vrsqrt.pop %v5397
    %v7219 = vmul.f32 %v7218, %v5397
    %v7220 = vmul.f32 %v7219, %v7218
    %v7221 = vmul.f32 0.5, %v7220
    %v7222 = vsub.f32 1.5, %v7221
    %v7223 = vmul.f32 %v7218, %v7222
    %vm7224 = vweird.f32 %v5397
    %vm7225 = vweird.f32 %v7218
    %vm7226 = vmor %vm7224, %vm7225
    %v7227 = vsel %vm7226, %v7218, %v7223
    %v7228 = vrsqrt.pop %v5398
    %v7229 = vmul.f32 %v7228, %v5398
    %v7230 = vmul.f32 %v7229, %v7228
    %v7231 = vmul.f32 0.5, %v7230
    %v7232 = vsub.f32 1.5, %v7231
    %v7233 = vmul.f32 %v7228, %v7232
    %vm7234 = vweird.f32 %v5398
    %vm7235 = vweird.f32 %v7228
    %vm7236 = vmor %vm7234, %vm7235
    %v7237 = vsel %vm7236, %v7228, %v7233
    %v7238 = vrsqrt.pop %v5399
    %v7239 = vmul.f32 %v7238, %v5399
    %v7240 = vmul.f32 %v7239, %v7238
    %v7241 = vmul.f32 0.5, %v7240
    %v7242 = vsub.f32 1.5, %v7241
    %v7243 = vmul.f32 %v7238, %v7242
    %vm7244 = vweird.f32 %v5399
    %vm7245 = vweird.f32 %v7238
    %vm7246 = vmor %vm7244, %vm7245
    %v7247 = vsel %vm7246, %v7238, %v7243
    %v7248 = vrsqrt.pop %v5400
    %v7249 = vmul.f32 %v7248, %v5400
    %v7250 = vmul.f32 %v7249, %v7248
    %v7251 = vmul.f32 0.5, %v7250
    %v7252 = vsub.f32 1.5, %v7251
    %v7253 = vmul.f32 %v7248, %v7252
    %vm7254 = vweird.f32 %v5400
    %vm7255 = vweird.f32 %v7248
    %vm7256 = vmor %vm7254, %vm7255
    %v7257 = vsel %vm7256, %v7248, %v7253
    %v7258 = vrsqrt.pop %v5401
    %v7259 = vmul.f32 %v7258, %v5401
    %v7260 = vmul.f32 %v7259, %v7258
    %v7261 = vmul.f32 0.5, %v7260
    %v7262 = vsub.f32 1.5, %v7261
    %v7263 = vmul.f32 %v7258, %v7262
    %vm7264 = vweird.f32 %v5401
    %vm7265 = vweird.f32 %v7258
    %vm7266 = vmor %vm7264, %vm7265
    %v7267 = vsel %vm7266, %v7258, %v7263
    %v7268 = vrsqrt.pop %v5402
    %v7269 = vmul.f32 %v7268, %v5402
    %v7270 = vmul.f32 %v7269, %v7268
    %v7271 = vmul.f32 0.5, %v7270
    %v7272 = vsub.f32 1.5, %v7271
    %v7273 = vmul.f32 %v7268, %v7272
    %vm7274 = vweird.f32 %v5402
    %vm7275 = vweird.f32 %v7268
    %vm7276 = vmor %vm7274, %vm7275
    %v7277 = vsel %vm7276, %v7268, %v7273
    %v7278 = vrsqrt.pop %v5403
    %v7279 = vmul.f32 %v7278, %v5403
    %v7280 = vmul.f32 %v7279, %v7278
    %v7281 = vmul.f32 0.5, %v7280
    %v7282 = vsub.f32 1.5, %v7281
    %v7283 = vmul.f32 %v7278, %v7282
    %vm7284 = vweird.f32 %v5403
    %vm7285 = vweird.f32 %v7278
    %vm7286 = vmor %vm7284, %vm7285
    %v7287 = vsel %vm7286, %v7278, %v7283
    %v7288 = vrsqrt.pop %v5404
    %v7289 = vmul.f32 %v7288, %v5404
    %v7290 = vmul.f32 %v7289, %v7288
    %v7291 = vmul.f32 0.5, %v7290
    %v7292 = vsub.f32 1.5, %v7291
    %v7293 = vmul.f32 %v7288, %v7292
    %vm7294 = vweird.f32 %v5404
    %vm7295 = vweird.f32 %v7288
    %vm7296 = vmor %vm7294, %vm7295
    %v7297 = vsel %vm7296, %v7288, %v7293
    %v7298 = vrsqrt.pop %v5405
    %v7299 = vmul.f32 %v7298, %v5405
    %v7300 = vmul.f32 %v7299, %v7298
    %v7301 = vmul.f32 0.5, %v7300
    %v7302 = vsub.f32 1.5, %v7301
    %v7303 = vmul.f32 %v7298, %v7302
    %vm7304 = vweird.f32 %v5405
    %vm7305 = vweird.f32 %v7298
    %vm7306 = vmor %vm7304, %vm7305
    %v7307 = vsel %vm7306, %v7298, %v7303
    %v7308 = vrsqrt.pop %v5406
    %v7309 = vmul.f32 %v7308, %v5406
    %v7310 = vmul.f32 %v7309, %v7308
    %v7311 = vmul.f32 0.5, %v7310
    %v7312 = vsub.f32 1.5, %v7311
    %v7313 = vmul.f32 %v7308, %v7312
    %vm7314 = vweird.f32 %v5406
    %vm7315 = vweird.f32 %v7308
    %vm7316 = vmor %vm7314, %vm7315
    %v7317 = vsel %vm7316, %v7308, %v7313
    %v7318 = vrsqrt.pop %v5407
    %v7319 = vmul.f32 %v7318, %v5407
    %v7320 = vmul.f32 %v7319, %v7318
    %v7321 = vmul.f32 0.5, %v7320
    %v7322 = vsub.f32 1.5, %v7321
    %v7323 = vmul.f32 %v7318, %v7322
    %vm7324 = vweird.f32 %v5407
    %vm7325 = vweird.f32 %v7318
    %vm7326 = vmor %vm7324, %vm7325
    %v7327 = vsel %vm7326, %v7318, %v7323
    %v7328 = vld [vmem:[%s1] sm:$0xf]
    %v7329 = vld [vmem:[%s1 + $0x4] sm:$0xf]
    %v7330 = vld [vmem:[%s1 + $0x8] sm:$0xf]
    %v7331 = vld [vmem:[%s1 + $0xc] sm:$0xf]
    %v7332 = vld [vmem:[%s1 + $0x10] sm:$0xf]
    %v7333 = vld [vmem:[%s1 + $0x14] sm:$0xf]
    %v7334 = vld [vmem:[%s1 + $0x18] sm:$0xf]
    %v7335 = vld [vmem:[%s1 + $0x1c] sm:$0xf]
    %v7336 = vld [vmem:[%s1 + $0x20] sm:$0xf]
    %v7337 = vld [vmem:[%s1 + $0x24] sm:$0xf]
    %v7338 = vld [vmem:[%s1 + $0x28] sm:$0xf]
    %v7339 = vld [vmem:[%s1 + $0x2c] sm:$0xf]
    %v7340 = vld [vmem:[%s1 + $0x30] sm:$0xf]
    %v7341 = vld [vmem:[%s1 + $0x34] sm:$0xf]
    %v7342 = vld [vmem:[%s1 + $0x38] sm:$0xf]
    %v7343 = vld [vmem:[%s1 + $0x3c] sm:$0xf]
    %v7344 = vld [vmem:[%s1 + $0x40] sm:$0xf]
    %v7345 = vld [vmem:[%s1 + $0x44] sm:$0xf]
    %v7346 = vld [vmem:[%s1 + $0x48] sm:$0xf]
    %v7347 = vld [vmem:[%s1 + $0x4c] sm:$0xf]
    %v7348 = vld [vmem:[%s1 + $0x50] sm:$0xf]
    %v7349 = vld [vmem:[%s1 + $0x54] sm:$0xf]
    %v7350 = vld [vmem:[%s1 + $0x58] sm:$0xf]
    %v7351 = vld [vmem:[%s1 + $0x5c] sm:$0xf]
    %v7352 = vld [vmem:[%s1 + $0x60] sm:$0xf]
    %v7353 = vld [vmem:[%s1 + $0x64] sm:$0xf]
    %v7354 = vld [vmem:[%s1 + $0x68] sm:$0xf]
    %v7355 = vld [vmem:[%s1 + $0x6c] sm:$0xf]
    %v7356 = vld [vmem:[%s1 + $0x70] sm:$0xf]
    %v7357 = vld [vmem:[%s1 + $0x74] sm:$0xf]
    %v7358 = vld [vmem:[%s1 + $0x78] sm:$0xf]
    %v7359 = vld [vmem:[%s1 + $0x7c] sm:$0xf]
    %v7360 = vld [vmem:[%s2] sm:$0xf]
    %v7361 = vld [vmem:[%s2 + $0x4] sm:$0xf]
    %v7362 = vld [vmem:[%s2 + $0x8] sm:$0xf]
    %v7363 = vld [vmem:[%s2 + $0xc] sm:$0xf]
    %v7364 = vld [vmem:[%s2 + $0x10] sm:$0xf]
    %v7365 = vld [vmem:[%s2 + $0x14] sm:$0xf]
    %v7366 = vld [vmem:[%s2 + $0x18] sm:$0xf]
    %v7367 = vld [vmem:[%s2 + $0x1c] sm:$0xf]
    %v7368 = vld [vmem:[%s2 + $0x20] sm:$0xf]
    %v7369 = vld [vmem:[%s2 + $0x24] sm:$0xf]
    %v7370 = vld [vmem:[%s2 + $0x28] sm:$0xf]
    %v7371 = vld [vmem:[%s2 + $0x2c] sm:$0xf]
    %v7372 = vld [vmem:[%s2 + $0x30] sm:$0xf]
    %v7373 = vld [vmem:[%s2 + $0x34] sm:$0xf]
    %v7374 = vld [vmem:[%s2 + $0x38] sm:$0xf]
    %v7375 = vld [vmem:[%s2 + $0x3c] sm:$0xf]
    %v7376 = vld [vmem:[%s2 + $0x40] sm:$0xf]
    %v7377 = vld [vmem:[%s2 + $0x44] sm:$0xf]
    %v7378 = vld [vmem:[%s2 + $0x48] sm:$0xf]
    %v7379 = vld [vmem:[%s2 + $0x4c] sm:$0xf]
    %v7380 = vld [vmem:[%s2 + $0x50] sm:$0xf]
    %v7381 = vld [vmem:[%s2 + $0x54] sm:$0xf]
    %v7382 = vld [vmem:[%s2 + $0x58] sm:$0xf]
    %v7383 = vld [vmem:[%s2 + $0x5c] sm:$0xf]
    %v7384 = vld [vmem:[%s2 + $0x60] sm:$0xf]
    %v7385 = vld [vmem:[%s2 + $0x64] sm:$0xf]
    %v7386 = vld [vmem:[%s2 + $0x68] sm:$0xf]
    %v7387 = vld [vmem:[%s2 + $0x6c] sm:$0xf]
    %v7388 = vld [vmem:[%s2 + $0x70] sm:$0xf]
    %v7389 = vld [vmem:[%s2 + $0x74] sm:$0xf]
    %v7390 = vld [vmem:[%s2 + $0x78] sm:$0xf]
    %v7391 = vld [vmem:[%s2 + $0x7c] sm:$0xf]
    %v7392 = vmul.f32 %v5417, %v7328
    %v7393 = vmul.f32 %v5427, %v7329
    %v7394 = vmul.f32 %v5437, %v7330
    %v7395 = vmul.f32 %v5447, %v7331
    %v7396 = vmul.f32 %v5457, %v7332
    %v7397 = vmul.f32 %v5467, %v7333
    %v7398 = vmul.f32 %v5477, %v7334
    %v7399 = vmul.f32 %v5487, %v7335
    %v7400 = vmul.f32 %v5497, %v7336
    %v7401 = vmul.f32 %v5507, %v7337
    %v7402 = vmul.f32 %v5517, %v7338
    %v7403 = vmul.f32 %v5527, %v7339
    %v7404 = vmul.f32 %v5537, %v7340
    %v7405 = vmul.f32 %v5547, %v7341
    %v7406 = vmul.f32 %v5557, %v7342
    %v7407 = vmul.f32 %v5567, %v7343
    %v7408 = vmul.f32 %v5577, %v7344
    %v7409 = vmul.f32 %v5587, %v7345
    %v7410 = vmul.f32 %v5597, %v7346
    %v7411 = vmul.f32 %v5607, %v7347
    %v7412 = vmul.f32 %v5617, %v7348
    %v7413 = vmul.f32 %v5627, %v7349
    %v7414 = vmul.f32 %v5637, %v7350
    %v7415 = vmul.f32 %v5647, %v7351
    %v7416 = vmul.f32 %v5657, %v7352
    %v7417 = vmul.f32 %v5667, %v7353
    %v7418 = vmul.f32 %v5677, %v7354
    %v7419 = vmul.f32 %v5687, %v7355
    %v7420 = vmul.f32 %v5697, %v7356
    %v7421 = vmul.f32 %v5707, %v7357
    %v7422 = vmul.f32 %v5717, %v7358
    %v7423 = vmul.f32 %v5727, %v7359
    %v7424 = vmul.f32 %v5737, %v7328
    %v7425 = vmul.f32 %v5747, %v7329
    %v7426 = vmul.f32 %v5757, %v7330
    %v7427 = vmul.f32 %v5767, %v7331
    %v7428 = vmul.f32 %v5777, %v7332
    %v7429 = vmul.f32 %v5787, %v7333
    %v7430 = vmul.f32 %v5797, %v7334
    %v7431 = vmul.f32 %v5807, %v7335
    %v7432 = vmul.f32 %v5817, %v7336
    %v7433 = vmul.f32 %v5827, %v7337
    %v7434 = vmul.f32 %v5837, %v7338
    %v7435 = vmul.f32 %v5847, %v7339
    %v7436 = vmul.f32 %v5857, %v7340
    %v7437 = vmul.f32 %v5867, %v7341
    %v7438 = vmul.f32 %v5877, %v7342
    %v7439 = vmul.f32 %v5887, %v7343
    %v7440 = vmul.f32 %v5897, %v7344
    %v7441 = vmul.f32 %v5907, %v7345
    %v7442 = vmul.f32 %v5917, %v7346
    %v7443 = vmul.f32 %v5927, %v7347
    %v7444 = vmul.f32 %v5937, %v7348
    %v7445 = vmul.f32 %v5947, %v7349
    %v7446 = vmul.f32 %v5957, %v7350
    %v7447 = vmul.f32 %v5967, %v7351
    %v7448 = vmul.f32 %v5977, %v7352
    %v7449 = vmul.f32 %v5987, %v7353
    %v7450 = vmul.f32 %v5997, %v7354
    %v7451 = vmul.f32 %v6007, %v7355
    %v7452 = vmul.f32 %v6017, %v7356
    %v7453 = vmul.f32 %v6027, %v7357
    %v7454 = vmul.f32 %v6037, %v7358
    %v7455 = vmul.f32 %v6047, %v7359
    %v7456 = vmul.f32 %v6057, %v7328
    %v7457 = vmul.f32 %v6067, %v7329
    %v7458 = vmul.f32 %v6077, %v7330
    %v7459 = vmul.f32 %v6087, %v7331
    %v7460 = vmul.f32 %v6097, %v7332
    %v7461 = vmul.f32 %v6107, %v7333
    %v7462 = vmul.f32 %v6117, %v7334
    %v7463 = vmul.f32 %v6127, %v7335
    %v7464 = vmul.f32 %v6137, %v7336
    %v7465 = vmul.f32 %v6147, %v7337
    %v7466 = vmul.f32 %v6157, %v7338
    %v7467 = vmul.f32 %v6167, %v7339
    %v7468 = vmul.f32 %v6177, %v7340
    %v7469 = vmul.f32 %v6187, %v7341
    %v7470 = vmul.f32 %v6197, %v7342
    %v7471 = vmul.f32 %v6207, %v7343
    %v7472 = vmul.f32 %v6217, %v7344
    %v7473 = vmul.f32 %v6227, %v7345
    %v7474 = vmul.f32 %v6237, %v7346
    %v7475 = vmul.f32 %v6247, %v7347
    %v7476 = vmul.f32 %v6257, %v7348
    %v7477 = vmul.f32 %v6267, %v7349
    %v7478 = vmul.f32 %v6277, %v7350
    %v7479 = vmul.f32 %v6287, %v7351
    %v7480 = vmul.f32 %v6297, %v7352
    %v7481 = vmul.f32 %v6307, %v7353
    %v7482 = vmul.f32 %v6317, %v7354
    %v7483 = vmul.f32 %v6327, %v7355
    %v7484 = vmul.f32 %v6337, %v7356
    %v7485 = vmul.f32 %v6347, %v7357
    %v7486 = vmul.f32 %v6357, %v7358
    %v7487 = vmul.f32 %v6367, %v7359
    %v7488 = vmul.f32 %v6377, %v7328
    %v7489 = vmul.f32 %v6387, %v7329
    %v7490 = vmul.f32 %v6397, %v7330
    %v7491 = vmul.f32 %v6407, %v7331
    %v7492 = vmul.f32 %v6417, %v7332
    %v7493 = vmul.f32 %v6427, %v7333
    %v7494 = vmul.f32 %v6437, %v7334
    %v7495 = vmul.f32 %v6447, %v7335
    %v7496 = vmul.f32 %v6457, %v7336
    %v7497 = vmul.f32 %v6467, %v7337
    %v7498 = vmul.f32 %v6477, %v7338
    %v7499 = vmul.f32 %v6487, %v7339
    %v7500 = vmul.f32 %v6497, %v7340
    %v7501 = vmul.f32 %v6507, %v7341
    %v7502 = vmul.f32 %v6517, %v7342
    %v7503 = vmul.f32 %v6527, %v7343
    %v7504 = vmul.f32 %v6537, %v7344
    %v7505 = vmul.f32 %v6547, %v7345
    %v7506 = vmul.f32 %v6557, %v7346
    %v7507 = vmul.f32 %v6567, %v7347
    %v7508 = vmul.f32 %v6577, %v7348
    %v7509 = vmul.f32 %v6587, %v7349
    %v7510 = vmul.f32 %v6597, %v7350
    %v7511 = vmul.f32 %v6607, %v7351
    %v7512 = vmul.f32 %v6617, %v7352
    %v7513 = vmul.f32 %v6627, %v7353
    %v7514 = vmul.f32 %v6637, %v7354
    %v7515 = vmul.f32 %v6647, %v7355
    %v7516 = vmul.f32 %v6657, %v7356
    %v7517 = vmul.f32 %v6667, %v7357
    %v7518 = vmul.f32 %v6677, %v7358
    %v7519 = vmul.f32 %v6687, %v7359
    %v7520 = vmul.f32 %v6697, %v7328
    %v7521 = vmul.f32 %v6707, %v7329
    %v7522 = vmul.f32 %v6717, %v7330
    %v7523 = vmul.f32 %v6727, %v7331
    %v7524 = vmul.f32 %v6737, %v7332
    %v7525 = vmul.f32 %v6747, %v7333
    %v7526 = vmul.f32 %v6757, %v7334
    %v7527 = vmul.f32 %v6767, %v7335
    %v7528 = vmul.f32 %v6777, %v7336
    %v7529 = vmul.f32 %v6787, %v7337
    %v7530 = vmul.f32 %v6797, %v7338
    %v7531 = vmul.f32 %v6807, %v7339
    %v7532 = vmul.f32 %v6817, %v7340
    %v7533 = vmul.f32 %v6827, %v7341
    %v7534 = vmul.f32 %v6837, %v7342
    %v7535 = vmul.f32 %v6847, %v7343
    %v7536 = vmul.f32 %v6857, %v7344
    %v7537 = vmul.f32 %v6867, %v7345
    %v7538 = vmul.f32 %v6877, %v7346
    %v7539 = vmul.f32 %v6887, %v7347
    %v7540 = vmul.f32 %v6897, %v7348
    %v7541 = vmul.f32 %v6907, %v7349
    %v7542 = vmul.f32 %v6917, %v7350
    %v7543 = vmul.f32 %v6927, %v7351
    %v7544 = vmul.f32 %v6937, %v7352
    %v7545 = vmul.f32 %v6947, %v7353
    %v7546 = vmul.f32 %v6957, %v7354
    %v7547 = vmul.f32 %v6967, %v7355
    %v7548 = vmul.f32 %v6977, %v7356
    %v7549 = vmul.f32 %v6987, %v7357
    %v7550 = vmul.f32 %v6997, %v7358
    %v7551 = vmul.f32 %v7007, %v7359
    %v7552 = vmul.f32 %v7017, %v7328
    %v7553 = vmul.f32 %v7027, %v7329
    %v7554 = vmul.f32 %v7037, %v7330
    %v7555 = vmul.f32 %v7047, %v7331
    %v7556 = vmul.f32 %v7057, %v7332
    %v7557 = vmul.f32 %v7067, %v7333
    %v7558 = vmul.f32 %v7077, %v7334
    %v7559 = vmul.f32 %v7087, %v7335
    %v7560 = vmul.f32 %v7097, %v7336
    %v7561 = vmul.f32 %v7107, %v7337
    %v7562 = vmul.f32 %v7117, %v7338
    %v7563 = vmul.f32 %v7127, %v7339
    %v7564 = vmul.f32 %v7137, %v7340
    %v7565 = vmul.f32 %v7147, %v7341
    %v7566 = vmul.f32 %v7157, %v7342
    %v7567 = vmul.f32 %v7167, %v7343
    %v7568 = vmul.f32 %v7177, %v7344
    %v7569 = vmul.f32 %v7187, %v7345
    %v7570 = vmul.f32 %v7197, %v7346
    %v7571 = vmul.f32 %v7207, %v7347
    %v7572 = vmul.f32 %v7217, %v7348
    %v7573 = vmul.f32 %v7227, %v7349
    %v7574 = vmul.f32 %v7237, %v7350
    %v7575 = vmul.f32 %v7247, %v7351
    %v7576 = vmul.f32 %v7257, %v7352
    %v7577 = vmul.f32 %v7267, %v7353
    %v7578 = vmul.f32 %v7277, %v7354
    %v7579 = vmul.f32 %v7287, %v7355
    %v7580 = vmul.f32 %v7297, %v7356
    %v7581 = vmul.f32 %v7307, %v7357
    %v7582 = vmul.f32 %v7317, %v7358
    %v7583 = vmul.f32 %v7327, %v7359
    %v7584 = vmul.f32 %v4256, %v7392
    %v7585 = vmul.f32 %v4257, %v7393
    %v7586 = vmul.f32 %v4258, %v7394
    %v7587 = vmul.f32 %v4259, %v7395
    %v7588 = vmul.f32 %v4260, %v7396
    %v7589 = vmul.f32 %v4261, %v7397
    %v7590 = vmul.f32 %v4262, %v7398
    %v7591 = vmul.f32 %v4263, %v7399
    %v7592 = vmul.f32 %v4264, %v7400
    %v7593 = vmul.f32 %v4265, %v7401
    %v7594 = vmul.f32 %v4266, %v7402
    %v7595 = vmul.f32 %v4267, %v7403
    %v7596 = vmul.f32 %v4268, %v7404
    %v7597 = vmul.f32 %v4269, %v7405
    %v7598 = vmul.f32 %v4270, %v7406
    %v7599 = vmul.f32 %v4271, %v7407
    %v7600 = vmul.f32 %v4272, %v7408
    %v7601 = vmul.f32 %v4273, %v7409
    %v7602 = vmul.f32 %v4274, %v7410
    %v7603 = vmul.f32 %v4275, %v7411
    %v7604 = vmul.f32 %v4276, %v7412
    %v7605 = vmul.f32 %v4277, %v7413
    %v7606 = vmul.f32 %v4278, %v7414
    %v7607 = vmul.f32 %v4279, %v7415
    %v7608 = vmul.f32 %v4280, %v7416
    %v7609 = vmul.f32 %v4281, %v7417
    %v7610 = vmul.f32 %v4282, %v7418
    %v7611 = vmul.f32 %v4283, %v7419
    %v7612 = vmul.f32 %v4284, %v7420
    %v7613 = vmul.f32 %v4285, %v7421
    %v7614 = vmul.f32 %v4286, %v7422
    %v7615 = vmul.f32 %v4287, %v7423
    %v7616 = vmul.f32 %v4288, %v7424
    %v7617 = vmul.f32 %v4289, %v7425
    %v7618 = vmul.f32 %v4290, %v7426
    %v7619 = vmul.f32 %v4291, %v7427
    %v7620 = vmul.f32 %v4292, %v7428
    %v7621 = vmul.f32 %v4293, %v7429
    %v7622 = vmul.f32 %v4294, %v7430
    %v7623 = vmul.f32 %v4295, %v7431
    %v7624 = vmul.f32 %v4296, %v7432
    %v7625 = vmul.f32 %v4297, %v7433
    %v7626 = vmul.f32 %v4298, %v7434
    %v7627 = vmul.f32 %v4299, %v7435
    %v7628 = vmul.f32 %v4300, %v7436
    %v7629 = vmul.f32 %v4301, %v7437
    %v7630 = vmul.f32 %v4302, %v7438
    %v7631 = vmul.f32 %v4303, %v7439
    %v7632 = vmul.f32 %v4304, %v7440
    %v7633 = vmul.f32 %v4305, %v7441
    %v7634 = vmul.f32 %v4306, %v7442
    %v7635 = vmul.f32 %v4307, %v7443
    %v7636 = vmul.f32 %v4308, %v7444
    %v7637 = vmul.f32 %v4309, %v7445
    %v7638 = vmul.f32 %v4310, %v7446
    %v7639 = vmul.f32 %v4311, %v7447
    %v7640 = vmul.f32 %v4312, %v7448
    %v7641 = vmul.f32 %v4313, %v7449
    %v7642 = vmul.f32 %v4314, %v7450
    %v7643 = vmul.f32 %v4315, %v7451
    %v7644 = vmul.f32 %v4316, %v7452
    %v7645 = vmul.f32 %v4317, %v7453
    %v7646 = vmul.f32 %v4318, %v7454
    %v7647 = vmul.f32 %v4319, %v7455
    %v7648 = vmul.f32 %v4320, %v7456
    %v7649 = vmul.f32 %v4321, %v7457
    %v7650 = vmul.f32 %v4322, %v7458
    %v7651 = vmul.f32 %v4323, %v7459
    %v7652 = vmul.f32 %v4324, %v7460
    %v7653 = vmul.f32 %v4325, %v7461
    %v7654 = vmul.f32 %v4326, %v7462
    %v7655 = vmul.f32 %v4327, %v7463
    %v7656 = vmul.f32 %v4328, %v7464
    %v7657 = vmul.f32 %v4329, %v7465
    %v7658 = vmul.f32 %v4330, %v7466
    %v7659 = vmul.f32 %v4331, %v7467
    %v7660 = vmul.f32 %v4332, %v7468
    %v7661 = vmul.f32 %v4333, %v7469
    %v7662 = vmul.f32 %v4334, %v7470
    %v7663 = vmul.f32 %v4335, %v7471
    %v7664 = vmul.f32 %v4336, %v7472
    %v7665 = vmul.f32 %v4337, %v7473
    %v7666 = vmul.f32 %v4338, %v7474
    %v7667 = vmul.f32 %v4339, %v7475
    %v7668 = vmul.f32 %v4340, %v7476
    %v7669 = vmul.f32 %v4341, %v7477
    %v7670 = vmul.f32 %v4342, %v7478
    %v7671 = vmul.f32 %v4343, %v7479
    %v7672 = vmul.f32 %v4344, %v7480
    %v7673 = vmul.f32 %v4345, %v7481
    %v7674 = vmul.f32 %v4346, %v7482
    %v7675 = vmul.f32 %v4347, %v7483
    %v7676 = vmul.f32 %v4348, %v7484
    %v7677 = vmul.f32 %v4349, %v7485
    %v7678 = vmul.f32 %v4350, %v7486
    %v7679 = vmul.f32 %v4351, %v7487
    %v7680 = vmul.f32 %v4352, %v7488
    %v7681 = vmul.f32 %v4353, %v7489
    %v7682 = vmul.f32 %v4354, %v7490
    %v7683 = vmul.f32 %v4355, %v7491
    %v7684 = vmul.f32 %v4356, %v7492
    %v7685 = vmul.f32 %v4357, %v7493
    %v7686 = vmul.f32 %v4358, %v7494
    %v7687 = vmul.f32 %v4359, %v7495
    %v7688 = vmul.f32 %v4360, %v7496
    %v7689 = vmul.f32 %v4361, %v7497
    %v7690 = vmul.f32 %v4362, %v7498
    %v7691 = vmul.f32 %v4363, %v7499
    %v7692 = vmul.f32 %v4364, %v7500
    %v7693 = vmul.f32 %v4365, %v7501
    %v7694 = vmul.f32 %v4366, %v7502
    %v7695 = vmul.f32 %v4367, %v7503
    %v7696 = vmul.f32 %v4368, %v7504
    %v7697 = vmul.f32 %v4369, %v7505
    %v7698 = vmul.f32 %v4370, %v7506
    %v7699 = vmul.f32 %v4371, %v7507
    %v7700 = vmul.f32 %v4372, %v7508
    %v7701 = vmul.f32 %v4373, %v7509
    %v7702 = vmul.f32 %v4374, %v7510
    %v7703 = vmul.f32 %v4375, %v7511
    %v7704 = vmul.f32 %v4376, %v7512
    %v7705 = vmul.f32 %v4377, %v7513
    %v7706 = vmul.f32 %v4378, %v7514
    %v7707 = vmul.f32 %v4379, %v7515
    %v7708 = vmul.f32 %v4380, %v7516
    %v7709 = vmul.f32 %v4381, %v7517
    %v7710 = vmul.f32 %v4382, %v7518
    %v7711 = vmul.f32 %v4383, %v7519
    %v7712 = vmul.f32 %v4384, %v7520
    %v7713 = vmul.f32 %v4385, %v7521
    %v7714 = vmul.f32 %v4386, %v7522
    %v7715 = vmul.f32 %v4387, %v7523
    %v7716 = vmul.f32 %v4388, %v7524
    %v7717 = vmul.f32 %v4389, %v7525
    %v7718 = vmul.f32 %v4390, %v7526
    %v7719 = vmul.f32 %v4391, %v7527
    %v7720 = vmul.f32 %v4392, %v7528
    %v7721 = vmul.f32 %v4393, %v7529
    %v7722 = vmul.f32 %v4394, %v7530
    %v7723 = vmul.f32 %v4395, %v7531
    %v7724 = vmul.f32 %v4396, %v7532
    %v7725 = vmul.f32 %v4397, %v7533
    %v7726 = vmul.f32 %v4398, %v7534
    %v7727 = vmul.f32 %v4399, %v7535
    %v7728 = vmul.f32 %v4400, %v7536
    %v7729 = vmul.f32 %v4401, %v7537
    %v7730 = vmul.f32 %v4402, %v7538
    %v7731 = vmul.f32 %v4403, %v7539
    %v7732 = vmul.f32 %v4404, %v7540
    %v7733 = vmul.f32 %v4405, %v7541
    %v7734 = vmul.f32 %v4406, %v7542
    %v7735 = vmul.f32 %v4407, %v7543
    %v7736 = vmul.f32 %v4408, %v7544
    %v7737 = vmul.f32 %v4409, %v7545
    %v7738 = vmul.f32 %v4410, %v7546
    %v7739 = vmul.f32 %v4411, %v7547
    %v7740 = vmul.f32 %v4412, %v7548
    %v7741 = vmul.f32 %v4413, %v7549
    %v7742 = vmul.f32 %v4414, %v7550
    %v7743 = vmul.f32 %v4415, %v7551
    %v7744 = vmul.f32 %v4416, %v7552
    %v7745 = vmul.f32 %v4417, %v7553
    %v7746 = vmul.f32 %v4418, %v7554
    %v7747 = vmul.f32 %v4419, %v7555
    %v7748 = vmul.f32 %v4420, %v7556
    %v7749 = vmul.f32 %v4421, %v7557
    %v7750 = vmul.f32 %v4422, %v7558
    %v7751 = vmul.f32 %v4423, %v7559
    %v7752 = vmul.f32 %v4424, %v7560
    %v7753 = vmul.f32 %v4425, %v7561
    %v7754 = vmul.f32 %v4426, %v7562
    %v7755 = vmul.f32 %v4427, %v7563
    %v7756 = vmul.f32 %v4428, %v7564
    %v7757 = vmul.f32 %v4429, %v7565
    %v7758 = vmul.f32 %v4430, %v7566
    %v7759 = vmul.f32 %v4431, %v7567
    %v7760 = vmul.f32 %v4432, %v7568
    %v7761 = vmul.f32 %v4433, %v7569
    %v7762 = vmul.f32 %v4434, %v7570
    %v7763 = vmul.f32 %v4435, %v7571
    %v7764 = vmul.f32 %v4436, %v7572
    %v7765 = vmul.f32 %v4437, %v7573
    %v7766 = vmul.f32 %v4438, %v7574
    %v7767 = vmul.f32 %v4439, %v7575
    %v7768 = vmul.f32 %v4440, %v7576
    %v7769 = vmul.f32 %v4441, %v7577
    %v7770 = vmul.f32 %v4442, %v7578
    %v7771 = vmul.f32 %v4443, %v7579
    %v7772 = vmul.f32 %v4444, %v7580
    %v7773 = vmul.f32 %v4445, %v7581
    %v7774 = vmul.f32 %v4446, %v7582
    %v7775 = vmul.f32 %v4447, %v7583
    %v7776 = vsub.f32 %v7360, %v7584
    %v7777 = vsub.f32 %v7361, %v7585
    %v7778 = vsub.f32 %v7362, %v7586
    %v7779 = vsub.f32 %v7363, %v7587
    %v7780 = vsub.f32 %v7364, %v7588
    %v7781 = vsub.f32 %v7365, %v7589
    %v7782 = vsub.f32 %v7366, %v7590
    %v7783 = vsub.f32 %v7367, %v7591
    %v7784 = vsub.f32 %v7368, %v7592
    %v7785 = vsub.f32 %v7369, %v7593
    %v7786 = vsub.f32 %v7370, %v7594
    %v7787 = vsub.f32 %v7371, %v7595
    %v7788 = vsub.f32 %v7372, %v7596
    %v7789 = vsub.f32 %v7373, %v7597
    %v7790 = vsub.f32 %v7374, %v7598
    %v7791 = vsub.f32 %v7375, %v7599
    %v7792 = vsub.f32 %v7376, %v7600
    %v7793 = vsub.f32 %v7377, %v7601
    %v7794 = vsub.f32 %v7378, %v7602
    %v7795 = vsub.f32 %v7379, %v7603
    %v7796 = vsub.f32 %v7380, %v7604
    %v7797 = vsub.f32 %v7381, %v7605
    %v7798 = vsub.f32 %v7382, %v7606
    %v7799 = vsub.f32 %v7383, %v7607
    %v7800 = vsub.f32 %v7384, %v7608
    %v7801 = vsub.f32 %v7385, %v7609
    %v7802 = vsub.f32 %v7386, %v7610
    %v7803 = vsub.f32 %v7387, %v7611
    %v7804 = vsub.f32 %v7388, %v7612
    %v7805 = vsub.f32 %v7389, %v7613
    %v7806 = vsub.f32 %v7390, %v7614
    %v7807 = vsub.f32 %v7391, %v7615
    %v7808 = vsub.f32 %v7360, %v7616
    %v7809 = vsub.f32 %v7361, %v7617
    %v7810 = vsub.f32 %v7362, %v7618
    %v7811 = vsub.f32 %v7363, %v7619
    %v7812 = vsub.f32 %v7364, %v7620
    %v7813 = vsub.f32 %v7365, %v7621
    %v7814 = vsub.f32 %v7366, %v7622
    %v7815 = vsub.f32 %v7367, %v7623
    %v7816 = vsub.f32 %v7368, %v7624
    %v7817 = vsub.f32 %v7369, %v7625
    %v7818 = vsub.f32 %v7370, %v7626
    %v7819 = vsub.f32 %v7371, %v7627
    %v7820 = vsub.f32 %v7372, %v7628
    %v7821 = vsub.f32 %v7373, %v7629
    %v7822 = vsub.f32 %v7374, %v7630
    %v7823 = vsub.f32 %v7375, %v7631
    %v7824 = vsub.f32 %v7376, %v7632
    %v7825 = vsub.f32 %v7377, %v7633
    %v7826 = vsub.f32 %v7378, %v7634
    %v7827 = vsub.f32 %v7379, %v7635
    %v7828 = vsub.f32 %v7380, %v7636
    %v7829 = vsub.f32 %v7381, %v7637
    %v7830 = vsub.f32 %v7382, %v7638
    %v7831 = vsub.f32 %v7383, %v7639
    %v7832 = vsub.f32 %v7384, %v7640
    %v7833 = vsub.f32 %v7385, %v7641
    %v7834 = vsub.f32 %v7386, %v7642
    %v7835 = vsub.f32 %v7387, %v7643
    %v7836 = vsub.f32 %v7388, %v7644
    %v7837 = vsub.f32 %v7389, %v7645
    %v7838 = vsub.f32 %v7390, %v7646
    %v7839 = vsub.f32 %v7391, %v7647
    %v7840 = vsub.f32 %v7360, %v7648
    %v7841 = vsub.f32 %v7361, %v7649
    %v7842 = vsub.f32 %v7362, %v7650
    %v7843 = vsub.f32 %v7363, %v7651
    %v7844 = vsub.f32 %v7364, %v7652
    %v7845 = vsub.f32 %v7365, %v7653
    %v7846 = vsub.f32 %v7366, %v7654
    %v7847 = vsub.f32 %v7367, %v7655
    %v7848 = vsub.f32 %v7368, %v7656
    %v7849 = vsub.f32 %v7369, %v7657
    %v7850 = vsub.f32 %v7370, %v7658
    %v7851 = vsub.f32 %v7371, %v7659
    %v7852 = vsub.f32 %v7372, %v7660
    %v7853 = vsub.f32 %v7373, %v7661
    %v7854 = vsub.f32 %v7374, %v7662
    %v7855 = vsub.f32 %v7375, %v7663
    %v7856 = vsub.f32 %v7376, %v7664
    %v7857 = vsub.f32 %v7377, %v7665
    %v7858 = vsub.f32 %v7378, %v7666
    %v7859 = vsub.f32 %v7379, %v7667
    %v7860 = vsub.f32 %v7380, %v7668
    %v7861 = vsub.f32 %v7381, %v7669
    %v7862 = vsub.f32 %v7382, %v7670
    %v7863 = vsub.f32 %v7383, %v7671
    %v7864 = vsub.f32 %v7384, %v7672
    %v7865 = vsub.f32 %v7385, %v7673
    %v7866 = vsub.f32 %v7386, %v7674
    %v7867 = vsub.f32 %v7387, %v7675
    %v7868 = vsub.f32 %v7388, %v7676
    %v7869 = vsub.f32 %v7389, %v7677
    %v7870 = vsub.f32 %v7390, %v7678
    %v7871 = vsub.f32 %v7391, %v7679
    %v7872 = vsub.f32 %v7360, %v7680
    %v7873 = vsub.f32 %v7361, %v7681
    %v7874 = vsub.f32 %v7362, %v7682
    %v7875 = vsub.f32 %v7363, %v7683
    %v7876 = vsub.f32 %v7364, %v7684
    %v7877 = vsub.f32 %v7365, %v7685
    %v7878 = vsub.f32 %v7366, %v7686
    %v7879 = vsub.f32 %v7367, %v7687
    %v7880 = vsub.f32 %v7368, %v7688
    %v7881 = vsub.f32 %v7369, %v7689
    %v7882 = vsub.f32 %v7370, %v7690
    %v7883 = vsub.f32 %v7371, %v7691
    %v7884 = vsub.f32 %v7372, %v7692
    %v7885 = vsub.f32 %v7373, %v7693
    %v7886 = vsub.f32 %v7374, %v7694
    %v7887 = vsub.f32 %v7375, %v7695
    %v7888 = vsub.f32 %v7376, %v7696
    %v7889 = vsub.f32 %v7377, %v7697
    %v7890 = vsub.f32 %v7378, %v7698
    %v7891 = vsub.f32 %v7379, %v7699
    %v7892 = vsub.f32 %v7380, %v7700
    %v7893 = vsub.f32 %v7381, %v7701
    %v7894 = vsub.f32 %v7382, %v7702
    %v7895 = vsub.f32 %v7383, %v7703
    %v7896 = vsub.f32 %v7384, %v7704
    %v7897 = vsub.f32 %v7385, %v7705
    %v7898 = vsub.f32 %v7386, %v7706
    %v7899 = vsub.f32 %v7387, %v7707
    %v7900 = vsub.f32 %v7388, %v7708
    %v7901 = vsub.f32 %v7389, %v7709
    %v7902 = vsub.f32 %v7390, %v7710
    %v7903 = vsub.f32 %v7391, %v7711
    %v7904 = vsub.f32 %v7360, %v7712
    %v7905 = vsub.f32 %v7361, %v7713
    %v7906 = vsub.f32 %v7362, %v7714
    %v7907 = vsub.f32 %v7363, %v7715
    %v7908 = vsub.f32 %v7364, %v7716
    %v7909 = vsub.f32 %v7365, %v7717
    %v7910 = vsub.f32 %v7366, %v7718
    %v7911 = vsub.f32 %v7367, %v7719
    %v7912 = vsub.f32 %v7368, %v7720
    %v7913 = vsub.f32 %v7369, %v7721
    %v7914 = vsub.f32 %v7370, %v7722
    %v7915 = vsub.f32 %v7371, %v7723
    %v7916 = vsub.f32 %v7372, %v7724
    %v7917 = vsub.f32 %v7373, %v7725
    %v7918 = vsub.f32 %v7374, %v7726
    %v7919 = vsub.f32 %v7375, %v7727
    %v7920 = vsub.f32 %v7376, %v7728
    %v7921 = vsub.f32 %v7377, %v7729
    %v7922 = vsub.f32 %v7378, %v7730
    %v7923 = vsub.f32 %v7379, %v7731
    %v7924 = vsub.f32 %v7380, %v7732
    %v7925 = vsub.f32 %v7381, %v7733
    %v7926 = vsub.f32 %v7382, %v7734
    %v7927 = vsub.f32 %v7383, %v7735
    %v7928 = vsub.f32 %v7384, %v7736
    %v7929 = vsub.f32 %v7385, %v7737
    %v7930 = vsub.f32 %v7386, %v7738
    %v7931 = vsub.f32 %v7387, %v7739
    %v7932 = vsub.f32 %v7388, %v7740
    %v7933 = vsub.f32 %v7389, %v7741
    %v7934 = vsub.f32 %v7390, %v7742
    %v7935 = vsub.f32 %v7391, %v7743
    %v7936 = vsub.f32 %v7360, %v7744
    %v7937 = vsub.f32 %v7361, %v7745
    %v7938 = vsub.f32 %v7362, %v7746
    %v7939 = vsub.f32 %v7363, %v7747
    %v7940 = vsub.f32 %v7364, %v7748
    %v7941 = vsub.f32 %v7365, %v7749
    %v7942 = vsub.f32 %v7366, %v7750
    %v7943 = vsub.f32 %v7367, %v7751
    %v7944 = vsub.f32 %v7368, %v7752
    %v7945 = vsub.f32 %v7369, %v7753
    %v7946 = vsub.f32 %v7370, %v7754
    %v7947 = vsub.f32 %v7371, %v7755
    %v7948 = vsub.f32 %v7372, %v7756
    %v7949 = vsub.f32 %v7373, %v7757
    %v7950 = vsub.f32 %v7374, %v7758
    %v7951 = vsub.f32 %v7375, %v7759
    %v7952 = vsub.f32 %v7376, %v7760
    %v7953 = vsub.f32 %v7377, %v7761
    %v7954 = vsub.f32 %v7378, %v7762
    %v7955 = vsub.f32 %v7379, %v7763
    %v7956 = vsub.f32 %v7380, %v7764
    %v7957 = vsub.f32 %v7381, %v7765
    %v7958 = vsub.f32 %v7382, %v7766
    %v7959 = vsub.f32 %v7383, %v7767
    %v7960 = vsub.f32 %v7384, %v7768
    %v7961 = vsub.f32 %v7385, %v7769
    %v7962 = vsub.f32 %v7386, %v7770
    %v7963 = vsub.f32 %v7387, %v7771
    %v7964 = vsub.f32 %v7388, %v7772
    %v7965 = vsub.f32 %v7389, %v7773
    %v7966 = vsub.f32 %v7390, %v7774
    %v7967 = vsub.f32 %v7391, %v7775
    %7969 = vset.pattern.permute.xlu0 0
    %7970 = vperm.xlu0 %7969, %v7392
    %v7971 = vpop.permute.xlu0 %7970
    %7974 = vset.pattern.permute.xlu0 0
    %7975 = vperm.xlu0 %7974, %v7393
    %v7976 = vpop.permute.xlu0 %7975
    %7979 = vset.pattern.permute.xlu0 0
    %7980 = vperm.xlu0 %7979, %v7394
    %v7981 = vpop.permute.xlu0 %7980
    %7984 = vset.pattern.permute.xlu0 0
    %7985 = vperm.xlu0 %7984, %v7395
    %v7986 = vpop.permute.xlu0 %7985
    %7989 = vset.pattern.permute.xlu0 0
    %7990 = vperm.xlu0 %7989, %v7396
    %v7991 = vpop.permute.xlu0 %7990
    %7994 = vset.pattern.permute.xlu0 0
    %7995 = vperm.xlu0 %7994, %v7397
    %v7996 = vpop.permute.xlu0 %7995
    %7999 = vset.pattern.permute.xlu0 0
    %8000 = vperm.xlu0 %7999, %v7398
    %v8001 = vpop.permute.xlu0 %8000
    %8004 = vset.pattern.permute.xlu0 0
    %8005 = vperm.xlu0 %8004, %v7399
    %v8006 = vpop.permute.xlu0 %8005
    %8009 = vset.pattern.permute.xlu0 0
    %8010 = vperm.xlu0 %8009, %v7400
    %v8011 = vpop.permute.xlu0 %8010
    %8014 = vset.pattern.permute.xlu0 0
    %8015 = vperm.xlu0 %8014, %v7401
    %v8016 = vpop.permute.xlu0 %8015
    %8019 = vset.pattern.permute.xlu0 0
    %8020 = vperm.xlu0 %8019, %v7402
    %v8021 = vpop.permute.xlu0 %8020
    %8024 = vset.pattern.permute.xlu0 0
    %8025 = vperm.xlu0 %8024, %v7403
    %v8026 = vpop.permute.xlu0 %8025
    %8029 = vset.pattern.permute.xlu0 0
    %8030 = vperm.xlu0 %8029, %v7404
    %v8031 = vpop.permute.xlu0 %8030
    %8034 = vset.pattern.permute.xlu0 0
    %8035 = vperm.xlu0 %8034, %v7405
    %v8036 = vpop.permute.xlu0 %8035
    %8039 = vset.pattern.permute.xlu0 0
    %8040 = vperm.xlu0 %8039, %v7406
    %v8041 = vpop.permute.xlu0 %8040
    %8044 = vset.pattern.permute.xlu0 0
    %8045 = vperm.xlu0 %8044, %v7407
    %v8046 = vpop.permute.xlu0 %8045
    %8049 = vset.pattern.permute.xlu0 0
    %8050 = vperm.xlu0 %8049, %v7408
    %v8051 = vpop.permute.xlu0 %8050
    %8054 = vset.pattern.permute.xlu0 0
    %8055 = vperm.xlu0 %8054, %v7409
    %v8056 = vpop.permute.xlu0 %8055
    %8059 = vset.pattern.permute.xlu0 0
    %8060 = vperm.xlu0 %8059, %v7410
    %v8061 = vpop.permute.xlu0 %8060
    %8064 = vset.pattern.permute.xlu0 0
    %8065 = vperm.xlu0 %8064, %v7411
    %v8066 = vpop.permute.xlu0 %8065
    %8069 = vset.pattern.permute.xlu0 0
    %8070 = vperm.xlu0 %8069, %v7412
    %v8071 = vpop.permute.xlu0 %8070
    %8074 = vset.pattern.permute.xlu0 0
    %8075 = vperm.xlu0 %8074, %v7413
    %v8076 = vpop.permute.xlu0 %8075
    %8079 = vset.pattern.permute.xlu0 0
    %8080 = vperm.xlu0 %8079, %v7414
    %v8081 = vpop.permute.xlu0 %8080
    %8084 = vset.pattern.permute.xlu0 0
    %8085 = vperm.xlu0 %8084, %v7415
    %v8086 = vpop.permute.xlu0 %8085
    %8089 = vset.pattern.permute.xlu0 0
    %8090 = vperm.xlu0 %8089, %v7416
    %v8091 = vpop.permute.xlu0 %8090
    %8094 = vset.pattern.permute.xlu0 0
    %8095 = vperm.xlu0 %8094, %v7417
    %v8096 = vpop.permute.xlu0 %8095
    %8099 = vset.pattern.permute.xlu0 0
    %8100 = vperm.xlu0 %8099, %v7418
    %v8101 = vpop.permute.xlu0 %8100
    %8104 = vset.pattern.permute.xlu0 0
    %8105 = vperm.xlu0 %8104, %v7419
    %v8106 = vpop.permute.xlu0 %8105
    %8109 = vset.pattern.permute.xlu0 0
    %8110 = vperm.xlu0 %8109, %v7420
    %v8111 = vpop.permute.xlu0 %8110
    %8114 = vset.pattern.permute.xlu0 0
    %8115 = vperm.xlu0 %8114, %v7421
    %v8116 = vpop.permute.xlu0 %8115
    %8119 = vset.pattern.permute.xlu0 0
    %8120 = vperm.xlu0 %8119, %v7422
    %v8121 = vpop.permute.xlu0 %8120
    %8124 = vset.pattern.permute.xlu0 0
    %8125 = vperm.xlu0 %8124, %v7423
    %v8126 = vpop.permute.xlu0 %8125
    %8129 = vset.pattern.permute.xlu0 0
    %8130 = vperm.xlu0 %8129, %v7424
    %v8131 = vpop.permute.xlu0 %8130
    %8134 = vset.pattern.permute.xlu0 0
    %8135 = vperm.xlu0 %8134, %v7425
    %v8136 = vpop.permute.xlu0 %8135
    %8139 = vset.pattern.permute.xlu0 0
    %8140 = vperm.xlu0 %8139, %v7426
    %v8141 = vpop.permute.xlu0 %8140
    %8144 = vset.pattern.permute.xlu0 0
    %8145 = vperm.xlu0 %8144, %v7427
    %v8146 = vpop.permute.xlu0 %8145
    %8149 = vset.pattern.permute.xlu0 0
    %8150 = vperm.xlu0 %8149, %v7428
    %v8151 = vpop.permute.xlu0 %8150
    %8154 = vset.pattern.permute.xlu0 0
    %8155 = vperm.xlu0 %8154, %v7429
    %v8156 = vpop.permute.xlu0 %8155
    %8159 = vset.pattern.permute.xlu0 0
    %8160 = vperm.xlu0 %8159, %v7430
    %v8161 = vpop.permute.xlu0 %8160
    %8164 = vset.pattern.permute.xlu0 0
    %8165 = vperm.xlu0 %8164, %v7431
    %v8166 = vpop.permute.xlu0 %8165
    %8169 = vset.pattern.permute.xlu0 0
    %8170 = vperm.xlu0 %8169, %v7432
    %v8171 = vpop.permute.xlu0 %8170
    %8174 = vset.pattern.permute.xlu0 0
    %8175 = vperm.xlu0 %8174, %v7433
    %v8176 = vpop.permute.xlu0 %8175
    %8179 = vset.pattern.permute.xlu0 0
    %8180 = vperm.xlu0 %8179, %v7434
    %v8181 = vpop.permute.xlu0 %8180
    %8184 = vset.pattern.permute.xlu0 0
    %8185 = vperm.xlu0 %8184, %v7435
    %v8186 = vpop.permute.xlu0 %8185
    %8189 = vset.pattern.permute.xlu0 0
    %8190 = vperm.xlu0 %8189, %v7436
    %v8191 = vpop.permute.xlu0 %8190
    %8194 = vset.pattern.permute.xlu0 0
    %8195 = vperm.xlu0 %8194, %v7437
    %v8196 = vpop.permute.xlu0 %8195
    %8199 = vset.pattern.permute.xlu0 0
    %8200 = vperm.xlu0 %8199, %v7438
    %v8201 = vpop.permute.xlu0 %8200
    %8204 = vset.pattern.permute.xlu0 0
    %8205 = vperm.xlu0 %8204, %v7439
    %v8206 = vpop.permute.xlu0 %8205
    %8209 = vset.pattern.permute.xlu0 0
    %8210 = vperm.xlu0 %8209, %v7440
    %v8211 = vpop.permute.xlu0 %8210
    %8214 = vset.pattern.permute.xlu0 0
    %8215 = vperm.xlu0 %8214, %v7441
    %v8216 = vpop.permute.xlu0 %8215
    %8219 = vset.pattern.permute.xlu0 0
    %8220 = vperm.xlu0 %8219, %v7442
    %v8221 = vpop.permute.xlu0 %8220
    %8224 = vset.pattern.permute.xlu0 0
    %8225 = vperm.xlu0 %8224, %v7443
    %v8226 = vpop.permute.xlu0 %8225
    %8229 = vset.pattern.permute.xlu0 0
    %8230 = vperm.xlu0 %8229, %v7444
    %v8231 = vpop.permute.xlu0 %8230
    %8234 = vset.pattern.permute.xlu0 0
    %8235 = vperm.xlu0 %8234, %v7445
    %v8236 = vpop.permute.xlu0 %8235
    %8239 = vset.pattern.permute.xlu0 0
    %8240 = vperm.xlu0 %8239, %v7446
    %v8241 = vpop.permute.xlu0 %8240
    %8244 = vset.pattern.permute.xlu0 0
    %8245 = vperm.xlu0 %8244, %v7447
    %v8246 = vpop.permute.xlu0 %8245
    %8249 = vset.pattern.permute.xlu0 0
    %8250 = vperm.xlu0 %8249, %v7448
    %v8251 = vpop.permute.xlu0 %8250
    %8254 = vset.pattern.permute.xlu0 0
    %8255 = vperm.xlu0 %8254, %v7449
    %v8256 = vpop.permute.xlu0 %8255
    %8259 = vset.pattern.permute.xlu0 0
    %8260 = vperm.xlu0 %8259, %v7450
    %v8261 = vpop.permute.xlu0 %8260
    %8264 = vset.pattern.permute.xlu0 0
    %8265 = vperm.xlu0 %8264, %v7451
    %v8266 = vpop.permute.xlu0 %8265
    %8269 = vset.pattern.permute.xlu0 0
    %8270 = vperm.xlu0 %8269, %v7452
    %v8271 = vpop.permute.xlu0 %8270
    %8274 = vset.pattern.permute.xlu0 0
    %8275 = vperm.xlu0 %8274, %v7453
    %v8276 = vpop.permute.xlu0 %8275
    %8279 = vset.pattern.permute.xlu0 0
    %8280 = vperm.xlu0 %8279, %v7454
    %v8281 = vpop.permute.xlu0 %8280
    %8284 = vset.pattern.permute.xlu0 0
    %8285 = vperm.xlu0 %8284, %v7455
    %v8286 = vpop.permute.xlu0 %8285
    %8289 = vset.pattern.permute.xlu0 0
    %8290 = vperm.xlu0 %8289, %v7456
    %v8291 = vpop.permute.xlu0 %8290
    %8294 = vset.pattern.permute.xlu0 0
    %8295 = vperm.xlu0 %8294, %v7457
    %v8296 = vpop.permute.xlu0 %8295
    %8299 = vset.pattern.permute.xlu0 0
    %8300 = vperm.xlu0 %8299, %v7458
    %v8301 = vpop.permute.xlu0 %8300
    %8304 = vset.pattern.permute.xlu0 0
    %8305 = vperm.xlu0 %8304, %v7459
    %v8306 = vpop.permute.xlu0 %8305
    %8309 = vset.pattern.permute.xlu0 0
    %8310 = vperm.xlu0 %8309, %v7460
    %v8311 = vpop.permute.xlu0 %8310
    %8314 = vset.pattern.permute.xlu0 0
    %8315 = vperm.xlu0 %8314, %v7461
    %v8316 = vpop.permute.xlu0 %8315
    %8319 = vset.pattern.permute.xlu0 0
    %8320 = vperm.xlu0 %8319, %v7462
    %v8321 = vpop.permute.xlu0 %8320
    %8324 = vset.pattern.permute.xlu0 0
    %8325 = vperm.xlu0 %8324, %v7463
    %v8326 = vpop.permute.xlu0 %8325
    %8329 = vset.pattern.permute.xlu0 0
    %8330 = vperm.xlu0 %8329, %v7464
    %v8331 = vpop.permute.xlu0 %8330
    %8334 = vset.pattern.permute.xlu0 0
    %8335 = vperm.xlu0 %8334, %v7465
    %v8336 = vpop.permute.xlu0 %8335
    %8339 = vset.pattern.permute.xlu0 0
    %8340 = vperm.xlu0 %8339, %v7466
    %v8341 = vpop.permute.xlu0 %8340
    %8344 = vset.pattern.permute.xlu0 0
    %8345 = vperm.xlu0 %8344, %v7467
    %v8346 = vpop.permute.xlu0 %8345
    %8349 = vset.pattern.permute.xlu0 0
    %8350 = vperm.xlu0 %8349, %v7468
    %v8351 = vpop.permute.xlu0 %8350
    %8354 = vset.pattern.permute.xlu0 0
    %8355 = vperm.xlu0 %8354, %v7469
    %v8356 = vpop.permute.xlu0 %8355
    %8359 = vset.pattern.permute.xlu0 0
    %8360 = vperm.xlu0 %8359, %v7470
    %v8361 = vpop.permute.xlu0 %8360
    %8364 = vset.pattern.permute.xlu0 0
    %8365 = vperm.xlu0 %8364, %v7471
    %v8366 = vpop.permute.xlu0 %8365
    %8369 = vset.pattern.permute.xlu0 0
    %8370 = vperm.xlu0 %8369, %v7472
    %v8371 = vpop.permute.xlu0 %8370
    %8374 = vset.pattern.permute.xlu0 0
    %8375 = vperm.xlu0 %8374, %v7473
    %v8376 = vpop.permute.xlu0 %8375
    %8379 = vset.pattern.permute.xlu0 0
    %8380 = vperm.xlu0 %8379, %v7474
    %v8381 = vpop.permute.xlu0 %8380
    %8384 = vset.pattern.permute.xlu0 0
    %8385 = vperm.xlu0 %8384, %v7475
    %v8386 = vpop.permute.xlu0 %8385
    %8389 = vset.pattern.permute.xlu0 0
    %8390 = vperm.xlu0 %8389, %v7476
    %v8391 = vpop.permute.xlu0 %8390
    %8394 = vset.pattern.permute.xlu0 0
    %8395 = vperm.xlu0 %8394, %v7477
    %v8396 = vpop.permute.xlu0 %8395
    %8399 = vset.pattern.permute.xlu0 0
    %8400 = vperm.xlu0 %8399, %v7478
    %v8401 = vpop.permute.xlu0 %8400
    %8404 = vset.pattern.permute.xlu0 0
    %8405 = vperm.xlu0 %8404, %v7479
    %v8406 = vpop.permute.xlu0 %8405
    %8409 = vset.pattern.permute.xlu0 0
    %8410 = vperm.xlu0 %8409, %v7480
    %v8411 = vpop.permute.xlu0 %8410
    %8414 = vset.pattern.permute.xlu0 0
    %8415 = vperm.xlu0 %8414, %v7481
    %v8416 = vpop.permute.xlu0 %8415
    %8419 = vset.pattern.permute.xlu0 0
    %8420 = vperm.xlu0 %8419, %v7482
    %v8421 = vpop.permute.xlu0 %8420
    %8424 = vset.pattern.permute.xlu0 0
    %8425 = vperm.xlu0 %8424, %v7483
    %v8426 = vpop.permute.xlu0 %8425
    %8429 = vset.pattern.permute.xlu0 0
    %8430 = vperm.xlu0 %8429, %v7484
    %v8431 = vpop.permute.xlu0 %8430
    %8434 = vset.pattern.permute.xlu0 0
    %8435 = vperm.xlu0 %8434, %v7485
    %v8436 = vpop.permute.xlu0 %8435
    %8439 = vset.pattern.permute.xlu0 0
    %8440 = vperm.xlu0 %8439, %v7486
    %v8441 = vpop.permute.xlu0 %8440
    %8444 = vset.pattern.permute.xlu0 0
    %8445 = vperm.xlu0 %8444, %v7487
    %v8446 = vpop.permute.xlu0 %8445
    %8449 = vset.pattern.permute.xlu0 0
    %8450 = vperm.xlu0 %8449, %v7488
    %v8451 = vpop.permute.xlu0 %8450
    %8454 = vset.pattern.permute.xlu0 0
    %8455 = vperm.xlu0 %8454, %v7489
    %v8456 = vpop.permute.xlu0 %8455
    %8459 = vset.pattern.permute.xlu0 0
    %8460 = vperm.xlu0 %8459, %v7490
    %v8461 = vpop.permute.xlu0 %8460
    %8464 = vset.pattern.permute.xlu0 0
    %8465 = vperm.xlu0 %8464, %v7491
    %v8466 = vpop.permute.xlu0 %8465
    %8469 = vset.pattern.permute.xlu0 0
    %8470 = vperm.xlu0 %8469, %v7492
    %v8471 = vpop.permute.xlu0 %8470
    %8474 = vset.pattern.permute.xlu0 0
    %8475 = vperm.xlu0 %8474, %v7493
    %v8476 = vpop.permute.xlu0 %8475
    %8479 = vset.pattern.permute.xlu0 0
    %8480 = vperm.xlu0 %8479, %v7494
    %v8481 = vpop.permute.xlu0 %8480
    %8484 = vset.pattern.permute.xlu0 0
    %8485 = vperm.xlu0 %8484, %v7495
    %v8486 = vpop.permute.xlu0 %8485
    %8489 = vset.pattern.permute.xlu0 0
    %8490 = vperm.xlu0 %8489, %v7496
    %v8491 = vpop.permute.xlu0 %8490
    %8494 = vset.pattern.permute.xlu0 0
    %8495 = vperm.xlu0 %8494, %v7497
    %v8496 = vpop.permute.xlu0 %8495
    %8499 = vset.pattern.permute.xlu0 0
    %8500 = vperm.xlu0 %8499, %v7498
    %v8501 = vpop.permute.xlu0 %8500
    %8504 = vset.pattern.permute.xlu0 0
    %8505 = vperm.xlu0 %8504, %v7499
    %v8506 = vpop.permute.xlu0 %8505
    %8509 = vset.pattern.permute.xlu0 0
    %8510 = vperm.xlu0 %8509, %v7500
    %v8511 = vpop.permute.xlu0 %8510
    %8514 = vset.pattern.permute.xlu0 0
    %8515 = vperm.xlu0 %8514, %v7501
    %v8516 = vpop.permute.xlu0 %8515
    %8519 = vset.pattern.permute.xlu0 0
    %8520 = vperm.xlu0 %8519, %v7502
    %v8521 = vpop.permute.xlu0 %8520
    %8524 = vset.pattern.permute.xlu0 0
    %8525 = vperm.xlu0 %8524, %v7503
    %v8526 = vpop.permute.xlu0 %8525
    %8529 = vset.pattern.permute.xlu0 0
    %8530 = vperm.xlu0 %8529, %v7504
    %v8531 = vpop.permute.xlu0 %8530
    %8534 = vset.pattern.permute.xlu0 0
    %8535 = vperm.xlu0 %8534, %v7505
    %v8536 = vpop.permute.xlu0 %8535
    %8539 = vset.pattern.permute.xlu0 0
    %8540 = vperm.xlu0 %8539, %v7506
    %v8541 = vpop.permute.xlu0 %8540
    %8544 = vset.pattern.permute.xlu0 0
    %8545 = vperm.xlu0 %8544, %v7507
    %v8546 = vpop.permute.xlu0 %8545
    %8549 = vset.pattern.permute.xlu0 0
    %8550 = vperm.xlu0 %8549, %v7508
    %v8551 = vpop.permute.xlu0 %8550
    %8554 = vset.pattern.permute.xlu0 0
    %8555 = vperm.xlu0 %8554, %v7509
    %v8556 = vpop.permute.xlu0 %8555
    %8559 = vset.pattern.permute.xlu0 0
    %8560 = vperm.xlu0 %8559, %v7510
    %v8561 = vpop.permute.xlu0 %8560
    %8564 = vset.pattern.permute.xlu0 0
    %8565 = vperm.xlu0 %8564, %v7511
    %v8566 = vpop.permute.xlu0 %8565
    %8569 = vset.pattern.permute.xlu0 0
    %8570 = vperm.xlu0 %8569, %v7512
    %v8571 = vpop.permute.xlu0 %8570
    %8574 = vset.pattern.permute.xlu0 0
    %8575 = vperm.xlu0 %8574, %v7513
    %v8576 = vpop.permute.xlu0 %8575
    %8579 = vset.pattern.permute.xlu0 0
    %8580 = vperm.xlu0 %8579, %v7514
    %v8581 = vpop.permute.xlu0 %8580
    %8584 = vset.pattern.permute.xlu0 0
    %8585 = vperm.xlu0 %8584, %v7515
    %v8586 = vpop.permute.xlu0 %8585
    %8589 = vset.pattern.permute.xlu0 0
    %8590 = vperm.xlu0 %8589, %v7516
    %v8591 = vpop.permute.xlu0 %8590
    %8594 = vset.pattern.permute.xlu0 0
    %8595 = vperm.xlu0 %8594, %v7517
    %v8596 = vpop.permute.xlu0 %8595
    %8599 = vset.pattern.permute.xlu0 0
    %8600 = vperm.xlu0 %8599, %v7518
    %v8601 = vpop.permute.xlu0 %8600
    %8604 = vset.pattern.permute.xlu0 0
    %8605 = vperm.xlu0 %8604, %v7519
    %v8606 = vpop.permute.xlu0 %8605
    %8609 = vset.pattern.permute.xlu0 0
    %8610 = vperm.xlu0 %8609, %v7520
    %v8611 = vpop.permute.xlu0 %8610
    %8614 = vset.pattern.permute.xlu0 0
    %8615 = vperm.xlu0 %8614, %v7521
    %v8616 = vpop.permute.xlu0 %8615
    %8619 = vset.pattern.permute.xlu0 0
    %8620 = vperm.xlu0 %8619, %v7522
    %v8621 = vpop.permute.xlu0 %8620
    %8624 = vset.pattern.permute.xlu0 0
    %8625 = vperm.xlu0 %8624, %v7523
    %v8626 = vpop.permute.xlu0 %8625
    %8629 = vset.pattern.permute.xlu0 0
    %8630 = vperm.xlu0 %8629, %v7524
    %v8631 = vpop.permute.xlu0 %8630
    %8634 = vset.pattern.permute.xlu0 0
    %8635 = vperm.xlu0 %8634, %v7525
    %v8636 = vpop.permute.xlu0 %8635
    %8639 = vset.pattern.permute.xlu0 0
    %8640 = vperm.xlu0 %8639, %v7526
    %v8641 = vpop.permute.xlu0 %8640
    %8644 = vset.pattern.permute.xlu0 0
    %8645 = vperm.xlu0 %8644, %v7527
    %v8646 = vpop.permute.xlu0 %8645
    %8649 = vset.pattern.permute.xlu0 0
    %8650 = vperm.xlu0 %8649, %v7528
    %v8651 = vpop.permute.xlu0 %8650
    %8654 = vset.pattern.permute.xlu0 0
    %8655 = vperm.xlu0 %8654, %v7529
    %v8656 = vpop.permute.xlu0 %8655
    %8659 = vset.pattern.permute.xlu0 0
    %8660 = vperm.xlu0 %8659, %v7530
    %v8661 = vpop.permute.xlu0 %8660
    %8664 = vset.pattern.permute.xlu0 0
    %8665 = vperm.xlu0 %8664, %v7531
    %v8666 = vpop.permute.xlu0 %8665
    %8669 = vset.pattern.permute.xlu0 0
    %8670 = vperm.xlu0 %8669, %v7532
    %v8671 = vpop.permute.xlu0 %8670
    %8674 = vset.pattern.permute.xlu0 0
    %8675 = vperm.xlu0 %8674, %v7533
    %v8676 = vpop.permute.xlu0 %8675
    %8679 = vset.pattern.permute.xlu0 0
    %8680 = vperm.xlu0 %8679, %v7534
    %v8681 = vpop.permute.xlu0 %8680
    %8684 = vset.pattern.permute.xlu0 0
    %8685 = vperm.xlu0 %8684, %v7535
    %v8686 = vpop.permute.xlu0 %8685
    %8689 = vset.pattern.permute.xlu0 0
    %8690 = vperm.xlu0 %8689, %v7536
    %v8691 = vpop.permute.xlu0 %8690
    %8694 = vset.pattern.permute.xlu0 0
    %8695 = vperm.xlu0 %8694, %v7537
    %v8696 = vpop.permute.xlu0 %8695
    %8699 = vset.pattern.permute.xlu0 0
    %8700 = vperm.xlu0 %8699, %v7538
    %v8701 = vpop.permute.xlu0 %8700
    %8704 = vset.pattern.permute.xlu0 0
    %8705 = vperm.xlu0 %8704, %v7539
    %v8706 = vpop.permute.xlu0 %8705
    %8709 = vset.pattern.permute.xlu0 0
    %8710 = vperm.xlu0 %8709, %v7540
    %v8711 = vpop.permute.xlu0 %8710
    %8714 = vset.pattern.permute.xlu0 0
    %8715 = vperm.xlu0 %8714, %v7541
    %v8716 = vpop.permute.xlu0 %8715
    %8719 = vset.pattern.permute.xlu0 0
    %8720 = vperm.xlu0 %8719, %v7542
    %v8721 = vpop.permute.xlu0 %8720
    %8724 = vset.pattern.permute.xlu0 0
    %8725 = vperm.xlu0 %8724, %v7543
    %v8726 = vpop.permute.xlu0 %8725
    %8729 = vset.pattern.permute.xlu0 0
    %8730 = vperm.xlu0 %8729, %v7544
    %v8731 = vpop.permute.xlu0 %8730
    %8734 = vset.pattern.permute.xlu0 0
    %8735 = vperm.xlu0 %8734, %v7545
    %v8736 = vpop.permute.xlu0 %8735
    %8739 = vset.pattern.permute.xlu0 0
    %8740 = vperm.xlu0 %8739, %v7546
    %v8741 = vpop.permute.xlu0 %8740
    %8744 = vset.pattern.permute.xlu0 0
    %8745 = vperm.xlu0 %8744, %v7547
    %v8746 = vpop.permute.xlu0 %8745
    %8749 = vset.pattern.permute.xlu0 0
    %8750 = vperm.xlu0 %8749, %v7548
    %v8751 = vpop.permute.xlu0 %8750
    %8754 = vset.pattern.permute.xlu0 0
    %8755 = vperm.xlu0 %8754, %v7549
    %v8756 = vpop.permute.xlu0 %8755
    %8759 = vset.pattern.permute.xlu0 0
    %8760 = vperm.xlu0 %8759, %v7550
    %v8761 = vpop.permute.xlu0 %8760
    %8764 = vset.pattern.permute.xlu0 0
    %8765 = vperm.xlu0 %8764, %v7551
    %v8766 = vpop.permute.xlu0 %8765
    %8769 = vset.pattern.permute.xlu0 0
    %8770 = vperm.xlu0 %8769, %v7552
    %v8771 = vpop.permute.xlu0 %8770
    %8774 = vset.pattern.permute.xlu0 0
    %8775 = vperm.xlu0 %8774, %v7553
    %v8776 = vpop.permute.xlu0 %8775
    %8779 = vset.pattern.permute.xlu0 0
    %8780 = vperm.xlu0 %8779, %v7554
    %v8781 = vpop.permute.xlu0 %8780
    %8784 = vset.pattern.permute.xlu0 0
    %8785 = vperm.xlu0 %8784, %v7555
    %v8786 = vpop.permute.xlu0 %8785
    %8789 = vset.pattern.permute.xlu0 0
    %8790 = vperm.xlu0 %8789, %v7556
    %v8791 = vpop.permute.xlu0 %8790
    %8794 = vset.pattern.permute.xlu0 0
    %8795 = vperm.xlu0 %8794, %v7557
    %v8796 = vpop.permute.xlu0 %8795
    %8799 = vset.pattern.permute.xlu0 0
    %8800 = vperm.xlu0 %8799, %v7558
    %v8801 = vpop.permute.xlu0 %8800
    %8804 = vset.pattern.permute.xlu0 0
    %8805 = vperm.xlu0 %8804, %v7559
    %v8806 = vpop.permute.xlu0 %8805
    %8809 = vset.pattern.permute.xlu0 0
    %8810 = vperm.xlu0 %8809, %v7560
    %v8811 = vpop.permute.xlu0 %8810
    %8814 = vset.pattern.permute.xlu0 0
    %8815 = vperm.xlu0 %8814, %v7561
    %v8816 = vpop.permute.xlu0 %8815
    %8819 = vset.pattern.permute.xlu0 0
    %8820 = vperm.xlu0 %8819, %v7562
    %v8821 = vpop.permute.xlu0 %8820
    %8824 = vset.pattern.permute.xlu0 0
    %8825 = vperm.xlu0 %8824, %v7563
    %v8826 = vpop.permute.xlu0 %8825
    %8829 = vset.pattern.permute.xlu0 0
    %8830 = vperm.xlu0 %8829, %v7564
    %v8831 = vpop.permute.xlu0 %8830
    %8834 = vset.pattern.permute.xlu0 0
    %8835 = vperm.xlu0 %8834, %v7565
    %v8836 = vpop.permute.xlu0 %8835
    %8839 = vset.pattern.permute.xlu0 0
    %8840 = vperm.xlu0 %8839, %v7566
    %v8841 = vpop.permute.xlu0 %8840
    %8844 = vset.pattern.permute.xlu0 0
    %8845 = vperm.xlu0 %8844, %v7567
    %v8846 = vpop.permute.xlu0 %8845
    %8849 = vset.pattern.permute.xlu0 0
    %8850 = vperm.xlu0 %8849, %v7568
    %v8851 = vpop.permute.xlu0 %8850
    %8854 = vset.pattern.permute.xlu0 0
    %8855 = vperm.xlu0 %8854, %v7569
    %v8856 = vpop.permute.xlu0 %8855
    %8859 = vset.pattern.permute.xlu0 0
    %8860 = vperm.xlu0 %8859, %v7570
    %v8861 = vpop.permute.xlu0 %8860
    %8864 = vset.pattern.permute.xlu0 0
    %8865 = vperm.xlu0 %8864, %v7571
    %v8866 = vpop.permute.xlu0 %8865
    %8869 = vset.pattern.permute.xlu0 0
    %8870 = vperm.xlu0 %8869, %v7572
    %v8871 = vpop.permute.xlu0 %8870
    %8874 = vset.pattern.permute.xlu0 0
    %8875 = vperm.xlu0 %8874, %v7573
    %v8876 = vpop.permute.xlu0 %8875
    %8879 = vset.pattern.permute.xlu0 0
    %8880 = vperm.xlu0 %8879, %v7574
    %v8881 = vpop.permute.xlu0 %8880
    %8884 = vset.pattern.permute.xlu0 0
    %8885 = vperm.xlu0 %8884, %v7575
    %v8886 = vpop.permute.xlu0 %8885
    %8889 = vset.pattern.permute.xlu0 0
    %8890 = vperm.xlu0 %8889, %v7576
    %v8891 = vpop.permute.xlu0 %8890
    %8894 = vset.pattern.permute.xlu0 0
    %8895 = vperm.xlu0 %8894, %v7577
    %v8896 = vpop.permute.xlu0 %8895
    %8899 = vset.pattern.permute.xlu0 0
    %8900 = vperm.xlu0 %8899, %v7578
    %v8901 = vpop.permute.xlu0 %8900
    %8904 = vset.pattern.permute.xlu0 0
    %8905 = vperm.xlu0 %8904, %v7579
    %v8906 = vpop.permute.xlu0 %8905
    %8909 = vset.pattern.permute.xlu0 0
    %8910 = vperm.xlu0 %8909, %v7580
    %v8911 = vpop.permute.xlu0 %8910
    %8914 = vset.pattern.permute.xlu0 0
    %8915 = vperm.xlu0 %8914, %v7581
    %v8916 = vpop.permute.xlu0 %8915
    %8919 = vset.pattern.permute.xlu0 0
    %8920 = vperm.xlu0 %8919, %v7582
    %v8921 = vpop.permute.xlu0 %8920
    %8924 = vset.pattern.permute.xlu0 0
    %8925 = vperm.xlu0 %8924, %v7583
    %v8926 = vpop.permute.xlu0 %8925
    %v8928 = vmul.f32 %v31, %v7971
    %v8929 = vmul.f32 %v32, %v7976
    %v8930 = vmul.f32 %v33, %v7981
    %v8931 = vmul.f32 %v34, %v7986
    %v8932 = vmul.f32 %v35, %v7991
    %v8933 = vmul.f32 %v36, %v7996
    %v8934 = vmul.f32 %v37, %v8001
    %v8935 = vmul.f32 %v38, %v8006
    %v8936 = vmul.f32 %v39, %v8011
    %v8937 = vmul.f32 %v40, %v8016
    %v8938 = vmul.f32 %v41, %v8021
    %v8939 = vmul.f32 %v42, %v8026
    %v8940 = vmul.f32 %v43, %v8031
    %v8941 = vmul.f32 %v44, %v8036
    %v8942 = vmul.f32 %v45, %v8041
    %v8943 = vmul.f32 %v46, %v8046
    %v8944 = vmul.f32 %v47, %v8051
    %v8945 = vmul.f32 %v48, %v8056
    %v8946 = vmul.f32 %v49, %v8061
    %v8947 = vmul.f32 %v50, %v8066
    %v8948 = vmul.f32 %v51, %v8071
    %v8949 = vmul.f32 %v52, %v8076
    %v8950 = vmul.f32 %v53, %v8081
    %v8951 = vmul.f32 %v54, %v8086
    %v8952 = vmul.f32 %v55, %v8091
    %v8953 = vmul.f32 %v56, %v8096
    %v8954 = vmul.f32 %v57, %v8101
    %v8955 = vmul.f32 %v58, %v8106
    %v8956 = vmul.f32 %v59, %v8111
    %v8957 = vmul.f32 %v60, %v8116
    %v8958 = vmul.f32 %v61, %v8121
    %v8959 = vmul.f32 %v62, %v8126
    %v8960 = vmul.f32 %v63, %v8131
    %v8961 = vmul.f32 %v64, %v8136
    %v8962 = vmul.f32 %v65, %v8141
    %v8963 = vmul.f32 %v66, %v8146
    %v8964 = vmul.f32 %v67, %v8151
    %v8965 = vmul.f32 %v68, %v8156
    %v8966 = vmul.f32 %v69, %v8161
    %v8967 = vmul.f32 %v70, %v8166
    %v8968 = vmul.f32 %v71, %v8171
    %v8969 = vmul.f32 %v72, %v8176
    %v8970 = vmul.f32 %v73, %v8181
    %v8971 = vmul.f32 %v74, %v8186
    %v8972 = vmul.f32 %v75, %v8191
    %v8973 = vmul.f32 %v76, %v8196
    %v8974 = vmul.f32 %v77, %v8201
    %v8975 = vmul.f32 %v78, %v8206
    %v8976 = vmul.f32 %v79, %v8211
    %v8977 = vmul.f32 %v80, %v8216
    %v8978 = vmul.f32 %v81, %v8221
    %v8979 = vmul.f32 %v82, %v8226
    %v8980 = vmul.f32 %v83, %v8231
    %v8981 = vmul.f32 %v84, %v8236
    %v8982 = vmul.f32 %v85, %v8241
    %v8983 = vmul.f32 %v86, %v8246
    %v8984 = vmul.f32 %v87, %v8251
    %v8985 = vmul.f32 %v88, %v8256
    %v8986 = vmul.f32 %v89, %v8261
    %v8987 = vmul.f32 %v90, %v8266
    %v8988 = vmul.f32 %v91, %v8271
    %v8989 = vmul.f32 %v92, %v8276
    %v8990 = vmul.f32 %v93, %v8281
    %v8991 = vmul.f32 %v94, %v8286
    %v8992 = vmul.f32 %v95, %v8291
    %v8993 = vmul.f32 %v96, %v8296
    %v8994 = vmul.f32 %v97, %v8301
    %v8995 = vmul.f32 %v98, %v8306
    %v8996 = vmul.f32 %v99, %v8311
    %v8997 = vmul.f32 %v100, %v8316
    %v8998 = vmul.f32 %v101, %v8321
    %v8999 = vmul.f32 %v102, %v8326
    %v9000 = vmul.f32 %v103, %v8331
    %v9001 = vmul.f32 %v104, %v8336
    %v9002 = vmul.f32 %v105, %v8341
    %v9003 = vmul.f32 %v106, %v8346
    %v9004 = vmul.f32 %v107, %v8351
    %v9005 = vmul.f32 %v108, %v8356
    %v9006 = vmul.f32 %v109, %v8361
    %v9007 = vmul.f32 %v110, %v8366
    %v9008 = vmul.f32 %v111, %v8371
    %v9009 = vmul.f32 %v112, %v8376
    %v9010 = vmul.f32 %v113, %v8381
    %v9011 = vmul.f32 %v114, %v8386
    %v9012 = vmul.f32 %v115, %v8391
    %v9013 = vmul.f32 %v116, %v8396
    %v9014 = vmul.f32 %v117, %v8401
    %v9015 = vmul.f32 %v118, %v8406
    %v9016 = vmul.f32 %v119, %v8411
    %v9017 = vmul.f32 %v120, %v8416
    %v9018 = vmul.f32 %v121, %v8421
    %v9019 = vmul.f32 %v122, %v8426
    %v9020 = vmul.f32 %v123, %v8431
    %v9021 = vmul.f32 %v124, %v8436
    %v9022 = vmul.f32 %v125, %v8441
    %v9023 = vmul.f32 %v126, %v8446
    %v9024 = vmul.f32 %v127, %v8451
    %v9025 = vmul.f32 %v128, %v8456
    %v9026 = vmul.f32 %v129, %v8461
    %v9027 = vmul.f32 %v130, %v8466
    %v9028 = vmul.f32 %v131, %v8471
    %v9029 = vmul.f32 %v132, %v8476
    %v9030 = vmul.f32 %v133, %v8481
    %v9031 = vmul.f32 %v134, %v8486
    %v9032 = vmul.f32 %v135, %v8491
    %v9033 = vmul.f32 %v136, %v8496
    %v9034 = vmul.f32 %v137, %v8501
    %v9035 = vmul.f32 %v138, %v8506
    %v9036 = vmul.f32 %v139, %v8511
    %v9037 = vmul.f32 %v140, %v8516
    %v9038 = vmul.f32 %v141, %v8521
    %v9039 = vmul.f32 %v142, %v8526
    %v9040 = vmul.f32 %v143, %v8531
    %v9041 = vmul.f32 %v144, %v8536
    %v9042 = vmul.f32 %v145, %v8541
    %v9043 = vmul.f32 %v146, %v8546
    %v9044 = vmul.f32 %v147, %v8551
    %v9045 = vmul.f32 %v148, %v8556
    %v9046 = vmul.f32 %v149, %v8561
    %v9047 = vmul.f32 %v150, %v8566
    %v9048 = vmul.f32 %v151, %v8571
    %v9049 = vmul.f32 %v152, %v8576
    %v9050 = vmul.f32 %v153, %v8581
    %v9051 = vmul.f32 %v154, %v8586
    %v9052 = vmul.f32 %v155, %v8591
    %v9053 = vmul.f32 %v156, %v8596
    %v9054 = vmul.f32 %v157, %v8601
    %v9055 = vmul.f32 %v158, %v8606
    %v9056 = vmul.f32 %v159, %v8611
    %v9057 = vmul.f32 %v160, %v8616
    %v9058 = vmul.f32 %v161, %v8621
    %v9059 = vmul.f32 %v162, %v8626
    %v9060 = vmul.f32 %v163, %v8631
    %v9061 = vmul.f32 %v164, %v8636
    %v9062 = vmul.f32 %v165, %v8641
    %v9063 = vmul.f32 %v166, %v8646
    %v9064 = vmul.f32 %v167, %v8651
    %v9065 = vmul.f32 %v168, %v8656
    %v9066 = vmul.f32 %v169, %v8661
    %v9067 = vmul.f32 %v170, %v8666
    %v9068 = vmul.f32 %v171, %v8671
    %v9069 = vmul.f32 %v172, %v8676
    %v9070 = vmul.f32 %v173, %v8681
    %v9071 = vmul.f32 %v174, %v8686
    %v9072 = vmul.f32 %v175, %v8691
    %v9073 = vmul.f32 %v176, %v8696
    %v9074 = vmul.f32 %v177, %v8701
    %v9075 = vmul.f32 %v178, %v8706
    %v9076 = vmul.f32 %v179, %v8711
    %v9077 = vmul.f32 %v180, %v8716
    %v9078 = vmul.f32 %v181, %v8721
    %v9079 = vmul.f32 %v182, %v8726
    %v9080 = vmul.f32 %v183, %v8731
    %v9081 = vmul.f32 %v184, %v8736
    %v9082 = vmul.f32 %v185, %v8741
    %v9083 = vmul.f32 %v186, %v8746
    %v9084 = vmul.f32 %v187, %v8751
    %v9085 = vmul.f32 %v188, %v8756
    %v9086 = vmul.f32 %v189, %v8761
    %v9087 = vmul.f32 %v190, %v8766
    %v9088 = vmul.f32 %v191, %v8771
    %v9089 = vmul.f32 %v192, %v8776
    %v9090 = vmul.f32 %v193, %v8781
    %v9091 = vmul.f32 %v194, %v8786
    %v9092 = vmul.f32 %v195, %v8791
    %v9093 = vmul.f32 %v196, %v8796
    %v9094 = vmul.f32 %v197, %v8801
    %v9095 = vmul.f32 %v198, %v8806
    %v9096 = vmul.f32 %v199, %v8811
    %v9097 = vmul.f32 %v200, %v8816
    %v9098 = vmul.f32 %v201, %v8821
    %v9099 = vmul.f32 %v202, %v8826
    %v9100 = vmul.f32 %v203, %v8831
    %v9101 = vmul.f32 %v204, %v8836
    %v9102 = vmul.f32 %v205, %v8841
    %v9103 = vmul.f32 %v206, %v8846
    %v9104 = vmul.f32 %v207, %v8851
    %v9105 = vmul.f32 %v208, %v8856
    %v9106 = vmul.f32 %v209, %v8861
    %v9107 = vmul.f32 %v210, %v8866
    %v9108 = vmul.f32 %v211, %v8871
    %v9109 = vmul.f32 %v212, %v8876
    %v9110 = vmul.f32 %v213, %v8881
    %v9111 = vmul.f32 %v214, %v8886
    %v9112 = vmul.f32 %v215, %v8891
    %v9113 = vmul.f32 %v216, %v8896
    %v9114 = vmul.f32 %v217, %v8901
    %v9115 = vmul.f32 %v218, %v8906
    %v9116 = vmul.f32 %v219, %v8911
    %v9117 = vmul.f32 %v220, %v8916
    %v9118 = vmul.f32 %v221, %v8921
    %v9119 = vmul.f32 %v222, %v8926
    %9121 = vset.pattern.permute.xlu0 0
    %9122 = vperm.xlu0 %9121, %v7776
    %v9123 = vpop.permute.xlu0 %9122
    %9126 = vset.pattern.permute.xlu0 0
    %9127 = vperm.xlu0 %9126, %v7777
    %v9128 = vpop.permute.xlu0 %9127
    %9131 = vset.pattern.permute.xlu0 0
    %9132 = vperm.xlu0 %9131, %v7778
    %v9133 = vpop.permute.xlu0 %9132
    %9136 = vset.pattern.permute.xlu0 0
    %9137 = vperm.xlu0 %9136, %v7779
    %v9138 = vpop.permute.xlu0 %9137
    %9141 = vset.pattern.permute.xlu0 0
    %9142 = vperm.xlu0 %9141, %v7780
    %v9143 = vpop.permute.xlu0 %9142
    %9146 = vset.pattern.permute.xlu0 0
    %9147 = vperm.xlu0 %9146, %v7781
    %v9148 = vpop.permute.xlu0 %9147
    %9151 = vset.pattern.permute.xlu0 0
    %9152 = vperm.xlu0 %9151, %v7782
    %v9153 = vpop.permute.xlu0 %9152
    %9156 = vset.pattern.permute.xlu0 0
    %9157 = vperm.xlu0 %9156, %v7783
    %v9158 = vpop.permute.xlu0 %9157
    %9161 = vset.pattern.permute.xlu0 0
    %9162 = vperm.xlu0 %9161, %v7784
    %v9163 = vpop.permute.xlu0 %9162
    %9166 = vset.pattern.permute.xlu0 0
    %9167 = vperm.xlu0 %9166, %v7785
    %v9168 = vpop.permute.xlu0 %9167
    %9171 = vset.pattern.permute.xlu0 0
    %9172 = vperm.xlu0 %9171, %v7786
    %v9173 = vpop.permute.xlu0 %9172
    %9176 = vset.pattern.permute.xlu0 0
    %9177 = vperm.xlu0 %9176, %v7787
    %v9178 = vpop.permute.xlu0 %9177
    %9181 = vset.pattern.permute.xlu0 0
    %9182 = vperm.xlu0 %9181, %v7788
    %v9183 = vpop.permute.xlu0 %9182
    %9186 = vset.pattern.permute.xlu0 0
    %9187 = vperm.xlu0 %9186, %v7789
    %v9188 = vpop.permute.xlu0 %9187
    %9191 = vset.pattern.permute.xlu0 0
    %9192 = vperm.xlu0 %9191, %v7790
    %v9193 = vpop.permute.xlu0 %9192
    %9196 = vset.pattern.permute.xlu0 0
    %9197 = vperm.xlu0 %9196, %v7791
    %v9198 = vpop.permute.xlu0 %9197
    %9201 = vset.pattern.permute.xlu0 0
    %9202 = vperm.xlu0 %9201, %v7792
    %v9203 = vpop.permute.xlu0 %9202
    %9206 = vset.pattern.permute.xlu0 0
    %9207 = vperm.xlu0 %9206, %v7793
    %v9208 = vpop.permute.xlu0 %9207
    %9211 = vset.pattern.permute.xlu0 0
    %9212 = vperm.xlu0 %9211, %v7794
    %v9213 = vpop.permute.xlu0 %9212
    %9216 = vset.pattern.permute.xlu0 0
    %9217 = vperm.xlu0 %9216, %v7795
    %v9218 = vpop.permute.xlu0 %9217
    %9221 = vset.pattern.permute.xlu0 0
    %9222 = vperm.xlu0 %9221, %v7796
    %v9223 = vpop.permute.xlu0 %9222
    %9226 = vset.pattern.permute.xlu0 0
    %9227 = vperm.xlu0 %9226, %v7797
    %v9228 = vpop.permute.xlu0 %9227
    %9231 = vset.pattern.permute.xlu0 0
    %9232 = vperm.xlu0 %9231, %v7798
    %v9233 = vpop.permute.xlu0 %9232
    %9236 = vset.pattern.permute.xlu0 0
    %9237 = vperm.xlu0 %9236, %v7799
    %v9238 = vpop.permute.xlu0 %9237
    %9241 = vset.pattern.permute.xlu0 0
    %9242 = vperm.xlu0 %9241, %v7800
    %v9243 = vpop.permute.xlu0 %9242
    %9246 = vset.pattern.permute.xlu0 0
    %9247 = vperm.xlu0 %9246, %v7801
    %v9248 = vpop.permute.xlu0 %9247
    %9251 = vset.pattern.permute.xlu0 0
    %9252 = vperm.xlu0 %9251, %v7802
    %v9253 = vpop.permute.xlu0 %9252
    %9256 = vset.pattern.permute.xlu0 0
    %9257 = vperm.xlu0 %9256, %v7803
    %v9258 = vpop.permute.xlu0 %9257
    %9261 = vset.pattern.permute.xlu0 0
    %9262 = vperm.xlu0 %9261, %v7804
    %v9263 = vpop.permute.xlu0 %9262
    %9266 = vset.pattern.permute.xlu0 0
    %9267 = vperm.xlu0 %9266, %v7805
    %v9268 = vpop.permute.xlu0 %9267
    %9271 = vset.pattern.permute.xlu0 0
    %9272 = vperm.xlu0 %9271, %v7806
    %v9273 = vpop.permute.xlu0 %9272
    %9276 = vset.pattern.permute.xlu0 0
    %9277 = vperm.xlu0 %9276, %v7807
    %v9278 = vpop.permute.xlu0 %9277
    %9281 = vset.pattern.permute.xlu0 0
    %9282 = vperm.xlu0 %9281, %v7808
    %v9283 = vpop.permute.xlu0 %9282
    %9286 = vset.pattern.permute.xlu0 0
    %9287 = vperm.xlu0 %9286, %v7809
    %v9288 = vpop.permute.xlu0 %9287
    %9291 = vset.pattern.permute.xlu0 0
    %9292 = vperm.xlu0 %9291, %v7810
    %v9293 = vpop.permute.xlu0 %9292
    %9296 = vset.pattern.permute.xlu0 0
    %9297 = vperm.xlu0 %9296, %v7811
    %v9298 = vpop.permute.xlu0 %9297
    %9301 = vset.pattern.permute.xlu0 0
    %9302 = vperm.xlu0 %9301, %v7812
    %v9303 = vpop.permute.xlu0 %9302
    %9306 = vset.pattern.permute.xlu0 0
    %9307 = vperm.xlu0 %9306, %v7813
    %v9308 = vpop.permute.xlu0 %9307
    %9311 = vset.pattern.permute.xlu0 0
    %9312 = vperm.xlu0 %9311, %v7814
    %v9313 = vpop.permute.xlu0 %9312
    %9316 = vset.pattern.permute.xlu0 0
    %9317 = vperm.xlu0 %9316, %v7815
    %v9318 = vpop.permute.xlu0 %9317
    %9321 = vset.pattern.permute.xlu0 0
    %9322 = vperm.xlu0 %9321, %v7816
    %v9323 = vpop.permute.xlu0 %9322
    %9326 = vset.pattern.permute.xlu0 0
    %9327 = vperm.xlu0 %9326, %v7817
    %v9328 = vpop.permute.xlu0 %9327
    %9331 = vset.pattern.permute.xlu0 0
    %9332 = vperm.xlu0 %9331, %v7818
    %v9333 = vpop.permute.xlu0 %9332
    %9336 = vset.pattern.permute.xlu0 0
    %9337 = vperm.xlu0 %9336, %v7819
    %v9338 = vpop.permute.xlu0 %9337
    %9341 = vset.pattern.permute.xlu0 0
    %9342 = vperm.xlu0 %9341, %v7820
    %v9343 = vpop.permute.xlu0 %9342
    %9346 = vset.pattern.permute.xlu0 0
    %9347 = vperm.xlu0 %9346, %v7821
    %v9348 = vpop.permute.xlu0 %9347
    %9351 = vset.pattern.permute.xlu0 0
    %9352 = vperm.xlu0 %9351, %v7822
    %v9353 = vpop.permute.xlu0 %9352
    %9356 = vset.pattern.permute.xlu0 0
    %9357 = vperm.xlu0 %9356, %v7823
    %v9358 = vpop.permute.xlu0 %9357
    %9361 = vset.pattern.permute.xlu0 0
    %9362 = vperm.xlu0 %9361, %v7824
    %v9363 = vpop.permute.xlu0 %9362
    %9366 = vset.pattern.permute.xlu0 0
    %9367 = vperm.xlu0 %9366, %v7825
    %v9368 = vpop.permute.xlu0 %9367
    %9371 = vset.pattern.permute.xlu0 0
    %9372 = vperm.xlu0 %9371, %v7826
    %v9373 = vpop.permute.xlu0 %9372
    %9376 = vset.pattern.permute.xlu0 0
    %9377 = vperm.xlu0 %9376, %v7827
    %v9378 = vpop.permute.xlu0 %9377
    %9381 = vset.pattern.permute.xlu0 0
    %9382 = vperm.xlu0 %9381, %v7828
    %v9383 = vpop.permute.xlu0 %9382
    %9386 = vset.pattern.permute.xlu0 0
    %9387 = vperm.xlu0 %9386, %v7829
    %v9388 = vpop.permute.xlu0 %9387
    %9391 = vset.pattern.permute.xlu0 0
    %9392 = vperm.xlu0 %9391, %v7830
    %v9393 = vpop.permute.xlu0 %9392
    %9396 = vset.pattern.permute.xlu0 0
    %9397 = vperm.xlu0 %9396, %v7831
    %v9398 = vpop.permute.xlu0 %9397
    %9401 = vset.pattern.permute.xlu0 0
    %9402 = vperm.xlu0 %9401, %v7832
    %v9403 = vpop.permute.xlu0 %9402
    %9406 = vset.pattern.permute.xlu0 0
    %9407 = vperm.xlu0 %9406, %v7833
    %v9408 = vpop.permute.xlu0 %9407
    %9411 = vset.pattern.permute.xlu0 0
    %9412 = vperm.xlu0 %9411, %v7834
    %v9413 = vpop.permute.xlu0 %9412
    %9416 = vset.pattern.permute.xlu0 0
    %9417 = vperm.xlu0 %9416, %v7835
    %v9418 = vpop.permute.xlu0 %9417
    %9421 = vset.pattern.permute.xlu0 0
    %9422 = vperm.xlu0 %9421, %v7836
    %v9423 = vpop.permute.xlu0 %9422
    %9426 = vset.pattern.permute.xlu0 0
    %9427 = vperm.xlu0 %9426, %v7837
    %v9428 = vpop.permute.xlu0 %9427
    %9431 = vset.pattern.permute.xlu0 0
    %9432 = vperm.xlu0 %9431, %v7838
    %v9433 = vpop.permute.xlu0 %9432
    %9436 = vset.pattern.permute.xlu0 0
    %9437 = vperm.xlu0 %9436, %v7839
    %v9438 = vpop.permute.xlu0 %9437
    %9441 = vset.pattern.permute.xlu0 0
    %9442 = vperm.xlu0 %9441, %v7840
    %v9443 = vpop.permute.xlu0 %9442
    %9446 = vset.pattern.permute.xlu0 0
    %9447 = vperm.xlu0 %9446, %v7841
    %v9448 = vpop.permute.xlu0 %9447
    %9451 = vset.pattern.permute.xlu0 0
    %9452 = vperm.xlu0 %9451, %v7842
    %v9453 = vpop.permute.xlu0 %9452
    %9456 = vset.pattern.permute.xlu0 0
    %9457 = vperm.xlu0 %9456, %v7843
    %v9458 = vpop.permute.xlu0 %9457
    %9461 = vset.pattern.permute.xlu0 0
    %9462 = vperm.xlu0 %9461, %v7844
    %v9463 = vpop.permute.xlu0 %9462
    %9466 = vset.pattern.permute.xlu0 0
    %9467 = vperm.xlu0 %9466, %v7845
    %v9468 = vpop.permute.xlu0 %9467
    %9471 = vset.pattern.permute.xlu0 0
    %9472 = vperm.xlu0 %9471, %v7846
    %v9473 = vpop.permute.xlu0 %9472
    %9476 = vset.pattern.permute.xlu0 0
    %9477 = vperm.xlu0 %9476, %v7847
    %v9478 = vpop.permute.xlu0 %9477
    %9481 = vset.pattern.permute.xlu0 0
    %9482 = vperm.xlu0 %9481, %v7848
    %v9483 = vpop.permute.xlu0 %9482
    %9486 = vset.pattern.permute.xlu0 0
    %9487 = vperm.xlu0 %9486, %v7849
    %v9488 = vpop.permute.xlu0 %9487
    %9491 = vset.pattern.permute.xlu0 0
    %9492 = vperm.xlu0 %9491, %v7850
    %v9493 = vpop.permute.xlu0 %9492
    %9496 = vset.pattern.permute.xlu0 0
    %9497 = vperm.xlu0 %9496, %v7851
    %v9498 = vpop.permute.xlu0 %9497
    %9501 = vset.pattern.permute.xlu0 0
    %9502 = vperm.xlu0 %9501, %v7852
    %v9503 = vpop.permute.xlu0 %9502
    %9506 = vset.pattern.permute.xlu0 0
    %9507 = vperm.xlu0 %9506, %v7853
    %v9508 = vpop.permute.xlu0 %9507
    %9511 = vset.pattern.permute.xlu0 0
    %9512 = vperm.xlu0 %9511, %v7854
    %v9513 = vpop.permute.xlu0 %9512
    %9516 = vset.pattern.permute.xlu0 0
    %9517 = vperm.xlu0 %9516, %v7855
    %v9518 = vpop.permute.xlu0 %9517
    %9521 = vset.pattern.permute.xlu0 0
    %9522 = vperm.xlu0 %9521, %v7856
    %v9523 = vpop.permute.xlu0 %9522
    %9526 = vset.pattern.permute.xlu0 0
    %9527 = vperm.xlu0 %9526, %v7857
    %v9528 = vpop.permute.xlu0 %9527
    %9531 = vset.pattern.permute.xlu0 0
    %9532 = vperm.xlu0 %9531, %v7858
    %v9533 = vpop.permute.xlu0 %9532
    %9536 = vset.pattern.permute.xlu0 0
    %9537 = vperm.xlu0 %9536, %v7859
    %v9538 = vpop.permute.xlu0 %9537
    %9541 = vset.pattern.permute.xlu0 0
    %9542 = vperm.xlu0 %9541, %v7860
    %v9543 = vpop.permute.xlu0 %9542
    %9546 = vset.pattern.permute.xlu0 0
    %9547 = vperm.xlu0 %9546, %v7861
    %v9548 = vpop.permute.xlu0 %9547
    %9551 = vset.pattern.permute.xlu0 0
    %9552 = vperm.xlu0 %9551, %v7862
    %v9553 = vpop.permute.xlu0 %9552
    %9556 = vset.pattern.permute.xlu0 0
    %9557 = vperm.xlu0 %9556, %v7863
    %v9558 = vpop.permute.xlu0 %9557
    %9561 = vset.pattern.permute.xlu0 0
    %9562 = vperm.xlu0 %9561, %v7864
    %v9563 = vpop.permute.xlu0 %9562
    %9566 = vset.pattern.permute.xlu0 0
    %9567 = vperm.xlu0 %9566, %v7865
    %v9568 = vpop.permute.xlu0 %9567
    %9571 = vset.pattern.permute.xlu0 0
    %9572 = vperm.xlu0 %9571, %v7866
    %v9573 = vpop.permute.xlu0 %9572
    %9576 = vset.pattern.permute.xlu0 0
    %9577 = vperm.xlu0 %9576, %v7867
    %v9578 = vpop.permute.xlu0 %9577
    %9581 = vset.pattern.permute.xlu0 0
    %9582 = vperm.xlu0 %9581, %v7868
    %v9583 = vpop.permute.xlu0 %9582
    %9586 = vset.pattern.permute.xlu0 0
    %9587 = vperm.xlu0 %9586, %v7869
    %v9588 = vpop.permute.xlu0 %9587
    %9591 = vset.pattern.permute.xlu0 0
    %9592 = vperm.xlu0 %9591, %v7870
    %v9593 = vpop.permute.xlu0 %9592
    %9596 = vset.pattern.permute.xlu0 0
    %9597 = vperm.xlu0 %9596, %v7871
    %v9598 = vpop.permute.xlu0 %9597
    %9601 = vset.pattern.permute.xlu0 0
    %9602 = vperm.xlu0 %9601, %v7872
    %v9603 = vpop.permute.xlu0 %9602
    %9606 = vset.pattern.permute.xlu0 0
    %9607 = vperm.xlu0 %9606, %v7873
    %v9608 = vpop.permute.xlu0 %9607
    %9611 = vset.pattern.permute.xlu0 0
    %9612 = vperm.xlu0 %9611, %v7874
    %v9613 = vpop.permute.xlu0 %9612
    %9616 = vset.pattern.permute.xlu0 0
    %9617 = vperm.xlu0 %9616, %v7875
    %v9618 = vpop.permute.xlu0 %9617
    %9621 = vset.pattern.permute.xlu0 0
    %9622 = vperm.xlu0 %9621, %v7876
    %v9623 = vpop.permute.xlu0 %9622
    %9626 = vset.pattern.permute.xlu0 0
    %9627 = vperm.xlu0 %9626, %v7877
    %v9628 = vpop.permute.xlu0 %9627
    %9631 = vset.pattern.permute.xlu0 0
    %9632 = vperm.xlu0 %9631, %v7878
    %v9633 = vpop.permute.xlu0 %9632
    %9636 = vset.pattern.permute.xlu0 0
    %9637 = vperm.xlu0 %9636, %v7879
    %v9638 = vpop.permute.xlu0 %9637
    %9641 = vset.pattern.permute.xlu0 0
    %9642 = vperm.xlu0 %9641, %v7880
    %v9643 = vpop.permute.xlu0 %9642
    %9646 = vset.pattern.permute.xlu0 0
    %9647 = vperm.xlu0 %9646, %v7881
    %v9648 = vpop.permute.xlu0 %9647
    %9651 = vset.pattern.permute.xlu0 0
    %9652 = vperm.xlu0 %9651, %v7882
    %v9653 = vpop.permute.xlu0 %9652
    %9656 = vset.pattern.permute.xlu0 0
    %9657 = vperm.xlu0 %9656, %v7883
    %v9658 = vpop.permute.xlu0 %9657
    %9661 = vset.pattern.permute.xlu0 0
    %9662 = vperm.xlu0 %9661, %v7884
    %v9663 = vpop.permute.xlu0 %9662
    %9666 = vset.pattern.permute.xlu0 0
    %9667 = vperm.xlu0 %9666, %v7885
    %v9668 = vpop.permute.xlu0 %9667
    %9671 = vset.pattern.permute.xlu0 0
    %9672 = vperm.xlu0 %9671, %v7886
    %v9673 = vpop.permute.xlu0 %9672
    %9676 = vset.pattern.permute.xlu0 0
    %9677 = vperm.xlu0 %9676, %v7887
    %v9678 = vpop.permute.xlu0 %9677
    %9681 = vset.pattern.permute.xlu0 0
    %9682 = vperm.xlu0 %9681, %v7888
    %v9683 = vpop.permute.xlu0 %9682
    %9686 = vset.pattern.permute.xlu0 0
    %9687 = vperm.xlu0 %9686, %v7889
    %v9688 = vpop.permute.xlu0 %9687
    %9691 = vset.pattern.permute.xlu0 0
    %9692 = vperm.xlu0 %9691, %v7890
    %v9693 = vpop.permute.xlu0 %9692
    %9696 = vset.pattern.permute.xlu0 0
    %9697 = vperm.xlu0 %9696, %v7891
    %v9698 = vpop.permute.xlu0 %9697
    %9701 = vset.pattern.permute.xlu0 0
    %9702 = vperm.xlu0 %9701, %v7892
    %v9703 = vpop.permute.xlu0 %9702
    %9706 = vset.pattern.permute.xlu0 0
    %9707 = vperm.xlu0 %9706, %v7893
    %v9708 = vpop.permute.xlu0 %9707
    %9711 = vset.pattern.permute.xlu0 0
    %9712 = vperm.xlu0 %9711, %v7894
    %v9713 = vpop.permute.xlu0 %9712
    %9716 = vset.pattern.permute.xlu0 0
    %9717 = vperm.xlu0 %9716, %v7895
    %v9718 = vpop.permute.xlu0 %9717
    %9721 = vset.pattern.permute.xlu0 0
    %9722 = vperm.xlu0 %9721, %v7896
    %v9723 = vpop.permute.xlu0 %9722
    %9726 = vset.pattern.permute.xlu0 0
    %9727 = vperm.xlu0 %9726, %v7897
    %v9728 = vpop.permute.xlu0 %9727
    %9731 = vset.pattern.permute.xlu0 0
    %9732 = vperm.xlu0 %9731, %v7898
    %v9733 = vpop.permute.xlu0 %9732
    %9736 = vset.pattern.permute.xlu0 0
    %9737 = vperm.xlu0 %9736, %v7899
    %v9738 = vpop.permute.xlu0 %9737
    %9741 = vset.pattern.permute.xlu0 0
    %9742 = vperm.xlu0 %9741, %v7900
    %v9743 = vpop.permute.xlu0 %9742
    %9746 = vset.pattern.permute.xlu0 0
    %9747 = vperm.xlu0 %9746, %v7901
    %v9748 = vpop.permute.xlu0 %9747
    %9751 = vset.pattern.permute.xlu0 0
    %9752 = vperm.xlu0 %9751, %v7902
    %v9753 = vpop.permute.xlu0 %9752
    %9756 = vset.pattern.permute.xlu0 0
    %9757 = vperm.xlu0 %9756, %v7903
    %v9758 = vpop.permute.xlu0 %9757
    %9761 = vset.pattern.permute.xlu0 0
    %9762 = vperm.xlu0 %9761, %v7904
    %v9763 = vpop.permute.xlu0 %9762
    %9766 = vset.pattern.permute.xlu0 0
    %9767 = vperm.xlu0 %9766, %v7905
    %v9768 = vpop.permute.xlu0 %9767
    %9771 = vset.pattern.permute.xlu0 0
    %9772 = vperm.xlu0 %9771, %v7906
    %v9773 = vpop.permute.xlu0 %9772
    %9776 = vset.pattern.permute.xlu0 0
    %9777 = vperm.xlu0 %9776, %v7907
    %v9778 = vpop.permute.xlu0 %9777
    %9781 = vset.pattern.permute.xlu0 0
    %9782 = vperm.xlu0 %9781, %v7908
    %v9783 = vpop.permute.xlu0 %9782
    %9786 = vset.pattern.permute.xlu0 0
    %9787 = vperm.xlu0 %9786, %v7909
    %v9788 = vpop.permute.xlu0 %9787
    %9791 = vset.pattern.permute.xlu0 0
    %9792 = vperm.xlu0 %9791, %v7910
    %v9793 = vpop.permute.xlu0 %9792
    %9796 = vset.pattern.permute.xlu0 0
    %9797 = vperm.xlu0 %9796, %v7911
    %v9798 = vpop.permute.xlu0 %9797
    %9801 = vset.pattern.permute.xlu0 0
    %9802 = vperm.xlu0 %9801, %v7912
    %v9803 = vpop.permute.xlu0 %9802
    %9806 = vset.pattern.permute.xlu0 0
    %9807 = vperm.xlu0 %9806, %v7913
    %v9808 = vpop.permute.xlu0 %9807
    %9811 = vset.pattern.permute.xlu0 0
    %9812 = vperm.xlu0 %9811, %v7914
    %v9813 = vpop.permute.xlu0 %9812
    %9816 = vset.pattern.permute.xlu0 0
    %9817 = vperm.xlu0 %9816, %v7915
    %v9818 = vpop.permute.xlu0 %9817
    %9821 = vset.pattern.permute.xlu0 0
    %9822 = vperm.xlu0 %9821, %v7916
    %v9823 = vpop.permute.xlu0 %9822
    %9826 = vset.pattern.permute.xlu0 0
    %9827 = vperm.xlu0 %9826, %v7917
    %v9828 = vpop.permute.xlu0 %9827
    %9831 = vset.pattern.permute.xlu0 0
    %9832 = vperm.xlu0 %9831, %v7918
    %v9833 = vpop.permute.xlu0 %9832
    %9836 = vset.pattern.permute.xlu0 0
    %9837 = vperm.xlu0 %9836, %v7919
    %v9838 = vpop.permute.xlu0 %9837
    %9841 = vset.pattern.permute.xlu0 0
    %9842 = vperm.xlu0 %9841, %v7920
    %v9843 = vpop.permute.xlu0 %9842
    %9846 = vset.pattern.permute.xlu0 0
    %9847 = vperm.xlu0 %9846, %v7921
    %v9848 = vpop.permute.xlu0 %9847
    %9851 = vset.pattern.permute.xlu0 0
    %9852 = vperm.xlu0 %9851, %v7922
    %v9853 = vpop.permute.xlu0 %9852
    %9856 = vset.pattern.permute.xlu0 0
    %9857 = vperm.xlu0 %9856, %v7923
    %v9858 = vpop.permute.xlu0 %9857
    %9861 = vset.pattern.permute.xlu0 0
    %9862 = vperm.xlu0 %9861, %v7924
    %v9863 = vpop.permute.xlu0 %9862
    %9866 = vset.pattern.permute.xlu0 0
    %9867 = vperm.xlu0 %9866, %v7925
    %v9868 = vpop.permute.xlu0 %9867
    %9871 = vset.pattern.permute.xlu0 0
    %9872 = vperm.xlu0 %9871, %v7926
    %v9873 = vpop.permute.xlu0 %9872
    %9876 = vset.pattern.permute.xlu0 0
    %9877 = vperm.xlu0 %9876, %v7927
    %v9878 = vpop.permute.xlu0 %9877
    %9881 = vset.pattern.permute.xlu0 0
    %9882 = vperm.xlu0 %9881, %v7928
    %v9883 = vpop.permute.xlu0 %9882
    %9886 = vset.pattern.permute.xlu0 0
    %9887 = vperm.xlu0 %9886, %v7929
    %v9888 = vpop.permute.xlu0 %9887
    %9891 = vset.pattern.permute.xlu0 0
    %9892 = vperm.xlu0 %9891, %v7930
    %v9893 = vpop.permute.xlu0 %9892
    %9896 = vset.pattern.permute.xlu0 0
    %9897 = vperm.xlu0 %9896, %v7931
    %v9898 = vpop.permute.xlu0 %9897
    %9901 = vset.pattern.permute.xlu0 0
    %9902 = vperm.xlu0 %9901, %v7932
    %v9903 = vpop.permute.xlu0 %9902
    %9906 = vset.pattern.permute.xlu0 0
    %9907 = vperm.xlu0 %9906, %v7933
    %v9908 = vpop.permute.xlu0 %9907
    %9911 = vset.pattern.permute.xlu0 0
    %9912 = vperm.xlu0 %9911, %v7934
    %v9913 = vpop.permute.xlu0 %9912
    %9916 = vset.pattern.permute.xlu0 0
    %9917 = vperm.xlu0 %9916, %v7935
    %v9918 = vpop.permute.xlu0 %9917
    %9921 = vset.pattern.permute.xlu0 0
    %9922 = vperm.xlu0 %9921, %v7936
    %v9923 = vpop.permute.xlu0 %9922
    %9926 = vset.pattern.permute.xlu0 0
    %9927 = vperm.xlu0 %9926, %v7937
    %v9928 = vpop.permute.xlu0 %9927
    %9931 = vset.pattern.permute.xlu0 0
    %9932 = vperm.xlu0 %9931, %v7938
    %v9933 = vpop.permute.xlu0 %9932
    %9936 = vset.pattern.permute.xlu0 0
    %9937 = vperm.xlu0 %9936, %v7939
    %v9938 = vpop.permute.xlu0 %9937
    %9941 = vset.pattern.permute.xlu0 0
    %9942 = vperm.xlu0 %9941, %v7940
    %v9943 = vpop.permute.xlu0 %9942
    %9946 = vset.pattern.permute.xlu0 0
    %9947 = vperm.xlu0 %9946, %v7941
    %v9948 = vpop.permute.xlu0 %9947
    %9951 = vset.pattern.permute.xlu0 0
    %9952 = vperm.xlu0 %9951, %v7942
    %v9953 = vpop.permute.xlu0 %9952
    %9956 = vset.pattern.permute.xlu0 0
    %9957 = vperm.xlu0 %9956, %v7943
    %v9958 = vpop.permute.xlu0 %9957
    %9961 = vset.pattern.permute.xlu0 0
    %9962 = vperm.xlu0 %9961, %v7944
    %v9963 = vpop.permute.xlu0 %9962
    %9966 = vset.pattern.permute.xlu0 0
    %9967 = vperm.xlu0 %9966, %v7945
    %v9968 = vpop.permute.xlu0 %9967
    %9971 = vset.pattern.permute.xlu0 0
    %9972 = vperm.xlu0 %9971, %v7946
    %v9973 = vpop.permute.xlu0 %9972
    %9976 = vset.pattern.permute.xlu0 0
    %9977 = vperm.xlu0 %9976, %v7947
    %v9978 = vpop.permute.xlu0 %9977
    %9981 = vset.pattern.permute.xlu0 0
    %9982 = vperm.xlu0 %9981, %v7948
    %v9983 = vpop.permute.xlu0 %9982
    %9986 = vset.pattern.permute.xlu0 0
    %9987 = vperm.xlu0 %9986, %v7949
    %v9988 = vpop.permute.xlu0 %9987
    %9991 = vset.pattern.permute.xlu0 0
    %9992 = vperm.xlu0 %9991, %v7950
    %v9993 = vpop.permute.xlu0 %9992
    %9996 = vset.pattern.permute.xlu0 0
    %9997 = vperm.xlu0 %9996, %v7951
    %v9998 = vpop.permute.xlu0 %9997
    %10001 = vset.pattern.permute.xlu0 0
    %10002 = vperm.xlu0 %10001, %v7952
    %v10003 = vpop.permute.xlu0 %10002
    %10006 = vset.pattern.permute.xlu0 0
    %10007 = vperm.xlu0 %10006, %v7953
    %v10008 = vpop.permute.xlu0 %10007
    %10011 = vset.pattern.permute.xlu0 0
    %10012 = vperm.xlu0 %10011, %v7954
    %v10013 = vpop.permute.xlu0 %10012
    %10016 = vset.pattern.permute.xlu0 0
    %10017 = vperm.xlu0 %10016, %v7955
    %v10018 = vpop.permute.xlu0 %10017
    %10021 = vset.pattern.permute.xlu0 0
    %10022 = vperm.xlu0 %10021, %v7956
    %v10023 = vpop.permute.xlu0 %10022
    %10026 = vset.pattern.permute.xlu0 0
    %10027 = vperm.xlu0 %10026, %v7957
    %v10028 = vpop.permute.xlu0 %10027
    %10031 = vset.pattern.permute.xlu0 0
    %10032 = vperm.xlu0 %10031, %v7958
    %v10033 = vpop.permute.xlu0 %10032
    %10036 = vset.pattern.permute.xlu0 0
    %10037 = vperm.xlu0 %10036, %v7959
    %v10038 = vpop.permute.xlu0 %10037
    %10041 = vset.pattern.permute.xlu0 0
    %10042 = vperm.xlu0 %10041, %v7960
    %v10043 = vpop.permute.xlu0 %10042
    %10046 = vset.pattern.permute.xlu0 0
    %10047 = vperm.xlu0 %10046, %v7961
    %v10048 = vpop.permute.xlu0 %10047
    %10051 = vset.pattern.permute.xlu0 0
    %10052 = vperm.xlu0 %10051, %v7962
    %v10053 = vpop.permute.xlu0 %10052
    %10056 = vset.pattern.permute.xlu0 0
    %10057 = vperm.xlu0 %10056, %v7963
    %v10058 = vpop.permute.xlu0 %10057
    %10061 = vset.pattern.permute.xlu0 0
    %10062 = vperm.xlu0 %10061, %v7964
    %v10063 = vpop.permute.xlu0 %10062
    %10066 = vset.pattern.permute.xlu0 0
    %10067 = vperm.xlu0 %10066, %v7965
    %v10068 = vpop.permute.xlu0 %10067
    %10071 = vset.pattern.permute.xlu0 0
    %10072 = vperm.xlu0 %10071, %v7966
    %v10073 = vpop.permute.xlu0 %10072
    %10076 = vset.pattern.permute.xlu0 0
    %10077 = vperm.xlu0 %10076, %v7967
    %v10078 = vpop.permute.xlu0 %10077
    %v10080 = vadd.f32 %v8928, %v9123
    %v10081 = vadd.f32 %v8929, %v9128
    %v10082 = vadd.f32 %v8930, %v9133
    %v10083 = vadd.f32 %v8931, %v9138
    %v10084 = vadd.f32 %v8932, %v9143
    %v10085 = vadd.f32 %v8933, %v9148
    %v10086 = vadd.f32 %v8934, %v9153
    %v10087 = vadd.f32 %v8935, %v9158
    %v10088 = vadd.f32 %v8936, %v9163
    %v10089 = vadd.f32 %v8937, %v9168
    %v10090 = vadd.f32 %v8938, %v9173
    %v10091 = vadd.f32 %v8939, %v9178
    %v10092 = vadd.f32 %v8940, %v9183
    %v10093 = vadd.f32 %v8941, %v9188
    %v10094 = vadd.f32 %v8942, %v9193
    %v10095 = vadd.f32 %v8943, %v9198
    %v10096 = vadd.f32 %v8944, %v9203
    %v10097 = vadd.f32 %v8945, %v9208
    %v10098 = vadd.f32 %v8946, %v9213
    %v10099 = vadd.f32 %v8947, %v9218
    %v10100 = vadd.f32 %v8948, %v9223
    %v10101 = vadd.f32 %v8949, %v9228
    %v10102 = vadd.f32 %v8950, %v9233
    %v10103 = vadd.f32 %v8951, %v9238
    %v10104 = vadd.f32 %v8952, %v9243
    %v10105 = vadd.f32 %v8953, %v9248
    %v10106 = vadd.f32 %v8954, %v9253
    %v10107 = vadd.f32 %v8955, %v9258
    %v10108 = vadd.f32 %v8956, %v9263
    %v10109 = vadd.f32 %v8957, %v9268
    %v10110 = vadd.f32 %v8958, %v9273
    %v10111 = vadd.f32 %v8959, %v9278
    %v10112 = vadd.f32 %v8960, %v9283
    %v10113 = vadd.f32 %v8961, %v9288
    %v10114 = vadd.f32 %v8962, %v9293
    %v10115 = vadd.f32 %v8963, %v9298
    %v10116 = vadd.f32 %v8964, %v9303
    %v10117 = vadd.f32 %v8965, %v9308
    %v10118 = vadd.f32 %v8966, %v9313
    %v10119 = vadd.f32 %v8967, %v9318
    %v10120 = vadd.f32 %v8968, %v9323
    %v10121 = vadd.f32 %v8969, %v9328
    %v10122 = vadd.f32 %v8970, %v9333
    %v10123 = vadd.f32 %v8971, %v9338
    %v10124 = vadd.f32 %v8972, %v9343
    %v10125 = vadd.f32 %v8973, %v9348
    %v10126 = vadd.f32 %v8974, %v9353
    %v10127 = vadd.f32 %v8975, %v9358
    %v10128 = vadd.f32 %v8976, %v9363
    %v10129 = vadd.f32 %v8977, %v9368
    %v10130 = vadd.f32 %v8978, %v9373
    %v10131 = vadd.f32 %v8979, %v9378
    %v10132 = vadd.f32 %v8980, %v9383
    %v10133 = vadd.f32 %v8981, %v9388
    %v10134 = vadd.f32 %v8982, %v9393
    %v10135 = vadd.f32 %v8983, %v9398
    %v10136 = vadd.f32 %v8984, %v9403
    %v10137 = vadd.f32 %v8985, %v9408
    %v10138 = vadd.f32 %v8986, %v9413
    %v10139 = vadd.f32 %v8987, %v9418
    %v10140 = vadd.f32 %v8988, %v9423
    %v10141 = vadd.f32 %v8989, %v9428
    %v10142 = vadd.f32 %v8990, %v9433
    %v10143 = vadd.f32 %v8991, %v9438
    %v10144 = vadd.f32 %v8992, %v9443
    %v10145 = vadd.f32 %v8993, %v9448
    %v10146 = vadd.f32 %v8994, %v9453
    %v10147 = vadd.f32 %v8995, %v9458
    %v10148 = vadd.f32 %v8996, %v9463
    %v10149 = vadd.f32 %v8997, %v9468
    %v10150 = vadd.f32 %v8998, %v9473
    %v10151 = vadd.f32 %v8999, %v9478
    %v10152 = vadd.f32 %v9000, %v9483
    %v10153 = vadd.f32 %v9001, %v9488
    %v10154 = vadd.f32 %v9002, %v9493
    %v10155 = vadd.f32 %v9003, %v9498
    %v10156 = vadd.f32 %v9004, %v9503
    %v10157 = vadd.f32 %v9005, %v9508
    %v10158 = vadd.f32 %v9006, %v9513
    %v10159 = vadd.f32 %v9007, %v9518
    %v10160 = vadd.f32 %v9008, %v9523
    %v10161 = vadd.f32 %v9009, %v9528
    %v10162 = vadd.f32 %v9010, %v9533
    %v10163 = vadd.f32 %v9011, %v9538
    %v10164 = vadd.f32 %v9012, %v9543
    %v10165 = vadd.f32 %v9013, %v9548
    %v10166 = vadd.f32 %v9014, %v9553
    %v10167 = vadd.f32 %v9015, %v9558
    %v10168 = vadd.f32 %v9016, %v9563
    %v10169 = vadd.f32 %v9017, %v9568
    %v10170 = vadd.f32 %v9018, %v9573
    %v10171 = vadd.f32 %v9019, %v9578
    %v10172 = vadd.f32 %v9020, %v9583
    %v10173 = vadd.f32 %v9021, %v9588
    %v10174 = vadd.f32 %v9022, %v9593
    %v10175 = vadd.f32 %v9023, %v9598
    %v10176 = vadd.f32 %v9024, %v9603
    %v10177 = vadd.f32 %v9025, %v9608
    %v10178 = vadd.f32 %v9026, %v9613
    %v10179 = vadd.f32 %v9027, %v9618
    %v10180 = vadd.f32 %v9028, %v9623
    %v10181 = vadd.f32 %v9029, %v9628
    %v10182 = vadd.f32 %v9030, %v9633
    %v10183 = vadd.f32 %v9031, %v9638
    %v10184 = vadd.f32 %v9032, %v9643
    %v10185 = vadd.f32 %v9033, %v9648
    %v10186 = vadd.f32 %v9034, %v9653
    %v10187 = vadd.f32 %v9035, %v9658
    %v10188 = vadd.f32 %v9036, %v9663
    %v10189 = vadd.f32 %v9037, %v9668
    %v10190 = vadd.f32 %v9038, %v9673
    %v10191 = vadd.f32 %v9039, %v9678
    %v10192 = vadd.f32 %v9040, %v9683
    %v10193 = vadd.f32 %v9041, %v9688
    %v10194 = vadd.f32 %v9042, %v9693
    %v10195 = vadd.f32 %v9043, %v9698
    %v10196 = vadd.f32 %v9044, %v9703
    %v10197 = vadd.f32 %v9045, %v9708
    %v10198 = vadd.f32 %v9046, %v9713
    %v10199 = vadd.f32 %v9047, %v9718
    %v10200 = vadd.f32 %v9048, %v9723
    %v10201 = vadd.f32 %v9049, %v9728
    %v10202 = vadd.f32 %v9050, %v9733
    %v10203 = vadd.f32 %v9051, %v9738
    %v10204 = vadd.f32 %v9052, %v9743
    %v10205 = vadd.f32 %v9053, %v9748
    %v10206 = vadd.f32 %v9054, %v9753
    %v10207 = vadd.f32 %v9055, %v9758
    %v10208 = vadd.f32 %v9056, %v9763
    %v10209 = vadd.f32 %v9057, %v9768
    %v10210 = vadd.f32 %v9058, %v9773
    %v10211 = vadd.f32 %v9059, %v9778
    %v10212 = vadd.f32 %v9060, %v9783
    %v10213 = vadd.f32 %v9061, %v9788
    %v10214 = vadd.f32 %v9062, %v9793
    %v10215 = vadd.f32 %v9063, %v9798
    %v10216 = vadd.f32 %v9064, %v9803
    %v10217 = vadd.f32 %v9065, %v9808
    %v10218 = vadd.f32 %v9066, %v9813
    %v10219 = vadd.f32 %v9067, %v9818
    %v10220 = vadd.f32 %v9068, %v9823
    %v10221 = vadd.f32 %v9069, %v9828
    %v10222 = vadd.f32 %v9070, %v9833
    %v10223 = vadd.f32 %v9071, %v9838
    %v10224 = vadd.f32 %v9072, %v9843
    %v10225 = vadd.f32 %v9073, %v9848
    %v10226 = vadd.f32 %v9074, %v9853
    %v10227 = vadd.f32 %v9075, %v9858
    %v10228 = vadd.f32 %v9076, %v9863
    %v10229 = vadd.f32 %v9077, %v9868
    %v10230 = vadd.f32 %v9078, %v9873
    %v10231 = vadd.f32 %v9079, %v9878
    %v10232 = vadd.f32 %v9080, %v9883
    %v10233 = vadd.f32 %v9081, %v9888
    %v10234 = vadd.f32 %v9082, %v9893
    %v10235 = vadd.f32 %v9083, %v9898
    %v10236 = vadd.f32 %v9084, %v9903
    %v10237 = vadd.f32 %v9085, %v9908
    %v10238 = vadd.f32 %v9086, %v9913
    %v10239 = vadd.f32 %v9087, %v9918
    %v10240 = vadd.f32 %v9088, %v9923
    %v10241 = vadd.f32 %v9089, %v9928
    %v10242 = vadd.f32 %v9090, %v9933
    %v10243 = vadd.f32 %v9091, %v9938
    %v10244 = vadd.f32 %v9092, %v9943
    %v10245 = vadd.f32 %v9093, %v9948
    %v10246 = vadd.f32 %v9094, %v9953
    %v10247 = vadd.f32 %v9095, %v9958
    %v10248 = vadd.f32 %v9096, %v9963
    %v10249 = vadd.f32 %v9097, %v9968
    %v10250 = vadd.f32 %v9098, %v9973
    %v10251 = vadd.f32 %v9099, %v9978
    %v10252 = vadd.f32 %v9100, %v9983
    %v10253 = vadd.f32 %v9101, %v9988
    %v10254 = vadd.f32 %v9102, %v9993
    %v10255 = vadd.f32 %v9103, %v9998
    %v10256 = vadd.f32 %v9104, %v10003
    %v10257 = vadd.f32 %v9105, %v10008
    %v10258 = vadd.f32 %v9106, %v10013
    %v10259 = vadd.f32 %v9107, %v10018
    %v10260 = vadd.f32 %v9108, %v10023
    %v10261 = vadd.f32 %v9109, %v10028
    %v10262 = vadd.f32 %v9110, %v10033
    %v10263 = vadd.f32 %v9111, %v10038
    %v10264 = vadd.f32 %v9112, %v10043
    %v10265 = vadd.f32 %v9113, %v10048
    %v10266 = vadd.f32 %v9114, %v10053
    %v10267 = vadd.f32 %v9115, %v10058
    %v10268 = vadd.f32 %v9116, %v10063
    %v10269 = vadd.f32 %v9117, %v10068
    %v10270 = vadd.f32 %v9118, %v10073
    %v10271 = vadd.f32 %v9119, %v10078
    %10272 = vst [vmem:[#allocation5] sm:$0xf] %v10080
    %10273 = vst [vmem:[#allocation5 + $0x4] sm:$0xf] %v10081
    %10274 = vst [vmem:[#allocation5 + $0x8] sm:$0xf] %v10082
    %10275 = vst [vmem:[#allocation5 + $0xc] sm:$0xf] %v10083
    %10276 = vst [vmem:[#allocation5 + $0x10] sm:$0xf] %v10084
    %10277 = vst [vmem:[#allocation5 + $0x14] sm:$0xf] %v10085
    %10278 = vst [vmem:[#allocation5 + $0x18] sm:$0xf] %v10086
    %10279 = vst [vmem:[#allocation5 + $0x1c] sm:$0xf] %v10087
    %10280 = vst [vmem:[#allocation5 + $0x20] sm:$0xf] %v10088
    %10281 = vst [vmem:[#allocation5 + $0x24] sm:$0xf] %v10089
    %10282 = vst [vmem:[#allocation5 + $0x28] sm:$0xf] %v10090
    %10283 = vst [vmem:[#allocation5 + $0x2c] sm:$0xf] %v10091
    %10284 = vst [vmem:[#allocation5 + $0x30] sm:$0xf] %v10092
    %10285 = vst [vmem:[#allocation5 + $0x34] sm:$0xf] %v10093
    %10286 = vst [vmem:[#allocation5 + $0x38] sm:$0xf] %v10094
    %10287 = vst [vmem:[#allocation5 + $0x3c] sm:$0xf] %v10095
    %10288 = vst [vmem:[#allocation5 + $0x40] sm:$0xf] %v10096
    %10289 = vst [vmem:[#allocation5 + $0x44] sm:$0xf] %v10097
    %10290 = vst [vmem:[#allocation5 + $0x48] sm:$0xf] %v10098
    %10291 = vst [vmem:[#allocation5 + $0x4c] sm:$0xf] %v10099
    %10292 = vst [vmem:[#allocation5 + $0x50] sm:$0xf] %v10100
    %10293 = vst [vmem:[#allocation5 + $0x54] sm:$0xf] %v10101
    %10294 = vst [vmem:[#allocation5 + $0x58] sm:$0xf] %v10102
    %10295 = vst [vmem:[#allocation5 + $0x5c] sm:$0xf] %v10103
    %10296 = vst [vmem:[#allocation5 + $0x60] sm:$0xf] %v10104
    %10297 = vst [vmem:[#allocation5 + $0x64] sm:$0xf] %v10105
    %10298 = vst [vmem:[#allocation5 + $0x68] sm:$0xf] %v10106
    %10299 = vst [vmem:[#allocation5 + $0x6c] sm:$0xf] %v10107
    %10300 = vst [vmem:[#allocation5 + $0x70] sm:$0xf] %v10108
    %10301 = vst [vmem:[#allocation5 + $0x74] sm:$0xf] %v10109
    %10302 = vst [vmem:[#allocation5 + $0x78] sm:$0xf] %v10110
    %10303 = vst [vmem:[#allocation5 + $0x7c] sm:$0xf] %v10111
    %10304 = vst [vmem:[#allocation5 + $0x80] sm:$0xf] %v10112
    %10305 = vst [vmem:[#allocation5 + $0x84] sm:$0xf] %v10113
    %10306 = vst [vmem:[#allocation5 + $0x88] sm:$0xf] %v10114
    %10307 = vst [vmem:[#allocation5 + $0x8c] sm:$0xf] %v10115
    %10308 = vst [vmem:[#allocation5 + $0x90] sm:$0xf] %v10116
    %10309 = vst [vmem:[#allocation5 + $0x94] sm:$0xf] %v10117
    %10310 = vst [vmem:[#allocation5 + $0x98] sm:$0xf] %v10118
    %10311 = vst [vmem:[#allocation5 + $0x9c] sm:$0xf] %v10119
    %10312 = vst [vmem:[#allocation5 + $0xa0] sm:$0xf] %v10120
    %10313 = vst [vmem:[#allocation5 + $0xa4] sm:$0xf] %v10121
    %10314 = vst [vmem:[#allocation5 + $0xa8] sm:$0xf] %v10122
    %10315 = vst [vmem:[#allocation5 + $0xac] sm:$0xf] %v10123
    %10316 = vst [vmem:[#allocation5 + $0xb0] sm:$0xf] %v10124
    %10317 = vst [vmem:[#allocation5 + $0xb4] sm:$0xf] %v10125
    %10318 = vst [vmem:[#allocation5 + $0xb8] sm:$0xf] %v10126
    %10319 = vst [vmem:[#allocation5 + $0xbc] sm:$0xf] %v10127
    %10320 = vst [vmem:[#allocation5 + $0xc0] sm:$0xf] %v10128
    %10321 = vst [vmem:[#allocation5 + $0xc4] sm:$0xf] %v10129
    %10322 = vst [vmem:[#allocation5 + $0xc8] sm:$0xf] %v10130
    %10323 = vst [vmem:[#allocation5 + $0xcc] sm:$0xf] %v10131
    %10324 = vst [vmem:[#allocation5 + $0xd0] sm:$0xf] %v10132
    %10325 = vst [vmem:[#allocation5 + $0xd4] sm:$0xf] %v10133
    %10326 = vst [vmem:[#allocation5 + $0xd8] sm:$0xf] %v10134
    %10327 = vst [vmem:[#allocation5 + $0xdc] sm:$0xf] %v10135
    %10328 = vst [vmem:[#allocation5 + $0xe0] sm:$0xf] %v10136
    %10329 = vst [vmem:[#allocation5 + $0xe4] sm:$0xf] %v10137
    %10330 = vst [vmem:[#allocation5 + $0xe8] sm:$0xf] %v10138
    %10331 = vst [vmem:[#allocation5 + $0xec] sm:$0xf] %v10139
    %10332 = vst [vmem:[#allocation5 + $0xf0] sm:$0xf] %v10140
    %10333 = vst [vmem:[#allocation5 + $0xf4] sm:$0xf] %v10141
    %10334 = vst [vmem:[#allocation5 + $0xf8] sm:$0xf] %v10142
    %10335 = vst [vmem:[#allocation5 + $0xfc] sm:$0xf] %v10143
    %10336 = vst [vmem:[#allocation5 + $0x100] sm:$0xf] %v10144
    %10337 = vst [vmem:[#allocation5 + $0x104] sm:$0xf] %v10145
    %10338 = vst [vmem:[#allocation5 + $0x108] sm:$0xf] %v10146
    %10339 = vst [vmem:[#allocation5 + $0x10c] sm:$0xf] %v10147
    %10340 = vst [vmem:[#allocation5 + $0x110] sm:$0xf] %v10148
    %10341 = vst [vmem:[#allocation5 + $0x114] sm:$0xf] %v10149
    %10342 = vst [vmem:[#allocation5 + $0x118] sm:$0xf] %v10150
    %10343 = vst [vmem:[#allocation5 + $0x11c] sm:$0xf] %v10151
    %10344 = vst [vmem:[#allocation5 + $0x120] sm:$0xf] %v10152
    %10345 = vst [vmem:[#allocation5 + $0x124] sm:$0xf] %v10153
    %10346 = vst [vmem:[#allocation5 + $0x128] sm:$0xf] %v10154
    %10347 = vst [vmem:[#allocation5 + $0x12c] sm:$0xf] %v10155
    %10348 = vst [vmem:[#allocation5 + $0x130] sm:$0xf] %v10156
    %10349 = vst [vmem:[#allocation5 + $0x134] sm:$0xf] %v10157
    %10350 = vst [vmem:[#allocation5 + $0x138] sm:$0xf] %v10158
    %10351 = vst [vmem:[#allocation5 + $0x13c] sm:$0xf] %v10159
    %10352 = vst [vmem:[#allocation5 + $0x140] sm:$0xf] %v10160
    %10353 = vst [vmem:[#allocation5 + $0x144] sm:$0xf] %v10161
    %10354 = vst [vmem:[#allocation5 + $0x148] sm:$0xf] %v10162
    %10355 = vst [vmem:[#allocation5 + $0x14c] sm:$0xf] %v10163
    %10356 = vst [vmem:[#allocation5 + $0x150] sm:$0xf] %v10164
    %10357 = vst [vmem:[#allocation5 + $0x154] sm:$0xf] %v10165
    %10358 = vst [vmem:[#allocation5 + $0x158] sm:$0xf] %v10166
    %10359 = vst [vmem:[#allocation5 + $0x15c] sm:$0xf] %v10167
    %10360 = vst [vmem:[#allocation5 + $0x160] sm:$0xf] %v10168
    %10361 = vst [vmem:[#allocation5 + $0x164] sm:$0xf] %v10169
    %10362 = vst [vmem:[#allocation5 + $0x168] sm:$0xf] %v10170
    %10363 = vst [vmem:[#allocation5 + $0x16c] sm:$0xf] %v10171
    %10364 = vst [vmem:[#allocation5 + $0x170] sm:$0xf] %v10172
    %10365 = vst [vmem:[#allocation5 + $0x174] sm:$0xf] %v10173
    %10366 = vst [vmem:[#allocation5 + $0x178] sm:$0xf] %v10174
    %10367 = vst [vmem:[#allocation5 + $0x17c] sm:$0xf] %v10175
    %10368 = vst [vmem:[#allocation5 + $0x180] sm:$0xf] %v10176
    %10369 = vst [vmem:[#allocation5 + $0x184] sm:$0xf] %v10177
    %10370 = vst [vmem:[#allocation5 + $0x188] sm:$0xf] %v10178
    %10371 = vst [vmem:[#allocation5 + $0x18c] sm:$0xf] %v10179
    %10372 = vst [vmem:[#allocation5 + $0x190] sm:$0xf] %v10180
    %10373 = vst [vmem:[#allocation5 + $0x194] sm:$0xf] %v10181
    %10374 = vst [vmem:[#allocation5 + $0x198] sm:$0xf] %v10182
    %10375 = vst [vmem:[#allocation5 + $0x19c] sm:$0xf] %v10183
    %10376 = vst [vmem:[#allocation5 + $0x1a0] sm:$0xf] %v10184
    %10377 = vst [vmem:[#allocation5 + $0x1a4] sm:$0xf] %v10185
    %10378 = vst [vmem:[#allocation5 + $0x1a8] sm:$0xf] %v10186
    %10379 = vst [vmem:[#allocation5 + $0x1ac] sm:$0xf] %v10187
    %10380 = vst [vmem:[#allocation5 + $0x1b0] sm:$0xf] %v10188
    %10381 = vst [vmem:[#allocation5 + $0x1b4] sm:$0xf] %v10189
    %10382 = vst [vmem:[#allocation5 + $0x1b8] sm:$0xf] %v10190
    %10383 = vst [vmem:[#allocation5 + $0x1bc] sm:$0xf] %v10191
    %10384 = vst [vmem:[#allocation5 + $0x1c0] sm:$0xf] %v10192
    %10385 = vst [vmem:[#allocation5 + $0x1c4] sm:$0xf] %v10193
    %10386 = vst [vmem:[#allocation5 + $0x1c8] sm:$0xf] %v10194
    %10387 = vst [vmem:[#allocation5 + $0x1cc] sm:$0xf] %v10195
    %10388 = vst [vmem:[#allocation5 + $0x1d0] sm:$0xf] %v10196
    %10389 = vst [vmem:[#allocation5 + $0x1d4] sm:$0xf] %v10197
    %10390 = vst [vmem:[#allocation5 + $0x1d8] sm:$0xf] %v10198
    %10391 = vst [vmem:[#allocation5 + $0x1dc] sm:$0xf] %v10199
    %10392 = vst [vmem:[#allocation5 + $0x1e0] sm:$0xf] %v10200
    %10393 = vst [vmem:[#allocation5 + $0x1e4] sm:$0xf] %v10201
    %10394 = vst [vmem:[#allocation5 + $0x1e8] sm:$0xf] %v10202
    %10395 = vst [vmem:[#allocation5 + $0x1ec] sm:$0xf] %v10203
    %10396 = vst [vmem:[#allocation5 + $0x1f0] sm:$0xf] %v10204
    %10397 = vst [vmem:[#allocation5 + $0x1f4] sm:$0xf] %v10205
    %10398 = vst [vmem:[#allocation5 + $0x1f8] sm:$0xf] %v10206
    %10399 = vst [vmem:[#allocation5 + $0x1fc] sm:$0xf] %v10207
    %10400 = vst [vmem:[#allocation5 + $0x200] sm:$0xf] %v10208
    %10401 = vst [vmem:[#allocation5 + $0x204] sm:$0xf] %v10209
    %10402 = vst [vmem:[#allocation5 + $0x208] sm:$0xf] %v10210
    %10403 = vst [vmem:[#allocation5 + $0x20c] sm:$0xf] %v10211
    %10404 = vst [vmem:[#allocation5 + $0x210] sm:$0xf] %v10212
    %10405 = vst [vmem:[#allocation5 + $0x214] sm:$0xf] %v10213
    %10406 = vst [vmem:[#allocation5 + $0x218] sm:$0xf] %v10214
    %10407 = vst [vmem:[#allocation5 + $0x21c] sm:$0xf] %v10215
    %10408 = vst [vmem:[#allocation5 + $0x220] sm:$0xf] %v10216
    %10409 = vst [vmem:[#allocation5 + $0x224] sm:$0xf] %v10217
    %10410 = vst [vmem:[#allocation5 + $0x228] sm:$0xf] %v10218
    %10411 = vst [vmem:[#allocation5 + $0x22c] sm:$0xf] %v10219
    %10412 = vst [vmem:[#allocation5 + $0x230] sm:$0xf] %v10220
    %10413 = vst [vmem:[#allocation5 + $0x234] sm:$0xf] %v10221
    %10414 = vst [vmem:[#allocation5 + $0x238] sm:$0xf] %v10222
    %10415 = vst [vmem:[#allocation5 + $0x23c] sm:$0xf] %v10223
    %10416 = vst [vmem:[#allocation5 + $0x240] sm:$0xf] %v10224
    %10417 = vst [vmem:[#allocation5 + $0x244] sm:$0xf] %v10225
    %10418 = vst [vmem:[#allocation5 + $0x248] sm:$0xf] %v10226
    %10419 = vst [vmem:[#allocation5 + $0x24c] sm:$0xf] %v10227
    %10420 = vst [vmem:[#allocation5 + $0x250] sm:$0xf] %v10228
    %10421 = vst [vmem:[#allocation5 + $0x254] sm:$0xf] %v10229
    %10422 = vst [vmem:[#allocation5 + $0x258] sm:$0xf] %v10230
    %10423 = vst [vmem:[#allocation5 + $0x25c] sm:$0xf] %v10231
    %10424 = vst [vmem:[#allocation5 + $0x260] sm:$0xf] %v10232
    %10425 = vst [vmem:[#allocation5 + $0x264] sm:$0xf] %v10233
    %10426 = vst [vmem:[#allocation5 + $0x268] sm:$0xf] %v10234
    %10427 = vst [vmem:[#allocation5 + $0x26c] sm:$0xf] %v10235
    %10428 = vst [vmem:[#allocation5 + $0x270] sm:$0xf] %v10236
    %10429 = vst [vmem:[#allocation5 + $0x274] sm:$0xf] %v10237
    %10430 = vst [vmem:[#allocation5 + $0x278] sm:$0xf] %v10238
    %10431 = vst [vmem:[#allocation5 + $0x27c] sm:$0xf] %v10239
    %10432 = vst [vmem:[#allocation5 + $0x280] sm:$0xf] %v10240
    %10433 = vst [vmem:[#allocation5 + $0x284] sm:$0xf] %v10241
    %10434 = vst [vmem:[#allocation5 + $0x288] sm:$0xf] %v10242
    %10435 = vst [vmem:[#allocation5 + $0x28c] sm:$0xf] %v10243
    %10436 = vst [vmem:[#allocation5 + $0x290] sm:$0xf] %v10244
    %10437 = vst [vmem:[#allocation5 + $0x294] sm:$0xf] %v10245
    %10438 = vst [vmem:[#allocation5 + $0x298] sm:$0xf] %v10246
    %10439 = vst [vmem:[#allocation5 + $0x29c] sm:$0xf] %v10247
    %10440 = vst [vmem:[#allocation5 + $0x2a0] sm:$0xf] %v10248
    %10441 = vst [vmem:[#allocation5 + $0x2a4] sm:$0xf] %v10249
    %10442 = vst [vmem:[#allocation5 + $0x2a8] sm:$0xf] %v10250
    %10443 = vst [vmem:[#allocation5 + $0x2ac] sm:$0xf] %v10251
    %10444 = vst [vmem:[#allocation5 + $0x2b0] sm:$0xf] %v10252
    %10445 = vst [vmem:[#allocation5 + $0x2b4] sm:$0xf] %v10253
    %10446 = vst [vmem:[#allocation5 + $0x2b8] sm:$0xf] %v10254
    %10447 = vst [vmem:[#allocation5 + $0x2bc] sm:$0xf] %v10255
    %10448 = vst [vmem:[#allocation5 + $0x2c0] sm:$0xf] %v10256
    %10449 = vst [vmem:[#allocation5 + $0x2c4] sm:$0xf] %v10257
    %10450 = vst [vmem:[#allocation5 + $0x2c8] sm:$0xf] %v10258
    %10451 = vst [vmem:[#allocation5 + $0x2cc] sm:$0xf] %v10259
    %10452 = vst [vmem:[#allocation5 + $0x2d0] sm:$0xf] %v10260
    %10453 = vst [vmem:[#allocation5 + $0x2d4] sm:$0xf] %v10261
    %10454 = vst [vmem:[#allocation5 + $0x2d8] sm:$0xf] %v10262
    %10455 = vst [vmem:[#allocation5 + $0x2dc] sm:$0xf] %v10263
    %10456 = vst [vmem:[#allocation5 + $0x2e0] sm:$0xf] %v10264
    %10457 = vst [vmem:[#allocation5 + $0x2e4] sm:$0xf] %v10265
    %10458 = vst [vmem:[#allocation5 + $0x2e8] sm:$0xf] %v10266
    %10459 = vst [vmem:[#allocation5 + $0x2ec] sm:$0xf] %v10267
    %10460 = vst [vmem:[#allocation5 + $0x2f0] sm:$0xf] %v10268
    %10461 = vst [vmem:[#allocation5 + $0x2f4] sm:$0xf] %v10269
    %10462 = vst [vmem:[#allocation5 + $0x2f8] sm:$0xf] %v10270
    %10463 = vst [vmem:[#allocation5 + $0x2fc] sm:$0xf] %v10271
    // Predicated region
    $region18: #{tpu_custom_call.1} parent=1 // pred_check
      _
    $region19: #{tpu_custom_call.1} parent=1 // pred_check_branch
      %10465 = sbr.rel (0) target = $region21
    $region20: #{tpu_custom_call.1} parent=1 // pred_region
      %10467 = vsyncadd [#allocation4], 0
      %s10468 = sshll.u32 [#allocation5], 4
      %s10469 = int_to_ptr.vmem [resolvable:$true] %s10468
      %s10470 = sshll.u32 %s3, 4
      %s10471 = int_to_ptr.hbm [resolvable:$true] %s10470
      %10476 = dma.vmem_to_hbm [thread:$0]  %s10469, 12288, %s10471, [#allocation4], 64, 64, 4
    $region21: #{tpu_custom_call.1} parent=1 // pred_fallthru
      _
    // Predicated region
    $region22: #{tpu_custom_call.1} parent=1 // pred_check
      _
    $region23: #{tpu_custom_call.1} parent=1 // pred_check_branch
      %10478 = sbr.rel (0) target = $region25
    $region24: #{tpu_custom_call.1} parent=1 // pred_region
      %10480 = dma.done [#allocation4], 12288
    $region25: #{tpu_custom_call.1} parent=1 // pred_fallthru
      _
    %10481 = vsyncpa [#allocation3], 1
    %10482 = vsyncpa [#allocation4], 1

</llo_original>
